<compile_context>
chip_gen: v7x
topology: tpu7x:2x2x1
jax: 0.10.0
libtpu: 0.0.40
codegen_flags: <defaults>
</compile_context>

<pallas_src>
import functools

import jax
import jax.numpy as jnp
from jax.experimental import pallas as pl
from jax.experimental.pallas import tpu as pltpu


LANE = 128


def _round_up(x, m):
    return (x + m - 1) // m * m


# ----------------------------------------------------------------------------
# Fused kernel: concat + (im2col -> deep MXU dot -> bias -> ReLU) x 2, one image
# per grid step.  All intermediates live in VMEM.
# ----------------------------------------------------------------------------
def _up_doubleconv_kernel(x2_ref, x1_ref, w1_ref, b1_ref, w2_ref, b2_ref, o_ref,
                          xpad_ref, col1_ref, mpad_ref, col2_ref,
                          *, H, W, Ccat, Cinp, Midp, off):
    # x2_ref : (H*W, C2)  bf16      x1_ref : (H*W, C1)  bf16
    # w1_ref : (9*Cinp, Midp) bf16  b1_ref : (1, Midp)  f32
    # w2_ref : (9*Midp, Coutp) bf16 b2_ref : (1, Coutp) f32
    # o_ref  : (H*W, Coutp) f32
    # xpad_ref: (P, Cinp) bf16   zero-haloed flat concat input
    # col1_ref: (HWp, 9*Cinp) bf16   im2col slab for conv1
    # mpad_ref: (P, Midp) bf16   zero-haloed flat conv1 output
    # col2_ref: (HWp, 9*Midp) bf16   im2col slab for conv2
    HW = H * W
    HWp = col1_ref.shape[0]

    # Zero the halo rows / padded lanes (read by boundary taps & padded K cols).
    xpad_ref[...] = jnp.zeros_like(xpad_ref)
    mpad_ref[...] = jnp.zeros_like(mpad_ref)
    if HWp != HW:
        col1_ref[...] = jnp.zeros_like(col1_ref)
        col2_ref[...] = jnp.zeros_like(col2_ref)

    # In-VMEM channel concat (torch.cat([x2, x1], dim=1)) -- never hits HBM.
    xcat = jnp.concatenate([x2_ref[...], x1_ref[...]], axis=-1)
    xpad_ref[off:off + HW, 0:Ccat] = xcat

    # Masks that zero the taps which wrap around the row-flattened image borders.
    xcol = jax.lax.broadcasted_iota(jnp.int32, (HW, 1), 0) % W
    left_ok = xcol != 0           # output x == 0 has no (x-1) neighbour
    right_ok = xcol != (W - 1)    # output x == W-1 has no (x+1) neighbour

    def build_cols(src_ref, dst_ref, cp):
        # Assemble the (HW, 9*cp) im2col slab from 9 shifted views of the
        # zero-haloed flat buffer; (dy, dx, channel) order matches the packed
        # weight layout.
        base = off - (W + 1)
        for dy in range(3):
            for dx in range(3):
                t = dy * 3 + dx
                s = base + dy * W + dx
                tap = src_ref[s:s + HW, :]
                if dx == 0:
                    tap = jnp.where(left_ok, tap, jnp.zeros_like(tap))
                elif dx == 2:
                    tap = jnp.where(right_ok, tap, jnp.zeros_like(tap))
                dst_ref[0:HW, t * cp:(t + 1) * cp] = tap

    # ---------------- conv1: one deep MXU contraction + bias + ReLU ----------
    build_cols(xpad_ref, col1_ref, Cinp)
    h = jnp.dot(col1_ref[...], w1_ref[...], preferred_element_type=jnp.float32)
    h = jnp.maximum(h + b1_ref[...], 0.0)
    # conv1 output stays in VMEM (bf16) and feeds conv2 directly.
    mpad_ref[off:off + HW, :] = h[0:HW].astype(mpad_ref.dtype)

    # ---------------- conv2: one deep MXU contraction + bias + ReLU ----------
    build_cols(mpad_ref, col2_ref, Midp)
    y = jnp.dot(col2_ref[...], w2_ref[...], preferred_element_type=jnp.float32)
    y = jnp.maximum(y + b2_ref[...], 0.0)
    o_ref[...] = y[0:HW].astype(o_ref.dtype)


# ----------------------------------------------------------------------------
# Weight / bias packing (done once in JAX; zero padding is inert in the dot).
# ----------------------------------------------------------------------------
def _pack_w(w, cin_p, cout_p):
    kh, kw, cin, cout = w.shape
    wp = jnp.pad(w, ((0, 0), (0, 0), (0, cin_p - cin), (0, cout_p - cout)))
    return wp.reshape(kh * kw * cin_p, cout_p).astype(jnp.bfloat16)


def _pack_b(b, cout_p):
    return jnp.pad(b, (0, cout_p - b.shape[0])).reshape(1, cout_p).astype(jnp.float32)


# ----------------------------------------------------------------------------
# Plain-JAX layout glue (negligible FLOPs/bytes vs. the convolutions).
# ----------------------------------------------------------------------------
def _interp_matrix(n):
    """Row-interpolation matrix for x2 bilinear upsample, align_corners=True."""
    m = 2 * n
    if n == 1:
        return jnp.ones((m, 1), jnp.float32)
    src = jnp.arange(m, dtype=jnp.float32) * (n - 1) / (m - 1)
    i0 = jnp.clip(jnp.floor(src).astype(jnp.int32), 0, n - 2)
    frac = src - i0.astype(jnp.float32)
    mat = jnp.zeros((m, n), jnp.float32)
    mat = mat.at[jnp.arange(m), i0].set(1.0 - frac)
    mat = mat.at[jnp.arange(m), i0 + 1].add(frac)
    return mat


def upsample_bilinear_x2(x):
    # matches nn.Upsample(scale_factor=2, mode='bilinear', align_corners=True)
    Mh = _interp_matrix(x.shape[1])
    Mw = _interp_matrix(x.shape[2])
    y = jnp.einsum('ph,bhwc->bpwc', Mh, x)
    y = jnp.einsum('qw,bpwc->bpqc', Mw, y)
    return y


# ----------------------------------------------------------------------------
# Up module forward (NCHW in/out, to match the PyTorch interface).
# ----------------------------------------------------------------------------
def up_forward(x1_nchw, x2_nchw, params):
    x1 = jnp.transpose(x1_nchw, (0, 2, 3, 1))     # NCHW -> NHWC
    x2 = jnp.transpose(x2_nchw, (0, 2, 3, 1))

    x1 = upsample_bilinear_x2(x1)
    dY = x2.shape[1] - x1.shape[1]
    dX = x2.shape[2] - x1.shape[2]
    if dY != 0 or dX != 0:                         # F.pad([dX//2, dX-dX//2, dY//2, dY-dY//2])
        x1 = jnp.pad(x1, ((0, 0),
                          (dY // 2, dY - dY // 2),
                          (dX // 2, dX - dX // 2),
                          (0, 0)))

    B, H, W, C2 = x2.shape
    C1 = x1.shape[-1]
    w1, b1, w2, b2 = params['w1'], params['b1'], params['w2'], params['b2']
    Cin = C2 + C1                                   # channels after torch.cat([x2, x1])
    Mid = w1.shape[-1]
    Cout = w2.shape[-1]
    assert w1.shape == (3, 3, Cin, Mid) and w2.shape == (3, 3, Mid, Cout)

    Cinp = _round_up(Cin, LANE)
    Midp = _round_up(Mid, LANE)
    Coutp = _round_up(Cout, LANE)
    HW = H * W
    HWp = _round_up(HW, 8)
    off = _round_up(W + 1, 8)                      # image start row inside the haloed buffer
    P = _round_up(off + HW + W + 1, 8)             # haloed flat buffer rows

    # bf16 activations halve the HBM traffic; accumulation/bias/ReLU stay f32
    # in-kernel (expect ~1e-2 relative deviation vs an f32 torch reference).
    x2_flat = x2.reshape(B, HW, C2).astype(jnp.bfloat16)
    x1_flat = x1.reshape(B, HW, C1).astype(jnp.bfloat16)
    w1p = _pack_w(w1, Cinp, Midp)
    w2p = _pack_w(w2, Midp, Coutp)
    b1p = _pack_b(b1, Midp)
    b2p = _pack_b(b2, Coutp)

    kernel = functools.partial(_up_doubleconv_kernel, H=H, W=W, Ccat=Cin,
                               Cinp=Cinp, Midp=Midp, off=off)

    flops = 2 * B * HW * 9 * (Cin * Mid + Mid * Cout)
    bytes_accessed = ((x2_flat.size + x1_flat.size + w1p.size + w2p.size) * 2
                      + (b1p.size + b2p.size) * 4 + B * HW * Coutp * 4)

    out = pl.pallas_call(
        kernel,
        out_shape=jax.ShapeDtypeStruct((B, HW, Coutp), jnp.float32),
        grid_spec=pltpu.PrefetchScalarGridSpec(
            num_scalar_prefetch=0,
            grid=(B,),
            in_specs=[
                pl.BlockSpec((None, HW, C2), lambda b: (b, 0, 0)),
                pl.BlockSpec((None, HW, C1), lambda b: (b, 0, 0)),
                # whole-array weight/bias blocks: constant index_map -> DMA'd once,
                # fully VMEM-resident across the batch grid.
                pl.BlockSpec((9 * Cinp, Midp), lambda b: (0, 0)),
                pl.BlockSpec((1, Midp), lambda b: (0, 0)),
                pl.BlockSpec((9 * Midp, Coutp), lambda b: (0, 0)),
                pl.BlockSpec((1, Coutp), lambda b: (0, 0)),
            ],
            out_specs=pl.BlockSpec((None, HW, Coutp), lambda b: (b, 0, 0)),
            scratch_shapes=[
                pltpu.VMEM((P, Cinp), jnp.bfloat16),        # haloed flat concat input
                pltpu.VMEM((HWp, 9 * Cinp), jnp.bfloat16),  # conv1 im2col slab
                pltpu.VMEM((P, Midp), jnp.bfloat16),        # haloed flat conv1 output
                pltpu.VMEM((HWp, 9 * Midp), jnp.bfloat16),  # conv2 im2col slab
            ],
        ),
        compiler_params=pltpu.CompilerParams(
            dimension_semantics=("parallel",),              # batch images across TCs
            vmem_limit_bytes=48 * 1024 * 1024,              # safe on v5e/v6e/v7x
        ),
        cost_estimate=pl.CostEstimate(flops=flops, transcendentals=0,
                                      bytes_accessed=bytes_accessed),
    )(x2_flat, x1_flat, w1p, b1p, w2p, b2p)

    out = out[:, :, :Cout].reshape(B, H, W, Cout)
    return jnp.transpose(out, (0, 3, 1, 2))        # NHWC -> NCHW


# ----------------------------------------------------------------------------
# Pure-JAX f32 reference (for a loose functional check against the bf16 kernel).
# ----------------------------------------------------------------------------
def up_forward_ref(x1_nchw, x2_nchw, params):
    x1 = jnp.transpose(x1_nchw, (0, 2, 3, 1))
    x2 = jnp.transpose(x2_nchw, (0, 2, 3, 1))
    x1 = upsample_bilinear_x2(x1)
    dY = x2.shape[1] - x1.shape[1]
    dX = x2.shape[2] - x1.shape[2]
    if dY != 0 or dX != 0:
        x1 = jnp.pad(x1, ((0, 0), (dY // 2, dY - dY // 2),
                          (dX // 2, dX - dX // 2), (0, 0)))
    x = jnp.concatenate([x2, x1], axis=-1)

    def conv(x, w, b):
        y = jax.lax.conv_general_dilated(
            x, w, (1, 1), 'SAME', dimension_numbers=('NHWC', 'HWIO', 'NHWC'))
        return jnp.maximum(y + b, 0.0)

    x = conv(x, params['w1'], params['b1'])
    x = conv(x, params['w2'], params['b2'])
    return jnp.transpose(x, (0, 3, 1, 2))


# ----------------------------------------------------------------------------
# Deterministic synthetic parameter init.
# ----------------------------------------------------------------------------
def _init_conv(key, kh, kw, cin, cout):
    kwk, kbk = jax.random.split(key)
    fan_in = kh * kw * cin
    w = jax.random.normal(kwk, (kh, kw, cin, cout), jnp.float32) / jnp.sqrt(fan_in)
    b = jax.random.normal(kbk, (cout,), jnp.float32) * 0.01
    return w, b


if __name__ == "__main__":
    # Up(in_channels=128, out_channels=64, bilinear=True, single=False, norm='none')
    in_channels, out_channels = 128, 64
    mid_channels = in_channels // 2
    B = 2
    C1, H1, W1 = 64, 8, 8                      # x1: low-res decoder feature
    C2, H2, W2 = in_channels - C1, 16, 16      # x2: skip connection at 2x resolution

    key = jax.random.PRNGKey(0)
    k_x1, k_x2, k_p = jax.random.split(key, 3)
    x1 = jax.random.normal(k_x1, (B, C1, H1, W1), jnp.float32)
    x2 = jax.random.normal(k_x2, (B, C2, H2, W2), jnp.float32)

    k1, k2 = jax.random.split(k_p)
    w1, b1 = _init_conv(k1, 3, 3, in_channels, mid_channels)
    w2, b2 = _init_conv(k2, 3, 3, mid_channels, out_channels)
    params = dict(w1=w1, b1=b1, w2=w2, b2=b2)

    out = jax.jit(up_forward)(x1, x2, params)
    jax.block_until_ready(out)
    assert out.shape == (B, out_channels, H2, W2), out.shape
    assert bool(jnp.all(jnp.isfinite(out)))

    # Loose functional check (bf16 matmul operands => ~1e-2 level deviation).
    ref = jax.jit(up_forward_ref)(x1, x2, params)
    max_diff = float(jnp.max(jnp.abs(out - ref)))
    assert max_diff < 0.3, f"max |kernel - ref| = {max_diff}"

    print("KERNEL_OK")
</pallas_src>

<mosaic_0001>
module attributes {stable_mosaic.version = 11 : i64} {
  func.func private @main(%arg0: i32) attributes {dimension_semantics = [#tpu.dimension_semantics<core_parallel>], iteration_bounds = array<i64: 2>, tpu.core_type = #tpu.core_type<sc_scalar_subcore>, window_params = []} {
    return
  }
}

module attributes {stable_mosaic.version = 11 : i64} {
  func.func private @main(%arg0: i32) attributes {dimension_semantics = [#tpu.dimension_semantics<core_parallel>], iteration_bounds = array<i64: 2>, tpu.core_type = #tpu.core_type<sc_scalar_subcore>, window_params = []} {
    return
  }
}

module attributes {stable_mosaic.version = 11 : i64} {
  func.func @_up_doubleconv_kernel(%arg0: i32, %arg1: memref<1x256x64xbf16, #tpu.memory_space<vmem>>, %arg2: memref<1x256x64xbf16, #tpu.memory_space<vmem>>, %arg3: memref<1152x128xbf16, #tpu.memory_space<vmem>>, %arg4: memref<1x128xf32, #tpu.memory_space<vmem>>, %arg5: memref<1152x128xbf16, #tpu.memory_space<vmem>>, %arg6: memref<1x128xf32, #tpu.memory_space<vmem>>, %arg7: memref<1x256x128xf32, #tpu.memory_space<vmem>>, %arg8: memref<304x128xbf16, #tpu.memory_space<vmem>>, %arg9: memref<256x1152xbf16, #tpu.memory_space<vmem>>, %arg10: memref<304x128xbf16, #tpu.memory_space<vmem>>, %arg11: memref<256x1152xbf16, #tpu.memory_space<vmem>>) attributes {dimension_semantics = [#tpu.dimension_semantics<parallel>], iteration_bounds = array<i64: 2>, scalar_prefetch = 0 : i64, scratch_operands = 4 : i64, tpu.core_type = #tpu.core_type<tc>, window_params = [{transform_indices = @transform_0, window_bounds = array<i64: 1, 256, 64>}, {transform_indices = @transform_1, window_bounds = array<i64: 1, 256, 64>}, {pipeline_mode = #tpu.pipeline_mode<synchronous>, transform_indices = @transform_2, window_bounds = array<i64: 1152, 128>}, {pipeline_mode = #tpu.pipeline_mode<synchronous>, transform_indices = @transform_3, window_bounds = array<i64: 1, 128>}, {pipeline_mode = #tpu.pipeline_mode<synchronous>, transform_indices = @transform_4, window_bounds = array<i64: 1152, 128>}, {pipeline_mode = #tpu.pipeline_mode<synchronous>, transform_indices = @transform_5, window_bounds = array<i64: 1, 128>}, {transform_indices = @transform_6, window_bounds = array<i64: 1, 256, 128>}]} {
    %cst = arith.constant 0.000000e+00 : bf16
    %0 = vector.broadcast %cst : bf16 to vector<304x128xbf16>
    %c0 = arith.constant 0 : index
    %c0_0 = arith.constant 0 : index
    %1 = vector.load %arg8[%c0, %c0_0] : memref<304x128xbf16, #tpu.memory_space<vmem>>, vector<304x128xbf16>
    tpu.vector_store %arg8[%c0, %c0_0], %0 {strides = array<i32>} : memref<304x128xbf16, #tpu.memory_space<vmem>>, vector<304x128xbf16>,
    %cst_1 = arith.constant 0.000000e+00 : bf16
    %2 = vector.broadcast %cst_1 : bf16 to vector<304x128xbf16>
    %c0_2 = arith.constant 0 : index
    %c0_3 = arith.constant 0 : index
    %3 = vector.load %arg10[%c0_2, %c0_3] : memref<304x128xbf16, #tpu.memory_space<vmem>>, vector<304x128xbf16>
    tpu.vector_store %arg10[%c0_2, %c0_3], %2 {strides = array<i32>} : memref<304x128xbf16, #tpu.memory_space<vmem>>, vector<304x128xbf16>,
    %c0_4 = arith.constant 0 : index
    %c0_5 = arith.constant 0 : index
    %c0_6 = arith.constant 0 : index
    %4 = vector.load %arg1[%c0_4, %c0_5, %c0_6] : memref<1x256x64xbf16, #tpu.memory_space<vmem>>, vector<1x256x64xbf16>
    %5 = vector.shape_cast %4 : vector<1x256x64xbf16> to vector<256x64xbf16>
    %c0_7 = arith.constant 0 : index
    %c0_8 = arith.constant 0 : index
    %c0_9 = arith.constant 0 : index
    %6 = vector.load %arg2[%c0_7, %c0_8, %c0_9] : memref<1x256x64xbf16, #tpu.memory_space<vmem>>, vector<1x256x64xbf16>
    %7 = vector.shape_cast %6 : vector<1x256x64xbf16> to vector<256x64xbf16>
    %8 = tpu.concatenate %5, %7 in 1 : vector<256x64xbf16>, vector<256x64xbf16> -> vector<256x128xbf16>
    %c24 = arith.constant 24 : index
    %c0_10 = arith.constant 0 : index
    %9 = vector.load %arg8[%c24, %c0_10] : memref<304x128xbf16, #tpu.memory_space<vmem>>, vector<256x128xbf16>
    tpu.vector_store %arg8[%c24, %c0_10], %8 {strides = array<i32>} : memref<304x128xbf16, #tpu.memory_space<vmem>>, vector<256x128xbf16>,
    %10 = tpu.iota {dimensions = array<i32: 0>} : vector<256x1xi32>
    %c16_i32 = arith.constant 16 : i32
    %c0_i32 = arith.constant 0 : i32
    %11 = arith.cmpi eq, %c16_i32, %c0_i32 : i32
    %c1_i32 = arith.constant 1 : i32
    %12 = arith.select %11, %c1_i32, %c16_i32 : i32
    %13 = vector.broadcast %12 : i32 to vector<256x1xi32>
    %14 = arith.remsi %10, %13 : vector<256x1xi32>
    %c0_i32_11 = arith.constant 0 : i32
    %15 = vector.broadcast %c0_i32_11 : i32 to vector<256x1xi32>
    %16 = arith.cmpi ne, %14, %15 : vector<256x1xi32>
    %c0_i32_12 = arith.constant 0 : i32
    %17 = vector.broadcast %c0_i32_12 : i32 to vector<256x1xi32>
    %18 = arith.cmpi slt, %14, %17 : vector<256x1xi32>
    %c0_i32_13 = arith.constant 0 : i32
    %19 = arith.cmpi slt, %12, %c0_i32_13 : i32
    %20 = vector.broadcast %19 : i1 to vector<256x1xi1>
    %21 = vector.broadcast %20 : vector<256x1xi1> to vector<256x1xi1>
    %22 = arith.xori %18, %21 : vector<256x1xi1>
    %23 = arith.andi %22, %16 : vector<256x1xi1>
    %24 = vector.broadcast %12 : i32 to vector<256x1xi32>
    %25 = arith.addi %14, %24 : vector<256x1xi32>
    %26 = arith.select %23, %25, %14 : vector<256x1xi1>, vector<256x1xi32>
    %c0_i32_14 = arith.constant 0 : i32
    %27 = vector.broadcast %c0_i32_14 : i32 to vector<256x1xi32>
    %28 = arith.cmpi ne, %26, %27 : vector<256x1xi32>
    %c15_i32 = arith.constant 15 : i32
    %29 = vector.broadcast %c15_i32 : i32 to vector<256x1xi32>
    %30 = arith.cmpi ne, %26, %29 : vector<256x1xi32>
    %c7 = arith.constant 7 : index
    %c0_15 = arith.constant 0 : index
    %31 = vector.load %arg8[%c7, %c0_15] : memref<304x128xbf16, #tpu.memory_space<vmem>>, vector<256x128xbf16>
    %cst_16 = arith.constant 0.000000e+00 : bf16
    %32 = vector.broadcast %cst_16 : bf16 to vector<256x128xbf16>
    %33 = vector.shape_cast %28 : vector<256x1xi1> to vector<256x1xi1>
    %34 = vector.broadcast %33 : vector<256x1xi1> to vector<256x128xi1>
    %35 = arith.select %34, %31, %32 : vector<256x128xi1>, vector<256x128xbf16>
    %c0_17 = arith.constant 0 : index
    %c0_18 = arith.constant 0 : index
    %36 = vector.load %arg9[%c0_17, %c0_18] : memref<256x1152xbf16, #tpu.memory_space<vmem>>, vector<256x128xbf16>
    tpu.vector_store %arg9[%c0_17, %c0_18], %35 {strides = array<i32>} : memref<256x1152xbf16, #tpu.memory_space<vmem>>, vector<256x128xbf16>,
    %c8 = arith.constant 8 : index
    %c0_19 = arith.constant 0 : index
    %37 = vector.load %arg8[%c8, %c0_19] : memref<304x128xbf16, #tpu.memory_space<vmem>>, vector<256x128xbf16>
    %c0_20 = arith.constant 0 : index
    %c128 = arith.constant 128 : index
    %38 = vector.load %arg9[%c0_20, %c128] : memref<256x1152xbf16, #tpu.memory_space<vmem>>, vector<256x128xbf16>
    tpu.vector_store %arg9[%c0_20, %c128], %37 {strides = array<i32>} : memref<256x1152xbf16, #tpu.memory_space<vmem>>, vector<256x128xbf16>,
    %c9 = arith.constant 9 : index
    %c0_21 = arith.constant 0 : index
    %39 = vector.load %arg8[%c9, %c0_21] : memref<304x128xbf16, #tpu.memory_space<vmem>>, vector<256x128xbf16>
    %cst_22 = arith.constant 0.000000e+00 : bf16
    %40 = vector.broadcast %cst_22 : bf16 to vector<256x128xbf16>
    %41 = vector.shape_cast %30 : vector<256x1xi1> to vector<256x1xi1>
    %42 = vector.broadcast %41 : vector<256x1xi1> to vector<256x128xi1>
    %43 = arith.select %42, %39, %40 : vector<256x128xi1>, vector<256x128xbf16>
    %c0_23 = arith.constant 0 : index
    %c256 = arith.constant 256 : index
    %44 = vector.load %arg9[%c0_23, %c256] : memref<256x1152xbf16, #tpu.memory_space<vmem>>, vector<256x128xbf16>
    tpu.vector_store %arg9[%c0_23, %c256], %43 {strides = array<i32>} : memref<256x1152xbf16, #tpu.memory_space<vmem>>, vector<256x128xbf16>,
    %c23 = arith.constant 23 : index
    %c0_24 = arith.constant 0 : index
    %45 = vector.load %arg8[%c23, %c0_24] : memref<304x128xbf16, #tpu.memory_space<vmem>>, vector<256x128xbf16>
    %cst_25 = arith.constant 0.000000e+00 : bf16
    %46 = vector.broadcast %cst_25 : bf16 to vector<256x128xbf16>
    %47 = vector.shape_cast %28 : vector<256x1xi1> to vector<256x1xi1>
    %48 = vector.broadcast %47 : vector<256x1xi1> to vector<256x128xi1>
    %49 = arith.select %48, %45, %46 : vector<256x128xi1>, vector<256x128xbf16>
    %c0_26 = arith.constant 0 : index
    %c384 = arith.constant 384 : index
    %50 = vector.load %arg9[%c0_26, %c384] : memref<256x1152xbf16, #tpu.memory_space<vmem>>, vector<256x128xbf16>
    tpu.vector_store %arg9[%c0_26, %c384], %49 {strides = array<i32>} : memref<256x1152xbf16, #tpu.memory_space<vmem>>, vector<256x128xbf16>,
    %c24_27 = arith.constant 24 : index
    %c0_28 = arith.constant 0 : index
    %51 = vector.load %arg8[%c24_27, %c0_28] : memref<304x128xbf16, #tpu.memory_space<vmem>>, vector<256x128xbf16>
    %c0_29 = arith.constant 0 : index
    %c512 = arith.constant 512 : index
    %52 = vector.load %arg9[%c0_29, %c512] : memref<256x1152xbf16, #tpu.memory_space<vmem>>, vector<256x128xbf16>
    tpu.vector_store %arg9[%c0_29, %c512], %51 {strides = array<i32>} : memref<256x1152xbf16, #tpu.memory_space<vmem>>, vector<256x128xbf16>,
    %c25 = arith.constant 25 : index
    %c0_30 = arith.constant 0 : index
    %53 = vector.load %arg8[%c25, %c0_30] : memref<304x128xbf16, #tpu.memory_space<vmem>>, vector<256x128xbf16>
    %cst_31 = arith.constant 0.000000e+00 : bf16
    %54 = vector.broadcast %cst_31 : bf16 to vector<256x128xbf16>
    %55 = vector.shape_cast %30 : vector<256x1xi1> to vector<256x1xi1>
    %56 = vector.broadcast %55 : vector<256x1xi1> to vector<256x128xi1>
    %57 = arith.select %56, %53, %54 : vector<256x128xi1>, vector<256x128xbf16>
    %c0_32 = arith.constant 0 : index
    %c640 = arith.constant 640 : index
    %58 = vector.load %arg9[%c0_32, %c640] : memref<256x1152xbf16, #tpu.memory_space<vmem>>, vector<256x128xbf16>
    tpu.vector_store %arg9[%c0_32, %c640], %57 {strides = array<i32>} : memref<256x1152xbf16, #tpu.memory_space<vmem>>, vector<256x128xbf16>,
    %c39 = arith.constant 39 : index
    %c0_33 = arith.constant 0 : index
    %59 = vector.load %arg8[%c39, %c0_33] : memref<304x128xbf16, #tpu.memory_space<vmem>>, vector<256x128xbf16>
    %cst_34 = arith.constant 0.000000e+00 : bf16
    %60 = vector.broadcast %cst_34 : bf16 to vector<256x128xbf16>
    %61 = vector.shape_cast %28 : vector<256x1xi1> to vector<256x1xi1>
    %62 = vector.broadcast %61 : vector<256x1xi1> to vector<256x128xi1>
    %63 = arith.select %62, %59, %60 : vector<256x128xi1>, vector<256x128xbf16>
    %c0_35 = arith.constant 0 : index
    %c768 = arith.constant 768 : index
    %64 = vector.load %arg9[%c0_35, %c768] : memref<256x1152xbf16, #tpu.memory_space<vmem>>, vector<256x128xbf16>
    tpu.vector_store %arg9[%c0_35, %c768], %63 {strides = array<i32>} : memref<256x1152xbf16, #tpu.memory_space<vmem>>, vector<256x128xbf16>,
    %c40 = arith.constant 40 : index
    %c0_36 = arith.constant 0 : index
    %65 = vector.load %arg8[%c40, %c0_36] : memref<304x128xbf16, #tpu.memory_space<vmem>>, vector<256x128xbf16>
    %c0_37 = arith.constant 0 : index
    %c896 = arith.constant 896 : index
    %66 = vector.load %arg9[%c0_37, %c896] : memref<256x1152xbf16, #tpu.memory_space<vmem>>, vector<256x128xbf16>
    tpu.vector_store %arg9[%c0_37, %c896], %65 {strides = array<i32>} : memref<256x1152xbf16, #tpu.memory_space<vmem>>, vector<256x128xbf16>,
    %c41 = arith.constant 41 : index
    %c0_38 = arith.constant 0 : index
    %67 = vector.load %arg8[%c41, %c0_38] : memref<304x128xbf16, #tpu.memory_space<vmem>>, vector<256x128xbf16>
    %cst_39 = arith.constant 0.000000e+00 : bf16
    %68 = vector.broadcast %cst_39 : bf16 to vector<256x128xbf16>
    %69 = vector.shape_cast %30 : vector<256x1xi1> to vector<256x1xi1>
    %70 = vector.broadcast %69 : vector<256x1xi1> to vector<256x128xi1>
    %71 = arith.select %70, %67, %68 : vector<256x128xi1>, vector<256x128xbf16>
    %c0_40 = arith.constant 0 : index
    %c1024 = arith.constant 1024 : index
    %72 = vector.load %arg9[%c0_40, %c1024] : memref<256x1152xbf16, #tpu.memory_space<vmem>>, vector<256x128xbf16>
    tpu.vector_store %arg9[%c0_40, %c1024], %71 {strides = array<i32>} : memref<256x1152xbf16, #tpu.memory_space<vmem>>, vector<256x128xbf16>,
    %c0_41 = arith.constant 0 : index
    %c0_42 = arith.constant 0 : index
    %73 = vector.load %arg9[%c0_41, %c0_42] : memref<256x1152xbf16, #tpu.memory_space<vmem>>, vector<256x1152xbf16>
    %c0_43 = arith.constant 0 : index
    %c0_44 = arith.constant 0 : index
    %74 = vector.load %arg3[%c0_43, %c0_44] : memref<1152x128xbf16, #tpu.memory_space<vmem>>, vector<1152x128xbf16>
    %cst_45 = arith.constant dense<0.000000e+00> : vector<256x128xf32>
    %75 = tpu.matmul %73, %74, %cst_45 {dimension_numbers = #tpu.dot_dimension_numbers<[1], [0], [0], [1], [0, 0, 1, 1], [], []>} : vector<256x1152xbf16>, vector<1152x128xbf16>, vector<256x128xf32> -> vector<256x128xf32>
    %c0_46 = arith.constant 0 : index
    %c0_47 = arith.constant 0 : index
    %76 = vector.load %arg4[%c0_46, %c0_47] : memref<1x128xf32, #tpu.memory_space<vmem>>, vector<1x128xf32>
    %77 = vector.broadcast %76 : vector<1x128xf32> to vector<256x128xf32>
    %78 = arith.addf %75, %77 : vector<256x128xf32>
    %cst_48 = arith.constant 0.000000e+00 : f32
    %79 = vector.broadcast %cst_48 : f32 to vector<256x128xf32>
    %80 = arith.maximumf %78, %79 : vector<256x128xf32>
    %81 = arith.truncf %80 : vector<256x128xf32> to vector<256x128xbf16>
    %c24_49 = arith.constant 24 : index
    %c0_50 = arith.constant 0 : index
    %82 = vector.load %arg10[%c24_49, %c0_50] : memref<304x128xbf16, #tpu.memory_space<vmem>>, vector<256x128xbf16>
    tpu.vector_store %arg10[%c24_49, %c0_50], %81 {strides = array<i32>} : memref<304x128xbf16, #tpu.memory_space<vmem>>, vector<256x128xbf16>,
    %c7_51 = arith.constant 7 : index
    %c0_52 = arith.constant 0 : index
    %83 = vector.load %arg10[%c7_51, %c0_52] : memref<304x128xbf16, #tpu.memory_space<vmem>>, vector<256x128xbf16>
    %cst_53 = arith.constant 0.000000e+00 : bf16
    %84 = vector.broadcast %cst_53 : bf16 to vector<256x128xbf16>
    %85 = vector.shape_cast %28 : vector<256x1xi1> to vector<256x1xi1>
    %86 = vector.broadcast %85 : vector<256x1xi1> to vector<256x128xi1>
    %87 = arith.select %86, %83, %84 : vector<256x128xi1>, vector<256x128xbf16>
    %c0_54 = arith.constant 0 : index
    %c0_55 = arith.constant 0 : index
    %88 = vector.load %arg11[%c0_54, %c0_55] : memref<256x1152xbf16, #tpu.memory_space<vmem>>, vector<256x128xbf16>
    tpu.vector_store %arg11[%c0_54, %c0_55], %87 {strides = array<i32>} : memref<256x1152xbf16, #tpu.memory_space<vmem>>, vector<256x128xbf16>,
    %c8_56 = arith.constant 8 : index
    %c0_57 = arith.constant 0 : index
    %89 = vector.load %arg10[%c8_56, %c0_57] : memref<304x128xbf16, #tpu.memory_space<vmem>>, vector<256x128xbf16>
    %c0_58 = arith.constant 0 : index
    %c128_59 = arith.constant 128 : index
    %90 = vector.load %arg11[%c0_58, %c128_59] : memref<256x1152xbf16, #tpu.memory_space<vmem>>, vector<256x128xbf16>
    tpu.vector_store %arg11[%c0_58, %c128_59], %89 {strides = array<i32>} : memref<256x1152xbf16, #tpu.memory_space<vmem>>, vector<256x128xbf16>,
    %c9_60 = arith.constant 9 : index
    %c0_61 = arith.constant 0 : index
    %91 = vector.load %arg10[%c9_60, %c0_61] : memref<304x128xbf16, #tpu.memory_space<vmem>>, vector<256x128xbf16>
    %cst_62 = arith.constant 0.000000e+00 : bf16
    %92 = vector.broadcast %cst_62 : bf16 to vector<256x128xbf16>
    %93 = vector.shape_cast %30 : vector<256x1xi1> to vector<256x1xi1>
    %94 = vector.broadcast %93 : vector<256x1xi1> to vector<256x128xi1>
    %95 = arith.select %94, %91, %92 : vector<256x128xi1>, vector<256x128xbf16>
    %c0_63 = arith.constant 0 : index
    %c256_64 = arith.constant 256 : index
    %96 = vector.load %arg11[%c0_63, %c256_64] : memref<256x1152xbf16, #tpu.memory_space<vmem>>, vector<256x128xbf16>
    tpu.vector_store %arg11[%c0_63, %c256_64], %95 {strides = array<i32>} : memref<256x1152xbf16, #tpu.memory_space<vmem>>, vector<256x128xbf16>,
    %c23_65 = arith.constant 23 : index
    %c0_66 = arith.constant 0 : index
    %97 = vector.load %arg10[%c23_65, %c0_66] : memref<304x128xbf16, #tpu.memory_space<vmem>>, vector<256x128xbf16>
    %cst_67 = arith.constant 0.000000e+00 : bf16
    %98 = vector.broadcast %cst_67 : bf16 to vector<256x128xbf16>
    %99 = vector.shape_cast %28 : vector<256x1xi1> to vector<256x1xi1>
    %100 = vector.broadcast %99 : vector<256x1xi1> to vector<256x128xi1>
    %101 = arith.select %100, %97, %98 : vector<256x128xi1>, vector<256x128xbf16>
    %c0_68 = arith.constant 0 : index
    %c384_69 = arith.constant 384 : index
    %102 = vector.load %arg11[%c0_68, %c384_69] : memref<256x1152xbf16, #tpu.memory_space<vmem>>, vector<256x128xbf16>
    tpu.vector_store %arg11[%c0_68, %c384_69], %101 {strides = array<i32>} : memref<256x1152xbf16, #tpu.memory_space<vmem>>, vector<256x128xbf16>,
    %c24_70 = arith.constant 24 : index
    %c0_71 = arith.constant 0 : index
    %103 = vector.load %arg10[%c24_70, %c0_71] : memref<304x128xbf16, #tpu.memory_space<vmem>>, vector<256x128xbf16>
    %c0_72 = arith.constant 0 : index
    %c512_73 = arith.constant 512 : index
    %104 = vector.load %arg11[%c0_72, %c512_73] : memref<256x1152xbf16, #tpu.memory_space<vmem>>, vector<256x128xbf16>
    tpu.vector_store %arg11[%c0_72, %c512_73], %103 {strides = array<i32>} : memref<256x1152xbf16, #tpu.memory_space<vmem>>, vector<256x128xbf16>,
    %c25_74 = arith.constant 25 : index
    %c0_75 = arith.constant 0 : index
    %105 = vector.load %arg10[%c25_74, %c0_75] : memref<304x128xbf16, #tpu.memory_space<vmem>>, vector<256x128xbf16>
    %cst_76 = arith.constant 0.000000e+00 : bf16
    %106 = vector.broadcast %cst_76 : bf16 to vector<256x128xbf16>
    %107 = vector.shape_cast %30 : vector<256x1xi1> to vector<256x1xi1>
    %108 = vector.broadcast %107 : vector<256x1xi1> to vector<256x128xi1>
    %109 = arith.select %108, %105, %106 : vector<256x128xi1>, vector<256x128xbf16>
    %c0_77 = arith.constant 0 : index
    %c640_78 = arith.constant 640 : index
    %110 = vector.load %arg11[%c0_77, %c640_78] : memref<256x1152xbf16, #tpu.memory_space<vmem>>, vector<256x128xbf16>
    tpu.vector_store %arg11[%c0_77, %c640_78], %109 {strides = array<i32>} : memref<256x1152xbf16, #tpu.memory_space<vmem>>, vector<256x128xbf16>,
    %c39_79 = arith.constant 39 : index
    %c0_80 = arith.constant 0 : index
    %111 = vector.load %arg10[%c39_79, %c0_80] : memref<304x128xbf16, #tpu.memory_space<vmem>>, vector<256x128xbf16>
    %cst_81 = arith.constant 0.000000e+00 : bf16
    %112 = vector.broadcast %cst_81 : bf16 to vector<256x128xbf16>
    %113 = vector.shape_cast %28 : vector<256x1xi1> to vector<256x1xi1>
    %114 = vector.broadcast %113 : vector<256x1xi1> to vector<256x128xi1>
    %115 = arith.select %114, %111, %112 : vector<256x128xi1>, vector<256x128xbf16>
    %c0_82 = arith.constant 0 : index
    %c768_83 = arith.constant 768 : index
    %116 = vector.load %arg11[%c0_82, %c768_83] : memref<256x1152xbf16, #tpu.memory_space<vmem>>, vector<256x128xbf16>
    tpu.vector_store %arg11[%c0_82, %c768_83], %115 {strides = array<i32>} : memref<256x1152xbf16, #tpu.memory_space<vmem>>, vector<256x128xbf16>,
    %c40_84 = arith.constant 40 : index
    %c0_85 = arith.constant 0 : index
    %117 = vector.load %arg10[%c40_84, %c0_85] : memref<304x128xbf16, #tpu.memory_space<vmem>>, vector<256x128xbf16>
    %c0_86 = arith.constant 0 : index
    %c896_87 = arith.constant 896 : index
    %118 = vector.load %arg11[%c0_86, %c896_87] : memref<256x1152xbf16, #tpu.memory_space<vmem>>, vector<256x128xbf16>
    tpu.vector_store %arg11[%c0_86, %c896_87], %117 {strides = array<i32>} : memref<256x1152xbf16, #tpu.memory_space<vmem>>, vector<256x128xbf16>,
    %c41_88 = arith.constant 41 : index
    %c0_89 = arith.constant 0 : index
    %119 = vector.load %arg10[%c41_88, %c0_89] : memref<304x128xbf16, #tpu.memory_space<vmem>>, vector<256x128xbf16>
    %cst_90 = arith.constant 0.000000e+00 : bf16
    %120 = vector.broadcast %cst_90 : bf16 to vector<256x128xbf16>
    %121 = vector.shape_cast %30 : vector<256x1xi1> to vector<256x1xi1>
    %122 = vector.broadcast %121 : vector<256x1xi1> to vector<256x128xi1>
    %123 = arith.select %122, %119, %120 : vector<256x128xi1>, vector<256x128xbf16>
    %c0_91 = arith.constant 0 : index
    %c1024_92 = arith.constant 1024 : index
    %124 = vector.load %arg11[%c0_91, %c1024_92] : memref<256x1152xbf16, #tpu.memory_space<vmem>>, vector<256x128xbf16>
    tpu.vector_store %arg11[%c0_91, %c1024_92], %123 {strides = array<i32>} : memref<256x1152xbf16, #tpu.memory_space<vmem>>, vector<256x128xbf16>,
    %c0_93 = arith.constant 0 : index
    %c0_94 = arith.constant 0 : index
    %125 = vector.load %arg11[%c0_93, %c0_94] : memref<256x1152xbf16, #tpu.memory_space<vmem>>, vector<256x1152xbf16>
    %c0_95 = arith.constant 0 : index
    %c0_96 = arith.constant 0 : index
    %126 = vector.load %arg5[%c0_95, %c0_96] : memref<1152x128xbf16, #tpu.memory_space<vmem>>, vector<1152x128xbf16>
    %cst_97 = arith.constant dense<0.000000e+00> : vector<256x128xf32>
    %127 = tpu.matmul %125, %126, %cst_97 {dimension_numbers = #tpu.dot_dimension_numbers<[1], [0], [0], [1], [0, 0, 1, 1], [], []>} : vector<256x1152xbf16>, vector<1152x128xbf16>, vector<256x128xf32> -> vector<256x128xf32>
    %c0_98 = arith.constant 0 : index
    %c0_99 = arith.constant 0 : index
    %128 = vector.load %arg6[%c0_98, %c0_99] : memref<1x128xf32, #tpu.memory_space<vmem>>, vector<1x128xf32>
    %129 = vector.broadcast %128 : vector<1x128xf32> to vector<256x128xf32>
    %130 = arith.addf %127, %129 : vector<256x128xf32>
    %cst_100 = arith.constant 0.000000e+00 : f32
    %131 = vector.broadcast %cst_100 : f32 to vector<256x128xf32>
    %132 = arith.maximumf %130, %131 : vector<256x128xf32>
    %c0_101 = arith.constant 0 : index
    %c0_102 = arith.constant 0 : index
    %c0_103 = arith.constant 0 : index
    %133 = vector.load %arg7[%c0_101, %c0_102, %c0_103] : memref<1x256x128xf32, #tpu.memory_space<vmem>>, vector<1x256x128xf32>
    %134 = vector.shape_cast %133 : vector<1x256x128xf32> to vector<256x128xf32>
    %135 = vector.shape_cast %132 : vector<256x128xf32> to vector<1x256x128xf32>
    tpu.vector_store %arg7[%c0_101, %c0_102, %c0_103], %135 {strides = array<i32>} : memref<1x256x128xf32, #tpu.memory_space<vmem>>, vector<1x256x128xf32>,
    return
  }
  func.func @transform_0(%arg0: i32) -> (i32, i32, i32) {
    %c0_i32 = arith.constant 0 : i32
    %c0_i32_0 = arith.constant 0 : i32
    %c0_i32_1 = arith.constant 0 : i32
    return %arg0, %c0_i32, %c0_i32_0 : i32, i32, i32
  }
  func.func @transform_1(%arg0: i32) -> (i32, i32, i32) {
    %c0_i32 = arith.constant 0 : i32
    %c0_i32_0 = arith.constant 0 : i32
    %c0_i32_1 = arith.constant 0 : i32
    return %arg0, %c0_i32, %c0_i32_0 : i32, i32, i32
  }
  func.func @transform_2(%arg0: i32) -> (i32, i32) {
    %c0_i32 = arith.constant 0 : i32
    %c0_i32_0 = arith.constant 0 : i32
    %c0_i32_1 = arith.constant 0 : i32
    return %c0_i32, %c0_i32_0 : i32, i32
  }
  func.func @transform_3(%arg0: i32) -> (i32, i32) {
    %c0_i32 = arith.constant 0 : i32
    %c0_i32_0 = arith.constant 0 : i32
    %c0_i32_1 = arith.constant 0 : i32
    return %c0_i32, %c0_i32_0 : i32, i32
  }
  func.func @transform_4(%arg0: i32) -> (i32, i32) {
    %c0_i32 = arith.constant 0 : i32
    %c0_i32_0 = arith.constant 0 : i32
    %c0_i32_1 = arith.constant 0 : i32
    return %c0_i32, %c0_i32_0 : i32, i32
  }
  func.func @transform_5(%arg0: i32) -> (i32, i32) {
    %c0_i32 = arith.constant 0 : i32
    %c0_i32_0 = arith.constant 0 : i32
    %c0_i32_1 = arith.constant 0 : i32
    return %c0_i32, %c0_i32_0 : i32, i32
  }
  func.func @transform_6(%arg0: i32) -> (i32, i32, i32) {
    %c0_i32 = arith.constant 0 : i32
    %c0_i32_0 = arith.constant 0 : i32
    %c0_i32_1 = arith.constant 0 : i32
    return %arg0, %c0_i32, %c0_i32_0 : i32, i32, i32
  }
}

</mosaic_0001>

<llo_original>
// kernel: up_forward.1
$region0: #{up_forward.1}
  #allocation0 [shape = 'u32[]', space=smem, size = 0x4, offset = 0x4, fixed_abs, tag = 'smem constant byte address 0x4 - core index']
  #allocation1 [shape = 'u32[144,128]{1,0:T(1,128)}', space=vmem, size = 0x12000, scoped, tag = 'internal scratch']
  #allocation2 [shape = 'bf16[304,128]{1,0:T(16,128)(2,1)}', space=vmem, size = 0x13000, scoped, tag = 'scratch operand']
  #allocation3 [shape = 'bf16[256,1152]{1,0:T(16,128)(2,1)}', space=vmem, size = 0x90000, scoped, tag = 'scratch operand']
  #allocation4 [shape = 'bf16[304,128]{1,0:T(16,128)(2,1)}', space=vmem, size = 0x13000, scoped, tag = 'scratch operand']
  #allocation5 [shape = 'bf16[256,1152]{1,0:T(16,128)(2,1)}', space=vmem, size = 0x90000, scoped, tag = 'scratch operand']
  %s0 = inlined_call_operand.vmem [shape: bf16[2,256,64], index: 0, kind: input, shape index: {}]
  %s1 = inlined_call_operand.vmem [shape: bf16[2,256,64], index: 1, kind: input, shape index: {}]
  %s2 = inlined_call_operand.vmem [shape: bf16[1152,128], index: 2, kind: input, shape index: {}]
  %s3 = inlined_call_operand.vmem [shape: f32[1,128], index: 3, kind: input, shape index: {}]
  %s4 = inlined_call_operand.vmem [shape: bf16[1152,128], index: 4, kind: input, shape index: {}]
  %s5 = inlined_call_operand.vmem [shape: f32[1,128], index: 5, kind: input, shape index: {}]
  %s6 = inlined_call_operand.hbm [shape: f32[2,256,128], index: 6, kind: output, shape index: {}]
  %s7 = sld [smem:[#allocation0]]
  $region57: #{up_forward.1} parent=0
    _
  %s9 = ssub.s32 1, %s7
  %s10 = scalar_select 0, %s9, %s7
  $region1: #{up_forward.1} parent=0
    #allocation6 [shape = 'u8[262144]{0}', space=vmem, size = 0x40000, scoped, tag = 'output window, operand 0']
    #allocation7 [shape = 's32[2]{0}', space=sflag, size = 0x8, scoped, tag = 'scoped memory for up_forward.1']
    %11 = vsyncpa [#allocation7], 0
    %s12 = scalar_lea.sflag [#allocation7], 1
    %13 = vsyncpa %s12, 0
    loop: start=0, step=1, limit=4
    $region2: #{up_forward.1} parent=1 // loop_pre_header
      _
    $region3: #{up_forward.1} parent=1 // loop_header
      %s15 = sphi 0, %s19
      %p16 = scmp.ge.s32.totalorder %s15, 4
      %s25 = sphi 0, %s27
      %s28 = sphi 0, %s25
      %s29 = sphi 0, %s28
      %s45 = sphi 0, %s29
      %s51 = sphi 0, %s53
      %s54 = sphi 0, %s51
      %s55 = sphi 0, %s54
      %s71 = sphi 0, %s55
      %s75 = sphi 0, %s75
      %s77 = sphi 0, %s75
      %s78 = sphi 0, %s77
      %s92 = sphi 0, %s78
      %s96 = sphi 0, %s96
      %s98 = sphi 0, %s96
      %s99 = sphi 0, %s98
      %s113 = sphi 0, %s99
      %s117 = sphi 0, %s117
      %s119 = sphi 0, %s117
      %s120 = sphi 0, %s119
      %s134 = sphi 0, %s120
      %s138 = sphi 0, %s138
      %s140 = sphi 0, %s138
      %s141 = sphi 0, %s140
      %s155 = sphi 0, %s141
      %s161 = sphi 0, %s163
      %s164 = sphi 0, %s161
      %s165 = sphi 0, %s164
      %s181 = sphi 0, %s165
    $region4: #{up_forward.1} parent=1 // loop_header_branch
      %18 = sbr.rel (%p16) target = $region8
    $region5: #{up_forward.1} parent=1 // loop_body
      %s20 = ssub.s32 %s15, 1
      %s21 = ssub.s32 %s15, 2
      %s22 = sadd.s32 %s15, 1
      %s23 = ssub.s32 %s15, %s22
      %p24 = scmp.eq.s32.totalorder %s23, 0
      %s26 = sadd.s32 %s25, 1
      %s27 = scalar_select %p24, %s25, %s26
      %p30 = pneg %p24
      %p31 = scmp.eq.s32.totalorder %s15, 1
      %p32 = por %p30, %p31
      %p33 = scmp.ne.s32.totalorder %s25, %s28
      %p34 = scmp.eq.s32.totalorder %s15, 0
      %p35 = por %p33, %p34
      %p36 = scmp.ne.s32.totalorder %s25, %s28
      %p37 = scmp.eq.s32.totalorder %s20, 1
      %p38 = por %p36, %p37
      %p39 = scmp.ne.s32.totalorder %s28, %s29
      %p40 = scmp.eq.s32.totalorder %s20, 0
      %p41 = por %p39, %p40
      %p42 = scmp.ne.s32.totalorder %s28, %s29
      %p43 = scmp.eq.s32.totalorder %s21, 1
      %p44 = por %p42, %p43
      %p46 = scmp.ne.s32.totalorder %s29, %s45
      %p47 = scmp.eq.s32.totalorder %s21, 0
      %p48 = por %p46, %p47
      %s49 = ssub.s32 %s15, %s22
      %p50 = scmp.eq.s32.totalorder %s49, 0
      %s52 = sadd.s32 %s51, 1
      %s53 = scalar_select %p50, %s51, %s52
      %p56 = pneg %p50
      %p57 = scmp.eq.s32.totalorder %s15, 1
      %p58 = por %p56, %p57
      %p59 = scmp.ne.s32.totalorder %s51, %s54
      %p60 = scmp.eq.s32.totalorder %s15, 0
      %p61 = por %p59, %p60
      %p62 = scmp.ne.s32.totalorder %s51, %s54
      %p63 = scmp.eq.s32.totalorder %s20, 1
      %p64 = por %p62, %p63
      %p65 = scmp.ne.s32.totalorder %s54, %s55
      %p66 = scmp.eq.s32.totalorder %s20, 0
      %p67 = por %p65, %p66
      %p68 = scmp.ne.s32.totalorder %s54, %s55
      %p69 = scmp.eq.s32.totalorder %s21, 1
      %p70 = por %p68, %p69
      %p72 = scmp.ne.s32.totalorder %s55, %s71
      %p73 = scmp.eq.s32.totalorder %s21, 0
      %p74 = por %p72, %p73
      %s76 = sadd.s32 %s75, 1
      %p79 = scmp.eq.s32.totalorder %s15, 1
      %p80 = scmp.ne.s32.totalorder %s75, %s77
      %p81 = scmp.eq.s32.totalorder %s15, 0
      %p82 = por %p80, %p81
      %p83 = scmp.ne.s32.totalorder %s75, %s77
      %p84 = scmp.eq.s32.totalorder %s20, 1
      %p85 = por %p83, %p84
      %p86 = scmp.ne.s32.totalorder %s77, %s78
      %p87 = scmp.eq.s32.totalorder %s20, 0
      %p88 = por %p86, %p87
      %p89 = scmp.ne.s32.totalorder %s77, %s78
      %p90 = scmp.eq.s32.totalorder %s21, 1
      %p91 = por %p89, %p90
      %p93 = scmp.ne.s32.totalorder %s78, %s92
      %p94 = scmp.eq.s32.totalorder %s21, 0
      %p95 = por %p93, %p94
      %s97 = sadd.s32 %s96, 1
      %p100 = scmp.eq.s32.totalorder %s15, 1
      %p101 = scmp.ne.s32.totalorder %s96, %s98
      %p102 = scmp.eq.s32.totalorder %s15, 0
      %p103 = por %p101, %p102
      %p104 = scmp.ne.s32.totalorder %s96, %s98
      %p105 = scmp.eq.s32.totalorder %s20, 1
      %p106 = por %p104, %p105
      %p107 = scmp.ne.s32.totalorder %s98, %s99
      %p108 = scmp.eq.s32.totalorder %s20, 0
      %p109 = por %p107, %p108
      %p110 = scmp.ne.s32.totalorder %s98, %s99
      %p111 = scmp.eq.s32.totalorder %s21, 1
      %p112 = por %p110, %p111
      %p114 = scmp.ne.s32.totalorder %s99, %s113
      %p115 = scmp.eq.s32.totalorder %s21, 0
      %p116 = por %p114, %p115
      %s118 = sadd.s32 %s117, 1
      %p121 = scmp.eq.s32.totalorder %s15, 1
      %p122 = scmp.ne.s32.totalorder %s117, %s119
      %p123 = scmp.eq.s32.totalorder %s15, 0
      %p124 = por %p122, %p123
      %p125 = scmp.ne.s32.totalorder %s117, %s119
      %p126 = scmp.eq.s32.totalorder %s20, 1
      %p127 = por %p125, %p126
      %p128 = scmp.ne.s32.totalorder %s119, %s120
      %p129 = scmp.eq.s32.totalorder %s20, 0
      %p130 = por %p128, %p129
      %p131 = scmp.ne.s32.totalorder %s119, %s120
      %p132 = scmp.eq.s32.totalorder %s21, 1
      %p133 = por %p131, %p132
      %p135 = scmp.ne.s32.totalorder %s120, %s134
      %p136 = scmp.eq.s32.totalorder %s21, 0
      %p137 = por %p135, %p136
      %s139 = sadd.s32 %s138, 1
      %p142 = scmp.eq.s32.totalorder %s15, 1
      %p143 = scmp.ne.s32.totalorder %s138, %s140
      %p144 = scmp.eq.s32.totalorder %s15, 0
      %p145 = por %p143, %p144
      %p146 = scmp.ne.s32.totalorder %s138, %s140
      %p147 = scmp.eq.s32.totalorder %s20, 1
      %p148 = por %p146, %p147
      %p149 = scmp.ne.s32.totalorder %s140, %s141
      %p150 = scmp.eq.s32.totalorder %s20, 0
      %p151 = por %p149, %p150
      %p152 = scmp.ne.s32.totalorder %s140, %s141
      %p153 = scmp.eq.s32.totalorder %s21, 1
      %p154 = por %p152, %p153
      %p156 = scmp.ne.s32.totalorder %s141, %s155
      %p157 = scmp.eq.s32.totalorder %s21, 0
      %p158 = por %p156, %p157
      %s159 = ssub.s32 %s15, %s22
      %p160 = scmp.eq.s32.totalorder %s159, 0
      %s162 = sadd.s32 %s161, 1
      %s163 = scalar_select %p160, %s161, %s162
      %p166 = pneg %p160
      %p167 = scmp.eq.s32.totalorder %s15, 1
      %p168 = por %p166, %p167
      %p169 = scmp.ne.s32.totalorder %s161, %s164
      %p170 = scmp.eq.s32.totalorder %s15, 0
      %p171 = por %p169, %p170
      %p172 = scmp.ne.s32.totalorder %s161, %s164
      %p173 = scmp.eq.s32.totalorder %s20, 1
      %p174 = por %p172, %p173
      %p175 = scmp.ne.s32.totalorder %s164, %s165
      %p176 = scmp.eq.s32.totalorder %s20, 0
      %p177 = por %p175, %p176
      %p178 = scmp.ne.s32.totalorder %s164, %s165
      %p179 = scmp.eq.s32.totalorder %s21, 1
      %p180 = por %p178, %p179
      %p182 = scmp.ne.s32.totalorder %s165, %s181
      %p183 = scmp.eq.s32.totalorder %s21, 0
      %p184 = por %p182, %p183
      %p185 = scmp.le.s32.totalorder 1, %s15
      %p186 = scmp.lt.s32.totalorder %s15, 3
      %p187 = pnand %p185, %p186
      %p188 = pneg %p187
      // Predicated region
      $region9: #{up_forward.1} parent=5 // pred_check
        _
      $region10: #{up_forward.1} parent=5 // pred_check_branch
        %190 = sbr.rel (%p187) target = $region12
      $region11: #{up_forward.1} parent=5 // pred_region
        %s191 = ssub.s32 %s15, 1
        // Predicated region
        $region13: #{up_forward.1} parent=11 // pred_check
          %p192 = pneg %p88
        $region14: #{up_forward.1} parent=11 // pred_check_branch
          %194 = sbr.rel (%p192) target = $region16
        $region15: #{up_forward.1} parent=11 // pred_region
          _
        $region16: #{up_forward.1} parent=11 // pred_fallthru
          _
        // Predicated region
        $region17: #{up_forward.1} parent=11 // pred_check
          %p195 = pneg %p109
        $region18: #{up_forward.1} parent=11 // pred_check_branch
          %197 = sbr.rel (%p195) target = $region20
        $region19: #{up_forward.1} parent=11 // pred_region
          _
        $region20: #{up_forward.1} parent=11 // pred_fallthru
          _
        // Predicated region
        $region21: #{up_forward.1} parent=11 // pred_check
          %p198 = pneg %p130
        $region22: #{up_forward.1} parent=11 // pred_check_branch
          %200 = sbr.rel (%p198) target = $region24
        $region23: #{up_forward.1} parent=11 // pred_region
          _
        $region24: #{up_forward.1} parent=11 // pred_fallthru
          _
        // Predicated region
        $region25: #{up_forward.1} parent=11 // pred_check
          %p201 = pneg %p151
        $region26: #{up_forward.1} parent=11 // pred_check_branch
          %203 = sbr.rel (%p201) target = $region28
        $region27: #{up_forward.1} parent=11 // pred_region
          _
        $region28: #{up_forward.1} parent=11 // pred_fallthru
          _
      $region12: #{up_forward.1} parent=5 // pred_fallthru
        _
      %p204 = scmp.lt.s32.totalorder %s15, 2
      // Predicated region
      $region29: #{up_forward.1} parent=5 // pred_check
        %p205 = pneg %p204
      $region30: #{up_forward.1} parent=5 // pred_check_branch
        %207 = sbr.rel (%p205) target = $region32
      $region31: #{up_forward.1} parent=5 // pred_region
        // Predicated region
        $region33: #{up_forward.1} parent=31 // pred_check
          %p208 = pneg %p35
        $region34: #{up_forward.1} parent=31 // pred_check_branch
          %210 = sbr.rel (%p208) target = $region36
        $region35: #{up_forward.1} parent=31 // pred_region
          %p211 = scmp.lt.s32.totalorder %s15, 1
          %s212 = scalar_select %p211, %s15, 1
          %s213 = smul.addr %s212, 32
          %s214 = smul.addr %s213, 4
          %s215 = scalar_lea.vmem %s0, %s214
        $region36: #{up_forward.1} parent=31 // pred_fallthru
          _
        // Predicated region
        $region37: #{up_forward.1} parent=31 // pred_check
          %p216 = pneg %p61
        $region38: #{up_forward.1} parent=31 // pred_check_branch
          %218 = sbr.rel (%p216) target = $region40
        $region39: #{up_forward.1} parent=31 // pred_region
          %p219 = scmp.lt.s32.totalorder %s15, 1
          %s220 = scalar_select %p219, %s15, 1
          %s221 = smul.addr %s220, 32
          %s222 = smul.addr %s221, 4
          %s223 = scalar_lea.vmem %s1, %s222
        $region40: #{up_forward.1} parent=31 // pred_fallthru
          _
      $region32: #{up_forward.1} parent=5 // pred_fallthru
        _
      %p224 = scmp.le.s32.totalorder 1, %s15
      %p225 = scmp.lt.s32.totalorder %s15, 3
      %p226 = pnand %p224, %p225
      %p227 = pneg %p226
      // Predicated region
      $region41: #{up_forward.1} parent=5 // pred_check
        _
      $region42: #{up_forward.1} parent=5 // pred_check_branch
        %229 = sbr.rel (%p226) target = $region44
      $region43: #{up_forward.1} parent=5 // pred_region
        %s230 = ssub.s32 %s15, 1
        %p231 = scmp.lt.s32.totalorder %s20, 1
        %s232 = scalar_select %p231, %s20, 1
        %s233 = smul.addr %s232, 32
        %s234 = smul.addr %s233, 4
        %s235 = scalar_lea.vmem %s0, %s234
        %p236 = pneg %p41
        %p237 = pneg %p38
        %p238 = scmp.lt.s32.totalorder %s20, 1
        %s239 = scalar_select %p238, %s20, 1
        %s240 = smul.addr %s239, 32
        %s241 = smul.addr %s240, 4
        %s242 = scalar_lea.vmem %s1, %s241
        %p243 = pneg %p67
        %p244 = pneg %p64
        %p245 = pneg %p88
        %p246 = pneg %p85
        %p247 = pneg %p109
        %p248 = pneg %p106
        %p249 = pneg %p130
        %p250 = pneg %p127
        %p251 = pneg %p151
        %p252 = pneg %p148
        %p253 = pneg %p177
        %p254 = pneg %p174
        %s255 = sand.u32 %s164, 1
        %s256 = scalar_lea.sflag [#allocation7], %s255
        %s257 = sand.u32 %s164, 1
        %s258 = smul.addr %s257, 256
        %s259 = scalar_lea.vmem [#allocation6], %s258
        %p260 = scmp.lt.s32.totalorder %s20, 1
        %s261 = scalar_select %p260, %s20, 1
        %s262 = smul.addr %s261, 32
        %s263 = smul.addr %s262, 4
        %s264 = scalar_lea.vmem %s0, %s263
        %p265 = scmp.lt.s32.totalorder %s20, 1
        %s266 = scalar_select %p265, %s20, 1
        %s267 = smul.addr %s266, 32
        %s268 = smul.addr %s267, 4
        %s269 = scalar_lea.vmem %s1, %s268
        %273 = vst [vmem:[#allocation2] sm:$0xff] 0
        %274 = vst [vmem:[#allocation2 + $0x8] sm:$0xff] 0
        %275 = vst [vmem:[#allocation2 + $0x10] sm:$0xff] 0
        %276 = vst [vmem:[#allocation2 + $0x18] sm:$0xff] 0
        %277 = vst [vmem:[#allocation2 + $0x20] sm:$0xff] 0
        %278 = vst [vmem:[#allocation2 + $0x28] sm:$0xff] 0
        %279 = vst [vmem:[#allocation2 + $0x30] sm:$0xff] 0
        %280 = vst [vmem:[#allocation2 + $0x38] sm:$0xff] 0
        %281 = vst [vmem:[#allocation2 + $0x40] sm:$0xff] 0
        %282 = vst [vmem:[#allocation2 + $0x48] sm:$0xff] 0
        %283 = vst [vmem:[#allocation2 + $0x50] sm:$0xff] 0
        %284 = vst [vmem:[#allocation2 + $0x58] sm:$0xff] 0
        %285 = vst [vmem:[#allocation2 + $0x60] sm:$0xff] 0
        %286 = vst [vmem:[#allocation2 + $0x68] sm:$0xff] 0
        %287 = vst [vmem:[#allocation2 + $0x70] sm:$0xff] 0
        %288 = vst [vmem:[#allocation2 + $0x78] sm:$0xff] 0
        %289 = vst [vmem:[#allocation2 + $0x80] sm:$0xff] 0
        %290 = vst [vmem:[#allocation2 + $0x88] sm:$0xff] 0
        %291 = vst [vmem:[#allocation2 + $0x90] sm:$0xff] 0
        %292 = vst [vmem:[#allocation4] sm:$0xff] 0
        %293 = vst [vmem:[#allocation4 + $0x8] sm:$0xff] 0
        %294 = vst [vmem:[#allocation4 + $0x10] sm:$0xff] 0
        %295 = vst [vmem:[#allocation4 + $0x18] sm:$0xff] 0
        %296 = vst [vmem:[#allocation4 + $0x20] sm:$0xff] 0
        %297 = vst [vmem:[#allocation4 + $0x28] sm:$0xff] 0
        %298 = vst [vmem:[#allocation4 + $0x30] sm:$0xff] 0
        %299 = vst [vmem:[#allocation4 + $0x38] sm:$0xff] 0
        %300 = vst [vmem:[#allocation4 + $0x40] sm:$0xff] 0
        %301 = vst [vmem:[#allocation4 + $0x48] sm:$0xff] 0
        %302 = vst [vmem:[#allocation4 + $0x50] sm:$0xff] 0
        %303 = vst [vmem:[#allocation4 + $0x58] sm:$0xff] 0
        %304 = vst [vmem:[#allocation4 + $0x60] sm:$0xff] 0
        %305 = vst [vmem:[#allocation4 + $0x68] sm:$0xff] 0
        %306 = vst [vmem:[#allocation4 + $0x70] sm:$0xff] 0
        %307 = vst [vmem:[#allocation4 + $0x78] sm:$0xff] 0
        %308 = vst [vmem:[#allocation4 + $0x80] sm:$0xff] 0
        %309 = vst [vmem:[#allocation4 + $0x88] sm:$0xff] 0
        %310 = vst [vmem:[#allocation4 + $0x90] sm:$0xff] 0
        %v311 = vld [vmem:[%s264] sm:$0xf]
        %v312 = vld [vmem:[%s264 + $0x4] sm:$0xf]
        %v313 = vld [vmem:[%s264 + $0x8] sm:$0xf]
        %v314 = vld [vmem:[%s264 + $0xc] sm:$0xf]
        %v315 = vld [vmem:[%s264 + $0x10] sm:$0xf]
        %v316 = vld [vmem:[%s264 + $0x14] sm:$0xf]
        %v317 = vld [vmem:[%s264 + $0x18] sm:$0xf]
        %v318 = vld [vmem:[%s264 + $0x1c] sm:$0xf]
        %v319 = vld [vmem:[%s264 + $0x20] sm:$0xf]
        %v320 = vld [vmem:[%s264 + $0x24] sm:$0xf]
        %v321 = vld [vmem:[%s264 + $0x28] sm:$0xf]
        %v322 = vld [vmem:[%s264 + $0x2c] sm:$0xf]
        %v323 = vld [vmem:[%s264 + $0x30] sm:$0xf]
        %v324 = vld [vmem:[%s264 + $0x34] sm:$0xf]
        %v325 = vld [vmem:[%s264 + $0x38] sm:$0xf]
        %v326 = vld [vmem:[%s264 + $0x3c] sm:$0xf]
        %v327 = vld [vmem:[%s264 + $0x40] sm:$0xf]
        %v328 = vld [vmem:[%s264 + $0x44] sm:$0xf]
        %v329 = vld [vmem:[%s264 + $0x48] sm:$0xf]
        %v330 = vld [vmem:[%s264 + $0x4c] sm:$0xf]
        %v331 = vld [vmem:[%s264 + $0x50] sm:$0xf]
        %v332 = vld [vmem:[%s264 + $0x54] sm:$0xf]
        %v333 = vld [vmem:[%s264 + $0x58] sm:$0xf]
        %v334 = vld [vmem:[%s264 + $0x5c] sm:$0xf]
        %v335 = vld [vmem:[%s264 + $0x60] sm:$0xf]
        %v336 = vld [vmem:[%s264 + $0x64] sm:$0xf]
        %v337 = vld [vmem:[%s264 + $0x68] sm:$0xf]
        %v338 = vld [vmem:[%s264 + $0x6c] sm:$0xf]
        %v339 = vld [vmem:[%s264 + $0x70] sm:$0xf]
        %v340 = vld [vmem:[%s264 + $0x74] sm:$0xf]
        %v341 = vld [vmem:[%s264 + $0x78] sm:$0xf]
        %v342 = vld [vmem:[%s264 + $0x7c] sm:$0xf]
        %v343 = vld [vmem:[%s269] sm:$0xf]
        %v344 = vld [vmem:[%s269 + $0x4] sm:$0xf]
        %v345 = vld [vmem:[%s269 + $0x8] sm:$0xf]
        %v346 = vld [vmem:[%s269 + $0xc] sm:$0xf]
        %v347 = vld [vmem:[%s269 + $0x10] sm:$0xf]
        %v348 = vld [vmem:[%s269 + $0x14] sm:$0xf]
        %v349 = vld [vmem:[%s269 + $0x18] sm:$0xf]
        %v350 = vld [vmem:[%s269 + $0x1c] sm:$0xf]
        %v351 = vld [vmem:[%s269 + $0x20] sm:$0xf]
        %v352 = vld [vmem:[%s269 + $0x24] sm:$0xf]
        %v353 = vld [vmem:[%s269 + $0x28] sm:$0xf]
        %v354 = vld [vmem:[%s269 + $0x2c] sm:$0xf]
        %v355 = vld [vmem:[%s269 + $0x30] sm:$0xf]
        %v356 = vld [vmem:[%s269 + $0x34] sm:$0xf]
        %v357 = vld [vmem:[%s269 + $0x38] sm:$0xf]
        %v358 = vld [vmem:[%s269 + $0x3c] sm:$0xf]
        %v359 = vld [vmem:[%s269 + $0x40] sm:$0xf]
        %v360 = vld [vmem:[%s269 + $0x44] sm:$0xf]
        %v361 = vld [vmem:[%s269 + $0x48] sm:$0xf]
        %v362 = vld [vmem:[%s269 + $0x4c] sm:$0xf]
        %v363 = vld [vmem:[%s269 + $0x50] sm:$0xf]
        %v364 = vld [vmem:[%s269 + $0x54] sm:$0xf]
        %v365 = vld [vmem:[%s269 + $0x58] sm:$0xf]
        %v366 = vld [vmem:[%s269 + $0x5c] sm:$0xf]
        %v367 = vld [vmem:[%s269 + $0x60] sm:$0xf]
        %v368 = vld [vmem:[%s269 + $0x64] sm:$0xf]
        %v369 = vld [vmem:[%s269 + $0x68] sm:$0xf]
        %v370 = vld [vmem:[%s269 + $0x6c] sm:$0xf]
        %v371 = vld [vmem:[%s269 + $0x70] sm:$0xf]
        %v372 = vld [vmem:[%s269 + $0x74] sm:$0xf]
        %v373 = vld [vmem:[%s269 + $0x78] sm:$0xf]
        %v374 = vld [vmem:[%s269 + $0x7c] sm:$0xf]
        %v407 = vunpack.c.l.b16 %v311
        %v408 = vunpack.c.l.b16 %v312
        %v409 = vunpack.c.l.b16 %v313
        %v410 = vunpack.c.l.b16 %v314
        %v411 = vunpack.c.l.b16 %v315
        %v412 = vunpack.c.l.b16 %v316
        %v413 = vunpack.c.l.b16 %v317
        %v414 = vunpack.c.l.b16 %v318
        %v415 = vunpack.c.l.b16 %v319
        %v416 = vunpack.c.l.b16 %v320
        %v417 = vunpack.c.l.b16 %v321
        %v418 = vunpack.c.l.b16 %v322
        %v419 = vunpack.c.l.b16 %v323
        %v420 = vunpack.c.l.b16 %v324
        %v421 = vunpack.c.l.b16 %v325
        %v422 = vunpack.c.l.b16 %v326
        %v423 = vunpack.c.l.b16 %v327
        %v424 = vunpack.c.l.b16 %v328
        %v425 = vunpack.c.l.b16 %v329
        %v426 = vunpack.c.l.b16 %v330
        %v427 = vunpack.c.l.b16 %v331
        %v428 = vunpack.c.l.b16 %v332
        %v429 = vunpack.c.l.b16 %v333
        %v430 = vunpack.c.l.b16 %v334
        %v431 = vunpack.c.l.b16 %v335
        %v432 = vunpack.c.l.b16 %v336
        %v433 = vunpack.c.l.b16 %v337
        %v434 = vunpack.c.l.b16 %v338
        %v435 = vunpack.c.l.b16 %v339
        %v436 = vunpack.c.l.b16 %v340
        %v437 = vunpack.c.l.b16 %v341
        %v438 = vunpack.c.l.b16 %v342
        %v439 = vpack.c.b16 %v408, %v407
        %v440 = vpack.c.b16 %v410, %v409
        %v441 = vpack.c.b16 %v412, %v411
        %v442 = vpack.c.b16 %v414, %v413
        %v443 = vpack.c.b16 %v416, %v415
        %v444 = vpack.c.b16 %v418, %v417
        %v445 = vpack.c.b16 %v420, %v419
        %v446 = vpack.c.b16 %v422, %v421
        %v447 = vpack.c.b16 %v424, %v423
        %v448 = vpack.c.b16 %v426, %v425
        %v449 = vpack.c.b16 %v428, %v427
        %v450 = vpack.c.b16 %v430, %v429
        %v451 = vpack.c.b16 %v432, %v431
        %v452 = vpack.c.b16 %v434, %v433
        %v453 = vpack.c.b16 %v436, %v435
        %v454 = vpack.c.b16 %v438, %v437
        %v487 = vunpack.c.l.b16 %v343
        %v488 = vunpack.c.l.b16 %v344
        %v489 = vunpack.c.l.b16 %v345
        %v490 = vunpack.c.l.b16 %v346
        %v491 = vunpack.c.l.b16 %v347
        %v492 = vunpack.c.l.b16 %v348
        %v493 = vunpack.c.l.b16 %v349
        %v494 = vunpack.c.l.b16 %v350
        %v495 = vunpack.c.l.b16 %v351
        %v496 = vunpack.c.l.b16 %v352
        %v497 = vunpack.c.l.b16 %v353
        %v498 = vunpack.c.l.b16 %v354
        %v499 = vunpack.c.l.b16 %v355
        %v500 = vunpack.c.l.b16 %v356
        %v501 = vunpack.c.l.b16 %v357
        %v502 = vunpack.c.l.b16 %v358
        %v503 = vunpack.c.l.b16 %v359
        %v504 = vunpack.c.l.b16 %v360
        %v505 = vunpack.c.l.b16 %v361
        %v506 = vunpack.c.l.b16 %v362
        %v507 = vunpack.c.l.b16 %v363
        %v508 = vunpack.c.l.b16 %v364
        %v509 = vunpack.c.l.b16 %v365
        %v510 = vunpack.c.l.b16 %v366
        %v511 = vunpack.c.l.b16 %v367
        %v512 = vunpack.c.l.b16 %v368
        %v513 = vunpack.c.l.b16 %v369
        %v514 = vunpack.c.l.b16 %v370
        %v515 = vunpack.c.l.b16 %v371
        %v516 = vunpack.c.l.b16 %v372
        %v517 = vunpack.c.l.b16 %v373
        %v518 = vunpack.c.l.b16 %v374
        %v519 = vpack.c.b16 %v488, %v487
        %v520 = vpack.c.b16 %v490, %v489
        %v521 = vpack.c.b16 %v492, %v491
        %v522 = vpack.c.b16 %v494, %v493
        %v523 = vpack.c.b16 %v496, %v495
        %v524 = vpack.c.b16 %v498, %v497
        %v525 = vpack.c.b16 %v500, %v499
        %v526 = vpack.c.b16 %v502, %v501
        %v527 = vpack.c.b16 %v504, %v503
        %v528 = vpack.c.b16 %v506, %v505
        %v529 = vpack.c.b16 %v508, %v507
        %v530 = vpack.c.b16 %v510, %v509
        %v531 = vpack.c.b16 %v512, %v511
        %v532 = vpack.c.b16 %v514, %v513
        %v533 = vpack.c.b16 %v516, %v515
        %v534 = vpack.c.b16 %v518, %v517
        %535 = vrot.lane.b32.xlu0 %v519, 64
        %v536 = vpop.permute.xlu0 %535
        %537 = vrot.lane.b32.xlu0 %v520, 64
        %v538 = vpop.permute.xlu0 %537
        %539 = vrot.lane.b32.xlu0 %v521, 64
        %v540 = vpop.permute.xlu0 %539
        %541 = vrot.lane.b32.xlu0 %v522, 64
        %v542 = vpop.permute.xlu0 %541
        %543 = vrot.lane.b32.xlu0 %v523, 64
        %v544 = vpop.permute.xlu0 %543
        %545 = vrot.lane.b32.xlu0 %v524, 64
        %v546 = vpop.permute.xlu0 %545
        %547 = vrot.lane.b32.xlu0 %v525, 64
        %v548 = vpop.permute.xlu0 %547
        %549 = vrot.lane.b32.xlu0 %v526, 64
        %v550 = vpop.permute.xlu0 %549
        %551 = vrot.lane.b32.xlu0 %v527, 64
        %v552 = vpop.permute.xlu0 %551
        %553 = vrot.lane.b32.xlu0 %v528, 64
        %v554 = vpop.permute.xlu0 %553
        %555 = vrot.lane.b32.xlu0 %v529, 64
        %v556 = vpop.permute.xlu0 %555
        %557 = vrot.lane.b32.xlu0 %v530, 64
        %v558 = vpop.permute.xlu0 %557
        %559 = vrot.lane.b32.xlu0 %v531, 64
        %v560 = vpop.permute.xlu0 %559
        %561 = vrot.lane.b32.xlu0 %v532, 64
        %v562 = vpop.permute.xlu0 %561
        %563 = vrot.lane.b32.xlu0 %v533, 64
        %v564 = vpop.permute.xlu0 %563
        %565 = vrot.lane.b32.xlu0 %v534, 64
        %v566 = vpop.permute.xlu0 %565
        %vm567 = vcmask 523264
        %v570 = vsel %vm567, %v439, %v536
        %v573 = vsel %vm567, %v440, %v538
        %v576 = vsel %vm567, %v441, %v540
        %v579 = vsel %vm567, %v442, %v542
        %v582 = vsel %vm567, %v443, %v544
        %v585 = vsel %vm567, %v444, %v546
        %v588 = vsel %vm567, %v445, %v548
        %v591 = vsel %vm567, %v446, %v550
        %v594 = vsel %vm567, %v447, %v552
        %v597 = vsel %vm567, %v448, %v554
        %v600 = vsel %vm567, %v449, %v556
        %v603 = vsel %vm567, %v450, %v558
        %v606 = vsel %vm567, %v451, %v560
        %v609 = vsel %vm567, %v452, %v562
        %v612 = vsel %vm567, %v453, %v564
        %v615 = vsel %vm567, %v454, %v566
        %vm632 = vcmask 1043456
        %v633 = vrot.slane %v570, 4
        %v634 = vrot.slane %v573, 4
        %v635 = vsel %vm632, %v633, %v634
        %v636 = vrot.slane %v576, 4
        %v637 = vsel %vm632, %v634, %v636
        %v638 = vrot.slane %v579, 4
        %v639 = vsel %vm632, %v636, %v638
        %v640 = vrot.slane %v582, 4
        %v641 = vsel %vm632, %v638, %v640
        %v642 = vrot.slane %v585, 4
        %v643 = vsel %vm632, %v640, %v642
        %v644 = vrot.slane %v588, 4
        %v645 = vsel %vm632, %v642, %v644
        %v646 = vrot.slane %v591, 4
        %v647 = vsel %vm632, %v644, %v646
        %v648 = vrot.slane %v594, 4
        %v649 = vsel %vm632, %v646, %v648
        %v650 = vrot.slane %v597, 4
        %v651 = vsel %vm632, %v648, %v650
        %v652 = vrot.slane %v600, 4
        %v653 = vsel %vm632, %v650, %v652
        %v654 = vrot.slane %v603, 4
        %v655 = vsel %vm632, %v652, %v654
        %v656 = vrot.slane %v606, 4
        %v657 = vsel %vm632, %v654, %v656
        %v658 = vrot.slane %v609, 4
        %v659 = vsel %vm632, %v656, %v658
        %v660 = vrot.slane %v612, 4
        %v661 = vsel %vm632, %v658, %v660
        %v662 = vrot.slane %v615, 4
        %v663 = vsel %vm632, %v660, %v662
        %681 = vst [vmem:[#allocation2 + $0x8] sm:$0xf0] %v633
        %682 = vst [vmem:[#allocation2 + $0x10] sm:$0xff] %v635
        %683 = vst [vmem:[#allocation2 + $0x18] sm:$0xff] %v637
        %684 = vst [vmem:[#allocation2 + $0x20] sm:$0xff] %v639
        %685 = vst [vmem:[#allocation2 + $0x28] sm:$0xff] %v641
        %686 = vst [vmem:[#allocation2 + $0x30] sm:$0xff] %v643
        %687 = vst [vmem:[#allocation2 + $0x38] sm:$0xff] %v645
        %688 = vst [vmem:[#allocation2 + $0x40] sm:$0xff] %v647
        %689 = vst [vmem:[#allocation2 + $0x48] sm:$0xff] %v649
        %690 = vst [vmem:[#allocation2 + $0x50] sm:$0xff] %v651
        %691 = vst [vmem:[#allocation2 + $0x58] sm:$0xff] %v653
        %692 = vst [vmem:[#allocation2 + $0x60] sm:$0xff] %v655
        %693 = vst [vmem:[#allocation2 + $0x68] sm:$0xff] %v657
        %694 = vst [vmem:[#allocation2 + $0x70] sm:$0xff] %v659
        %695 = vst [vmem:[#allocation2 + $0x78] sm:$0xff] %v661
        %696 = vst [vmem:[#allocation2 + $0x80] sm:$0xff] %v663
        %697 = vst [vmem:[#allocation2 + $0x88] sm:$0xf] %v662
        %v698 = vlaneseq
        %v699 = vshrl.u32 %v698, 7
        %v700 = vadd.s32 %v699, 8
        %v701 = vadd.s32 %v699, 16
        %v702 = vadd.s32 %v699, 24
        %v703 = vadd.s32 %v699, 32
        %v704 = vadd.s32 %v699, 40
        %v705 = vadd.s32 %v699, 48
        %v706 = vadd.s32 %v699, 56
        %v707 = vadd.s32 %v699, 64
        %v708 = vadd.s32 %v699, 72
        %v709 = vadd.s32 %v699, 80
        %v710 = vadd.s32 %v699, 88
        %v711 = vadd.s32 %v699, 96
        %v712 = vadd.s32 %v699, 104
        %v713 = vadd.s32 %v699, 112
        %v714 = vadd.s32 %v699, 120
        %v715 = vadd.s32 %v699, 128
        %v716 = vadd.s32 %v699, 136
        %v717 = vadd.s32 %v699, 144
        %v718 = vadd.s32 %v699, 152
        %v719 = vadd.s32 %v699, 160
        %v720 = vadd.s32 %v699, 168
        %v721 = vadd.s32 %v699, 176
        %v722 = vadd.s32 %v699, 184
        %v723 = vadd.s32 %v699, 192
        %v724 = vadd.s32 %v699, 200
        %v725 = vadd.s32 %v699, 208
        %v726 = vadd.s32 %v699, 216
        %v727 = vadd.s32 %v699, 224
        %v728 = vadd.s32 %v699, 232
        %v729 = vadd.s32 %v699, 240
        %v730 = vadd.s32 %v699, 248
        %vm731 = vcmp.lt.s32.totalorder %v699, 0
        %v732 = vsub.s32 0, %v699
        %v733 = vsel %vm731, %v732, %v699
        %v734 = vshrl.u32 %v733, 4
        %v735 = vand.u32 %v733, 15
        %v736 = vsub.s32 0, %v735
        %v737 = vsel %vm731, %v736, %v735
        %vm738 = vcmp.lt.s32.totalorder %v700, 0
        %v739 = vsub.s32 0, %v700
        %v740 = vsel %vm738, %v739, %v700
        %v741 = vshrl.u32 %v740, 4
        %v742 = vand.u32 %v740, 15
        %v743 = vsub.s32 0, %v742
        %v744 = vsel %vm738, %v743, %v742
        %vm745 = vcmp.lt.s32.totalorder %v701, 0
        %v746 = vsub.s32 0, %v701
        %v747 = vsel %vm745, %v746, %v701
        %v748 = vshrl.u32 %v747, 4
        %v749 = vand.u32 %v747, 15
        %v750 = vsub.s32 0, %v749
        %v751 = vsel %vm745, %v750, %v749
        %vm752 = vcmp.lt.s32.totalorder %v702, 0
        %v753 = vsub.s32 0, %v702
        %v754 = vsel %vm752, %v753, %v702
        %v755 = vshrl.u32 %v754, 4
        %v756 = vand.u32 %v754, 15
        %v757 = vsub.s32 0, %v756
        %v758 = vsel %vm752, %v757, %v756
        %vm759 = vcmp.lt.s32.totalorder %v703, 0
        %v760 = vsub.s32 0, %v703
        %v761 = vsel %vm759, %v760, %v703
        %v762 = vshrl.u32 %v761, 4
        %v763 = vand.u32 %v761, 15
        %v764 = vsub.s32 0, %v763
        %v765 = vsel %vm759, %v764, %v763
        %vm766 = vcmp.lt.s32.totalorder %v704, 0
        %v767 = vsub.s32 0, %v704
        %v768 = vsel %vm766, %v767, %v704
        %v769 = vshrl.u32 %v768, 4
        %v770 = vand.u32 %v768, 15
        %v771 = vsub.s32 0, %v770
        %v772 = vsel %vm766, %v771, %v770
        %vm773 = vcmp.lt.s32.totalorder %v705, 0
        %v774 = vsub.s32 0, %v705
        %v775 = vsel %vm773, %v774, %v705
        %v776 = vshrl.u32 %v775, 4
        %v777 = vand.u32 %v775, 15
        %v778 = vsub.s32 0, %v777
        %v779 = vsel %vm773, %v778, %v777
        %vm780 = vcmp.lt.s32.totalorder %v706, 0
        %v781 = vsub.s32 0, %v706
        %v782 = vsel %vm780, %v781, %v706
        %v783 = vshrl.u32 %v782, 4
        %v784 = vand.u32 %v782, 15
        %v785 = vsub.s32 0, %v784
        %v786 = vsel %vm780, %v785, %v784
        %vm787 = vcmp.lt.s32.totalorder %v707, 0
        %v788 = vsub.s32 0, %v707
        %v789 = vsel %vm787, %v788, %v707
        %v790 = vshrl.u32 %v789, 4
        %v791 = vand.u32 %v789, 15
        %v792 = vsub.s32 0, %v791
        %v793 = vsel %vm787, %v792, %v791
        %vm794 = vcmp.lt.s32.totalorder %v708, 0
        %v795 = vsub.s32 0, %v708
        %v796 = vsel %vm794, %v795, %v708
        %v797 = vshrl.u32 %v796, 4
        %v798 = vand.u32 %v796, 15
        %v799 = vsub.s32 0, %v798
        %v800 = vsel %vm794, %v799, %v798
        %vm801 = vcmp.lt.s32.totalorder %v709, 0
        %v802 = vsub.s32 0, %v709
        %v803 = vsel %vm801, %v802, %v709
        %v804 = vshrl.u32 %v803, 4
        %v805 = vand.u32 %v803, 15
        %v806 = vsub.s32 0, %v805
        %v807 = vsel %vm801, %v806, %v805
        %vm808 = vcmp.lt.s32.totalorder %v710, 0
        %v809 = vsub.s32 0, %v710
        %v810 = vsel %vm808, %v809, %v710
        %v811 = vshrl.u32 %v810, 4
        %v812 = vand.u32 %v810, 15
        %v813 = vsub.s32 0, %v812
        %v814 = vsel %vm808, %v813, %v812
        %vm815 = vcmp.lt.s32.totalorder %v711, 0
        %v816 = vsub.s32 0, %v711
        %v817 = vsel %vm815, %v816, %v711
        %v818 = vshrl.u32 %v817, 4
        %v819 = vand.u32 %v817, 15
        %v820 = vsub.s32 0, %v819
        %v821 = vsel %vm815, %v820, %v819
        %vm822 = vcmp.lt.s32.totalorder %v712, 0
        %v823 = vsub.s32 0, %v712
        %v824 = vsel %vm822, %v823, %v712
        %v825 = vshrl.u32 %v824, 4
        %v826 = vand.u32 %v824, 15
        %v827 = vsub.s32 0, %v826
        %v828 = vsel %vm822, %v827, %v826
        %vm829 = vcmp.lt.s32.totalorder %v713, 0
        %v830 = vsub.s32 0, %v713
        %v831 = vsel %vm829, %v830, %v713
        %v832 = vshrl.u32 %v831, 4
        %v833 = vand.u32 %v831, 15
        %v834 = vsub.s32 0, %v833
        %v835 = vsel %vm829, %v834, %v833
        %vm836 = vcmp.lt.s32.totalorder %v714, 0
        %v837 = vsub.s32 0, %v714
        %v838 = vsel %vm836, %v837, %v714
        %v839 = vshrl.u32 %v838, 4
        %v840 = vand.u32 %v838, 15
        %v841 = vsub.s32 0, %v840
        %v842 = vsel %vm836, %v841, %v840
        %vm843 = vcmp.lt.s32.totalorder %v715, 0
        %v844 = vsub.s32 0, %v715
        %v845 = vsel %vm843, %v844, %v715
        %v846 = vshrl.u32 %v845, 4
        %v847 = vand.u32 %v845, 15
        %v848 = vsub.s32 0, %v847
        %v849 = vsel %vm843, %v848, %v847
        %vm850 = vcmp.lt.s32.totalorder %v716, 0
        %v851 = vsub.s32 0, %v716
        %v852 = vsel %vm850, %v851, %v716
        %v853 = vshrl.u32 %v852, 4
        %v854 = vand.u32 %v852, 15
        %v855 = vsub.s32 0, %v854
        %v856 = vsel %vm850, %v855, %v854
        %vm857 = vcmp.lt.s32.totalorder %v717, 0
        %v858 = vsub.s32 0, %v717
        %v859 = vsel %vm857, %v858, %v717
        %v860 = vshrl.u32 %v859, 4
        %v861 = vand.u32 %v859, 15
        %v862 = vsub.s32 0, %v861
        %v863 = vsel %vm857, %v862, %v861
        %vm864 = vcmp.lt.s32.totalorder %v718, 0
        %v865 = vsub.s32 0, %v718
        %v866 = vsel %vm864, %v865, %v718
        %v867 = vshrl.u32 %v866, 4
        %v868 = vand.u32 %v866, 15
        %v869 = vsub.s32 0, %v868
        %v870 = vsel %vm864, %v869, %v868
        %vm871 = vcmp.lt.s32.totalorder %v719, 0
        %v872 = vsub.s32 0, %v719
        %v873 = vsel %vm871, %v872, %v719
        %v874 = vshrl.u32 %v873, 4
        %v875 = vand.u32 %v873, 15
        %v876 = vsub.s32 0, %v875
        %v877 = vsel %vm871, %v876, %v875
        %vm878 = vcmp.lt.s32.totalorder %v720, 0
        %v879 = vsub.s32 0, %v720
        %v880 = vsel %vm878, %v879, %v720
        %v881 = vshrl.u32 %v880, 4
        %v882 = vand.u32 %v880, 15
        %v883 = vsub.s32 0, %v882
        %v884 = vsel %vm878, %v883, %v882
        %vm885 = vcmp.lt.s32.totalorder %v721, 0
        %v886 = vsub.s32 0, %v721
        %v887 = vsel %vm885, %v886, %v721
        %v888 = vshrl.u32 %v887, 4
        %v889 = vand.u32 %v887, 15
        %v890 = vsub.s32 0, %v889
        %v891 = vsel %vm885, %v890, %v889
        %vm892 = vcmp.lt.s32.totalorder %v722, 0
        %v893 = vsub.s32 0, %v722
        %v894 = vsel %vm892, %v893, %v722
        %v895 = vshrl.u32 %v894, 4
        %v896 = vand.u32 %v894, 15
        %v897 = vsub.s32 0, %v896
        %v898 = vsel %vm892, %v897, %v896
        %vm899 = vcmp.lt.s32.totalorder %v723, 0
        %v900 = vsub.s32 0, %v723
        %v901 = vsel %vm899, %v900, %v723
        %v902 = vshrl.u32 %v901, 4
        %v903 = vand.u32 %v901, 15
        %v904 = vsub.s32 0, %v903
        %v905 = vsel %vm899, %v904, %v903
        %vm906 = vcmp.lt.s32.totalorder %v724, 0
        %v907 = vsub.s32 0, %v724
        %v908 = vsel %vm906, %v907, %v724
        %v909 = vshrl.u32 %v908, 4
        %v910 = vand.u32 %v908, 15
        %v911 = vsub.s32 0, %v910
        %v912 = vsel %vm906, %v911, %v910
        %vm913 = vcmp.lt.s32.totalorder %v725, 0
        %v914 = vsub.s32 0, %v725
        %v915 = vsel %vm913, %v914, %v725
        %v916 = vshrl.u32 %v915, 4
        %v917 = vand.u32 %v915, 15
        %v918 = vsub.s32 0, %v917
        %v919 = vsel %vm913, %v918, %v917
        %vm920 = vcmp.lt.s32.totalorder %v726, 0
        %v921 = vsub.s32 0, %v726
        %v922 = vsel %vm920, %v921, %v726
        %v923 = vshrl.u32 %v922, 4
        %v924 = vand.u32 %v922, 15
        %v925 = vsub.s32 0, %v924
        %v926 = vsel %vm920, %v925, %v924
        %vm927 = vcmp.lt.s32.totalorder %v727, 0
        %v928 = vsub.s32 0, %v727
        %v929 = vsel %vm927, %v928, %v727
        %v930 = vshrl.u32 %v929, 4
        %v931 = vand.u32 %v929, 15
        %v932 = vsub.s32 0, %v931
        %v933 = vsel %vm927, %v932, %v931
        %vm934 = vcmp.lt.s32.totalorder %v728, 0
        %v935 = vsub.s32 0, %v728
        %v936 = vsel %vm934, %v935, %v728
        %v937 = vshrl.u32 %v936, 4
        %v938 = vand.u32 %v936, 15
        %v939 = vsub.s32 0, %v938
        %v940 = vsel %vm934, %v939, %v938
        %vm941 = vcmp.lt.s32.totalorder %v729, 0
        %v942 = vsub.s32 0, %v729
        %v943 = vsel %vm941, %v942, %v729
        %v944 = vshrl.u32 %v943, 4
        %v945 = vand.u32 %v943, 15
        %v946 = vsub.s32 0, %v945
        %v947 = vsel %vm941, %v946, %v945
        %vm948 = vcmp.lt.s32.totalorder %v730, 0
        %v949 = vsub.s32 0, %v730
        %v950 = vsel %vm948, %v949, %v730
        %v951 = vshrl.u32 %v950, 4
        %v952 = vand.u32 %v950, 15
        %v953 = vsub.s32 0, %v952
        %v954 = vsel %vm948, %v953, %v952
        %vm955 = vcmp.ne.s32.totalorder %v737, 0
        %vm956 = vcmp.ne.s32.totalorder %v744, 0
        %vm957 = vcmp.ne.s32.totalorder %v751, 0
        %vm958 = vcmp.ne.s32.totalorder %v758, 0
        %vm959 = vcmp.ne.s32.totalorder %v765, 0
        %vm960 = vcmp.ne.s32.totalorder %v772, 0
        %vm961 = vcmp.ne.s32.totalorder %v779, 0
        %vm962 = vcmp.ne.s32.totalorder %v786, 0
        %vm963 = vcmp.ne.s32.totalorder %v793, 0
        %vm964 = vcmp.ne.s32.totalorder %v800, 0
        %vm965 = vcmp.ne.s32.totalorder %v807, 0
        %vm966 = vcmp.ne.s32.totalorder %v814, 0
        %vm967 = vcmp.ne.s32.totalorder %v821, 0
        %vm968 = vcmp.ne.s32.totalorder %v828, 0
        %vm969 = vcmp.ne.s32.totalorder %v835, 0
        %vm970 = vcmp.ne.s32.totalorder %v842, 0
        %vm971 = vcmp.ne.s32.totalorder %v849, 0
        %vm972 = vcmp.ne.s32.totalorder %v856, 0
        %vm973 = vcmp.ne.s32.totalorder %v863, 0
        %vm974 = vcmp.ne.s32.totalorder %v870, 0
        %vm975 = vcmp.ne.s32.totalorder %v877, 0
        %vm976 = vcmp.ne.s32.totalorder %v884, 0
        %vm977 = vcmp.ne.s32.totalorder %v891, 0
        %vm978 = vcmp.ne.s32.totalorder %v898, 0
        %vm979 = vcmp.ne.s32.totalorder %v905, 0
        %vm980 = vcmp.ne.s32.totalorder %v912, 0
        %vm981 = vcmp.ne.s32.totalorder %v919, 0
        %vm982 = vcmp.ne.s32.totalorder %v926, 0
        %vm983 = vcmp.ne.s32.totalorder %v933, 0
        %vm984 = vcmp.ne.s32.totalorder %v940, 0
        %vm985 = vcmp.ne.s32.totalorder %v947, 0
        %vm986 = vcmp.ne.s32.totalorder %v954, 0
        %vm987 = vcmp.lt.s32.totalorder %v737, 0
        %vm988 = vcmp.lt.s32.totalorder %v744, 0
        %vm989 = vcmp.lt.s32.totalorder %v751, 0
        %vm990 = vcmp.lt.s32.totalorder %v758, 0
        %vm991 = vcmp.lt.s32.totalorder %v765, 0
        %vm992 = vcmp.lt.s32.totalorder %v772, 0
        %vm993 = vcmp.lt.s32.totalorder %v779, 0
        %vm994 = vcmp.lt.s32.totalorder %v786, 0
        %vm995 = vcmp.lt.s32.totalorder %v793, 0
        %vm996 = vcmp.lt.s32.totalorder %v800, 0
        %vm997 = vcmp.lt.s32.totalorder %v807, 0
        %vm998 = vcmp.lt.s32.totalorder %v814, 0
        %vm999 = vcmp.lt.s32.totalorder %v821, 0
        %vm1000 = vcmp.lt.s32.totalorder %v828, 0
        %vm1001 = vcmp.lt.s32.totalorder %v835, 0
        %vm1002 = vcmp.lt.s32.totalorder %v842, 0
        %vm1003 = vcmp.lt.s32.totalorder %v849, 0
        %vm1004 = vcmp.lt.s32.totalorder %v856, 0
        %vm1005 = vcmp.lt.s32.totalorder %v863, 0
        %vm1006 = vcmp.lt.s32.totalorder %v870, 0
        %vm1007 = vcmp.lt.s32.totalorder %v877, 0
        %vm1008 = vcmp.lt.s32.totalorder %v884, 0
        %vm1009 = vcmp.lt.s32.totalorder %v891, 0
        %vm1010 = vcmp.lt.s32.totalorder %v898, 0
        %vm1011 = vcmp.lt.s32.totalorder %v905, 0
        %vm1012 = vcmp.lt.s32.totalorder %v912, 0
        %vm1013 = vcmp.lt.s32.totalorder %v919, 0
        %vm1014 = vcmp.lt.s32.totalorder %v926, 0
        %vm1015 = vcmp.lt.s32.totalorder %v933, 0
        %vm1016 = vcmp.lt.s32.totalorder %v940, 0
        %vm1017 = vcmp.lt.s32.totalorder %v947, 0
        %vm1018 = vcmp.lt.s32.totalorder %v954, 0
        %vm1019 = vmand %vm987, %vm955
        %vm1020 = vmand %vm988, %vm956
        %vm1021 = vmand %vm989, %vm957
        %vm1022 = vmand %vm990, %vm958
        %vm1023 = vmand %vm991, %vm959
        %vm1024 = vmand %vm992, %vm960
        %vm1025 = vmand %vm993, %vm961
        %vm1026 = vmand %vm994, %vm962
        %vm1027 = vmand %vm995, %vm963
        %vm1028 = vmand %vm996, %vm964
        %vm1029 = vmand %vm997, %vm965
        %vm1030 = vmand %vm998, %vm966
        %vm1031 = vmand %vm999, %vm967
        %vm1032 = vmand %vm1000, %vm968
        %vm1033 = vmand %vm1001, %vm969
        %vm1034 = vmand %vm1002, %vm970
        %vm1035 = vmand %vm1003, %vm971
        %vm1036 = vmand %vm1004, %vm972
        %vm1037 = vmand %vm1005, %vm973
        %vm1038 = vmand %vm1006, %vm974
        %vm1039 = vmand %vm1007, %vm975
        %vm1040 = vmand %vm1008, %vm976
        %vm1041 = vmand %vm1009, %vm977
        %vm1042 = vmand %vm1010, %vm978
        %vm1043 = vmand %vm1011, %vm979
        %vm1044 = vmand %vm1012, %vm980
        %vm1045 = vmand %vm1013, %vm981
        %vm1046 = vmand %vm1014, %vm982
        %vm1047 = vmand %vm1015, %vm983
        %vm1048 = vmand %vm1016, %vm984
        %vm1049 = vmand %vm1017, %vm985
        %vm1050 = vmand %vm1018, %vm986
        %v1051 = vadd.s32 %v737, 16
        %v1052 = vadd.s32 %v744, 16
        %v1053 = vadd.s32 %v751, 16
        %v1054 = vadd.s32 %v758, 16
        %v1055 = vadd.s32 %v765, 16
        %v1056 = vadd.s32 %v772, 16
        %v1057 = vadd.s32 %v779, 16
        %v1058 = vadd.s32 %v786, 16
        %v1059 = vadd.s32 %v793, 16
        %v1060 = vadd.s32 %v800, 16
        %v1061 = vadd.s32 %v807, 16
        %v1062 = vadd.s32 %v814, 16
        %v1063 = vadd.s32 %v821, 16
        %v1064 = vadd.s32 %v828, 16
        %v1065 = vadd.s32 %v835, 16
        %v1066 = vadd.s32 %v842, 16
        %v1067 = vadd.s32 %v849, 16
        %v1068 = vadd.s32 %v856, 16
        %v1069 = vadd.s32 %v863, 16
        %v1070 = vadd.s32 %v870, 16
        %v1071 = vadd.s32 %v877, 16
        %v1072 = vadd.s32 %v884, 16
        %v1073 = vadd.s32 %v891, 16
        %v1074 = vadd.s32 %v898, 16
        %v1075 = vadd.s32 %v905, 16
        %v1076 = vadd.s32 %v912, 16
        %v1077 = vadd.s32 %v919, 16
        %v1078 = vadd.s32 %v926, 16
        %v1079 = vadd.s32 %v933, 16
        %v1080 = vadd.s32 %v940, 16
        %v1081 = vadd.s32 %v947, 16
        %v1082 = vadd.s32 %v954, 16
        %v1083 = vsel %vm1019, %v1051, %v737
        %v1084 = vsel %vm1020, %v1052, %v744
        %v1085 = vsel %vm1021, %v1053, %v751
        %v1086 = vsel %vm1022, %v1054, %v758
        %v1087 = vsel %vm1023, %v1055, %v765
        %v1088 = vsel %vm1024, %v1056, %v772
        %v1089 = vsel %vm1025, %v1057, %v779
        %v1090 = vsel %vm1026, %v1058, %v786
        %v1091 = vsel %vm1027, %v1059, %v793
        %v1092 = vsel %vm1028, %v1060, %v800
        %v1093 = vsel %vm1029, %v1061, %v807
        %v1094 = vsel %vm1030, %v1062, %v814
        %v1095 = vsel %vm1031, %v1063, %v821
        %v1096 = vsel %vm1032, %v1064, %v828
        %v1097 = vsel %vm1033, %v1065, %v835
        %v1098 = vsel %vm1034, %v1066, %v842
        %v1099 = vsel %vm1035, %v1067, %v849
        %v1100 = vsel %vm1036, %v1068, %v856
        %v1101 = vsel %vm1037, %v1069, %v863
        %v1102 = vsel %vm1038, %v1070, %v870
        %v1103 = vsel %vm1039, %v1071, %v877
        %v1104 = vsel %vm1040, %v1072, %v884
        %v1105 = vsel %vm1041, %v1073, %v891
        %v1106 = vsel %vm1042, %v1074, %v898
        %v1107 = vsel %vm1043, %v1075, %v905
        %v1108 = vsel %vm1044, %v1076, %v912
        %v1109 = vsel %vm1045, %v1077, %v919
        %v1110 = vsel %vm1046, %v1078, %v926
        %v1111 = vsel %vm1047, %v1079, %v933
        %v1112 = vsel %vm1048, %v1080, %v940
        %v1113 = vsel %vm1049, %v1081, %v947
        %v1114 = vsel %vm1050, %v1082, %v954
        %vm1115 = vcmp.ne.s32.totalorder %v1083, 0
        %vm1116 = vcmp.ne.s32.totalorder %v1084, 0
        %vm1117 = vcmp.ne.s32.totalorder %v1085, 0
        %vm1118 = vcmp.ne.s32.totalorder %v1086, 0
        %vm1119 = vcmp.ne.s32.totalorder %v1087, 0
        %vm1120 = vcmp.ne.s32.totalorder %v1088, 0
        %vm1121 = vcmp.ne.s32.totalorder %v1089, 0
        %vm1122 = vcmp.ne.s32.totalorder %v1090, 0
        %vm1123 = vcmp.ne.s32.totalorder %v1091, 0
        %vm1124 = vcmp.ne.s32.totalorder %v1092, 0
        %vm1125 = vcmp.ne.s32.totalorder %v1093, 0
        %vm1126 = vcmp.ne.s32.totalorder %v1094, 0
        %vm1127 = vcmp.ne.s32.totalorder %v1095, 0
        %vm1128 = vcmp.ne.s32.totalorder %v1096, 0
        %vm1129 = vcmp.ne.s32.totalorder %v1097, 0
        %vm1130 = vcmp.ne.s32.totalorder %v1098, 0
        %vm1131 = vcmp.ne.s32.totalorder %v1099, 0
        %vm1132 = vcmp.ne.s32.totalorder %v1100, 0
        %vm1133 = vcmp.ne.s32.totalorder %v1101, 0
        %vm1134 = vcmp.ne.s32.totalorder %v1102, 0
        %vm1135 = vcmp.ne.s32.totalorder %v1103, 0
        %vm1136 = vcmp.ne.s32.totalorder %v1104, 0
        %vm1137 = vcmp.ne.s32.totalorder %v1105, 0
        %vm1138 = vcmp.ne.s32.totalorder %v1106, 0
        %vm1139 = vcmp.ne.s32.totalorder %v1107, 0
        %vm1140 = vcmp.ne.s32.totalorder %v1108, 0
        %vm1141 = vcmp.ne.s32.totalorder %v1109, 0
        %vm1142 = vcmp.ne.s32.totalorder %v1110, 0
        %vm1143 = vcmp.ne.s32.totalorder %v1111, 0
        %vm1144 = vcmp.ne.s32.totalorder %v1112, 0
        %vm1145 = vcmp.ne.s32.totalorder %v1113, 0
        %vm1146 = vcmp.ne.s32.totalorder %v1114, 0
        %vm1147 = vcmp.ne.s32.totalorder %v1083, 15
        %vm1148 = vcmp.ne.s32.totalorder %v1084, 15
        %vm1149 = vcmp.ne.s32.totalorder %v1085, 15
        %vm1150 = vcmp.ne.s32.totalorder %v1086, 15
        %vm1151 = vcmp.ne.s32.totalorder %v1087, 15
        %vm1152 = vcmp.ne.s32.totalorder %v1088, 15
        %vm1153 = vcmp.ne.s32.totalorder %v1089, 15
        %vm1154 = vcmp.ne.s32.totalorder %v1090, 15
        %vm1155 = vcmp.ne.s32.totalorder %v1091, 15
        %vm1156 = vcmp.ne.s32.totalorder %v1092, 15
        %vm1157 = vcmp.ne.s32.totalorder %v1093, 15
        %vm1158 = vcmp.ne.s32.totalorder %v1094, 15
        %vm1159 = vcmp.ne.s32.totalorder %v1095, 15
        %vm1160 = vcmp.ne.s32.totalorder %v1096, 15
        %vm1161 = vcmp.ne.s32.totalorder %v1097, 15
        %vm1162 = vcmp.ne.s32.totalorder %v1098, 15
        %vm1163 = vcmp.ne.s32.totalorder %v1099, 15
        %vm1164 = vcmp.ne.s32.totalorder %v1100, 15
        %vm1165 = vcmp.ne.s32.totalorder %v1101, 15
        %vm1166 = vcmp.ne.s32.totalorder %v1102, 15
        %vm1167 = vcmp.ne.s32.totalorder %v1103, 15
        %vm1168 = vcmp.ne.s32.totalorder %v1104, 15
        %vm1169 = vcmp.ne.s32.totalorder %v1105, 15
        %vm1170 = vcmp.ne.s32.totalorder %v1106, 15
        %vm1171 = vcmp.ne.s32.totalorder %v1107, 15
        %vm1172 = vcmp.ne.s32.totalorder %v1108, 15
        %vm1173 = vcmp.ne.s32.totalorder %v1109, 15
        %vm1174 = vcmp.ne.s32.totalorder %v1110, 15
        %vm1175 = vcmp.ne.s32.totalorder %v1111, 15
        %vm1176 = vcmp.ne.s32.totalorder %v1112, 15
        %vm1177 = vcmp.ne.s32.totalorder %v1113, 15
        %vm1178 = vcmp.ne.s32.totalorder %v1114, 15
        %v1179 = vld [vmem:[#allocation2] sm:$0xf8]
        %v1180 = vld [vmem:[#allocation2 + $0x8] sm:$0xff]
        %v1181 = vld [vmem:[#allocation2 + $0x10] sm:$0xff]
        %v1182 = vld [vmem:[#allocation2 + $0x18] sm:$0xff]
        %v1183 = vld [vmem:[#allocation2 + $0x20] sm:$0xff]
        %v1184 = vld [vmem:[#allocation2 + $0x28] sm:$0xff]
        %v1185 = vld [vmem:[#allocation2 + $0x30] sm:$0xff]
        %v1186 = vld [vmem:[#allocation2 + $0x38] sm:$0xff]
        %v1187 = vld [vmem:[#allocation2 + $0x40] sm:$0xff]
        %v1188 = vld [vmem:[#allocation2 + $0x48] sm:$0xff]
        %v1189 = vld [vmem:[#allocation2 + $0x50] sm:$0xff]
        %v1190 = vld [vmem:[#allocation2 + $0x58] sm:$0xff]
        %v1191 = vld [vmem:[#allocation2 + $0x60] sm:$0xff]
        %v1192 = vld [vmem:[#allocation2 + $0x68] sm:$0xff]
        %v1193 = vld [vmem:[#allocation2 + $0x70] sm:$0xff]
        %v1194 = vld [vmem:[#allocation2 + $0x78] sm:$0xff]
        %v1195 = vld [vmem:[#allocation2 + $0x80] sm:$0xf]
        %v1196 = vsel %vm1115, 1, 0
        %v1197 = vsel %vm1116, 1, 0
        %v1198 = vsel %vm1117, 1, 0
        %v1199 = vsel %vm1118, 1, 0
        %v1200 = vsel %vm1119, 1, 0
        %v1201 = vsel %vm1120, 1, 0
        %v1202 = vsel %vm1121, 1, 0
        %v1203 = vsel %vm1122, 1, 0
        %v1204 = vsel %vm1123, 1, 0
        %v1205 = vsel %vm1124, 1, 0
        %v1206 = vsel %vm1125, 1, 0
        %v1207 = vsel %vm1126, 1, 0
        %v1208 = vsel %vm1127, 1, 0
        %v1209 = vsel %vm1128, 1, 0
        %v1210 = vsel %vm1129, 1, 0
        %v1211 = vsel %vm1130, 1, 0
        %v1212 = vsel %vm1131, 1, 0
        %v1213 = vsel %vm1132, 1, 0
        %v1214 = vsel %vm1133, 1, 0
        %v1215 = vsel %vm1134, 1, 0
        %v1216 = vsel %vm1135, 1, 0
        %v1217 = vsel %vm1136, 1, 0
        %v1218 = vsel %vm1137, 1, 0
        %v1219 = vsel %vm1138, 1, 0
        %v1220 = vsel %vm1139, 1, 0
        %v1221 = vsel %vm1140, 1, 0
        %v1222 = vsel %vm1141, 1, 0
        %v1223 = vsel %vm1142, 1, 0
        %v1224 = vsel %vm1143, 1, 0
        %v1225 = vsel %vm1144, 1, 0
        %v1226 = vsel %vm1145, 1, 0
        %v1227 = vsel %vm1146, 1, 0
        %vm1228 = vcmp.eq.s32.totalorder %v1196, 1
        %vm1229 = vcmp.eq.s32.totalorder %v1197, 1
        %vm1230 = vcmp.eq.s32.totalorder %v1198, 1
        %vm1231 = vcmp.eq.s32.totalorder %v1199, 1
        %vm1232 = vcmp.eq.s32.totalorder %v1200, 1
        %vm1233 = vcmp.eq.s32.totalorder %v1201, 1
        %vm1234 = vcmp.eq.s32.totalorder %v1202, 1
        %vm1235 = vcmp.eq.s32.totalorder %v1203, 1
        %vm1236 = vcmp.eq.s32.totalorder %v1204, 1
        %vm1237 = vcmp.eq.s32.totalorder %v1205, 1
        %vm1238 = vcmp.eq.s32.totalorder %v1206, 1
        %vm1239 = vcmp.eq.s32.totalorder %v1207, 1
        %vm1240 = vcmp.eq.s32.totalorder %v1208, 1
        %vm1241 = vcmp.eq.s32.totalorder %v1209, 1
        %vm1242 = vcmp.eq.s32.totalorder %v1210, 1
        %vm1243 = vcmp.eq.s32.totalorder %v1211, 1
        %vm1244 = vcmp.eq.s32.totalorder %v1212, 1
        %vm1245 = vcmp.eq.s32.totalorder %v1213, 1
        %vm1246 = vcmp.eq.s32.totalorder %v1214, 1
        %vm1247 = vcmp.eq.s32.totalorder %v1215, 1
        %vm1248 = vcmp.eq.s32.totalorder %v1216, 1
        %vm1249 = vcmp.eq.s32.totalorder %v1217, 1
        %vm1250 = vcmp.eq.s32.totalorder %v1218, 1
        %vm1251 = vcmp.eq.s32.totalorder %v1219, 1
        %vm1252 = vcmp.eq.s32.totalorder %v1220, 1
        %vm1253 = vcmp.eq.s32.totalorder %v1221, 1
        %vm1254 = vcmp.eq.s32.totalorder %v1222, 1
        %vm1255 = vcmp.eq.s32.totalorder %v1223, 1
        %vm1256 = vcmp.eq.s32.totalorder %v1224, 1
        %vm1257 = vcmp.eq.s32.totalorder %v1225, 1
        %vm1258 = vcmp.eq.s32.totalorder %v1226, 1
        %vm1259 = vcmp.eq.s32.totalorder %v1227, 1
        %vm1260 = vmpackc.low %vm1228, %vm1228
        %vm1261 = vmpackc.low %vm1229, %vm1229
        %vm1262 = vmpackc.low %vm1230, %vm1230
        %vm1263 = vmpackc.low %vm1231, %vm1231
        %vm1264 = vmpackc.low %vm1232, %vm1232
        %vm1265 = vmpackc.low %vm1233, %vm1233
        %vm1266 = vmpackc.low %vm1234, %vm1234
        %vm1267 = vmpackc.low %vm1235, %vm1235
        %vm1268 = vmpackc.low %vm1236, %vm1236
        %vm1269 = vmpackc.low %vm1237, %vm1237
        %vm1270 = vmpackc.low %vm1238, %vm1238
        %vm1271 = vmpackc.low %vm1239, %vm1239
        %vm1272 = vmpackc.low %vm1240, %vm1240
        %vm1273 = vmpackc.low %vm1241, %vm1241
        %vm1274 = vmpackc.low %vm1242, %vm1242
        %vm1275 = vmpackc.low %vm1243, %vm1243
        %vm1276 = vmpackc.low %vm1244, %vm1244
        %vm1277 = vmpackc.low %vm1245, %vm1245
        %vm1278 = vmpackc.low %vm1246, %vm1246
        %vm1279 = vmpackc.low %vm1247, %vm1247
        %vm1280 = vmpackc.low %vm1248, %vm1248
        %vm1281 = vmpackc.low %vm1249, %vm1249
        %vm1282 = vmpackc.low %vm1250, %vm1250
        %vm1283 = vmpackc.low %vm1251, %vm1251
        %vm1284 = vmpackc.low %vm1252, %vm1252
        %vm1285 = vmpackc.low %vm1253, %vm1253
        %vm1286 = vmpackc.low %vm1254, %vm1254
        %vm1287 = vmpackc.low %vm1255, %vm1255
        %vm1288 = vmpackc.low %vm1256, %vm1256
        %vm1289 = vmpackc.low %vm1257, %vm1257
        %vm1290 = vmpackc.low %vm1258, %vm1258
        %vm1291 = vmpackc.low %vm1259, %vm1259
        %v1292 = vsel %vm1260, 65537, 0
        %v1293 = vsel %vm1261, 65537, 0
        %v1294 = vsel %vm1262, 65537, 0
        %v1295 = vsel %vm1263, 65537, 0
        %v1296 = vsel %vm1264, 65537, 0
        %v1297 = vsel %vm1265, 65537, 0
        %v1298 = vsel %vm1266, 65537, 0
        %v1299 = vsel %vm1267, 65537, 0
        %v1300 = vsel %vm1268, 65537, 0
        %v1301 = vsel %vm1269, 65537, 0
        %v1302 = vsel %vm1270, 65537, 0
        %v1303 = vsel %vm1271, 65537, 0
        %v1304 = vsel %vm1272, 65537, 0
        %v1305 = vsel %vm1273, 65537, 0
        %v1306 = vsel %vm1274, 65537, 0
        %v1307 = vsel %vm1275, 65537, 0
        %v1308 = vsel %vm1276, 65537, 0
        %v1309 = vsel %vm1277, 65537, 0
        %v1310 = vsel %vm1278, 65537, 0
        %v1311 = vsel %vm1279, 65537, 0
        %v1312 = vsel %vm1280, 65537, 0
        %v1313 = vsel %vm1281, 65537, 0
        %v1314 = vsel %vm1282, 65537, 0
        %v1315 = vsel %vm1283, 65537, 0
        %v1316 = vsel %vm1284, 65537, 0
        %v1317 = vsel %vm1285, 65537, 0
        %v1318 = vsel %vm1286, 65537, 0
        %v1319 = vsel %vm1287, 65537, 0
        %v1320 = vsel %vm1288, 65537, 0
        %v1321 = vsel %vm1289, 65537, 0
        %v1322 = vsel %vm1290, 65537, 0
        %v1323 = vsel %vm1291, 65537, 0
        %v1324 = vunpack.c.l.b16 %v1292
        %v1325 = vunpack.c.l.b16 %v1293
        %v1326 = vunpack.c.l.b16 %v1294
        %v1327 = vunpack.c.l.b16 %v1295
        %v1328 = vunpack.c.l.b16 %v1296
        %v1329 = vunpack.c.l.b16 %v1297
        %v1330 = vunpack.c.l.b16 %v1298
        %v1331 = vunpack.c.l.b16 %v1299
        %v1332 = vunpack.c.l.b16 %v1300
        %v1333 = vunpack.c.l.b16 %v1301
        %v1334 = vunpack.c.l.b16 %v1302
        %v1335 = vunpack.c.l.b16 %v1303
        %v1336 = vunpack.c.l.b16 %v1304
        %v1337 = vunpack.c.l.b16 %v1305
        %v1338 = vunpack.c.l.b16 %v1306
        %v1339 = vunpack.c.l.b16 %v1307
        %v1340 = vunpack.c.l.b16 %v1308
        %v1341 = vunpack.c.l.b16 %v1309
        %v1342 = vunpack.c.l.b16 %v1310
        %v1343 = vunpack.c.l.b16 %v1311
        %v1344 = vunpack.c.l.b16 %v1312
        %v1345 = vunpack.c.l.b16 %v1313
        %v1346 = vunpack.c.l.b16 %v1314
        %v1347 = vunpack.c.l.b16 %v1315
        %v1348 = vunpack.c.l.b16 %v1316
        %v1349 = vunpack.c.l.b16 %v1317
        %v1350 = vunpack.c.l.b16 %v1318
        %v1351 = vunpack.c.l.b16 %v1319
        %v1352 = vunpack.c.l.b16 %v1320
        %v1353 = vunpack.c.l.b16 %v1321
        %v1354 = vunpack.c.l.b16 %v1322
        %v1355 = vunpack.c.l.b16 %v1323
        %v1356 = vpack.c.b16 %v1325, %v1324
        %v1357 = vpack.c.b16 %v1327, %v1326
        %v1358 = vpack.c.b16 %v1329, %v1328
        %v1359 = vpack.c.b16 %v1331, %v1330
        %v1360 = vpack.c.b16 %v1333, %v1332
        %v1361 = vpack.c.b16 %v1335, %v1334
        %v1362 = vpack.c.b16 %v1337, %v1336
        %v1363 = vpack.c.b16 %v1339, %v1338
        %v1364 = vpack.c.b16 %v1341, %v1340
        %v1365 = vpack.c.b16 %v1343, %v1342
        %v1366 = vpack.c.b16 %v1345, %v1344
        %v1367 = vpack.c.b16 %v1347, %v1346
        %v1368 = vpack.c.b16 %v1349, %v1348
        %v1369 = vpack.c.b16 %v1351, %v1350
        %v1370 = vpack.c.b16 %v1353, %v1352
        %v1371 = vpack.c.b16 %v1355, %v1354
        %vm1372 = vsmask.f32 3328
        %v1374 = vshrl.u32 %v1356, 16
        %v1376 = vrot.slane %v1374, 4
        %v1377 = vshll.u32 %v1356, 16
        %v1379 = vrot.slane %v1377, 5
        %v1380 = vor.u32 %v1376, %v1379
        %v1382 = vshrl.u32 %v1357, 16
        %v1384 = vrot.slane %v1382, 4
        %v1385 = vshll.u32 %v1357, 16
        %v1387 = vrot.slane %v1385, 5
        %v1388 = vor.u32 %v1384, %v1387
        %v1389 = vsel %vm1372, %v1380, %v1388
        %v1391 = vshrl.u32 %v1358, 16
        %v1393 = vrot.slane %v1391, 4
        %v1394 = vshll.u32 %v1358, 16
        %v1396 = vrot.slane %v1394, 5
        %v1397 = vor.u32 %v1393, %v1396
        %v1398 = vsel %vm1372, %v1388, %v1397
        %v1400 = vshrl.u32 %v1359, 16
        %v1402 = vrot.slane %v1400, 4
        %v1403 = vshll.u32 %v1359, 16
        %v1405 = vrot.slane %v1403, 5
        %v1406 = vor.u32 %v1402, %v1405
        %v1407 = vsel %vm1372, %v1397, %v1406
        %v1409 = vshrl.u32 %v1360, 16
        %v1411 = vrot.slane %v1409, 4
        %v1412 = vshll.u32 %v1360, 16
        %v1414 = vrot.slane %v1412, 5
        %v1415 = vor.u32 %v1411, %v1414
        %v1416 = vsel %vm1372, %v1406, %v1415
        %v1418 = vshrl.u32 %v1361, 16
        %v1420 = vrot.slane %v1418, 4
        %v1421 = vshll.u32 %v1361, 16
        %v1423 = vrot.slane %v1421, 5
        %v1424 = vor.u32 %v1420, %v1423
        %v1425 = vsel %vm1372, %v1415, %v1424
        %v1427 = vshrl.u32 %v1362, 16
        %v1429 = vrot.slane %v1427, 4
        %v1430 = vshll.u32 %v1362, 16
        %v1432 = vrot.slane %v1430, 5
        %v1433 = vor.u32 %v1429, %v1432
        %v1434 = vsel %vm1372, %v1424, %v1433
        %v1436 = vshrl.u32 %v1363, 16
        %v1438 = vrot.slane %v1436, 4
        %v1439 = vshll.u32 %v1363, 16
        %v1441 = vrot.slane %v1439, 5
        %v1442 = vor.u32 %v1438, %v1441
        %v1443 = vsel %vm1372, %v1433, %v1442
        %v1445 = vshrl.u32 %v1364, 16
        %v1447 = vrot.slane %v1445, 4
        %v1448 = vshll.u32 %v1364, 16
        %v1450 = vrot.slane %v1448, 5
        %v1451 = vor.u32 %v1447, %v1450
        %v1452 = vsel %vm1372, %v1442, %v1451
        %v1454 = vshrl.u32 %v1365, 16
        %v1456 = vrot.slane %v1454, 4
        %v1457 = vshll.u32 %v1365, 16
        %v1459 = vrot.slane %v1457, 5
        %v1460 = vor.u32 %v1456, %v1459
        %v1461 = vsel %vm1372, %v1451, %v1460
        %v1463 = vshrl.u32 %v1366, 16
        %v1465 = vrot.slane %v1463, 4
        %v1466 = vshll.u32 %v1366, 16
        %v1468 = vrot.slane %v1466, 5
        %v1469 = vor.u32 %v1465, %v1468
        %v1470 = vsel %vm1372, %v1460, %v1469
        %v1472 = vshrl.u32 %v1367, 16
        %v1474 = vrot.slane %v1472, 4
        %v1475 = vshll.u32 %v1367, 16
        %v1477 = vrot.slane %v1475, 5
        %v1478 = vor.u32 %v1474, %v1477
        %v1479 = vsel %vm1372, %v1469, %v1478
        %v1481 = vshrl.u32 %v1368, 16
        %v1483 = vrot.slane %v1481, 4
        %v1484 = vshll.u32 %v1368, 16
        %v1486 = vrot.slane %v1484, 5
        %v1487 = vor.u32 %v1483, %v1486
        %v1488 = vsel %vm1372, %v1478, %v1487
        %v1490 = vshrl.u32 %v1369, 16
        %v1492 = vrot.slane %v1490, 4
        %v1493 = vshll.u32 %v1369, 16
        %v1495 = vrot.slane %v1493, 5
        %v1496 = vor.u32 %v1492, %v1495
        %v1497 = vsel %vm1372, %v1487, %v1496
        %v1499 = vshrl.u32 %v1370, 16
        %v1501 = vrot.slane %v1499, 4
        %v1502 = vshll.u32 %v1370, 16
        %v1504 = vrot.slane %v1502, 5
        %v1505 = vor.u32 %v1501, %v1504
        %v1506 = vsel %vm1372, %v1496, %v1505
        %v1508 = vshrl.u32 %v1371, 16
        %v1510 = vrot.slane %v1508, 4
        %v1511 = vshll.u32 %v1371, 16
        %v1513 = vrot.slane %v1511, 5
        %v1514 = vor.u32 %v1510, %v1513
        %v1515 = vsel %vm1372, %v1505, %v1514
        %vm1516 = vcmp.ne.s16.totalorder %v1380, 0
        %vm1517 = vcmp.ne.s16.totalorder %v1389, 0
        %vm1518 = vcmp.ne.s16.totalorder %v1398, 0
        %vm1519 = vcmp.ne.s16.totalorder %v1407, 0
        %vm1520 = vcmp.ne.s16.totalorder %v1416, 0
        %vm1521 = vcmp.ne.s16.totalorder %v1425, 0
        %vm1522 = vcmp.ne.s16.totalorder %v1434, 0
        %vm1523 = vcmp.ne.s16.totalorder %v1443, 0
        %vm1524 = vcmp.ne.s16.totalorder %v1452, 0
        %vm1525 = vcmp.ne.s16.totalorder %v1461, 0
        %vm1526 = vcmp.ne.s16.totalorder %v1470, 0
        %vm1527 = vcmp.ne.s16.totalorder %v1479, 0
        %vm1528 = vcmp.ne.s16.totalorder %v1488, 0
        %vm1529 = vcmp.ne.s16.totalorder %v1497, 0
        %vm1530 = vcmp.ne.s16.totalorder %v1506, 0
        %vm1531 = vcmp.ne.s16.totalorder %v1515, 0
        %vm1532 = vcmp.ne.s16.totalorder %v1514, 0
        %v1533 = vsel %vm1516, %v1179, 0
        %v1534 = vsel %vm1517, %v1180, 0
        %v1535 = vsel %vm1518, %v1181, 0
        %v1536 = vsel %vm1519, %v1182, 0
        %v1537 = vsel %vm1520, %v1183, 0
        %v1538 = vsel %vm1521, %v1184, 0
        %v1539 = vsel %vm1522, %v1185, 0
        %v1540 = vsel %vm1523, %v1186, 0
        %v1541 = vsel %vm1524, %v1187, 0
        %v1542 = vsel %vm1525, %v1188, 0
        %v1543 = vsel %vm1526, %v1189, 0
        %v1544 = vsel %vm1527, %v1190, 0
        %v1545 = vsel %vm1528, %v1191, 0
        %v1546 = vsel %vm1529, %v1192, 0
        %v1547 = vsel %vm1530, %v1193, 0
        %v1548 = vsel %vm1531, %v1194, 0
        %v1549 = vsel %vm1532, %v1195, 0
        %vm1550 = vsmask.f32 4352
        %v1552 = vshrl.u32 %v1533, 16
        %v1554 = vrot.slane %v1552, 3
        %v1555 = vshll.u32 %v1533, 16
        %v1557 = vrot.slane %v1555, 4
        %v1558 = vor.u32 %v1554, %v1557
        %v1560 = vshrl.u32 %v1534, 16
        %v1562 = vrot.slane %v1560, 3
        %v1563 = vshll.u32 %v1534, 16
        %v1565 = vrot.slane %v1563, 4
        %v1566 = vor.u32 %v1562, %v1565
        %v1567 = vsel %vm1550, %v1558, %v1566
        %v1569 = vshrl.u32 %v1535, 16
        %v1571 = vrot.slane %v1569, 3
        %v1572 = vshll.u32 %v1535, 16
        %v1574 = vrot.slane %v1572, 4
        %v1575 = vor.u32 %v1571, %v1574
        %v1576 = vsel %vm1550, %v1566, %v1575
        %v1578 = vshrl.u32 %v1536, 16
        %v1580 = vrot.slane %v1578, 3
        %v1581 = vshll.u32 %v1536, 16
        %v1583 = vrot.slane %v1581, 4
        %v1584 = vor.u32 %v1580, %v1583
        %v1585 = vsel %vm1550, %v1575, %v1584
        %v1587 = vshrl.u32 %v1537, 16
        %v1589 = vrot.slane %v1587, 3
        %v1590 = vshll.u32 %v1537, 16
        %v1592 = vrot.slane %v1590, 4
        %v1593 = vor.u32 %v1589, %v1592
        %v1594 = vsel %vm1550, %v1584, %v1593
        %v1596 = vshrl.u32 %v1538, 16
        %v1598 = vrot.slane %v1596, 3
        %v1599 = vshll.u32 %v1538, 16
        %v1601 = vrot.slane %v1599, 4
        %v1602 = vor.u32 %v1598, %v1601
        %v1603 = vsel %vm1550, %v1593, %v1602
        %v1605 = vshrl.u32 %v1539, 16
        %v1607 = vrot.slane %v1605, 3
        %v1608 = vshll.u32 %v1539, 16
        %v1610 = vrot.slane %v1608, 4
        %v1611 = vor.u32 %v1607, %v1610
        %v1612 = vsel %vm1550, %v1602, %v1611
        %v1614 = vshrl.u32 %v1540, 16
        %v1616 = vrot.slane %v1614, 3
        %v1617 = vshll.u32 %v1540, 16
        %v1619 = vrot.slane %v1617, 4
        %v1620 = vor.u32 %v1616, %v1619
        %v1621 = vsel %vm1550, %v1611, %v1620
        %v1623 = vshrl.u32 %v1541, 16
        %v1625 = vrot.slane %v1623, 3
        %v1626 = vshll.u32 %v1541, 16
        %v1628 = vrot.slane %v1626, 4
        %v1629 = vor.u32 %v1625, %v1628
        %v1630 = vsel %vm1550, %v1620, %v1629
        %v1632 = vshrl.u32 %v1542, 16
        %v1634 = vrot.slane %v1632, 3
        %v1635 = vshll.u32 %v1542, 16
        %v1637 = vrot.slane %v1635, 4
        %v1638 = vor.u32 %v1634, %v1637
        %v1639 = vsel %vm1550, %v1629, %v1638
        %v1641 = vshrl.u32 %v1543, 16
        %v1643 = vrot.slane %v1641, 3
        %v1644 = vshll.u32 %v1543, 16
        %v1646 = vrot.slane %v1644, 4
        %v1647 = vor.u32 %v1643, %v1646
        %v1648 = vsel %vm1550, %v1638, %v1647
        %v1650 = vshrl.u32 %v1544, 16
        %v1652 = vrot.slane %v1650, 3
        %v1653 = vshll.u32 %v1544, 16
        %v1655 = vrot.slane %v1653, 4
        %v1656 = vor.u32 %v1652, %v1655
        %v1657 = vsel %vm1550, %v1647, %v1656
        %v1659 = vshrl.u32 %v1545, 16
        %v1661 = vrot.slane %v1659, 3
        %v1662 = vshll.u32 %v1545, 16
        %v1664 = vrot.slane %v1662, 4
        %v1665 = vor.u32 %v1661, %v1664
        %v1666 = vsel %vm1550, %v1656, %v1665
        %v1668 = vshrl.u32 %v1546, 16
        %v1670 = vrot.slane %v1668, 3
        %v1671 = vshll.u32 %v1546, 16
        %v1673 = vrot.slane %v1671, 4
        %v1674 = vor.u32 %v1670, %v1673
        %v1675 = vsel %vm1550, %v1665, %v1674
        %v1677 = vshrl.u32 %v1547, 16
        %v1679 = vrot.slane %v1677, 3
        %v1680 = vshll.u32 %v1547, 16
        %v1682 = vrot.slane %v1680, 4
        %v1683 = vor.u32 %v1679, %v1682
        %v1684 = vsel %vm1550, %v1674, %v1683
        %v1686 = vshrl.u32 %v1548, 16
        %v1688 = vrot.slane %v1686, 3
        %v1689 = vshll.u32 %v1548, 16
        %v1691 = vrot.slane %v1689, 4
        %v1692 = vor.u32 %v1688, %v1691
        %v1693 = vsel %vm1550, %v1683, %v1692
        %v1695 = vshrl.u32 %v1549, 16
        %v1697 = vrot.slane %v1695, 3
        %v1698 = vshll.u32 %v1549, 16
        %v1700 = vrot.slane %v1698, 4
        %v1701 = vor.u32 %v1697, %v1700
        %v1702 = vsel %vm1550, %v1692, %v1701
        %1719 = vst [vmem:[#allocation3] sm:$0xff] %v1567
        %1720 = vst [vmem:[#allocation3 + $0x48] sm:$0xff] %v1576
        %1721 = vst [vmem:[#allocation3 + $0x90] sm:$0xff] %v1585
        %1722 = vst [vmem:[#allocation3 + $0xd8] sm:$0xff] %v1594
        %1723 = vst [vmem:[#allocation3 + $0x120] sm:$0xff] %v1603
        %1724 = vst [vmem:[#allocation3 + $0x168] sm:$0xff] %v1612
        %1725 = vst [vmem:[#allocation3 + $0x1b0] sm:$0xff] %v1621
        %1726 = vst [vmem:[#allocation3 + $0x1f8] sm:$0xff] %v1630
        %1727 = vst [vmem:[#allocation3 + $0x240] sm:$0xff] %v1639
        %1728 = vst [vmem:[#allocation3 + $0x288] sm:$0xff] %v1648
        %1729 = vst [vmem:[#allocation3 + $0x2d0] sm:$0xff] %v1657
        %1730 = vst [vmem:[#allocation3 + $0x318] sm:$0xff] %v1666
        %1731 = vst [vmem:[#allocation3 + $0x360] sm:$0xff] %v1675
        %1732 = vst [vmem:[#allocation3 + $0x3a8] sm:$0xff] %v1684
        %1733 = vst [vmem:[#allocation3 + $0x3f0] sm:$0xff] %v1693
        %1734 = vst [vmem:[#allocation3 + $0x438] sm:$0xff] %v1702
        %v1735 = vld [vmem:[#allocation2] sm:$0xf0]
        %v1736 = vld [vmem:[#allocation2 + $0x8] sm:$0xff]
        %v1737 = vld [vmem:[#allocation2 + $0x10] sm:$0xff]
        %v1738 = vld [vmem:[#allocation2 + $0x18] sm:$0xff]
        %v1739 = vld [vmem:[#allocation2 + $0x20] sm:$0xff]
        %v1740 = vld [vmem:[#allocation2 + $0x28] sm:$0xff]
        %v1741 = vld [vmem:[#allocation2 + $0x30] sm:$0xff]
        %v1742 = vld [vmem:[#allocation2 + $0x38] sm:$0xff]
        %v1743 = vld [vmem:[#allocation2 + $0x40] sm:$0xff]
        %v1744 = vld [vmem:[#allocation2 + $0x48] sm:$0xff]
        %v1745 = vld [vmem:[#allocation2 + $0x50] sm:$0xff]
        %v1746 = vld [vmem:[#allocation2 + $0x58] sm:$0xff]
        %v1747 = vld [vmem:[#allocation2 + $0x60] sm:$0xff]
        %v1748 = vld [vmem:[#allocation2 + $0x68] sm:$0xff]
        %v1749 = vld [vmem:[#allocation2 + $0x70] sm:$0xff]
        %v1750 = vld [vmem:[#allocation2 + $0x78] sm:$0xff]
        %v1751 = vld [vmem:[#allocation2 + $0x80] sm:$0xf]
        %v1769 = vrot.slane %v1735, 4
        %v1770 = vrot.slane %v1736, 4
        %v1771 = vsel %vm632, %v1769, %v1770
        %v1772 = vrot.slane %v1737, 4
        %v1773 = vsel %vm632, %v1770, %v1772
        %v1774 = vrot.slane %v1738, 4
        %v1775 = vsel %vm632, %v1772, %v1774
        %v1776 = vrot.slane %v1739, 4
        %v1777 = vsel %vm632, %v1774, %v1776
        %v1778 = vrot.slane %v1740, 4
        %v1779 = vsel %vm632, %v1776, %v1778
        %v1780 = vrot.slane %v1741, 4
        %v1781 = vsel %vm632, %v1778, %v1780
        %v1782 = vrot.slane %v1742, 4
        %v1783 = vsel %vm632, %v1780, %v1782
        %v1784 = vrot.slane %v1743, 4
        %v1785 = vsel %vm632, %v1782, %v1784
        %v1786 = vrot.slane %v1744, 4
        %v1787 = vsel %vm632, %v1784, %v1786
        %v1788 = vrot.slane %v1745, 4
        %v1789 = vsel %vm632, %v1786, %v1788
        %v1790 = vrot.slane %v1746, 4
        %v1791 = vsel %vm632, %v1788, %v1790
        %v1792 = vrot.slane %v1747, 4
        %v1793 = vsel %vm632, %v1790, %v1792
        %v1794 = vrot.slane %v1748, 4
        %v1795 = vsel %vm632, %v1792, %v1794
        %v1796 = vrot.slane %v1749, 4
        %v1797 = vsel %vm632, %v1794, %v1796
        %v1798 = vrot.slane %v1750, 4
        %v1799 = vsel %vm632, %v1796, %v1798
        %v1800 = vrot.slane %v1751, 4
        %v1801 = vsel %vm632, %v1798, %v1800
        %1818 = vst [vmem:[#allocation3 + $0x8] sm:$0xff] %v1771
        %1819 = vst [vmem:[#allocation3 + $0x50] sm:$0xff] %v1773
        %1820 = vst [vmem:[#allocation3 + $0x98] sm:$0xff] %v1775
        %1821 = vst [vmem:[#allocation3 + $0xe0] sm:$0xff] %v1777
        %1822 = vst [vmem:[#allocation3 + $0x128] sm:$0xff] %v1779
        %1823 = vst [vmem:[#allocation3 + $0x170] sm:$0xff] %v1781
        %1824 = vst [vmem:[#allocation3 + $0x1b8] sm:$0xff] %v1783
        %1825 = vst [vmem:[#allocation3 + $0x200] sm:$0xff] %v1785
        %1826 = vst [vmem:[#allocation3 + $0x248] sm:$0xff] %v1787
        %1827 = vst [vmem:[#allocation3 + $0x290] sm:$0xff] %v1789
        %1828 = vst [vmem:[#allocation3 + $0x2d8] sm:$0xff] %v1791
        %1829 = vst [vmem:[#allocation3 + $0x320] sm:$0xff] %v1793
        %1830 = vst [vmem:[#allocation3 + $0x368] sm:$0xff] %v1795
        %1831 = vst [vmem:[#allocation3 + $0x3b0] sm:$0xff] %v1797
        %1832 = vst [vmem:[#allocation3 + $0x3f8] sm:$0xff] %v1799
        %1833 = vst [vmem:[#allocation3 + $0x440] sm:$0xff] %v1801
        %v1834 = vld [vmem:[#allocation2] sm:$0xf0]
        %v1835 = vld [vmem:[#allocation2 + $0x8] sm:$0xff]
        %v1836 = vld [vmem:[#allocation2 + $0x10] sm:$0xff]
        %v1837 = vld [vmem:[#allocation2 + $0x18] sm:$0xff]
        %v1838 = vld [vmem:[#allocation2 + $0x20] sm:$0xff]
        %v1839 = vld [vmem:[#allocation2 + $0x28] sm:$0xff]
        %v1840 = vld [vmem:[#allocation2 + $0x30] sm:$0xff]
        %v1841 = vld [vmem:[#allocation2 + $0x38] sm:$0xff]
        %v1842 = vld [vmem:[#allocation2 + $0x40] sm:$0xff]
        %v1843 = vld [vmem:[#allocation2 + $0x48] sm:$0xff]
        %v1844 = vld [vmem:[#allocation2 + $0x50] sm:$0xff]
        %v1845 = vld [vmem:[#allocation2 + $0x58] sm:$0xff]
        %v1846 = vld [vmem:[#allocation2 + $0x60] sm:$0xff]
        %v1847 = vld [vmem:[#allocation2 + $0x68] sm:$0xff]
        %v1848 = vld [vmem:[#allocation2 + $0x70] sm:$0xff]
        %v1849 = vld [vmem:[#allocation2 + $0x78] sm:$0xff]
        %v1850 = vld [vmem:[#allocation2 + $0x80] sm:$0x1f]
        %v1851 = vsel %vm1147, 1, 0
        %v1852 = vsel %vm1148, 1, 0
        %v1853 = vsel %vm1149, 1, 0
        %v1854 = vsel %vm1150, 1, 0
        %v1855 = vsel %vm1151, 1, 0
        %v1856 = vsel %vm1152, 1, 0
        %v1857 = vsel %vm1153, 1, 0
        %v1858 = vsel %vm1154, 1, 0
        %v1859 = vsel %vm1155, 1, 0
        %v1860 = vsel %vm1156, 1, 0
        %v1861 = vsel %vm1157, 1, 0
        %v1862 = vsel %vm1158, 1, 0
        %v1863 = vsel %vm1159, 1, 0
        %v1864 = vsel %vm1160, 1, 0
        %v1865 = vsel %vm1161, 1, 0
        %v1866 = vsel %vm1162, 1, 0
        %v1867 = vsel %vm1163, 1, 0
        %v1868 = vsel %vm1164, 1, 0
        %v1869 = vsel %vm1165, 1, 0
        %v1870 = vsel %vm1166, 1, 0
        %v1871 = vsel %vm1167, 1, 0
        %v1872 = vsel %vm1168, 1, 0
        %v1873 = vsel %vm1169, 1, 0
        %v1874 = vsel %vm1170, 1, 0
        %v1875 = vsel %vm1171, 1, 0
        %v1876 = vsel %vm1172, 1, 0
        %v1877 = vsel %vm1173, 1, 0
        %v1878 = vsel %vm1174, 1, 0
        %v1879 = vsel %vm1175, 1, 0
        %v1880 = vsel %vm1176, 1, 0
        %v1881 = vsel %vm1177, 1, 0
        %v1882 = vsel %vm1178, 1, 0
        %vm1883 = vcmp.eq.s32.totalorder %v1851, 1
        %vm1884 = vcmp.eq.s32.totalorder %v1852, 1
        %vm1885 = vcmp.eq.s32.totalorder %v1853, 1
        %vm1886 = vcmp.eq.s32.totalorder %v1854, 1
        %vm1887 = vcmp.eq.s32.totalorder %v1855, 1
        %vm1888 = vcmp.eq.s32.totalorder %v1856, 1
        %vm1889 = vcmp.eq.s32.totalorder %v1857, 1
        %vm1890 = vcmp.eq.s32.totalorder %v1858, 1
        %vm1891 = vcmp.eq.s32.totalorder %v1859, 1
        %vm1892 = vcmp.eq.s32.totalorder %v1860, 1
        %vm1893 = vcmp.eq.s32.totalorder %v1861, 1
        %vm1894 = vcmp.eq.s32.totalorder %v1862, 1
        %vm1895 = vcmp.eq.s32.totalorder %v1863, 1
        %vm1896 = vcmp.eq.s32.totalorder %v1864, 1
        %vm1897 = vcmp.eq.s32.totalorder %v1865, 1
        %vm1898 = vcmp.eq.s32.totalorder %v1866, 1
        %vm1899 = vcmp.eq.s32.totalorder %v1867, 1
        %vm1900 = vcmp.eq.s32.totalorder %v1868, 1
        %vm1901 = vcmp.eq.s32.totalorder %v1869, 1
        %vm1902 = vcmp.eq.s32.totalorder %v1870, 1
        %vm1903 = vcmp.eq.s32.totalorder %v1871, 1
        %vm1904 = vcmp.eq.s32.totalorder %v1872, 1
        %vm1905 = vcmp.eq.s32.totalorder %v1873, 1
        %vm1906 = vcmp.eq.s32.totalorder %v1874, 1
        %vm1907 = vcmp.eq.s32.totalorder %v1875, 1
        %vm1908 = vcmp.eq.s32.totalorder %v1876, 1
        %vm1909 = vcmp.eq.s32.totalorder %v1877, 1
        %vm1910 = vcmp.eq.s32.totalorder %v1878, 1
        %vm1911 = vcmp.eq.s32.totalorder %v1879, 1
        %vm1912 = vcmp.eq.s32.totalorder %v1880, 1
        %vm1913 = vcmp.eq.s32.totalorder %v1881, 1
        %vm1914 = vcmp.eq.s32.totalorder %v1882, 1
        %vm1915 = vmpackc.low %vm1883, %vm1883
        %vm1916 = vmpackc.low %vm1884, %vm1884
        %vm1917 = vmpackc.low %vm1885, %vm1885
        %vm1918 = vmpackc.low %vm1886, %vm1886
        %vm1919 = vmpackc.low %vm1887, %vm1887
        %vm1920 = vmpackc.low %vm1888, %vm1888
        %vm1921 = vmpackc.low %vm1889, %vm1889
        %vm1922 = vmpackc.low %vm1890, %vm1890
        %vm1923 = vmpackc.low %vm1891, %vm1891
        %vm1924 = vmpackc.low %vm1892, %vm1892
        %vm1925 = vmpackc.low %vm1893, %vm1893
        %vm1926 = vmpackc.low %vm1894, %vm1894
        %vm1927 = vmpackc.low %vm1895, %vm1895
        %vm1928 = vmpackc.low %vm1896, %vm1896
        %vm1929 = vmpackc.low %vm1897, %vm1897
        %vm1930 = vmpackc.low %vm1898, %vm1898
        %vm1931 = vmpackc.low %vm1899, %vm1899
        %vm1932 = vmpackc.low %vm1900, %vm1900
        %vm1933 = vmpackc.low %vm1901, %vm1901
        %vm1934 = vmpackc.low %vm1902, %vm1902
        %vm1935 = vmpackc.low %vm1903, %vm1903
        %vm1936 = vmpackc.low %vm1904, %vm1904
        %vm1937 = vmpackc.low %vm1905, %vm1905
        %vm1938 = vmpackc.low %vm1906, %vm1906
        %vm1939 = vmpackc.low %vm1907, %vm1907
        %vm1940 = vmpackc.low %vm1908, %vm1908
        %vm1941 = vmpackc.low %vm1909, %vm1909
        %vm1942 = vmpackc.low %vm1910, %vm1910
        %vm1943 = vmpackc.low %vm1911, %vm1911
        %vm1944 = vmpackc.low %vm1912, %vm1912
        %vm1945 = vmpackc.low %vm1913, %vm1913
        %vm1946 = vmpackc.low %vm1914, %vm1914
        %v1947 = vsel %vm1915, 65537, 0
        %v1948 = vsel %vm1916, 65537, 0
        %v1949 = vsel %vm1917, 65537, 0
        %v1950 = vsel %vm1918, 65537, 0
        %v1951 = vsel %vm1919, 65537, 0
        %v1952 = vsel %vm1920, 65537, 0
        %v1953 = vsel %vm1921, 65537, 0
        %v1954 = vsel %vm1922, 65537, 0
        %v1955 = vsel %vm1923, 65537, 0
        %v1956 = vsel %vm1924, 65537, 0
        %v1957 = vsel %vm1925, 65537, 0
        %v1958 = vsel %vm1926, 65537, 0
        %v1959 = vsel %vm1927, 65537, 0
        %v1960 = vsel %vm1928, 65537, 0
        %v1961 = vsel %vm1929, 65537, 0
        %v1962 = vsel %vm1930, 65537, 0
        %v1963 = vsel %vm1931, 65537, 0
        %v1964 = vsel %vm1932, 65537, 0
        %v1965 = vsel %vm1933, 65537, 0
        %v1966 = vsel %vm1934, 65537, 0
        %v1967 = vsel %vm1935, 65537, 0
        %v1968 = vsel %vm1936, 65537, 0
        %v1969 = vsel %vm1937, 65537, 0
        %v1970 = vsel %vm1938, 65537, 0
        %v1971 = vsel %vm1939, 65537, 0
        %v1972 = vsel %vm1940, 65537, 0
        %v1973 = vsel %vm1941, 65537, 0
        %v1974 = vsel %vm1942, 65537, 0
        %v1975 = vsel %vm1943, 65537, 0
        %v1976 = vsel %vm1944, 65537, 0
        %v1977 = vsel %vm1945, 65537, 0
        %v1978 = vsel %vm1946, 65537, 0
        %v1979 = vunpack.c.l.b16 %v1947
        %v1980 = vunpack.c.l.b16 %v1948
        %v1981 = vunpack.c.l.b16 %v1949
        %v1982 = vunpack.c.l.b16 %v1950
        %v1983 = vunpack.c.l.b16 %v1951
        %v1984 = vunpack.c.l.b16 %v1952
        %v1985 = vunpack.c.l.b16 %v1953
        %v1986 = vunpack.c.l.b16 %v1954
        %v1987 = vunpack.c.l.b16 %v1955
        %v1988 = vunpack.c.l.b16 %v1956
        %v1989 = vunpack.c.l.b16 %v1957
        %v1990 = vunpack.c.l.b16 %v1958
        %v1991 = vunpack.c.l.b16 %v1959
        %v1992 = vunpack.c.l.b16 %v1960
        %v1993 = vunpack.c.l.b16 %v1961
        %v1994 = vunpack.c.l.b16 %v1962
        %v1995 = vunpack.c.l.b16 %v1963
        %v1996 = vunpack.c.l.b16 %v1964
        %v1997 = vunpack.c.l.b16 %v1965
        %v1998 = vunpack.c.l.b16 %v1966
        %v1999 = vunpack.c.l.b16 %v1967
        %v2000 = vunpack.c.l.b16 %v1968
        %v2001 = vunpack.c.l.b16 %v1969
        %v2002 = vunpack.c.l.b16 %v1970
        %v2003 = vunpack.c.l.b16 %v1971
        %v2004 = vunpack.c.l.b16 %v1972
        %v2005 = vunpack.c.l.b16 %v1973
        %v2006 = vunpack.c.l.b16 %v1974
        %v2007 = vunpack.c.l.b16 %v1975
        %v2008 = vunpack.c.l.b16 %v1976
        %v2009 = vunpack.c.l.b16 %v1977
        %v2010 = vunpack.c.l.b16 %v1978
        %v2011 = vpack.c.b16 %v1980, %v1979
        %v2012 = vpack.c.b16 %v1982, %v1981
        %v2013 = vpack.c.b16 %v1984, %v1983
        %v2014 = vpack.c.b16 %v1986, %v1985
        %v2015 = vpack.c.b16 %v1988, %v1987
        %v2016 = vpack.c.b16 %v1990, %v1989
        %v2017 = vpack.c.b16 %v1992, %v1991
        %v2018 = vpack.c.b16 %v1994, %v1993
        %v2019 = vpack.c.b16 %v1996, %v1995
        %v2020 = vpack.c.b16 %v1998, %v1997
        %v2021 = vpack.c.b16 %v2000, %v1999
        %v2022 = vpack.c.b16 %v2002, %v2001
        %v2023 = vpack.c.b16 %v2004, %v2003
        %v2024 = vpack.c.b16 %v2006, %v2005
        %v2025 = vpack.c.b16 %v2008, %v2007
        %v2026 = vpack.c.b16 %v2010, %v2009
        %v2028 = vshrl.u32 %v2011, 16
        %v2030 = vrot.slane %v2028, 3
        %v2031 = vshll.u32 %v2011, 16
        %v2033 = vrot.slane %v2031, 4
        %v2034 = vor.u32 %v2030, %v2033
        %v2036 = vshrl.u32 %v2012, 16
        %v2038 = vrot.slane %v2036, 3
        %v2039 = vshll.u32 %v2012, 16
        %v2041 = vrot.slane %v2039, 4
        %v2042 = vor.u32 %v2038, %v2041
        %v2043 = vsel %vm1550, %v2034, %v2042
        %v2045 = vshrl.u32 %v2013, 16
        %v2047 = vrot.slane %v2045, 3
        %v2048 = vshll.u32 %v2013, 16
        %v2050 = vrot.slane %v2048, 4
        %v2051 = vor.u32 %v2047, %v2050
        %v2052 = vsel %vm1550, %v2042, %v2051
        %v2054 = vshrl.u32 %v2014, 16
        %v2056 = vrot.slane %v2054, 3
        %v2057 = vshll.u32 %v2014, 16
        %v2059 = vrot.slane %v2057, 4
        %v2060 = vor.u32 %v2056, %v2059
        %v2061 = vsel %vm1550, %v2051, %v2060
        %v2063 = vshrl.u32 %v2015, 16
        %v2065 = vrot.slane %v2063, 3
        %v2066 = vshll.u32 %v2015, 16
        %v2068 = vrot.slane %v2066, 4
        %v2069 = vor.u32 %v2065, %v2068
        %v2070 = vsel %vm1550, %v2060, %v2069
        %v2072 = vshrl.u32 %v2016, 16
        %v2074 = vrot.slane %v2072, 3
        %v2075 = vshll.u32 %v2016, 16
        %v2077 = vrot.slane %v2075, 4
        %v2078 = vor.u32 %v2074, %v2077
        %v2079 = vsel %vm1550, %v2069, %v2078
        %v2081 = vshrl.u32 %v2017, 16
        %v2083 = vrot.slane %v2081, 3
        %v2084 = vshll.u32 %v2017, 16
        %v2086 = vrot.slane %v2084, 4
        %v2087 = vor.u32 %v2083, %v2086
        %v2088 = vsel %vm1550, %v2078, %v2087
        %v2090 = vshrl.u32 %v2018, 16
        %v2092 = vrot.slane %v2090, 3
        %v2093 = vshll.u32 %v2018, 16
        %v2095 = vrot.slane %v2093, 4
        %v2096 = vor.u32 %v2092, %v2095
        %v2097 = vsel %vm1550, %v2087, %v2096
        %v2099 = vshrl.u32 %v2019, 16
        %v2101 = vrot.slane %v2099, 3
        %v2102 = vshll.u32 %v2019, 16
        %v2104 = vrot.slane %v2102, 4
        %v2105 = vor.u32 %v2101, %v2104
        %v2106 = vsel %vm1550, %v2096, %v2105
        %v2108 = vshrl.u32 %v2020, 16
        %v2110 = vrot.slane %v2108, 3
        %v2111 = vshll.u32 %v2020, 16
        %v2113 = vrot.slane %v2111, 4
        %v2114 = vor.u32 %v2110, %v2113
        %v2115 = vsel %vm1550, %v2105, %v2114
        %v2117 = vshrl.u32 %v2021, 16
        %v2119 = vrot.slane %v2117, 3
        %v2120 = vshll.u32 %v2021, 16
        %v2122 = vrot.slane %v2120, 4
        %v2123 = vor.u32 %v2119, %v2122
        %v2124 = vsel %vm1550, %v2114, %v2123
        %v2126 = vshrl.u32 %v2022, 16
        %v2128 = vrot.slane %v2126, 3
        %v2129 = vshll.u32 %v2022, 16
        %v2131 = vrot.slane %v2129, 4
        %v2132 = vor.u32 %v2128, %v2131
        %v2133 = vsel %vm1550, %v2123, %v2132
        %v2135 = vshrl.u32 %v2023, 16
        %v2137 = vrot.slane %v2135, 3
        %v2138 = vshll.u32 %v2023, 16
        %v2140 = vrot.slane %v2138, 4
        %v2141 = vor.u32 %v2137, %v2140
        %v2142 = vsel %vm1550, %v2132, %v2141
        %v2144 = vshrl.u32 %v2024, 16
        %v2146 = vrot.slane %v2144, 3
        %v2147 = vshll.u32 %v2024, 16
        %v2149 = vrot.slane %v2147, 4
        %v2150 = vor.u32 %v2146, %v2149
        %v2151 = vsel %vm1550, %v2141, %v2150
        %v2153 = vshrl.u32 %v2025, 16
        %v2155 = vrot.slane %v2153, 3
        %v2156 = vshll.u32 %v2025, 16
        %v2158 = vrot.slane %v2156, 4
        %v2159 = vor.u32 %v2155, %v2158
        %v2160 = vsel %vm1550, %v2150, %v2159
        %v2162 = vshrl.u32 %v2026, 16
        %v2164 = vrot.slane %v2162, 3
        %v2165 = vshll.u32 %v2026, 16
        %v2167 = vrot.slane %v2165, 4
        %v2168 = vor.u32 %v2164, %v2167
        %v2169 = vsel %vm1550, %v2159, %v2168
        %vm2170 = vcmp.ne.s16.totalorder %v2034, 0
        %vm2171 = vcmp.ne.s16.totalorder %v2043, 0
        %vm2172 = vcmp.ne.s16.totalorder %v2052, 0
        %vm2173 = vcmp.ne.s16.totalorder %v2061, 0
        %vm2174 = vcmp.ne.s16.totalorder %v2070, 0
        %vm2175 = vcmp.ne.s16.totalorder %v2079, 0
        %vm2176 = vcmp.ne.s16.totalorder %v2088, 0
        %vm2177 = vcmp.ne.s16.totalorder %v2097, 0
        %vm2178 = vcmp.ne.s16.totalorder %v2106, 0
        %vm2179 = vcmp.ne.s16.totalorder %v2115, 0
        %vm2180 = vcmp.ne.s16.totalorder %v2124, 0
        %vm2181 = vcmp.ne.s16.totalorder %v2133, 0
        %vm2182 = vcmp.ne.s16.totalorder %v2142, 0
        %vm2183 = vcmp.ne.s16.totalorder %v2151, 0
        %vm2184 = vcmp.ne.s16.totalorder %v2160, 0
        %vm2185 = vcmp.ne.s16.totalorder %v2169, 0
        %vm2186 = vcmp.ne.s16.totalorder %v2168, 0
        %v2187 = vsel %vm2170, %v1834, 0
        %v2188 = vsel %vm2171, %v1835, 0
        %v2189 = vsel %vm2172, %v1836, 0
        %v2190 = vsel %vm2173, %v1837, 0
        %v2191 = vsel %vm2174, %v1838, 0
        %v2192 = vsel %vm2175, %v1839, 0
        %v2193 = vsel %vm2176, %v1840, 0
        %v2194 = vsel %vm2177, %v1841, 0
        %v2195 = vsel %vm2178, %v1842, 0
        %v2196 = vsel %vm2179, %v1843, 0
        %v2197 = vsel %vm2180, %v1844, 0
        %v2198 = vsel %vm2181, %v1845, 0
        %v2199 = vsel %vm2182, %v1846, 0
        %v2200 = vsel %vm2183, %v1847, 0
        %v2201 = vsel %vm2184, %v1848, 0
        %v2202 = vsel %vm2185, %v1849, 0
        %v2203 = vsel %vm2186, %v1850, 0
        %v2205 = vshrl.u32 %v2187, 16
        %v2207 = vrot.slane %v2205, 4
        %v2208 = vshll.u32 %v2187, 16
        %v2210 = vrot.slane %v2208, 5
        %v2211 = vor.u32 %v2207, %v2210
        %v2213 = vshrl.u32 %v2188, 16
        %v2215 = vrot.slane %v2213, 4
        %v2216 = vshll.u32 %v2188, 16
        %v2218 = vrot.slane %v2216, 5
        %v2219 = vor.u32 %v2215, %v2218
        %v2220 = vsel %vm1372, %v2211, %v2219
        %v2222 = vshrl.u32 %v2189, 16
        %v2224 = vrot.slane %v2222, 4
        %v2225 = vshll.u32 %v2189, 16
        %v2227 = vrot.slane %v2225, 5
        %v2228 = vor.u32 %v2224, %v2227
        %v2229 = vsel %vm1372, %v2219, %v2228
        %v2231 = vshrl.u32 %v2190, 16
        %v2233 = vrot.slane %v2231, 4
        %v2234 = vshll.u32 %v2190, 16
        %v2236 = vrot.slane %v2234, 5
        %v2237 = vor.u32 %v2233, %v2236
        %v2238 = vsel %vm1372, %v2228, %v2237
        %v2240 = vshrl.u32 %v2191, 16
        %v2242 = vrot.slane %v2240, 4
        %v2243 = vshll.u32 %v2191, 16
        %v2245 = vrot.slane %v2243, 5
        %v2246 = vor.u32 %v2242, %v2245
        %v2247 = vsel %vm1372, %v2237, %v2246
        %v2249 = vshrl.u32 %v2192, 16
        %v2251 = vrot.slane %v2249, 4
        %v2252 = vshll.u32 %v2192, 16
        %v2254 = vrot.slane %v2252, 5
        %v2255 = vor.u32 %v2251, %v2254
        %v2256 = vsel %vm1372, %v2246, %v2255
        %v2258 = vshrl.u32 %v2193, 16
        %v2260 = vrot.slane %v2258, 4
        %v2261 = vshll.u32 %v2193, 16
        %v2263 = vrot.slane %v2261, 5
        %v2264 = vor.u32 %v2260, %v2263
        %v2265 = vsel %vm1372, %v2255, %v2264
        %v2267 = vshrl.u32 %v2194, 16
        %v2269 = vrot.slane %v2267, 4
        %v2270 = vshll.u32 %v2194, 16
        %v2272 = vrot.slane %v2270, 5
        %v2273 = vor.u32 %v2269, %v2272
        %v2274 = vsel %vm1372, %v2264, %v2273
        %v2276 = vshrl.u32 %v2195, 16
        %v2278 = vrot.slane %v2276, 4
        %v2279 = vshll.u32 %v2195, 16
        %v2281 = vrot.slane %v2279, 5
        %v2282 = vor.u32 %v2278, %v2281
        %v2283 = vsel %vm1372, %v2273, %v2282
        %v2285 = vshrl.u32 %v2196, 16
        %v2287 = vrot.slane %v2285, 4
        %v2288 = vshll.u32 %v2196, 16
        %v2290 = vrot.slane %v2288, 5
        %v2291 = vor.u32 %v2287, %v2290
        %v2292 = vsel %vm1372, %v2282, %v2291
        %v2294 = vshrl.u32 %v2197, 16
        %v2296 = vrot.slane %v2294, 4
        %v2297 = vshll.u32 %v2197, 16
        %v2299 = vrot.slane %v2297, 5
        %v2300 = vor.u32 %v2296, %v2299
        %v2301 = vsel %vm1372, %v2291, %v2300
        %v2303 = vshrl.u32 %v2198, 16
        %v2305 = vrot.slane %v2303, 4
        %v2306 = vshll.u32 %v2198, 16
        %v2308 = vrot.slane %v2306, 5
        %v2309 = vor.u32 %v2305, %v2308
        %v2310 = vsel %vm1372, %v2300, %v2309
        %v2312 = vshrl.u32 %v2199, 16
        %v2314 = vrot.slane %v2312, 4
        %v2315 = vshll.u32 %v2199, 16
        %v2317 = vrot.slane %v2315, 5
        %v2318 = vor.u32 %v2314, %v2317
        %v2319 = vsel %vm1372, %v2309, %v2318
        %v2321 = vshrl.u32 %v2200, 16
        %v2323 = vrot.slane %v2321, 4
        %v2324 = vshll.u32 %v2200, 16
        %v2326 = vrot.slane %v2324, 5
        %v2327 = vor.u32 %v2323, %v2326
        %v2328 = vsel %vm1372, %v2318, %v2327
        %v2330 = vshrl.u32 %v2201, 16
        %v2332 = vrot.slane %v2330, 4
        %v2333 = vshll.u32 %v2201, 16
        %v2335 = vrot.slane %v2333, 5
        %v2336 = vor.u32 %v2332, %v2335
        %v2337 = vsel %vm1372, %v2327, %v2336
        %v2339 = vshrl.u32 %v2202, 16
        %v2341 = vrot.slane %v2339, 4
        %v2342 = vshll.u32 %v2202, 16
        %v2344 = vrot.slane %v2342, 5
        %v2345 = vor.u32 %v2341, %v2344
        %v2346 = vsel %vm1372, %v2336, %v2345
        %v2348 = vshrl.u32 %v2203, 16
        %v2350 = vrot.slane %v2348, 4
        %v2351 = vshll.u32 %v2203, 16
        %v2353 = vrot.slane %v2351, 5
        %v2354 = vor.u32 %v2350, %v2353
        %v2355 = vsel %vm1372, %v2345, %v2354
        %2372 = vst [vmem:[#allocation3 + $0x10] sm:$0xff] %v2220
        %2373 = vst [vmem:[#allocation3 + $0x58] sm:$0xff] %v2229
        %2374 = vst [vmem:[#allocation3 + $0xa0] sm:$0xff] %v2238
        %2375 = vst [vmem:[#allocation3 + $0xe8] sm:$0xff] %v2247
        %2376 = vst [vmem:[#allocation3 + $0x130] sm:$0xff] %v2256
        %2377 = vst [vmem:[#allocation3 + $0x178] sm:$0xff] %v2265
        %2378 = vst [vmem:[#allocation3 + $0x1c0] sm:$0xff] %v2274
        %2379 = vst [vmem:[#allocation3 + $0x208] sm:$0xff] %v2283
        %2380 = vst [vmem:[#allocation3 + $0x250] sm:$0xff] %v2292
        %2381 = vst [vmem:[#allocation3 + $0x298] sm:$0xff] %v2301
        %2382 = vst [vmem:[#allocation3 + $0x2e0] sm:$0xff] %v2310
        %2383 = vst [vmem:[#allocation3 + $0x328] sm:$0xff] %v2319
        %2384 = vst [vmem:[#allocation3 + $0x370] sm:$0xff] %v2328
        %2385 = vst [vmem:[#allocation3 + $0x3b8] sm:$0xff] %v2337
        %2386 = vst [vmem:[#allocation3 + $0x400] sm:$0xff] %v2346
        %2387 = vst [vmem:[#allocation3 + $0x448] sm:$0xff] %v2355
        %v2388 = vld [vmem:[#allocation2 + $0x8] sm:$0xf8]
        %v2389 = vld [vmem:[#allocation2 + $0x10] sm:$0xff]
        %v2390 = vld [vmem:[#allocation2 + $0x18] sm:$0xff]
        %v2391 = vld [vmem:[#allocation2 + $0x20] sm:$0xff]
        %v2392 = vld [vmem:[#allocation2 + $0x28] sm:$0xff]
        %v2393 = vld [vmem:[#allocation2 + $0x30] sm:$0xff]
        %v2394 = vld [vmem:[#allocation2 + $0x38] sm:$0xff]
        %v2395 = vld [vmem:[#allocation2 + $0x40] sm:$0xff]
        %v2396 = vld [vmem:[#allocation2 + $0x48] sm:$0xff]
        %v2397 = vld [vmem:[#allocation2 + $0x50] sm:$0xff]
        %v2398 = vld [vmem:[#allocation2 + $0x58] sm:$0xff]
        %v2399 = vld [vmem:[#allocation2 + $0x60] sm:$0xff]
        %v2400 = vld [vmem:[#allocation2 + $0x68] sm:$0xff]
        %v2401 = vld [vmem:[#allocation2 + $0x70] sm:$0xff]
        %v2402 = vld [vmem:[#allocation2 + $0x78] sm:$0xff]
        %v2403 = vld [vmem:[#allocation2 + $0x80] sm:$0xff]
        %v2404 = vld [vmem:[#allocation2 + $0x88] sm:$0xf]
        %v2405 = vsel %vm1516, %v2388, 0
        %v2406 = vsel %vm1517, %v2389, 0
        %v2407 = vsel %vm1518, %v2390, 0
        %v2408 = vsel %vm1519, %v2391, 0
        %v2409 = vsel %vm1520, %v2392, 0
        %v2410 = vsel %vm1521, %v2393, 0
        %v2411 = vsel %vm1522, %v2394, 0
        %v2412 = vsel %vm1523, %v2395, 0
        %v2413 = vsel %vm1524, %v2396, 0
        %v2414 = vsel %vm1525, %v2397, 0
        %v2415 = vsel %vm1526, %v2398, 0
        %v2416 = vsel %vm1527, %v2399, 0
        %v2417 = vsel %vm1528, %v2400, 0
        %v2418 = vsel %vm1529, %v2401, 0
        %v2419 = vsel %vm1530, %v2402, 0
        %v2420 = vsel %vm1531, %v2403, 0
        %v2421 = vsel %vm1532, %v2404, 0
        %v2423 = vshrl.u32 %v2405, 16
        %v2425 = vrot.slane %v2423, 3
        %v2426 = vshll.u32 %v2405, 16
        %v2428 = vrot.slane %v2426, 4
        %v2429 = vor.u32 %v2425, %v2428
        %v2431 = vshrl.u32 %v2406, 16
        %v2433 = vrot.slane %v2431, 3
        %v2434 = vshll.u32 %v2406, 16
        %v2436 = vrot.slane %v2434, 4
        %v2437 = vor.u32 %v2433, %v2436
        %v2438 = vsel %vm1550, %v2429, %v2437
        %v2440 = vshrl.u32 %v2407, 16
        %v2442 = vrot.slane %v2440, 3
        %v2443 = vshll.u32 %v2407, 16
        %v2445 = vrot.slane %v2443, 4
        %v2446 = vor.u32 %v2442, %v2445
        %v2447 = vsel %vm1550, %v2437, %v2446
        %v2449 = vshrl.u32 %v2408, 16
        %v2451 = vrot.slane %v2449, 3
        %v2452 = vshll.u32 %v2408, 16
        %v2454 = vrot.slane %v2452, 4
        %v2455 = vor.u32 %v2451, %v2454
        %v2456 = vsel %vm1550, %v2446, %v2455
        %v2458 = vshrl.u32 %v2409, 16
        %v2460 = vrot.slane %v2458, 3
        %v2461 = vshll.u32 %v2409, 16
        %v2463 = vrot.slane %v2461, 4
        %v2464 = vor.u32 %v2460, %v2463
        %v2465 = vsel %vm1550, %v2455, %v2464
        %v2467 = vshrl.u32 %v2410, 16
        %v2469 = vrot.slane %v2467, 3
        %v2470 = vshll.u32 %v2410, 16
        %v2472 = vrot.slane %v2470, 4
        %v2473 = vor.u32 %v2469, %v2472
        %v2474 = vsel %vm1550, %v2464, %v2473
        %v2476 = vshrl.u32 %v2411, 16
        %v2478 = vrot.slane %v2476, 3
        %v2479 = vshll.u32 %v2411, 16
        %v2481 = vrot.slane %v2479, 4
        %v2482 = vor.u32 %v2478, %v2481
        %v2483 = vsel %vm1550, %v2473, %v2482
        %v2485 = vshrl.u32 %v2412, 16
        %v2487 = vrot.slane %v2485, 3
        %v2488 = vshll.u32 %v2412, 16
        %v2490 = vrot.slane %v2488, 4
        %v2491 = vor.u32 %v2487, %v2490
        %v2492 = vsel %vm1550, %v2482, %v2491
        %v2494 = vshrl.u32 %v2413, 16
        %v2496 = vrot.slane %v2494, 3
        %v2497 = vshll.u32 %v2413, 16
        %v2499 = vrot.slane %v2497, 4
        %v2500 = vor.u32 %v2496, %v2499
        %v2501 = vsel %vm1550, %v2491, %v2500
        %v2503 = vshrl.u32 %v2414, 16
        %v2505 = vrot.slane %v2503, 3
        %v2506 = vshll.u32 %v2414, 16
        %v2508 = vrot.slane %v2506, 4
        %v2509 = vor.u32 %v2505, %v2508
        %v2510 = vsel %vm1550, %v2500, %v2509
        %v2512 = vshrl.u32 %v2415, 16
        %v2514 = vrot.slane %v2512, 3
        %v2515 = vshll.u32 %v2415, 16
        %v2517 = vrot.slane %v2515, 4
        %v2518 = vor.u32 %v2514, %v2517
        %v2519 = vsel %vm1550, %v2509, %v2518
        %v2521 = vshrl.u32 %v2416, 16
        %v2523 = vrot.slane %v2521, 3
        %v2524 = vshll.u32 %v2416, 16
        %v2526 = vrot.slane %v2524, 4
        %v2527 = vor.u32 %v2523, %v2526
        %v2528 = vsel %vm1550, %v2518, %v2527
        %v2530 = vshrl.u32 %v2417, 16
        %v2532 = vrot.slane %v2530, 3
        %v2533 = vshll.u32 %v2417, 16
        %v2535 = vrot.slane %v2533, 4
        %v2536 = vor.u32 %v2532, %v2535
        %v2537 = vsel %vm1550, %v2527, %v2536
        %v2539 = vshrl.u32 %v2418, 16
        %v2541 = vrot.slane %v2539, 3
        %v2542 = vshll.u32 %v2418, 16
        %v2544 = vrot.slane %v2542, 4
        %v2545 = vor.u32 %v2541, %v2544
        %v2546 = vsel %vm1550, %v2536, %v2545
        %v2548 = vshrl.u32 %v2419, 16
        %v2550 = vrot.slane %v2548, 3
        %v2551 = vshll.u32 %v2419, 16
        %v2553 = vrot.slane %v2551, 4
        %v2554 = vor.u32 %v2550, %v2553
        %v2555 = vsel %vm1550, %v2545, %v2554
        %v2557 = vshrl.u32 %v2420, 16
        %v2559 = vrot.slane %v2557, 3
        %v2560 = vshll.u32 %v2420, 16
        %v2562 = vrot.slane %v2560, 4
        %v2563 = vor.u32 %v2559, %v2562
        %v2564 = vsel %vm1550, %v2554, %v2563
        %v2566 = vshrl.u32 %v2421, 16
        %v2568 = vrot.slane %v2566, 3
        %v2569 = vshll.u32 %v2421, 16
        %v2571 = vrot.slane %v2569, 4
        %v2572 = vor.u32 %v2568, %v2571
        %v2573 = vsel %vm1550, %v2563, %v2572
        %2590 = vst [vmem:[#allocation3 + $0x18] sm:$0xff] %v2438
        %2591 = vst [vmem:[#allocation3 + $0x60] sm:$0xff] %v2447
        %2592 = vst [vmem:[#allocation3 + $0xa8] sm:$0xff] %v2456
        %2593 = vst [vmem:[#allocation3 + $0xf0] sm:$0xff] %v2465
        %2594 = vst [vmem:[#allocation3 + $0x138] sm:$0xff] %v2474
        %2595 = vst [vmem:[#allocation3 + $0x180] sm:$0xff] %v2483
        %2596 = vst [vmem:[#allocation3 + $0x1c8] sm:$0xff] %v2492
        %2597 = vst [vmem:[#allocation3 + $0x210] sm:$0xff] %v2501
        %2598 = vst [vmem:[#allocation3 + $0x258] sm:$0xff] %v2510
        %2599 = vst [vmem:[#allocation3 + $0x2a0] sm:$0xff] %v2519
        %2600 = vst [vmem:[#allocation3 + $0x2e8] sm:$0xff] %v2528
        %2601 = vst [vmem:[#allocation3 + $0x330] sm:$0xff] %v2537
        %2602 = vst [vmem:[#allocation3 + $0x378] sm:$0xff] %v2546
        %2603 = vst [vmem:[#allocation3 + $0x3c0] sm:$0xff] %v2555
        %2604 = vst [vmem:[#allocation3 + $0x408] sm:$0xff] %v2564
        %2605 = vst [vmem:[#allocation3 + $0x450] sm:$0xff] %v2573
        %v2606 = vld [vmem:[#allocation2 + $0x8] sm:$0xf0]
        %v2607 = vld [vmem:[#allocation2 + $0x10] sm:$0xff]
        %v2608 = vld [vmem:[#allocation2 + $0x18] sm:$0xff]
        %v2609 = vld [vmem:[#allocation2 + $0x20] sm:$0xff]
        %v2610 = vld [vmem:[#allocation2 + $0x28] sm:$0xff]
        %v2611 = vld [vmem:[#allocation2 + $0x30] sm:$0xff]
        %v2612 = vld [vmem:[#allocation2 + $0x38] sm:$0xff]
        %v2613 = vld [vmem:[#allocation2 + $0x40] sm:$0xff]
        %v2614 = vld [vmem:[#allocation2 + $0x48] sm:$0xff]
        %v2615 = vld [vmem:[#allocation2 + $0x50] sm:$0xff]
        %v2616 = vld [vmem:[#allocation2 + $0x58] sm:$0xff]
        %v2617 = vld [vmem:[#allocation2 + $0x60] sm:$0xff]
        %v2618 = vld [vmem:[#allocation2 + $0x68] sm:$0xff]
        %v2619 = vld [vmem:[#allocation2 + $0x70] sm:$0xff]
        %v2620 = vld [vmem:[#allocation2 + $0x78] sm:$0xff]
        %v2621 = vld [vmem:[#allocation2 + $0x80] sm:$0xff]
        %v2622 = vld [vmem:[#allocation2 + $0x88] sm:$0xf]
        %v2640 = vrot.slane %v2606, 4
        %v2641 = vrot.slane %v2607, 4
        %v2642 = vsel %vm632, %v2640, %v2641
        %v2643 = vrot.slane %v2608, 4
        %v2644 = vsel %vm632, %v2641, %v2643
        %v2645 = vrot.slane %v2609, 4
        %v2646 = vsel %vm632, %v2643, %v2645
        %v2647 = vrot.slane %v2610, 4
        %v2648 = vsel %vm632, %v2645, %v2647
        %v2649 = vrot.slane %v2611, 4
        %v2650 = vsel %vm632, %v2647, %v2649
        %v2651 = vrot.slane %v2612, 4
        %v2652 = vsel %vm632, %v2649, %v2651
        %v2653 = vrot.slane %v2613, 4
        %v2654 = vsel %vm632, %v2651, %v2653
        %v2655 = vrot.slane %v2614, 4
        %v2656 = vsel %vm632, %v2653, %v2655
        %v2657 = vrot.slane %v2615, 4
        %v2658 = vsel %vm632, %v2655, %v2657
        %v2659 = vrot.slane %v2616, 4
        %v2660 = vsel %vm632, %v2657, %v2659
        %v2661 = vrot.slane %v2617, 4
        %v2662 = vsel %vm632, %v2659, %v2661
        %v2663 = vrot.slane %v2618, 4
        %v2664 = vsel %vm632, %v2661, %v2663
        %v2665 = vrot.slane %v2619, 4
        %v2666 = vsel %vm632, %v2663, %v2665
        %v2667 = vrot.slane %v2620, 4
        %v2668 = vsel %vm632, %v2665, %v2667
        %v2669 = vrot.slane %v2621, 4
        %v2670 = vsel %vm632, %v2667, %v2669
        %v2671 = vrot.slane %v2622, 4
        %v2672 = vsel %vm632, %v2669, %v2671
        %2689 = vst [vmem:[#allocation3 + $0x20] sm:$0xff] %v2642
        %2690 = vst [vmem:[#allocation3 + $0x68] sm:$0xff] %v2644
        %2691 = vst [vmem:[#allocation3 + $0xb0] sm:$0xff] %v2646
        %2692 = vst [vmem:[#allocation3 + $0xf8] sm:$0xff] %v2648
        %2693 = vst [vmem:[#allocation3 + $0x140] sm:$0xff] %v2650
        %2694 = vst [vmem:[#allocation3 + $0x188] sm:$0xff] %v2652
        %2695 = vst [vmem:[#allocation3 + $0x1d0] sm:$0xff] %v2654
        %2696 = vst [vmem:[#allocation3 + $0x218] sm:$0xff] %v2656
        %2697 = vst [vmem:[#allocation3 + $0x260] sm:$0xff] %v2658
        %2698 = vst [vmem:[#allocation3 + $0x2a8] sm:$0xff] %v2660
        %2699 = vst [vmem:[#allocation3 + $0x2f0] sm:$0xff] %v2662
        %2700 = vst [vmem:[#allocation3 + $0x338] sm:$0xff] %v2664
        %2701 = vst [vmem:[#allocation3 + $0x380] sm:$0xff] %v2666
        %2702 = vst [vmem:[#allocation3 + $0x3c8] sm:$0xff] %v2668
        %2703 = vst [vmem:[#allocation3 + $0x410] sm:$0xff] %v2670
        %2704 = vst [vmem:[#allocation3 + $0x458] sm:$0xff] %v2672
        %v2705 = vld [vmem:[#allocation2 + $0x8] sm:$0xf0]
        %v2706 = vld [vmem:[#allocation2 + $0x10] sm:$0xff]
        %v2707 = vld [vmem:[#allocation2 + $0x18] sm:$0xff]
        %v2708 = vld [vmem:[#allocation2 + $0x20] sm:$0xff]
        %v2709 = vld [vmem:[#allocation2 + $0x28] sm:$0xff]
        %v2710 = vld [vmem:[#allocation2 + $0x30] sm:$0xff]
        %v2711 = vld [vmem:[#allocation2 + $0x38] sm:$0xff]
        %v2712 = vld [vmem:[#allocation2 + $0x40] sm:$0xff]
        %v2713 = vld [vmem:[#allocation2 + $0x48] sm:$0xff]
        %v2714 = vld [vmem:[#allocation2 + $0x50] sm:$0xff]
        %v2715 = vld [vmem:[#allocation2 + $0x58] sm:$0xff]
        %v2716 = vld [vmem:[#allocation2 + $0x60] sm:$0xff]
        %v2717 = vld [vmem:[#allocation2 + $0x68] sm:$0xff]
        %v2718 = vld [vmem:[#allocation2 + $0x70] sm:$0xff]
        %v2719 = vld [vmem:[#allocation2 + $0x78] sm:$0xff]
        %v2720 = vld [vmem:[#allocation2 + $0x80] sm:$0xff]
        %v2721 = vld [vmem:[#allocation2 + $0x88] sm:$0x1f]
        %v2722 = vsel %vm2170, %v2705, 0
        %v2723 = vsel %vm2171, %v2706, 0
        %v2724 = vsel %vm2172, %v2707, 0
        %v2725 = vsel %vm2173, %v2708, 0
        %v2726 = vsel %vm2174, %v2709, 0
        %v2727 = vsel %vm2175, %v2710, 0
        %v2728 = vsel %vm2176, %v2711, 0
        %v2729 = vsel %vm2177, %v2712, 0
        %v2730 = vsel %vm2178, %v2713, 0
        %v2731 = vsel %vm2179, %v2714, 0
        %v2732 = vsel %vm2180, %v2715, 0
        %v2733 = vsel %vm2181, %v2716, 0
        %v2734 = vsel %vm2182, %v2717, 0
        %v2735 = vsel %vm2183, %v2718, 0
        %v2736 = vsel %vm2184, %v2719, 0
        %v2737 = vsel %vm2185, %v2720, 0
        %v2738 = vsel %vm2186, %v2721, 0
        %v2740 = vshrl.u32 %v2722, 16
        %v2742 = vrot.slane %v2740, 4
        %v2743 = vshll.u32 %v2722, 16
        %v2745 = vrot.slane %v2743, 5
        %v2746 = vor.u32 %v2742, %v2745
        %v2748 = vshrl.u32 %v2723, 16
        %v2750 = vrot.slane %v2748, 4
        %v2751 = vshll.u32 %v2723, 16
        %v2753 = vrot.slane %v2751, 5
        %v2754 = vor.u32 %v2750, %v2753
        %v2755 = vsel %vm1372, %v2746, %v2754
        %v2757 = vshrl.u32 %v2724, 16
        %v2759 = vrot.slane %v2757, 4
        %v2760 = vshll.u32 %v2724, 16
        %v2762 = vrot.slane %v2760, 5
        %v2763 = vor.u32 %v2759, %v2762
        %v2764 = vsel %vm1372, %v2754, %v2763
        %v2766 = vshrl.u32 %v2725, 16
        %v2768 = vrot.slane %v2766, 4
        %v2769 = vshll.u32 %v2725, 16
        %v2771 = vrot.slane %v2769, 5
        %v2772 = vor.u32 %v2768, %v2771
        %v2773 = vsel %vm1372, %v2763, %v2772
        %v2775 = vshrl.u32 %v2726, 16
        %v2777 = vrot.slane %v2775, 4
        %v2778 = vshll.u32 %v2726, 16
        %v2780 = vrot.slane %v2778, 5
        %v2781 = vor.u32 %v2777, %v2780
        %v2782 = vsel %vm1372, %v2772, %v2781
        %v2784 = vshrl.u32 %v2727, 16
        %v2786 = vrot.slane %v2784, 4
        %v2787 = vshll.u32 %v2727, 16
        %v2789 = vrot.slane %v2787, 5
        %v2790 = vor.u32 %v2786, %v2789
        %v2791 = vsel %vm1372, %v2781, %v2790
        %v2793 = vshrl.u32 %v2728, 16
        %v2795 = vrot.slane %v2793, 4
        %v2796 = vshll.u32 %v2728, 16
        %v2798 = vrot.slane %v2796, 5
        %v2799 = vor.u32 %v2795, %v2798
        %v2800 = vsel %vm1372, %v2790, %v2799
        %v2802 = vshrl.u32 %v2729, 16
        %v2804 = vrot.slane %v2802, 4
        %v2805 = vshll.u32 %v2729, 16
        %v2807 = vrot.slane %v2805, 5
        %v2808 = vor.u32 %v2804, %v2807
        %v2809 = vsel %vm1372, %v2799, %v2808
        %v2811 = vshrl.u32 %v2730, 16
        %v2813 = vrot.slane %v2811, 4
        %v2814 = vshll.u32 %v2730, 16
        %v2816 = vrot.slane %v2814, 5
        %v2817 = vor.u32 %v2813, %v2816
        %v2818 = vsel %vm1372, %v2808, %v2817
        %v2820 = vshrl.u32 %v2731, 16
        %v2822 = vrot.slane %v2820, 4
        %v2823 = vshll.u32 %v2731, 16
        %v2825 = vrot.slane %v2823, 5
        %v2826 = vor.u32 %v2822, %v2825
        %v2827 = vsel %vm1372, %v2817, %v2826
        %v2829 = vshrl.u32 %v2732, 16
        %v2831 = vrot.slane %v2829, 4
        %v2832 = vshll.u32 %v2732, 16
        %v2834 = vrot.slane %v2832, 5
        %v2835 = vor.u32 %v2831, %v2834
        %v2836 = vsel %vm1372, %v2826, %v2835
        %v2838 = vshrl.u32 %v2733, 16
        %v2840 = vrot.slane %v2838, 4
        %v2841 = vshll.u32 %v2733, 16
        %v2843 = vrot.slane %v2841, 5
        %v2844 = vor.u32 %v2840, %v2843
        %v2845 = vsel %vm1372, %v2835, %v2844
        %v2847 = vshrl.u32 %v2734, 16
        %v2849 = vrot.slane %v2847, 4
        %v2850 = vshll.u32 %v2734, 16
        %v2852 = vrot.slane %v2850, 5
        %v2853 = vor.u32 %v2849, %v2852
        %v2854 = vsel %vm1372, %v2844, %v2853
        %v2856 = vshrl.u32 %v2735, 16
        %v2858 = vrot.slane %v2856, 4
        %v2859 = vshll.u32 %v2735, 16
        %v2861 = vrot.slane %v2859, 5
        %v2862 = vor.u32 %v2858, %v2861
        %v2863 = vsel %vm1372, %v2853, %v2862
        %v2865 = vshrl.u32 %v2736, 16
        %v2867 = vrot.slane %v2865, 4
        %v2868 = vshll.u32 %v2736, 16
        %v2870 = vrot.slane %v2868, 5
        %v2871 = vor.u32 %v2867, %v2870
        %v2872 = vsel %vm1372, %v2862, %v2871
        %v2874 = vshrl.u32 %v2737, 16
        %v2876 = vrot.slane %v2874, 4
        %v2877 = vshll.u32 %v2737, 16
        %v2879 = vrot.slane %v2877, 5
        %v2880 = vor.u32 %v2876, %v2879
        %v2881 = vsel %vm1372, %v2871, %v2880
        %v2883 = vshrl.u32 %v2738, 16
        %v2885 = vrot.slane %v2883, 4
        %v2886 = vshll.u32 %v2738, 16
        %v2888 = vrot.slane %v2886, 5
        %v2889 = vor.u32 %v2885, %v2888
        %v2890 = vsel %vm1372, %v2880, %v2889
        %2907 = vst [vmem:[#allocation3 + $0x28] sm:$0xff] %v2755
        %2908 = vst [vmem:[#allocation3 + $0x70] sm:$0xff] %v2764
        %2909 = vst [vmem:[#allocation3 + $0xb8] sm:$0xff] %v2773
        %2910 = vst [vmem:[#allocation3 + $0x100] sm:$0xff] %v2782
        %2911 = vst [vmem:[#allocation3 + $0x148] sm:$0xff] %v2791
        %2912 = vst [vmem:[#allocation3 + $0x190] sm:$0xff] %v2800
        %2913 = vst [vmem:[#allocation3 + $0x1d8] sm:$0xff] %v2809
        %2914 = vst [vmem:[#allocation3 + $0x220] sm:$0xff] %v2818
        %2915 = vst [vmem:[#allocation3 + $0x268] sm:$0xff] %v2827
        %2916 = vst [vmem:[#allocation3 + $0x2b0] sm:$0xff] %v2836
        %2917 = vst [vmem:[#allocation3 + $0x2f8] sm:$0xff] %v2845
        %2918 = vst [vmem:[#allocation3 + $0x340] sm:$0xff] %v2854
        %2919 = vst [vmem:[#allocation3 + $0x388] sm:$0xff] %v2863
        %2920 = vst [vmem:[#allocation3 + $0x3d0] sm:$0xff] %v2872
        %2921 = vst [vmem:[#allocation3 + $0x418] sm:$0xff] %v2881
        %2922 = vst [vmem:[#allocation3 + $0x460] sm:$0xff] %v2890
        %v2923 = vld [vmem:[#allocation2 + $0x10] sm:$0xf8]
        %v2924 = vld [vmem:[#allocation2 + $0x18] sm:$0xff]
        %v2925 = vld [vmem:[#allocation2 + $0x20] sm:$0xff]
        %v2926 = vld [vmem:[#allocation2 + $0x28] sm:$0xff]
        %v2927 = vld [vmem:[#allocation2 + $0x30] sm:$0xff]
        %v2928 = vld [vmem:[#allocation2 + $0x38] sm:$0xff]
        %v2929 = vld [vmem:[#allocation2 + $0x40] sm:$0xff]
        %v2930 = vld [vmem:[#allocation2 + $0x48] sm:$0xff]
        %v2931 = vld [vmem:[#allocation2 + $0x50] sm:$0xff]
        %v2932 = vld [vmem:[#allocation2 + $0x58] sm:$0xff]
        %v2933 = vld [vmem:[#allocation2 + $0x60] sm:$0xff]
        %v2934 = vld [vmem:[#allocation2 + $0x68] sm:$0xff]
        %v2935 = vld [vmem:[#allocation2 + $0x70] sm:$0xff]
        %v2936 = vld [vmem:[#allocation2 + $0x78] sm:$0xff]
        %v2937 = vld [vmem:[#allocation2 + $0x80] sm:$0xff]
        %v2938 = vld [vmem:[#allocation2 + $0x88] sm:$0xff]
        %v2939 = vld [vmem:[#allocation2 + $0x90] sm:$0xf]
        %v2940 = vsel %vm1516, %v2923, 0
        %v2941 = vsel %vm1517, %v2924, 0
        %v2942 = vsel %vm1518, %v2925, 0
        %v2943 = vsel %vm1519, %v2926, 0
        %v2944 = vsel %vm1520, %v2927, 0
        %v2945 = vsel %vm1521, %v2928, 0
        %v2946 = vsel %vm1522, %v2929, 0
        %v2947 = vsel %vm1523, %v2930, 0
        %v2948 = vsel %vm1524, %v2931, 0
        %v2949 = vsel %vm1525, %v2932, 0
        %v2950 = vsel %vm1526, %v2933, 0
        %v2951 = vsel %vm1527, %v2934, 0
        %v2952 = vsel %vm1528, %v2935, 0
        %v2953 = vsel %vm1529, %v2936, 0
        %v2954 = vsel %vm1530, %v2937, 0
        %v2955 = vsel %vm1531, %v2938, 0
        %v2956 = vsel %vm1532, %v2939, 0
        %v2958 = vshrl.u32 %v2940, 16
        %v2960 = vrot.slane %v2958, 3
        %v2961 = vshll.u32 %v2940, 16
        %v2963 = vrot.slane %v2961, 4
        %v2964 = vor.u32 %v2960, %v2963
        %v2966 = vshrl.u32 %v2941, 16
        %v2968 = vrot.slane %v2966, 3
        %v2969 = vshll.u32 %v2941, 16
        %v2971 = vrot.slane %v2969, 4
        %v2972 = vor.u32 %v2968, %v2971
        %v2973 = vsel %vm1550, %v2964, %v2972
        %v2975 = vshrl.u32 %v2942, 16
        %v2977 = vrot.slane %v2975, 3
        %v2978 = vshll.u32 %v2942, 16
        %v2980 = vrot.slane %v2978, 4
        %v2981 = vor.u32 %v2977, %v2980
        %v2982 = vsel %vm1550, %v2972, %v2981
        %v2984 = vshrl.u32 %v2943, 16
        %v2986 = vrot.slane %v2984, 3
        %v2987 = vshll.u32 %v2943, 16
        %v2989 = vrot.slane %v2987, 4
        %v2990 = vor.u32 %v2986, %v2989
        %v2991 = vsel %vm1550, %v2981, %v2990
        %v2993 = vshrl.u32 %v2944, 16
        %v2995 = vrot.slane %v2993, 3
        %v2996 = vshll.u32 %v2944, 16
        %v2998 = vrot.slane %v2996, 4
        %v2999 = vor.u32 %v2995, %v2998
        %v3000 = vsel %vm1550, %v2990, %v2999
        %v3002 = vshrl.u32 %v2945, 16
        %v3004 = vrot.slane %v3002, 3
        %v3005 = vshll.u32 %v2945, 16
        %v3007 = vrot.slane %v3005, 4
        %v3008 = vor.u32 %v3004, %v3007
        %v3009 = vsel %vm1550, %v2999, %v3008
        %v3011 = vshrl.u32 %v2946, 16
        %v3013 = vrot.slane %v3011, 3
        %v3014 = vshll.u32 %v2946, 16
        %v3016 = vrot.slane %v3014, 4
        %v3017 = vor.u32 %v3013, %v3016
        %v3018 = vsel %vm1550, %v3008, %v3017
        %v3020 = vshrl.u32 %v2947, 16
        %v3022 = vrot.slane %v3020, 3
        %v3023 = vshll.u32 %v2947, 16
        %v3025 = vrot.slane %v3023, 4
        %v3026 = vor.u32 %v3022, %v3025
        %v3027 = vsel %vm1550, %v3017, %v3026
        %v3029 = vshrl.u32 %v2948, 16
        %v3031 = vrot.slane %v3029, 3
        %v3032 = vshll.u32 %v2948, 16
        %v3034 = vrot.slane %v3032, 4
        %v3035 = vor.u32 %v3031, %v3034
        %v3036 = vsel %vm1550, %v3026, %v3035
        %v3038 = vshrl.u32 %v2949, 16
        %v3040 = vrot.slane %v3038, 3
        %v3041 = vshll.u32 %v2949, 16
        %v3043 = vrot.slane %v3041, 4
        %v3044 = vor.u32 %v3040, %v3043
        %v3045 = vsel %vm1550, %v3035, %v3044
        %v3047 = vshrl.u32 %v2950, 16
        %v3049 = vrot.slane %v3047, 3
        %v3050 = vshll.u32 %v2950, 16
        %v3052 = vrot.slane %v3050, 4
        %v3053 = vor.u32 %v3049, %v3052
        %v3054 = vsel %vm1550, %v3044, %v3053
        %v3056 = vshrl.u32 %v2951, 16
        %v3058 = vrot.slane %v3056, 3
        %v3059 = vshll.u32 %v2951, 16
        %v3061 = vrot.slane %v3059, 4
        %v3062 = vor.u32 %v3058, %v3061
        %v3063 = vsel %vm1550, %v3053, %v3062
        %v3065 = vshrl.u32 %v2952, 16
        %v3067 = vrot.slane %v3065, 3
        %v3068 = vshll.u32 %v2952, 16
        %v3070 = vrot.slane %v3068, 4
        %v3071 = vor.u32 %v3067, %v3070
        %v3072 = vsel %vm1550, %v3062, %v3071
        %v3074 = vshrl.u32 %v2953, 16
        %v3076 = vrot.slane %v3074, 3
        %v3077 = vshll.u32 %v2953, 16
        %v3079 = vrot.slane %v3077, 4
        %v3080 = vor.u32 %v3076, %v3079
        %v3081 = vsel %vm1550, %v3071, %v3080
        %v3083 = vshrl.u32 %v2954, 16
        %v3085 = vrot.slane %v3083, 3
        %v3086 = vshll.u32 %v2954, 16
        %v3088 = vrot.slane %v3086, 4
        %v3089 = vor.u32 %v3085, %v3088
        %v3090 = vsel %vm1550, %v3080, %v3089
        %v3092 = vshrl.u32 %v2955, 16
        %v3094 = vrot.slane %v3092, 3
        %v3095 = vshll.u32 %v2955, 16
        %v3097 = vrot.slane %v3095, 4
        %v3098 = vor.u32 %v3094, %v3097
        %v3099 = vsel %vm1550, %v3089, %v3098
        %v3101 = vshrl.u32 %v2956, 16
        %v3103 = vrot.slane %v3101, 3
        %v3104 = vshll.u32 %v2956, 16
        %v3106 = vrot.slane %v3104, 4
        %v3107 = vor.u32 %v3103, %v3106
        %v3108 = vsel %vm1550, %v3098, %v3107
        %3125 = vst [vmem:[#allocation3 + $0x30] sm:$0xff] %v2973
        %3126 = vst [vmem:[#allocation3 + $0x78] sm:$0xff] %v2982
        %3127 = vst [vmem:[#allocation3 + $0xc0] sm:$0xff] %v2991
        %3128 = vst [vmem:[#allocation3 + $0x108] sm:$0xff] %v3000
        %3129 = vst [vmem:[#allocation3 + $0x150] sm:$0xff] %v3009
        %3130 = vst [vmem:[#allocation3 + $0x198] sm:$0xff] %v3018
        %3131 = vst [vmem:[#allocation3 + $0x1e0] sm:$0xff] %v3027
        %3132 = vst [vmem:[#allocation3 + $0x228] sm:$0xff] %v3036
        %3133 = vst [vmem:[#allocation3 + $0x270] sm:$0xff] %v3045
        %3134 = vst [vmem:[#allocation3 + $0x2b8] sm:$0xff] %v3054
        %3135 = vst [vmem:[#allocation3 + $0x300] sm:$0xff] %v3063
        %3136 = vst [vmem:[#allocation3 + $0x348] sm:$0xff] %v3072
        %3137 = vst [vmem:[#allocation3 + $0x390] sm:$0xff] %v3081
        %3138 = vst [vmem:[#allocation3 + $0x3d8] sm:$0xff] %v3090
        %3139 = vst [vmem:[#allocation3 + $0x420] sm:$0xff] %v3099
        %3140 = vst [vmem:[#allocation3 + $0x468] sm:$0xff] %v3108
        %v3141 = vld [vmem:[#allocation2 + $0x10] sm:$0xf0]
        %v3142 = vld [vmem:[#allocation2 + $0x18] sm:$0xff]
        %v3143 = vld [vmem:[#allocation2 + $0x20] sm:$0xff]
        %v3144 = vld [vmem:[#allocation2 + $0x28] sm:$0xff]
        %v3145 = vld [vmem:[#allocation2 + $0x30] sm:$0xff]
        %v3146 = vld [vmem:[#allocation2 + $0x38] sm:$0xff]
        %v3147 = vld [vmem:[#allocation2 + $0x40] sm:$0xff]
        %v3148 = vld [vmem:[#allocation2 + $0x48] sm:$0xff]
        %v3149 = vld [vmem:[#allocation2 + $0x50] sm:$0xff]
        %v3150 = vld [vmem:[#allocation2 + $0x58] sm:$0xff]
        %v3151 = vld [vmem:[#allocation2 + $0x60] sm:$0xff]
        %v3152 = vld [vmem:[#allocation2 + $0x68] sm:$0xff]
        %v3153 = vld [vmem:[#allocation2 + $0x70] sm:$0xff]
        %v3154 = vld [vmem:[#allocation2 + $0x78] sm:$0xff]
        %v3155 = vld [vmem:[#allocation2 + $0x80] sm:$0xff]
        %v3156 = vld [vmem:[#allocation2 + $0x88] sm:$0xff]
        %v3157 = vld [vmem:[#allocation2 + $0x90] sm:$0xf]
        %v3175 = vrot.slane %v3141, 4
        %v3176 = vrot.slane %v3142, 4
        %v3177 = vsel %vm632, %v3175, %v3176
        %v3178 = vrot.slane %v3143, 4
        %v3179 = vsel %vm632, %v3176, %v3178
        %v3180 = vrot.slane %v3144, 4
        %v3181 = vsel %vm632, %v3178, %v3180
        %v3182 = vrot.slane %v3145, 4
        %v3183 = vsel %vm632, %v3180, %v3182
        %v3184 = vrot.slane %v3146, 4
        %v3185 = vsel %vm632, %v3182, %v3184
        %v3186 = vrot.slane %v3147, 4
        %v3187 = vsel %vm632, %v3184, %v3186
        %v3188 = vrot.slane %v3148, 4
        %v3189 = vsel %vm632, %v3186, %v3188
        %v3190 = vrot.slane %v3149, 4
        %v3191 = vsel %vm632, %v3188, %v3190
        %v3192 = vrot.slane %v3150, 4
        %v3193 = vsel %vm632, %v3190, %v3192
        %v3194 = vrot.slane %v3151, 4
        %v3195 = vsel %vm632, %v3192, %v3194
        %v3196 = vrot.slane %v3152, 4
        %v3197 = vsel %vm632, %v3194, %v3196
        %v3198 = vrot.slane %v3153, 4
        %v3199 = vsel %vm632, %v3196, %v3198
        %v3200 = vrot.slane %v3154, 4
        %v3201 = vsel %vm632, %v3198, %v3200
        %v3202 = vrot.slane %v3155, 4
        %v3203 = vsel %vm632, %v3200, %v3202
        %v3204 = vrot.slane %v3156, 4
        %v3205 = vsel %vm632, %v3202, %v3204
        %v3206 = vrot.slane %v3157, 4
        %v3207 = vsel %vm632, %v3204, %v3206
        %3224 = vst [vmem:[#allocation3 + $0x38] sm:$0xff] %v3177
        %3225 = vst [vmem:[#allocation3 + $0x80] sm:$0xff] %v3179
        %3226 = vst [vmem:[#allocation3 + $0xc8] sm:$0xff] %v3181
        %3227 = vst [vmem:[#allocation3 + $0x110] sm:$0xff] %v3183
        %3228 = vst [vmem:[#allocation3 + $0x158] sm:$0xff] %v3185
        %3229 = vst [vmem:[#allocation3 + $0x1a0] sm:$0xff] %v3187
        %3230 = vst [vmem:[#allocation3 + $0x1e8] sm:$0xff] %v3189
        %3231 = vst [vmem:[#allocation3 + $0x230] sm:$0xff] %v3191
        %3232 = vst [vmem:[#allocation3 + $0x278] sm:$0xff] %v3193
        %3233 = vst [vmem:[#allocation3 + $0x2c0] sm:$0xff] %v3195
        %3234 = vst [vmem:[#allocation3 + $0x308] sm:$0xff] %v3197
        %3235 = vst [vmem:[#allocation3 + $0x350] sm:$0xff] %v3199
        %3236 = vst [vmem:[#allocation3 + $0x398] sm:$0xff] %v3201
        %3237 = vst [vmem:[#allocation3 + $0x3e0] sm:$0xff] %v3203
        %3238 = vst [vmem:[#allocation3 + $0x428] sm:$0xff] %v3205
        %3239 = vst [vmem:[#allocation3 + $0x470] sm:$0xff] %v3207
        %v3240 = vld [vmem:[#allocation2 + $0x10] sm:$0xf0]
        %v3241 = vld [vmem:[#allocation2 + $0x18] sm:$0xff]
        %v3242 = vld [vmem:[#allocation2 + $0x20] sm:$0xff]
        %v3243 = vld [vmem:[#allocation2 + $0x28] sm:$0xff]
        %v3244 = vld [vmem:[#allocation2 + $0x30] sm:$0xff]
        %v3245 = vld [vmem:[#allocation2 + $0x38] sm:$0xff]
        %v3246 = vld [vmem:[#allocation2 + $0x40] sm:$0xff]
        %v3247 = vld [vmem:[#allocation2 + $0x48] sm:$0xff]
        %v3248 = vld [vmem:[#allocation2 + $0x50] sm:$0xff]
        %v3249 = vld [vmem:[#allocation2 + $0x58] sm:$0xff]
        %v3250 = vld [vmem:[#allocation2 + $0x60] sm:$0xff]
        %v3251 = vld [vmem:[#allocation2 + $0x68] sm:$0xff]
        %v3252 = vld [vmem:[#allocation2 + $0x70] sm:$0xff]
        %v3253 = vld [vmem:[#allocation2 + $0x78] sm:$0xff]
        %v3254 = vld [vmem:[#allocation2 + $0x80] sm:$0xff]
        %v3255 = vld [vmem:[#allocation2 + $0x88] sm:$0xff]
        %v3256 = vld [vmem:[#allocation2 + $0x90] sm:$0x1f]
        %v3257 = vsel %vm2170, %v3240, 0
        %v3258 = vsel %vm2171, %v3241, 0
        %v3259 = vsel %vm2172, %v3242, 0
        %v3260 = vsel %vm2173, %v3243, 0
        %v3261 = vsel %vm2174, %v3244, 0
        %v3262 = vsel %vm2175, %v3245, 0
        %v3263 = vsel %vm2176, %v3246, 0
        %v3264 = vsel %vm2177, %v3247, 0
        %v3265 = vsel %vm2178, %v3248, 0
        %v3266 = vsel %vm2179, %v3249, 0
        %v3267 = vsel %vm2180, %v3250, 0
        %v3268 = vsel %vm2181, %v3251, 0
        %v3269 = vsel %vm2182, %v3252, 0
        %v3270 = vsel %vm2183, %v3253, 0
        %v3271 = vsel %vm2184, %v3254, 0
        %v3272 = vsel %vm2185, %v3255, 0
        %v3273 = vsel %vm2186, %v3256, 0
        %v3275 = vshrl.u32 %v3257, 16
        %v3277 = vrot.slane %v3275, 4
        %v3278 = vshll.u32 %v3257, 16
        %v3280 = vrot.slane %v3278, 5
        %v3281 = vor.u32 %v3277, %v3280
        %v3283 = vshrl.u32 %v3258, 16
        %v3285 = vrot.slane %v3283, 4
        %v3286 = vshll.u32 %v3258, 16
        %v3288 = vrot.slane %v3286, 5
        %v3289 = vor.u32 %v3285, %v3288
        %v3290 = vsel %vm1372, %v3281, %v3289
        %v3292 = vshrl.u32 %v3259, 16
        %v3294 = vrot.slane %v3292, 4
        %v3295 = vshll.u32 %v3259, 16
        %v3297 = vrot.slane %v3295, 5
        %v3298 = vor.u32 %v3294, %v3297
        %v3299 = vsel %vm1372, %v3289, %v3298
        %v3301 = vshrl.u32 %v3260, 16
        %v3303 = vrot.slane %v3301, 4
        %v3304 = vshll.u32 %v3260, 16
        %v3306 = vrot.slane %v3304, 5
        %v3307 = vor.u32 %v3303, %v3306
        %v3308 = vsel %vm1372, %v3298, %v3307
        %v3310 = vshrl.u32 %v3261, 16
        %v3312 = vrot.slane %v3310, 4
        %v3313 = vshll.u32 %v3261, 16
        %v3315 = vrot.slane %v3313, 5
        %v3316 = vor.u32 %v3312, %v3315
        %v3317 = vsel %vm1372, %v3307, %v3316
        %v3319 = vshrl.u32 %v3262, 16
        %v3321 = vrot.slane %v3319, 4
        %v3322 = vshll.u32 %v3262, 16
        %v3324 = vrot.slane %v3322, 5
        %v3325 = vor.u32 %v3321, %v3324
        %v3326 = vsel %vm1372, %v3316, %v3325
        %v3328 = vshrl.u32 %v3263, 16
        %v3330 = vrot.slane %v3328, 4
        %v3331 = vshll.u32 %v3263, 16
        %v3333 = vrot.slane %v3331, 5
        %v3334 = vor.u32 %v3330, %v3333
        %v3335 = vsel %vm1372, %v3325, %v3334
        %v3337 = vshrl.u32 %v3264, 16
        %v3339 = vrot.slane %v3337, 4
        %v3340 = vshll.u32 %v3264, 16
        %v3342 = vrot.slane %v3340, 5
        %v3343 = vor.u32 %v3339, %v3342
        %v3344 = vsel %vm1372, %v3334, %v3343
        %v3346 = vshrl.u32 %v3265, 16
        %v3348 = vrot.slane %v3346, 4
        %v3349 = vshll.u32 %v3265, 16
        %v3351 = vrot.slane %v3349, 5
        %v3352 = vor.u32 %v3348, %v3351
        %v3353 = vsel %vm1372, %v3343, %v3352
        %v3355 = vshrl.u32 %v3266, 16
        %v3357 = vrot.slane %v3355, 4
        %v3358 = vshll.u32 %v3266, 16
        %v3360 = vrot.slane %v3358, 5
        %v3361 = vor.u32 %v3357, %v3360
        %v3362 = vsel %vm1372, %v3352, %v3361
        %v3364 = vshrl.u32 %v3267, 16
        %v3366 = vrot.slane %v3364, 4
        %v3367 = vshll.u32 %v3267, 16
        %v3369 = vrot.slane %v3367, 5
        %v3370 = vor.u32 %v3366, %v3369
        %v3371 = vsel %vm1372, %v3361, %v3370
        %v3373 = vshrl.u32 %v3268, 16
        %v3375 = vrot.slane %v3373, 4
        %v3376 = vshll.u32 %v3268, 16
        %v3378 = vrot.slane %v3376, 5
        %v3379 = vor.u32 %v3375, %v3378
        %v3380 = vsel %vm1372, %v3370, %v3379
        %v3382 = vshrl.u32 %v3269, 16
        %v3384 = vrot.slane %v3382, 4
        %v3385 = vshll.u32 %v3269, 16
        %v3387 = vrot.slane %v3385, 5
        %v3388 = vor.u32 %v3384, %v3387
        %v3389 = vsel %vm1372, %v3379, %v3388
        %v3391 = vshrl.u32 %v3270, 16
        %v3393 = vrot.slane %v3391, 4
        %v3394 = vshll.u32 %v3270, 16
        %v3396 = vrot.slane %v3394, 5
        %v3397 = vor.u32 %v3393, %v3396
        %v3398 = vsel %vm1372, %v3388, %v3397
        %v3400 = vshrl.u32 %v3271, 16
        %v3402 = vrot.slane %v3400, 4
        %v3403 = vshll.u32 %v3271, 16
        %v3405 = vrot.slane %v3403, 5
        %v3406 = vor.u32 %v3402, %v3405
        %v3407 = vsel %vm1372, %v3397, %v3406
        %v3409 = vshrl.u32 %v3272, 16
        %v3411 = vrot.slane %v3409, 4
        %v3412 = vshll.u32 %v3272, 16
        %v3414 = vrot.slane %v3412, 5
        %v3415 = vor.u32 %v3411, %v3414
        %v3416 = vsel %vm1372, %v3406, %v3415
        %v3418 = vshrl.u32 %v3273, 16
        %v3420 = vrot.slane %v3418, 4
        %v3421 = vshll.u32 %v3273, 16
        %v3423 = vrot.slane %v3421, 5
        %v3424 = vor.u32 %v3420, %v3423
        %v3425 = vsel %vm1372, %v3415, %v3424
        %3442 = vst [vmem:[#allocation3 + $0x40] sm:$0xff] %v3290
        %3443 = vst [vmem:[#allocation3 + $0x88] sm:$0xff] %v3299
        %3444 = vst [vmem:[#allocation3 + $0xd0] sm:$0xff] %v3308
        %3445 = vst [vmem:[#allocation3 + $0x118] sm:$0xff] %v3317
        %3446 = vst [vmem:[#allocation3 + $0x160] sm:$0xff] %v3326
        %3447 = vst [vmem:[#allocation3 + $0x1a8] sm:$0xff] %v3335
        %3448 = vst [vmem:[#allocation3 + $0x1f0] sm:$0xff] %v3344
        %3449 = vst [vmem:[#allocation3 + $0x238] sm:$0xff] %v3353
        %3450 = vst [vmem:[#allocation3 + $0x280] sm:$0xff] %v3362
        %3451 = vst [vmem:[#allocation3 + $0x2c8] sm:$0xff] %v3371
        %3452 = vst [vmem:[#allocation3 + $0x310] sm:$0xff] %v3380
        %3453 = vst [vmem:[#allocation3 + $0x358] sm:$0xff] %v3389
        %3454 = vst [vmem:[#allocation3 + $0x3a0] sm:$0xff] %v3398
        %3455 = vst [vmem:[#allocation3 + $0x3e8] sm:$0xff] %v3407
        %3456 = vst [vmem:[#allocation3 + $0x430] sm:$0xff] %v3416
        %3457 = vst [vmem:[#allocation3 + $0x478] sm:$0xff] %v3425
        %v3458 = vld [vmem:[#allocation3] sm:$0xff]
        %v3459 = vld [vmem:[#allocation3 + $0x8] sm:$0xff]
        %v3460 = vld [vmem:[#allocation3 + $0x10] sm:$0xff]
        %v3461 = vld [vmem:[#allocation3 + $0x18] sm:$0xff]
        %v3462 = vld [vmem:[#allocation3 + $0x20] sm:$0xff]
        %v3463 = vld [vmem:[#allocation3 + $0x28] sm:$0xff]
        %v3464 = vld [vmem:[#allocation3 + $0x30] sm:$0xff]
        %v3465 = vld [vmem:[#allocation3 + $0x38] sm:$0xff]
        %v3466 = vld [vmem:[#allocation3 + $0x40] sm:$0xff]
        %v3467 = vld [vmem:[#allocation3 + $0x48] sm:$0xff]
        %v3468 = vld [vmem:[#allocation3 + $0x50] sm:$0xff]
        %v3469 = vld [vmem:[#allocation3 + $0x58] sm:$0xff]
        %v3470 = vld [vmem:[#allocation3 + $0x60] sm:$0xff]
        %v3471 = vld [vmem:[#allocation3 + $0x68] sm:$0xff]
        %v3472 = vld [vmem:[#allocation3 + $0x70] sm:$0xff]
        %v3473 = vld [vmem:[#allocation3 + $0x78] sm:$0xff]
        %v3474 = vld [vmem:[#allocation3 + $0x80] sm:$0xff]
        %v3475 = vld [vmem:[#allocation3 + $0x88] sm:$0xff]
        %v3476 = vld [vmem:[#allocation3 + $0x90] sm:$0xff]
        %v3477 = vld [vmem:[#allocation3 + $0x98] sm:$0xff]
        %v3478 = vld [vmem:[#allocation3 + $0xa0] sm:$0xff]
        %v3479 = vld [vmem:[#allocation3 + $0xa8] sm:$0xff]
        %v3480 = vld [vmem:[#allocation3 + $0xb0] sm:$0xff]
        %v3481 = vld [vmem:[#allocation3 + $0xb8] sm:$0xff]
        %v3482 = vld [vmem:[#allocation3 + $0xc0] sm:$0xff]
        %v3483 = vld [vmem:[#allocation3 + $0xc8] sm:$0xff]
        %v3484 = vld [vmem:[#allocation3 + $0xd0] sm:$0xff]
        %v3485 = vld [vmem:[#allocation3 + $0xd8] sm:$0xff]
        %v3486 = vld [vmem:[#allocation3 + $0xe0] sm:$0xff]
        %v3487 = vld [vmem:[#allocation3 + $0xe8] sm:$0xff]
        %v3488 = vld [vmem:[#allocation3 + $0xf0] sm:$0xff]
        %v3489 = vld [vmem:[#allocation3 + $0xf8] sm:$0xff]
        %v3490 = vld [vmem:[#allocation3 + $0x100] sm:$0xff]
        %v3491 = vld [vmem:[#allocation3 + $0x108] sm:$0xff]
        %v3492 = vld [vmem:[#allocation3 + $0x110] sm:$0xff]
        %v3493 = vld [vmem:[#allocation3 + $0x118] sm:$0xff]
        %v3494 = vld [vmem:[#allocation3 + $0x120] sm:$0xff]
        %v3495 = vld [vmem:[#allocation3 + $0x128] sm:$0xff]
        %v3496 = vld [vmem:[#allocation3 + $0x130] sm:$0xff]
        %v3497 = vld [vmem:[#allocation3 + $0x138] sm:$0xff]
        %v3498 = vld [vmem:[#allocation3 + $0x140] sm:$0xff]
        %v3499 = vld [vmem:[#allocation3 + $0x148] sm:$0xff]
        %v3500 = vld [vmem:[#allocation3 + $0x150] sm:$0xff]
        %v3501 = vld [vmem:[#allocation3 + $0x158] sm:$0xff]
        %v3502 = vld [vmem:[#allocation3 + $0x160] sm:$0xff]
        %v3503 = vld [vmem:[#allocation3 + $0x168] sm:$0xff]
        %v3504 = vld [vmem:[#allocation3 + $0x170] sm:$0xff]
        %v3505 = vld [vmem:[#allocation3 + $0x178] sm:$0xff]
        %v3506 = vld [vmem:[#allocation3 + $0x180] sm:$0xff]
        %v3507 = vld [vmem:[#allocation3 + $0x188] sm:$0xff]
        %v3508 = vld [vmem:[#allocation3 + $0x190] sm:$0xff]
        %v3509 = vld [vmem:[#allocation3 + $0x198] sm:$0xff]
        %v3510 = vld [vmem:[#allocation3 + $0x1a0] sm:$0xff]
        %v3511 = vld [vmem:[#allocation3 + $0x1a8] sm:$0xff]
        %v3512 = vld [vmem:[#allocation3 + $0x1b0] sm:$0xff]
        %v3513 = vld [vmem:[#allocation3 + $0x1b8] sm:$0xff]
        %v3514 = vld [vmem:[#allocation3 + $0x1c0] sm:$0xff]
        %v3515 = vld [vmem:[#allocation3 + $0x1c8] sm:$0xff]
        %v3516 = vld [vmem:[#allocation3 + $0x1d0] sm:$0xff]
        %v3517 = vld [vmem:[#allocation3 + $0x1d8] sm:$0xff]
        %v3518 = vld [vmem:[#allocation3 + $0x1e0] sm:$0xff]
        %v3519 = vld [vmem:[#allocation3 + $0x1e8] sm:$0xff]
        %v3520 = vld [vmem:[#allocation3 + $0x1f0] sm:$0xff]
        %v3521 = vld [vmem:[#allocation3 + $0x1f8] sm:$0xff]
        %v3522 = vld [vmem:[#allocation3 + $0x200] sm:$0xff]
        %v3523 = vld [vmem:[#allocation3 + $0x208] sm:$0xff]
        %v3524 = vld [vmem:[#allocation3 + $0x210] sm:$0xff]
        %v3525 = vld [vmem:[#allocation3 + $0x218] sm:$0xff]
        %v3526 = vld [vmem:[#allocation3 + $0x220] sm:$0xff]
        %v3527 = vld [vmem:[#allocation3 + $0x228] sm:$0xff]
        %v3528 = vld [vmem:[#allocation3 + $0x230] sm:$0xff]
        %v3529 = vld [vmem:[#allocation3 + $0x238] sm:$0xff]
        %v3530 = vld [vmem:[#allocation3 + $0x240] sm:$0xff]
        %v3531 = vld [vmem:[#allocation3 + $0x248] sm:$0xff]
        %v3532 = vld [vmem:[#allocation3 + $0x250] sm:$0xff]
        %v3533 = vld [vmem:[#allocation3 + $0x258] sm:$0xff]
        %v3534 = vld [vmem:[#allocation3 + $0x260] sm:$0xff]
        %v3535 = vld [vmem:[#allocation3 + $0x268] sm:$0xff]
        %v3536 = vld [vmem:[#allocation3 + $0x270] sm:$0xff]
        %v3537 = vld [vmem:[#allocation3 + $0x278] sm:$0xff]
        %v3538 = vld [vmem:[#allocation3 + $0x280] sm:$0xff]
        %v3539 = vld [vmem:[#allocation3 + $0x288] sm:$0xff]
        %v3540 = vld [vmem:[#allocation3 + $0x290] sm:$0xff]
        %v3541 = vld [vmem:[#allocation3 + $0x298] sm:$0xff]
        %v3542 = vld [vmem:[#allocation3 + $0x2a0] sm:$0xff]
        %v3543 = vld [vmem:[#allocation3 + $0x2a8] sm:$0xff]
        %v3544 = vld [vmem:[#allocation3 + $0x2b0] sm:$0xff]
        %v3545 = vld [vmem:[#allocation3 + $0x2b8] sm:$0xff]
        %v3546 = vld [vmem:[#allocation3 + $0x2c0] sm:$0xff]
        %v3547 = vld [vmem:[#allocation3 + $0x2c8] sm:$0xff]
        %v3548 = vld [vmem:[#allocation3 + $0x2d0] sm:$0xff]
        %v3549 = vld [vmem:[#allocation3 + $0x2d8] sm:$0xff]
        %v3550 = vld [vmem:[#allocation3 + $0x2e0] sm:$0xff]
        %v3551 = vld [vmem:[#allocation3 + $0x2e8] sm:$0xff]
        %v3552 = vld [vmem:[#allocation3 + $0x2f0] sm:$0xff]
        %v3553 = vld [vmem:[#allocation3 + $0x2f8] sm:$0xff]
        %v3554 = vld [vmem:[#allocation3 + $0x300] sm:$0xff]
        %v3555 = vld [vmem:[#allocation3 + $0x308] sm:$0xff]
        %v3556 = vld [vmem:[#allocation3 + $0x310] sm:$0xff]
        %v3557 = vld [vmem:[#allocation3 + $0x318] sm:$0xff]
        %v3558 = vld [vmem:[#allocation3 + $0x320] sm:$0xff]
        %v3559 = vld [vmem:[#allocation3 + $0x328] sm:$0xff]
        %v3560 = vld [vmem:[#allocation3 + $0x330] sm:$0xff]
        %v3561 = vld [vmem:[#allocation3 + $0x338] sm:$0xff]
        %v3562 = vld [vmem:[#allocation3 + $0x340] sm:$0xff]
        %v3563 = vld [vmem:[#allocation3 + $0x348] sm:$0xff]
        %v3564 = vld [vmem:[#allocation3 + $0x350] sm:$0xff]
        %v3565 = vld [vmem:[#allocation3 + $0x358] sm:$0xff]
        %v3566 = vld [vmem:[#allocation3 + $0x360] sm:$0xff]
        %v3567 = vld [vmem:[#allocation3 + $0x368] sm:$0xff]
        %v3568 = vld [vmem:[#allocation3 + $0x370] sm:$0xff]
        %v3569 = vld [vmem:[#allocation3 + $0x378] sm:$0xff]
        %v3570 = vld [vmem:[#allocation3 + $0x380] sm:$0xff]
        %v3571 = vld [vmem:[#allocation3 + $0x388] sm:$0xff]
        %v3572 = vld [vmem:[#allocation3 + $0x390] sm:$0xff]
        %v3573 = vld [vmem:[#allocation3 + $0x398] sm:$0xff]
        %v3574 = vld [vmem:[#allocation3 + $0x3a0] sm:$0xff]
        %v3575 = vld [vmem:[#allocation3 + $0x3a8] sm:$0xff]
        %v3576 = vld [vmem:[#allocation3 + $0x3b0] sm:$0xff]
        %v3577 = vld [vmem:[#allocation3 + $0x3b8] sm:$0xff]
        %v3578 = vld [vmem:[#allocation3 + $0x3c0] sm:$0xff]
        %v3579 = vld [vmem:[#allocation3 + $0x3c8] sm:$0xff]
        %v3580 = vld [vmem:[#allocation3 + $0x3d0] sm:$0xff]
        %v3581 = vld [vmem:[#allocation3 + $0x3d8] sm:$0xff]
        %v3582 = vld [vmem:[#allocation3 + $0x3e0] sm:$0xff]
        %v3583 = vld [vmem:[#allocation3 + $0x3e8] sm:$0xff]
        %v3584 = vld [vmem:[#allocation3 + $0x3f0] sm:$0xff]
        %v3585 = vld [vmem:[#allocation3 + $0x3f8] sm:$0xff]
        %v3586 = vld [vmem:[#allocation3 + $0x400] sm:$0xff]
        %v3587 = vld [vmem:[#allocation3 + $0x408] sm:$0xff]
        %v3588 = vld [vmem:[#allocation3 + $0x410] sm:$0xff]
        %v3589 = vld [vmem:[#allocation3 + $0x418] sm:$0xff]
        %v3590 = vld [vmem:[#allocation3 + $0x420] sm:$0xff]
        %v3591 = vld [vmem:[#allocation3 + $0x428] sm:$0xff]
        %v3592 = vld [vmem:[#allocation3 + $0x430] sm:$0xff]
        %v3593 = vld [vmem:[#allocation3 + $0x438] sm:$0xff]
        %v3594 = vld [vmem:[#allocation3 + $0x440] sm:$0xff]
        %v3595 = vld [vmem:[#allocation3 + $0x448] sm:$0xff]
        %v3596 = vld [vmem:[#allocation3 + $0x450] sm:$0xff]
        %v3597 = vld [vmem:[#allocation3 + $0x458] sm:$0xff]
        %v3598 = vld [vmem:[#allocation3 + $0x460] sm:$0xff]
        %v3599 = vld [vmem:[#allocation3 + $0x468] sm:$0xff]
        %v3600 = vld [vmem:[#allocation3 + $0x470] sm:$0xff]
        %v3601 = vld [vmem:[#allocation3 + $0x478] sm:$0xff]
        %v3602 = vld [vmem:[%s2] sm:$0xf]
        %v3603 = vld [vmem:[%s2 + $0x4] sm:$0xf]
        %v3604 = vld [vmem:[%s2 + $0x8] sm:$0xf]
        %v3605 = vld [vmem:[%s2 + $0xc] sm:$0xf]
        %v3606 = vld [vmem:[%s2 + $0x10] sm:$0xf]
        %v3607 = vld [vmem:[%s2 + $0x14] sm:$0xf]
        %v3608 = vld [vmem:[%s2 + $0x18] sm:$0xf]
        %v3609 = vld [vmem:[%s2 + $0x1c] sm:$0xf]
        %v3610 = vld [vmem:[%s2 + $0x20] sm:$0xf]
        %v3611 = vld [vmem:[%s2 + $0x24] sm:$0xf]
        %v3612 = vld [vmem:[%s2 + $0x28] sm:$0xf]
        %v3613 = vld [vmem:[%s2 + $0x2c] sm:$0xf]
        %v3614 = vld [vmem:[%s2 + $0x30] sm:$0xf]
        %v3615 = vld [vmem:[%s2 + $0x34] sm:$0xf]
        %v3616 = vld [vmem:[%s2 + $0x38] sm:$0xf]
        %v3617 = vld [vmem:[%s2 + $0x3c] sm:$0xf]
        %v3618 = vld [vmem:[%s2 + $0x40] sm:$0xf]
        %v3619 = vld [vmem:[%s2 + $0x44] sm:$0xf]
        %v3620 = vld [vmem:[%s2 + $0x48] sm:$0xf]
        %v3621 = vld [vmem:[%s2 + $0x4c] sm:$0xf]
        %v3622 = vld [vmem:[%s2 + $0x50] sm:$0xf]
        %v3623 = vld [vmem:[%s2 + $0x54] sm:$0xf]
        %v3624 = vld [vmem:[%s2 + $0x58] sm:$0xf]
        %v3625 = vld [vmem:[%s2 + $0x5c] sm:$0xf]
        %v3626 = vld [vmem:[%s2 + $0x60] sm:$0xf]
        %v3627 = vld [vmem:[%s2 + $0x64] sm:$0xf]
        %v3628 = vld [vmem:[%s2 + $0x68] sm:$0xf]
        %v3629 = vld [vmem:[%s2 + $0x6c] sm:$0xf]
        %v3630 = vld [vmem:[%s2 + $0x70] sm:$0xf]
        %v3631 = vld [vmem:[%s2 + $0x74] sm:$0xf]
        %v3632 = vld [vmem:[%s2 + $0x78] sm:$0xf]
        %v3633 = vld [vmem:[%s2 + $0x7c] sm:$0xf]
        %v3634 = vld [vmem:[%s2 + $0x80] sm:$0xf]
        %v3635 = vld [vmem:[%s2 + $0x84] sm:$0xf]
        %v3636 = vld [vmem:[%s2 + $0x88] sm:$0xf]
        %v3637 = vld [vmem:[%s2 + $0x8c] sm:$0xf]
        %v3638 = vld [vmem:[%s2 + $0x90] sm:$0xf]
        %v3639 = vld [vmem:[%s2 + $0x94] sm:$0xf]
        %v3640 = vld [vmem:[%s2 + $0x98] sm:$0xf]
        %v3641 = vld [vmem:[%s2 + $0x9c] sm:$0xf]
        %v3642 = vld [vmem:[%s2 + $0xa0] sm:$0xf]
        %v3643 = vld [vmem:[%s2 + $0xa4] sm:$0xf]
        %v3644 = vld [vmem:[%s2 + $0xa8] sm:$0xf]
        %v3645 = vld [vmem:[%s2 + $0xac] sm:$0xf]
        %v3646 = vld [vmem:[%s2 + $0xb0] sm:$0xf]
        %v3647 = vld [vmem:[%s2 + $0xb4] sm:$0xf]
        %v3648 = vld [vmem:[%s2 + $0xb8] sm:$0xf]
        %v3649 = vld [vmem:[%s2 + $0xbc] sm:$0xf]
        %v3650 = vld [vmem:[%s2 + $0xc0] sm:$0xf]
        %v3651 = vld [vmem:[%s2 + $0xc4] sm:$0xf]
        %v3652 = vld [vmem:[%s2 + $0xc8] sm:$0xf]
        %v3653 = vld [vmem:[%s2 + $0xcc] sm:$0xf]
        %v3654 = vld [vmem:[%s2 + $0xd0] sm:$0xf]
        %v3655 = vld [vmem:[%s2 + $0xd4] sm:$0xf]
        %v3656 = vld [vmem:[%s2 + $0xd8] sm:$0xf]
        %v3657 = vld [vmem:[%s2 + $0xdc] sm:$0xf]
        %v3658 = vld [vmem:[%s2 + $0xe0] sm:$0xf]
        %v3659 = vld [vmem:[%s2 + $0xe4] sm:$0xf]
        %v3660 = vld [vmem:[%s2 + $0xe8] sm:$0xf]
        %v3661 = vld [vmem:[%s2 + $0xec] sm:$0xf]
        %v3662 = vld [vmem:[%s2 + $0xf0] sm:$0xf]
        %v3663 = vld [vmem:[%s2 + $0xf4] sm:$0xf]
        %v3664 = vld [vmem:[%s2 + $0xf8] sm:$0xf]
        %v3665 = vld [vmem:[%s2 + $0xfc] sm:$0xf]
        %v3666 = vld [vmem:[%s2 + $0x100] sm:$0xf]
        %v3667 = vld [vmem:[%s2 + $0x104] sm:$0xf]
        %v3668 = vld [vmem:[%s2 + $0x108] sm:$0xf]
        %v3669 = vld [vmem:[%s2 + $0x10c] sm:$0xf]
        %v3670 = vld [vmem:[%s2 + $0x110] sm:$0xf]
        %v3671 = vld [vmem:[%s2 + $0x114] sm:$0xf]
        %v3672 = vld [vmem:[%s2 + $0x118] sm:$0xf]
        %v3673 = vld [vmem:[%s2 + $0x11c] sm:$0xf]
        %v3674 = vld [vmem:[%s2 + $0x120] sm:$0xf]
        %v3675 = vld [vmem:[%s2 + $0x124] sm:$0xf]
        %v3676 = vld [vmem:[%s2 + $0x128] sm:$0xf]
        %v3677 = vld [vmem:[%s2 + $0x12c] sm:$0xf]
        %v3678 = vld [vmem:[%s2 + $0x130] sm:$0xf]
        %v3679 = vld [vmem:[%s2 + $0x134] sm:$0xf]
        %v3680 = vld [vmem:[%s2 + $0x138] sm:$0xf]
        %v3681 = vld [vmem:[%s2 + $0x13c] sm:$0xf]
        %v3682 = vld [vmem:[%s2 + $0x140] sm:$0xf]
        %v3683 = vld [vmem:[%s2 + $0x144] sm:$0xf]
        %v3684 = vld [vmem:[%s2 + $0x148] sm:$0xf]
        %v3685 = vld [vmem:[%s2 + $0x14c] sm:$0xf]
        %v3686 = vld [vmem:[%s2 + $0x150] sm:$0xf]
        %v3687 = vld [vmem:[%s2 + $0x154] sm:$0xf]
        %v3688 = vld [vmem:[%s2 + $0x158] sm:$0xf]
        %v3689 = vld [vmem:[%s2 + $0x15c] sm:$0xf]
        %v3690 = vld [vmem:[%s2 + $0x160] sm:$0xf]
        %v3691 = vld [vmem:[%s2 + $0x164] sm:$0xf]
        %v3692 = vld [vmem:[%s2 + $0x168] sm:$0xf]
        %v3693 = vld [vmem:[%s2 + $0x16c] sm:$0xf]
        %v3694 = vld [vmem:[%s2 + $0x170] sm:$0xf]
        %v3695 = vld [vmem:[%s2 + $0x174] sm:$0xf]
        %v3696 = vld [vmem:[%s2 + $0x178] sm:$0xf]
        %v3697 = vld [vmem:[%s2 + $0x17c] sm:$0xf]
        %v3698 = vld [vmem:[%s2 + $0x180] sm:$0xf]
        %v3699 = vld [vmem:[%s2 + $0x184] sm:$0xf]
        %v3700 = vld [vmem:[%s2 + $0x188] sm:$0xf]
        %v3701 = vld [vmem:[%s2 + $0x18c] sm:$0xf]
        %v3702 = vld [vmem:[%s2 + $0x190] sm:$0xf]
        %v3703 = vld [vmem:[%s2 + $0x194] sm:$0xf]
        %v3704 = vld [vmem:[%s2 + $0x198] sm:$0xf]
        %v3705 = vld [vmem:[%s2 + $0x19c] sm:$0xf]
        %v3706 = vld [vmem:[%s2 + $0x1a0] sm:$0xf]
        %v3707 = vld [vmem:[%s2 + $0x1a4] sm:$0xf]
        %v3708 = vld [vmem:[%s2 + $0x1a8] sm:$0xf]
        %v3709 = vld [vmem:[%s2 + $0x1ac] sm:$0xf]
        %v3710 = vld [vmem:[%s2 + $0x1b0] sm:$0xf]
        %v3711 = vld [vmem:[%s2 + $0x1b4] sm:$0xf]
        %v3712 = vld [vmem:[%s2 + $0x1b8] sm:$0xf]
        %v3713 = vld [vmem:[%s2 + $0x1bc] sm:$0xf]
        %v3714 = vld [vmem:[%s2 + $0x1c0] sm:$0xf]
        %v3715 = vld [vmem:[%s2 + $0x1c4] sm:$0xf]
        %v3716 = vld [vmem:[%s2 + $0x1c8] sm:$0xf]
        %v3717 = vld [vmem:[%s2 + $0x1cc] sm:$0xf]
        %v3718 = vld [vmem:[%s2 + $0x1d0] sm:$0xf]
        %v3719 = vld [vmem:[%s2 + $0x1d4] sm:$0xf]
        %v3720 = vld [vmem:[%s2 + $0x1d8] sm:$0xf]
        %v3721 = vld [vmem:[%s2 + $0x1dc] sm:$0xf]
        %v3722 = vld [vmem:[%s2 + $0x1e0] sm:$0xf]
        %v3723 = vld [vmem:[%s2 + $0x1e4] sm:$0xf]
        %v3724 = vld [vmem:[%s2 + $0x1e8] sm:$0xf]
        %v3725 = vld [vmem:[%s2 + $0x1ec] sm:$0xf]
        %v3726 = vld [vmem:[%s2 + $0x1f0] sm:$0xf]
        %v3727 = vld [vmem:[%s2 + $0x1f4] sm:$0xf]
        %v3728 = vld [vmem:[%s2 + $0x1f8] sm:$0xf]
        %v3729 = vld [vmem:[%s2 + $0x1fc] sm:$0xf]
        %v3730 = vld [vmem:[%s2 + $0x200] sm:$0xf]
        %v3731 = vld [vmem:[%s2 + $0x204] sm:$0xf]
        %v3732 = vld [vmem:[%s2 + $0x208] sm:$0xf]
        %v3733 = vld [vmem:[%s2 + $0x20c] sm:$0xf]
        %v3734 = vld [vmem:[%s2 + $0x210] sm:$0xf]
        %v3735 = vld [vmem:[%s2 + $0x214] sm:$0xf]
        %v3736 = vld [vmem:[%s2 + $0x218] sm:$0xf]
        %v3737 = vld [vmem:[%s2 + $0x21c] sm:$0xf]
        %v3738 = vld [vmem:[%s2 + $0x220] sm:$0xf]
        %v3739 = vld [vmem:[%s2 + $0x224] sm:$0xf]
        %v3740 = vld [vmem:[%s2 + $0x228] sm:$0xf]
        %v3741 = vld [vmem:[%s2 + $0x22c] sm:$0xf]
        %v3742 = vld [vmem:[%s2 + $0x230] sm:$0xf]
        %v3743 = vld [vmem:[%s2 + $0x234] sm:$0xf]
        %v3744 = vld [vmem:[%s2 + $0x238] sm:$0xf]
        %v3745 = vld [vmem:[%s2 + $0x23c] sm:$0xf]
        %v3746 = vld [vmem:[%s3] sm:$0x1]
        %v3748 = vlaneseq
        %v3749 = vshrl.u32 %v3748, 7
        %v3750 = vsub.s32 0, %v3749
        %v3751 = vrot.slane %v3746, %v3750
        %v3897 = vunpack.c.l.b16 %v3602
        %v3898 = vunpack.c.l.b16 %v3603
        %v3899 = vunpack.c.l.b16 %v3604
        %v3900 = vunpack.c.l.b16 %v3605
        %v3901 = vunpack.c.l.b16 %v3606
        %v3902 = vunpack.c.l.b16 %v3607
        %v3903 = vunpack.c.l.b16 %v3608
        %v3904 = vunpack.c.l.b16 %v3609
        %v3905 = vunpack.c.l.b16 %v3610
        %v3906 = vunpack.c.l.b16 %v3611
        %v3907 = vunpack.c.l.b16 %v3612
        %v3908 = vunpack.c.l.b16 %v3613
        %v3909 = vunpack.c.l.b16 %v3614
        %v3910 = vunpack.c.l.b16 %v3615
        %v3911 = vunpack.c.l.b16 %v3616
        %v3912 = vunpack.c.l.b16 %v3617
        %v3913 = vunpack.c.l.b16 %v3618
        %v3914 = vunpack.c.l.b16 %v3619
        %v3915 = vunpack.c.l.b16 %v3620
        %v3916 = vunpack.c.l.b16 %v3621
        %v3917 = vunpack.c.l.b16 %v3622
        %v3918 = vunpack.c.l.b16 %v3623
        %v3919 = vunpack.c.l.b16 %v3624
        %v3920 = vunpack.c.l.b16 %v3625
        %v3921 = vunpack.c.l.b16 %v3626
        %v3922 = vunpack.c.l.b16 %v3627
        %v3923 = vunpack.c.l.b16 %v3628
        %v3924 = vunpack.c.l.b16 %v3629
        %v3925 = vunpack.c.l.b16 %v3630
        %v3926 = vunpack.c.l.b16 %v3631
        %v3927 = vunpack.c.l.b16 %v3632
        %v3928 = vunpack.c.l.b16 %v3633
        %v3929 = vunpack.c.l.b16 %v3634
        %v3930 = vunpack.c.l.b16 %v3635
        %v3931 = vunpack.c.l.b16 %v3636
        %v3932 = vunpack.c.l.b16 %v3637
        %v3933 = vunpack.c.l.b16 %v3638
        %v3934 = vunpack.c.l.b16 %v3639
        %v3935 = vunpack.c.l.b16 %v3640
        %v3936 = vunpack.c.l.b16 %v3641
        %v3937 = vunpack.c.l.b16 %v3642
        %v3938 = vunpack.c.l.b16 %v3643
        %v3939 = vunpack.c.l.b16 %v3644
        %v3940 = vunpack.c.l.b16 %v3645
        %v3941 = vunpack.c.l.b16 %v3646
        %v3942 = vunpack.c.l.b16 %v3647
        %v3943 = vunpack.c.l.b16 %v3648
        %v3944 = vunpack.c.l.b16 %v3649
        %v3945 = vunpack.c.l.b16 %v3650
        %v3946 = vunpack.c.l.b16 %v3651
        %v3947 = vunpack.c.l.b16 %v3652
        %v3948 = vunpack.c.l.b16 %v3653
        %v3949 = vunpack.c.l.b16 %v3654
        %v3950 = vunpack.c.l.b16 %v3655
        %v3951 = vunpack.c.l.b16 %v3656
        %v3952 = vunpack.c.l.b16 %v3657
        %v3953 = vunpack.c.l.b16 %v3658
        %v3954 = vunpack.c.l.b16 %v3659
        %v3955 = vunpack.c.l.b16 %v3660
        %v3956 = vunpack.c.l.b16 %v3661
        %v3957 = vunpack.c.l.b16 %v3662
        %v3958 = vunpack.c.l.b16 %v3663
        %v3959 = vunpack.c.l.b16 %v3664
        %v3960 = vunpack.c.l.b16 %v3665
        %v3961 = vunpack.c.l.b16 %v3666
        %v3962 = vunpack.c.l.b16 %v3667
        %v3963 = vunpack.c.l.b16 %v3668
        %v3964 = vunpack.c.l.b16 %v3669
        %v3965 = vunpack.c.l.b16 %v3670
        %v3966 = vunpack.c.l.b16 %v3671
        %v3967 = vunpack.c.l.b16 %v3672
        %v3968 = vunpack.c.l.b16 %v3673
        %v3969 = vunpack.c.l.b16 %v3674
        %v3970 = vunpack.c.l.b16 %v3675
        %v3971 = vunpack.c.l.b16 %v3676
        %v3972 = vunpack.c.l.b16 %v3677
        %v3973 = vunpack.c.l.b16 %v3678
        %v3974 = vunpack.c.l.b16 %v3679
        %v3975 = vunpack.c.l.b16 %v3680
        %v3976 = vunpack.c.l.b16 %v3681
        %v3977 = vunpack.c.l.b16 %v3682
        %v3978 = vunpack.c.l.b16 %v3683
        %v3979 = vunpack.c.l.b16 %v3684
        %v3980 = vunpack.c.l.b16 %v3685
        %v3981 = vunpack.c.l.b16 %v3686
        %v3982 = vunpack.c.l.b16 %v3687
        %v3983 = vunpack.c.l.b16 %v3688
        %v3984 = vunpack.c.l.b16 %v3689
        %v3985 = vunpack.c.l.b16 %v3690
        %v3986 = vunpack.c.l.b16 %v3691
        %v3987 = vunpack.c.l.b16 %v3692
        %v3988 = vunpack.c.l.b16 %v3693
        %v3989 = vunpack.c.l.b16 %v3694
        %v3990 = vunpack.c.l.b16 %v3695
        %v3991 = vunpack.c.l.b16 %v3696
        %v3992 = vunpack.c.l.b16 %v3697
        %v3993 = vunpack.c.l.b16 %v3698
        %v3994 = vunpack.c.l.b16 %v3699
        %v3995 = vunpack.c.l.b16 %v3700
        %v3996 = vunpack.c.l.b16 %v3701
        %v3997 = vunpack.c.l.b16 %v3702
        %v3998 = vunpack.c.l.b16 %v3703
        %v3999 = vunpack.c.l.b16 %v3704
        %v4000 = vunpack.c.l.b16 %v3705
        %v4001 = vunpack.c.l.b16 %v3706
        %v4002 = vunpack.c.l.b16 %v3707
        %v4003 = vunpack.c.l.b16 %v3708
        %v4004 = vunpack.c.l.b16 %v3709
        %v4005 = vunpack.c.l.b16 %v3710
        %v4006 = vunpack.c.l.b16 %v3711
        %v4007 = vunpack.c.l.b16 %v3712
        %v4008 = vunpack.c.l.b16 %v3713
        %v4009 = vunpack.c.l.b16 %v3714
        %v4010 = vunpack.c.l.b16 %v3715
        %v4011 = vunpack.c.l.b16 %v3716
        %v4012 = vunpack.c.l.b16 %v3717
        %v4013 = vunpack.c.l.b16 %v3718
        %v4014 = vunpack.c.l.b16 %v3719
        %v4015 = vunpack.c.l.b16 %v3720
        %v4016 = vunpack.c.l.b16 %v3721
        %v4017 = vunpack.c.l.b16 %v3722
        %v4018 = vunpack.c.l.b16 %v3723
        %v4019 = vunpack.c.l.b16 %v3724
        %v4020 = vunpack.c.l.b16 %v3725
        %v4021 = vunpack.c.l.b16 %v3726
        %v4022 = vunpack.c.l.b16 %v3727
        %v4023 = vunpack.c.l.b16 %v3728
        %v4024 = vunpack.c.l.b16 %v3729
        %v4025 = vunpack.c.l.b16 %v3730
        %v4026 = vunpack.c.l.b16 %v3731
        %v4027 = vunpack.c.l.b16 %v3732
        %v4028 = vunpack.c.l.b16 %v3733
        %v4029 = vunpack.c.l.b16 %v3734
        %v4030 = vunpack.c.l.b16 %v3735
        %v4031 = vunpack.c.l.b16 %v3736
        %v4032 = vunpack.c.l.b16 %v3737
        %v4033 = vunpack.c.l.b16 %v3738
        %v4034 = vunpack.c.l.b16 %v3739
        %v4035 = vunpack.c.l.b16 %v3740
        %v4036 = vunpack.c.l.b16 %v3741
        %v4037 = vunpack.c.l.b16 %v3742
        %v4038 = vunpack.c.l.b16 %v3743
        %v4039 = vunpack.c.l.b16 %v3744
        %v4040 = vunpack.c.l.b16 %v3745
        %v4041 = vpack.c.b16 %v3898, %v3897
        %v4042 = vpack.c.b16 %v3900, %v3899
        %v4043 = vpack.c.b16 %v3902, %v3901
        %v4044 = vpack.c.b16 %v3904, %v3903
        %v4045 = vpack.c.b16 %v3906, %v3905
        %v4046 = vpack.c.b16 %v3908, %v3907
        %v4047 = vpack.c.b16 %v3910, %v3909
        %v4048 = vpack.c.b16 %v3912, %v3911
        %v4049 = vpack.c.b16 %v3914, %v3913
        %v4050 = vpack.c.b16 %v3916, %v3915
        %v4051 = vpack.c.b16 %v3918, %v3917
        %v4052 = vpack.c.b16 %v3920, %v3919
        %v4053 = vpack.c.b16 %v3922, %v3921
        %v4054 = vpack.c.b16 %v3924, %v3923
        %v4055 = vpack.c.b16 %v3926, %v3925
        %v4056 = vpack.c.b16 %v3928, %v3927
        %v4057 = vpack.c.b16 %v3930, %v3929
        %v4058 = vpack.c.b16 %v3932, %v3931
        %v4059 = vpack.c.b16 %v3934, %v3933
        %v4060 = vpack.c.b16 %v3936, %v3935
        %v4061 = vpack.c.b16 %v3938, %v3937
        %v4062 = vpack.c.b16 %v3940, %v3939
        %v4063 = vpack.c.b16 %v3942, %v3941
        %v4064 = vpack.c.b16 %v3944, %v3943
        %v4065 = vpack.c.b16 %v3946, %v3945
        %v4066 = vpack.c.b16 %v3948, %v3947
        %v4067 = vpack.c.b16 %v3950, %v3949
        %v4068 = vpack.c.b16 %v3952, %v3951
        %v4069 = vpack.c.b16 %v3954, %v3953
        %v4070 = vpack.c.b16 %v3956, %v3955
        %v4071 = vpack.c.b16 %v3958, %v3957
        %v4072 = vpack.c.b16 %v3960, %v3959
        %v4073 = vpack.c.b16 %v3962, %v3961
        %v4074 = vpack.c.b16 %v3964, %v3963
        %v4075 = vpack.c.b16 %v3966, %v3965
        %v4076 = vpack.c.b16 %v3968, %v3967
        %v4077 = vpack.c.b16 %v3970, %v3969
        %v4078 = vpack.c.b16 %v3972, %v3971
        %v4079 = vpack.c.b16 %v3974, %v3973
        %v4080 = vpack.c.b16 %v3976, %v3975
        %v4081 = vpack.c.b16 %v3978, %v3977
        %v4082 = vpack.c.b16 %v3980, %v3979
        %v4083 = vpack.c.b16 %v3982, %v3981
        %v4084 = vpack.c.b16 %v3984, %v3983
        %v4085 = vpack.c.b16 %v3986, %v3985
        %v4086 = vpack.c.b16 %v3988, %v3987
        %v4087 = vpack.c.b16 %v3990, %v3989
        %v4088 = vpack.c.b16 %v3992, %v3991
        %v4089 = vpack.c.b16 %v3994, %v3993
        %v4090 = vpack.c.b16 %v3996, %v3995
        %v4091 = vpack.c.b16 %v3998, %v3997
        %v4092 = vpack.c.b16 %v4000, %v3999
        %v4093 = vpack.c.b16 %v4002, %v4001
        %v4094 = vpack.c.b16 %v4004, %v4003
        %v4095 = vpack.c.b16 %v4006, %v4005
        %v4096 = vpack.c.b16 %v4008, %v4007
        %v4097 = vpack.c.b16 %v4010, %v4009
        %v4098 = vpack.c.b16 %v4012, %v4011
        %v4099 = vpack.c.b16 %v4014, %v4013
        %v4100 = vpack.c.b16 %v4016, %v4015
        %v4101 = vpack.c.b16 %v4018, %v4017
        %v4102 = vpack.c.b16 %v4020, %v4019
        %v4103 = vpack.c.b16 %v4022, %v4021
        %v4104 = vpack.c.b16 %v4024, %v4023
        %v4105 = vpack.c.b16 %v4026, %v4025
        %v4106 = vpack.c.b16 %v4028, %v4027
        %v4107 = vpack.c.b16 %v4030, %v4029
        %v4108 = vpack.c.b16 %v4032, %v4031
        %v4109 = vpack.c.b16 %v4034, %v4033
        %v4110 = vpack.c.b16 %v4036, %v4035
        %v4111 = vpack.c.b16 %v4038, %v4037
        %v4112 = vpack.c.b16 %v4040, %v4039
        %4185 = vmatprep.subr.bf16.mxu0 0
        %4186 = vmatpush1.bf16.msra.mxu0 %v4041
        %4187 = vmatprep.subr.bf16.mxu0 0
        %4188 = vmatpush1.bf16.msra.mxu0 %v4042
        %4189 = vmatprep.subr.bf16.mxu0 0
        %4190 = vmatpush1.bf16.msra.mxu0 %v4043
        %4191 = vmatprep.subr.bf16.mxu0 0
        %4192 = vmatpush1.bf16.msra.mxu0 %v4044
        %4193 = vmatprep.subr.bf16.mxu0 0
        %4194 = vmatpush1.bf16.msra.mxu0 %v4045
        %4195 = vmatprep.subr.bf16.mxu0 0
        %4196 = vmatpush1.bf16.msra.mxu0 %v4046
        %4197 = vmatprep.subr.bf16.mxu0 0
        %4198 = vmatpush1.bf16.msra.mxu0 %v4047
        %4199 = vmatprep.subr.bf16.mxu0 0
        %4200 = vmatpush1.bf16.msra.mxu0 %v4048
        %4201 = vmatprep.subr.bf16.mxu0 0
        %4202 = vmatpush1.bf16.msra.mxu0 %v4049
        %4203 = vmatprep.subr.bf16.mxu0 0
        %4204 = vmatpush1.bf16.msra.mxu0 %v4050
        %4205 = vmatprep.subr.bf16.mxu0 0
        %4206 = vmatpush1.bf16.msra.mxu0 %v4051
        %4207 = vmatprep.subr.bf16.mxu0 0
        %4208 = vmatpush1.bf16.msra.mxu0 %v4052
        %4209 = vmatprep.subr.bf16.mxu0 0
        %4210 = vmatpush1.bf16.msra.mxu0 %v4053
        %4211 = vmatprep.subr.bf16.mxu0 0
        %4212 = vmatpush1.bf16.msra.mxu0 %v4054
        %4213 = vmatprep.subr.bf16.mxu0 0
        %4214 = vmatpush1.bf16.msra.mxu0 %v4055
        %4215 = vmatprep.subr.bf16.mxu0 0
        %4216 = vmatpush1.bf16.msra.mxu0 %v4056
        %4217 = vmatprep.mubr.bf16.mxu0 %v3459
        %4218 = vmatmul.mubr.bf16.gmra.mrb[0].mxu0 %v3458
        %v4219 = vpop.f32.mrb[0].mxu0
        %v4220 = vadd.f32 %v3751, %v4219
        %v4221 = vpop.f32.mrb[0].mxu0
        %v4222 = vpop.f32.mrb[0].mxu0
        %v4223 = vadd.f32 %v3751, %v4222
        %v4224 = vpop.f32.mrb[0].mxu0
        %4225 = vmatprep.mubr.bf16.mxu0 %v3468
        %4226 = vmatmul.mubr.bf16.gmra.mrb[0].mxu0 %v3467
        %v4227 = vpop.f32.mrb[0].mxu0
        %v4228 = vadd.f32 %v3751, %v4227
        %v4229 = vpop.f32.mrb[0].mxu0
        %v4230 = vpop.f32.mrb[0].mxu0
        %v4231 = vadd.f32 %v3751, %v4230
        %v4232 = vpop.f32.mrb[0].mxu0
        %4233 = vmatprep.mubr.bf16.mxu0 %v3477
        %4234 = vmatmul.mubr.bf16.gmra.mrb[0].mxu0 %v3476
        %v4235 = vpop.f32.mrb[0].mxu0
        %v4236 = vadd.f32 %v3751, %v4235
        %v4237 = vpop.f32.mrb[0].mxu0
        %v4238 = vpop.f32.mrb[0].mxu0
        %v4239 = vadd.f32 %v3751, %v4238
        %v4240 = vpop.f32.mrb[0].mxu0
        %4241 = vmatprep.mubr.bf16.mxu0 %v3486
        %4242 = vmatmul.mubr.bf16.gmra.mrb[0].mxu0 %v3485
        %v4243 = vpop.f32.mrb[0].mxu0
        %v4244 = vadd.f32 %v3751, %v4243
        %v4245 = vpop.f32.mrb[0].mxu0
        %v4246 = vpop.f32.mrb[0].mxu0
        %v4247 = vadd.f32 %v3751, %v4246
        %v4248 = vpop.f32.mrb[0].mxu0
        %4249 = vmatprep.mubr.bf16.mxu0 %v3495
        %4250 = vmatmul.mubr.bf16.gmra.mrb[0].mxu0 %v3494
        %v4251 = vpop.f32.mrb[0].mxu0
        %v4252 = vadd.f32 %v3751, %v4251
        %v4253 = vpop.f32.mrb[0].mxu0
        %v4254 = vpop.f32.mrb[0].mxu0
        %v4255 = vadd.f32 %v3751, %v4254
        %v4256 = vpop.f32.mrb[0].mxu0
        %4257 = vmatprep.mubr.bf16.mxu0 %v3504
        %4258 = vmatmul.mubr.bf16.gmra.mrb[0].mxu0 %v3503
        %v4259 = vpop.f32.mrb[0].mxu0
        %v4260 = vadd.f32 %v3751, %v4259
        %v4261 = vpop.f32.mrb[0].mxu0
        %v4262 = vpop.f32.mrb[0].mxu0
        %v4263 = vadd.f32 %v3751, %v4262
        %v4264 = vpop.f32.mrb[0].mxu0
        %4265 = vmatprep.mubr.bf16.mxu0 %v3513
        %4266 = vmatmul.mubr.bf16.gmra.mrb[0].mxu0 %v3512
        %v4267 = vpop.f32.mrb[0].mxu0
        %v4268 = vadd.f32 %v3751, %v4267
        %v4269 = vpop.f32.mrb[0].mxu0
        %v4270 = vpop.f32.mrb[0].mxu0
        %v4271 = vadd.f32 %v3751, %v4270
        %v4272 = vpop.f32.mrb[0].mxu0
        %4273 = vmatprep.mubr.bf16.mxu0 %v3522
        %4274 = vmatmul.mubr.bf16.gmra.mrb[0].mxu0 %v3521
        %v4275 = vpop.f32.mrb[0].mxu0
        %v4276 = vadd.f32 %v3751, %v4275
        %v4277 = vpop.f32.mrb[0].mxu0
        %v4278 = vpop.f32.mrb[0].mxu0
        %v4279 = vadd.f32 %v3751, %v4278
        %v4280 = vpop.f32.mrb[0].mxu0
        %4281 = vmatprep.mubr.bf16.mxu0 %v3531
        %4282 = vmatmul.mubr.bf16.gmra.mrb[0].mxu0 %v3530
        %v4283 = vpop.f32.mrb[0].mxu0
        %v4284 = vadd.f32 %v3751, %v4283
        %v4285 = vpop.f32.mrb[0].mxu0
        %v4286 = vpop.f32.mrb[0].mxu0
        %v4287 = vadd.f32 %v3751, %v4286
        %v4288 = vpop.f32.mrb[0].mxu0
        %4289 = vmatprep.mubr.bf16.mxu0 %v3540
        %4290 = vmatmul.mubr.bf16.gmra.mrb[0].mxu0 %v3539
        %v4291 = vpop.f32.mrb[0].mxu0
        %v4292 = vadd.f32 %v3751, %v4291
        %v4293 = vpop.f32.mrb[0].mxu0
        %v4294 = vpop.f32.mrb[0].mxu0
        %v4295 = vadd.f32 %v3751, %v4294
        %v4296 = vpop.f32.mrb[0].mxu0
        %4297 = vmatprep.mubr.bf16.mxu0 %v3549
        %4298 = vmatmul.mubr.bf16.gmra.mrb[0].mxu0 %v3548
        %v4299 = vpop.f32.mrb[0].mxu0
        %v4300 = vadd.f32 %v3751, %v4299
        %v4301 = vpop.f32.mrb[0].mxu0
        %v4302 = vpop.f32.mrb[0].mxu0
        %v4303 = vadd.f32 %v3751, %v4302
        %v4304 = vpop.f32.mrb[0].mxu0
        %4305 = vmatprep.mubr.bf16.mxu0 %v3558
        %4306 = vmatmul.mubr.bf16.gmra.mrb[0].mxu0 %v3557
        %v4307 = vpop.f32.mrb[0].mxu0
        %v4308 = vadd.f32 %v3751, %v4307
        %v4309 = vpop.f32.mrb[0].mxu0
        %v4310 = vpop.f32.mrb[0].mxu0
        %v4311 = vadd.f32 %v3751, %v4310
        %v4312 = vpop.f32.mrb[0].mxu0
        %4313 = vmatprep.mubr.bf16.mxu0 %v3567
        %4314 = vmatmul.mubr.bf16.gmra.mrb[0].mxu0 %v3566
        %v4315 = vpop.f32.mrb[0].mxu0
        %v4316 = vadd.f32 %v3751, %v4315
        %v4317 = vpop.f32.mrb[0].mxu0
        %v4318 = vpop.f32.mrb[0].mxu0
        %v4319 = vadd.f32 %v3751, %v4318
        %v4320 = vpop.f32.mrb[0].mxu0
        %4321 = vmatprep.mubr.bf16.mxu0 %v3576
        %4322 = vmatmul.mubr.bf16.gmra.mrb[0].mxu0 %v3575
        %v4323 = vpop.f32.mrb[0].mxu0
        %v4324 = vadd.f32 %v3751, %v4323
        %v4325 = vpop.f32.mrb[0].mxu0
        %v4326 = vpop.f32.mrb[0].mxu0
        %v4327 = vadd.f32 %v3751, %v4326
        %v4328 = vpop.f32.mrb[0].mxu0
        %4329 = vmatprep.mubr.bf16.mxu0 %v3585
        %4330 = vmatmul.mubr.bf16.gmra.mrb[0].mxu0 %v3584
        %v4331 = vpop.f32.mrb[0].mxu0
        %v4332 = vadd.f32 %v3751, %v4331
        %v4333 = vpop.f32.mrb[0].mxu0
        %v4334 = vpop.f32.mrb[0].mxu0
        %v4335 = vadd.f32 %v3751, %v4334
        %v4336 = vpop.f32.mrb[0].mxu0
        %4337 = vmatprep.mubr.bf16.mxu0 %v3594
        %4338 = vmatmul.mubr.bf16.gmra.mrb[0].mxu0 %v3593
        %v4339 = vpop.f32.mrb[0].mxu0
        %v4340 = vadd.f32 %v3751, %v4339
        %v4341 = vpop.f32.mrb[0].mxu0
        %v4342 = vpop.f32.mrb[0].mxu0
        %v4343 = vadd.f32 %v3751, %v4342
        %v4344 = vpop.f32.mrb[0].mxu0
        %4345 = vdwg.mxu0
        %4346 = vmatprep.subr.bf16.mxu0 0
        %4347 = vmatpush1.bf16.msra.mxu0 %v4057
        %4348 = vmatprep.subr.bf16.mxu0 0
        %4349 = vmatpush1.bf16.msra.mxu0 %v4058
        %4350 = vmatprep.subr.bf16.mxu0 0
        %4351 = vmatpush1.bf16.msra.mxu0 %v4059
        %4352 = vmatprep.subr.bf16.mxu0 0
        %4353 = vmatpush1.bf16.msra.mxu0 %v4060
        %4354 = vmatprep.subr.bf16.mxu0 0
        %4355 = vmatpush1.bf16.msra.mxu0 %v4061
        %4356 = vmatprep.subr.bf16.mxu0 0
        %4357 = vmatpush1.bf16.msra.mxu0 %v4062
        %4358 = vmatprep.subr.bf16.mxu0 0
        %4359 = vmatpush1.bf16.msra.mxu0 %v4063
        %4360 = vmatprep.subr.bf16.mxu0 0
        %4361 = vmatpush1.bf16.msra.mxu0 %v4064
        %4362 = vmatprep.subr.bf16.mxu0 0
        %4363 = vmatpush1.bf16.msra.mxu0 %v4065
        %4364 = vmatprep.subr.bf16.mxu0 0
        %4365 = vmatpush1.bf16.msra.mxu0 %v4066
        %4366 = vmatprep.subr.bf16.mxu0 0
        %4367 = vmatpush1.bf16.msra.mxu0 %v4067
        %4368 = vmatprep.subr.bf16.mxu0 0
        %4369 = vmatpush1.bf16.msra.mxu0 %v4068
        %4370 = vmatprep.subr.bf16.mxu0 0
        %4371 = vmatpush1.bf16.msra.mxu0 %v4069
        %4372 = vmatprep.subr.bf16.mxu0 0
        %4373 = vmatpush1.bf16.msra.mxu0 %v4070
        %4374 = vmatprep.subr.bf16.mxu0 0
        %4375 = vmatpush1.bf16.msra.mxu0 %v4071
        %4376 = vmatprep.subr.bf16.mxu0 0
        %4377 = vmatpush1.bf16.msra.mxu0 %v4072
        %4378 = vmatprep.mubr.bf16.mxu0 %v3461
        %4379 = vmatmul.mubr.bf16.gmra.mrb[0].mxu0 %v3460
        %v4380 = vpop.f32.mrb[0].mxu0
        %v4381 = vadd.f32 %v4220, %v4380
        %v4382 = vpop.f32.mrb[0].mxu0
        %v4383 = vpop.f32.mrb[0].mxu0
        %v4384 = vadd.f32 %v4223, %v4383
        %v4385 = vpop.f32.mrb[0].mxu0
        %4386 = vmatprep.mubr.bf16.mxu0 %v3470
        %4387 = vmatmul.mubr.bf16.gmra.mrb[0].mxu0 %v3469
        %v4388 = vpop.f32.mrb[0].mxu0
        %v4389 = vadd.f32 %v4228, %v4388
        %v4390 = vpop.f32.mrb[0].mxu0
        %v4391 = vpop.f32.mrb[0].mxu0
        %v4392 = vadd.f32 %v4231, %v4391
        %v4393 = vpop.f32.mrb[0].mxu0
        %4394 = vmatprep.mubr.bf16.mxu0 %v3479
        %4395 = vmatmul.mubr.bf16.gmra.mrb[0].mxu0 %v3478
        %v4396 = vpop.f32.mrb[0].mxu0
        %v4397 = vadd.f32 %v4236, %v4396
        %v4398 = vpop.f32.mrb[0].mxu0
        %v4399 = vpop.f32.mrb[0].mxu0
        %v4400 = vadd.f32 %v4239, %v4399
        %v4401 = vpop.f32.mrb[0].mxu0
        %4402 = vmatprep.mubr.bf16.mxu0 %v3488
        %4403 = vmatmul.mubr.bf16.gmra.mrb[0].mxu0 %v3487
        %v4404 = vpop.f32.mrb[0].mxu0
        %v4405 = vadd.f32 %v4244, %v4404
        %v4406 = vpop.f32.mrb[0].mxu0
        %v4407 = vpop.f32.mrb[0].mxu0
        %v4408 = vadd.f32 %v4247, %v4407
        %v4409 = vpop.f32.mrb[0].mxu0
        %4410 = vmatprep.mubr.bf16.mxu0 %v3497
        %4411 = vmatmul.mubr.bf16.gmra.mrb[0].mxu0 %v3496
        %v4412 = vpop.f32.mrb[0].mxu0
        %v4413 = vadd.f32 %v4252, %v4412
        %v4414 = vpop.f32.mrb[0].mxu0
        %v4415 = vpop.f32.mrb[0].mxu0
        %v4416 = vadd.f32 %v4255, %v4415
        %v4417 = vpop.f32.mrb[0].mxu0
        %4418 = vmatprep.mubr.bf16.mxu0 %v3506
        %4419 = vmatmul.mubr.bf16.gmra.mrb[0].mxu0 %v3505
        %v4420 = vpop.f32.mrb[0].mxu0
        %v4421 = vadd.f32 %v4260, %v4420
        %v4422 = vpop.f32.mrb[0].mxu0
        %v4423 = vpop.f32.mrb[0].mxu0
        %v4424 = vadd.f32 %v4263, %v4423
        %v4425 = vpop.f32.mrb[0].mxu0
        %4426 = vmatprep.mubr.bf16.mxu0 %v3515
        %4427 = vmatmul.mubr.bf16.gmra.mrb[0].mxu0 %v3514
        %v4428 = vpop.f32.mrb[0].mxu0
        %v4429 = vadd.f32 %v4268, %v4428
        %v4430 = vpop.f32.mrb[0].mxu0
        %v4431 = vpop.f32.mrb[0].mxu0
        %v4432 = vadd.f32 %v4271, %v4431
        %v4433 = vpop.f32.mrb[0].mxu0
        %4434 = vmatprep.mubr.bf16.mxu0 %v3524
        %4435 = vmatmul.mubr.bf16.gmra.mrb[0].mxu0 %v3523
        %v4436 = vpop.f32.mrb[0].mxu0
        %v4437 = vadd.f32 %v4276, %v4436
        %v4438 = vpop.f32.mrb[0].mxu0
        %v4439 = vpop.f32.mrb[0].mxu0
        %v4440 = vadd.f32 %v4279, %v4439
        %v4441 = vpop.f32.mrb[0].mxu0
        %4442 = vmatprep.mubr.bf16.mxu0 %v3533
        %4443 = vmatmul.mubr.bf16.gmra.mrb[0].mxu0 %v3532
        %v4444 = vpop.f32.mrb[0].mxu0
        %v4445 = vadd.f32 %v4284, %v4444
        %v4446 = vpop.f32.mrb[0].mxu0
        %v4447 = vpop.f32.mrb[0].mxu0
        %v4448 = vadd.f32 %v4287, %v4447
        %v4449 = vpop.f32.mrb[0].mxu0
        %4450 = vmatprep.mubr.bf16.mxu0 %v3542
        %4451 = vmatmul.mubr.bf16.gmra.mrb[0].mxu0 %v3541
        %v4452 = vpop.f32.mrb[0].mxu0
        %v4453 = vadd.f32 %v4292, %v4452
        %v4454 = vpop.f32.mrb[0].mxu0
        %v4455 = vpop.f32.mrb[0].mxu0
        %v4456 = vadd.f32 %v4295, %v4455
        %v4457 = vpop.f32.mrb[0].mxu0
        %4458 = vmatprep.mubr.bf16.mxu0 %v3551
        %4459 = vmatmul.mubr.bf16.gmra.mrb[0].mxu0 %v3550
        %v4460 = vpop.f32.mrb[0].mxu0
        %v4461 = vadd.f32 %v4300, %v4460
        %v4462 = vpop.f32.mrb[0].mxu0
        %v4463 = vpop.f32.mrb[0].mxu0
        %v4464 = vadd.f32 %v4303, %v4463
        %v4465 = vpop.f32.mrb[0].mxu0
        %4466 = vmatprep.mubr.bf16.mxu0 %v3560
        %4467 = vmatmul.mubr.bf16.gmra.mrb[0].mxu0 %v3559
        %v4468 = vpop.f32.mrb[0].mxu0
        %v4469 = vadd.f32 %v4308, %v4468
        %v4470 = vpop.f32.mrb[0].mxu0
        %v4471 = vpop.f32.mrb[0].mxu0
        %v4472 = vadd.f32 %v4311, %v4471
        %v4473 = vpop.f32.mrb[0].mxu0
        %4474 = vmatprep.mubr.bf16.mxu0 %v3569
        %4475 = vmatmul.mubr.bf16.gmra.mrb[0].mxu0 %v3568
        %v4476 = vpop.f32.mrb[0].mxu0
        %v4477 = vadd.f32 %v4316, %v4476
        %v4478 = vpop.f32.mrb[0].mxu0
        %v4479 = vpop.f32.mrb[0].mxu0
        %v4480 = vadd.f32 %v4319, %v4479
        %v4481 = vpop.f32.mrb[0].mxu0
        %4482 = vmatprep.mubr.bf16.mxu0 %v3578
        %4483 = vmatmul.mubr.bf16.gmra.mrb[0].mxu0 %v3577
        %v4484 = vpop.f32.mrb[0].mxu0
        %v4485 = vadd.f32 %v4324, %v4484
        %v4486 = vpop.f32.mrb[0].mxu0
        %v4487 = vpop.f32.mrb[0].mxu0
        %v4488 = vadd.f32 %v4327, %v4487
        %v4489 = vpop.f32.mrb[0].mxu0
        %4490 = vmatprep.mubr.bf16.mxu0 %v3587
        %4491 = vmatmul.mubr.bf16.gmra.mrb[0].mxu0 %v3586
        %v4492 = vpop.f32.mrb[0].mxu0
        %v4493 = vadd.f32 %v4332, %v4492
        %v4494 = vpop.f32.mrb[0].mxu0
        %v4495 = vpop.f32.mrb[0].mxu0
        %v4496 = vadd.f32 %v4335, %v4495
        %v4497 = vpop.f32.mrb[0].mxu0
        %4498 = vmatprep.mubr.bf16.mxu0 %v3596
        %4499 = vmatmul.mubr.bf16.gmra.mrb[0].mxu0 %v3595
        %v4500 = vpop.f32.mrb[0].mxu0
        %v4501 = vadd.f32 %v4340, %v4500
        %v4502 = vpop.f32.mrb[0].mxu0
        %v4503 = vpop.f32.mrb[0].mxu0
        %v4504 = vadd.f32 %v4343, %v4503
        %v4505 = vpop.f32.mrb[0].mxu0
        %4506 = vdwg.mxu0
        %4507 = vmatprep.subr.bf16.mxu0 0
        %4508 = vmatpush1.bf16.msra.mxu0 %v4073
        %4509 = vmatprep.subr.bf16.mxu0 0
        %4510 = vmatpush1.bf16.msra.mxu0 %v4074
        %4511 = vmatprep.subr.bf16.mxu0 0
        %4512 = vmatpush1.bf16.msra.mxu0 %v4075
        %4513 = vmatprep.subr.bf16.mxu0 0
        %4514 = vmatpush1.bf16.msra.mxu0 %v4076
        %4515 = vmatprep.subr.bf16.mxu0 0
        %4516 = vmatpush1.bf16.msra.mxu0 %v4077
        %4517 = vmatprep.subr.bf16.mxu0 0
        %4518 = vmatpush1.bf16.msra.mxu0 %v4078
        %4519 = vmatprep.subr.bf16.mxu0 0
        %4520 = vmatpush1.bf16.msra.mxu0 %v4079
        %4521 = vmatprep.subr.bf16.mxu0 0
        %4522 = vmatpush1.bf16.msra.mxu0 %v4080
        %4523 = vmatprep.subr.bf16.mxu0 0
        %4524 = vmatpush1.bf16.msra.mxu0 %v4081
        %4525 = vmatprep.subr.bf16.mxu0 0
        %4526 = vmatpush1.bf16.msra.mxu0 %v4082
        %4527 = vmatprep.subr.bf16.mxu0 0
        %4528 = vmatpush1.bf16.msra.mxu0 %v4083
        %4529 = vmatprep.subr.bf16.mxu0 0
        %4530 = vmatpush1.bf16.msra.mxu0 %v4084
        %4531 = vmatprep.subr.bf16.mxu0 0
        %4532 = vmatpush1.bf16.msra.mxu0 %v4085
        %4533 = vmatprep.subr.bf16.mxu0 0
        %4534 = vmatpush1.bf16.msra.mxu0 %v4086
        %4535 = vmatprep.subr.bf16.mxu0 0
        %4536 = vmatpush1.bf16.msra.mxu0 %v4087
        %4537 = vmatprep.subr.bf16.mxu0 0
        %4538 = vmatpush1.bf16.msra.mxu0 %v4088
        %4539 = vmatprep.mubr.bf16.mxu0 %v3463
        %4540 = vmatmul.mubr.bf16.gmra.mrb[0].mxu0 %v3462
        %v4541 = vpop.f32.mrb[0].mxu0
        %v4542 = vadd.f32 %v4381, %v4541
        %v4543 = vpop.f32.mrb[0].mxu0
        %v4544 = vpop.f32.mrb[0].mxu0
        %v4545 = vadd.f32 %v4384, %v4544
        %v4546 = vpop.f32.mrb[0].mxu0
        %4547 = vmatprep.mubr.bf16.mxu0 %v3472
        %4548 = vmatmul.mubr.bf16.gmra.mrb[0].mxu0 %v3471
        %v4549 = vpop.f32.mrb[0].mxu0
        %v4550 = vadd.f32 %v4389, %v4549
        %v4551 = vpop.f32.mrb[0].mxu0
        %v4552 = vpop.f32.mrb[0].mxu0
        %v4553 = vadd.f32 %v4392, %v4552
        %v4554 = vpop.f32.mrb[0].mxu0
        %4555 = vmatprep.mubr.bf16.mxu0 %v3481
        %4556 = vmatmul.mubr.bf16.gmra.mrb[0].mxu0 %v3480
        %v4557 = vpop.f32.mrb[0].mxu0
        %v4558 = vadd.f32 %v4397, %v4557
        %v4559 = vpop.f32.mrb[0].mxu0
        %v4560 = vpop.f32.mrb[0].mxu0
        %v4561 = vadd.f32 %v4400, %v4560
        %v4562 = vpop.f32.mrb[0].mxu0
        %4563 = vmatprep.mubr.bf16.mxu0 %v3490
        %4564 = vmatmul.mubr.bf16.gmra.mrb[0].mxu0 %v3489
        %v4565 = vpop.f32.mrb[0].mxu0
        %v4566 = vadd.f32 %v4405, %v4565
        %v4567 = vpop.f32.mrb[0].mxu0
        %v4568 = vpop.f32.mrb[0].mxu0
        %v4569 = vadd.f32 %v4408, %v4568
        %v4570 = vpop.f32.mrb[0].mxu0
        %4571 = vmatprep.mubr.bf16.mxu0 %v3499
        %4572 = vmatmul.mubr.bf16.gmra.mrb[0].mxu0 %v3498
        %v4573 = vpop.f32.mrb[0].mxu0
        %v4574 = vadd.f32 %v4413, %v4573
        %v4575 = vpop.f32.mrb[0].mxu0
        %v4576 = vpop.f32.mrb[0].mxu0
        %v4577 = vadd.f32 %v4416, %v4576
        %v4578 = vpop.f32.mrb[0].mxu0
        %4579 = vmatprep.mubr.bf16.mxu0 %v3508
        %4580 = vmatmul.mubr.bf16.gmra.mrb[0].mxu0 %v3507
        %v4581 = vpop.f32.mrb[0].mxu0
        %v4582 = vadd.f32 %v4421, %v4581
        %v4583 = vpop.f32.mrb[0].mxu0
        %v4584 = vpop.f32.mrb[0].mxu0
        %v4585 = vadd.f32 %v4424, %v4584
        %v4586 = vpop.f32.mrb[0].mxu0
        %4587 = vmatprep.mubr.bf16.mxu0 %v3517
        %4588 = vmatmul.mubr.bf16.gmra.mrb[0].mxu0 %v3516
        %v4589 = vpop.f32.mrb[0].mxu0
        %v4590 = vadd.f32 %v4429, %v4589
        %v4591 = vpop.f32.mrb[0].mxu0
        %v4592 = vpop.f32.mrb[0].mxu0
        %v4593 = vadd.f32 %v4432, %v4592
        %v4594 = vpop.f32.mrb[0].mxu0
        %4595 = vmatprep.mubr.bf16.mxu0 %v3526
        %4596 = vmatmul.mubr.bf16.gmra.mrb[0].mxu0 %v3525
        %v4597 = vpop.f32.mrb[0].mxu0
        %v4598 = vadd.f32 %v4437, %v4597
        %v4599 = vpop.f32.mrb[0].mxu0
        %v4600 = vpop.f32.mrb[0].mxu0
        %v4601 = vadd.f32 %v4440, %v4600
        %v4602 = vpop.f32.mrb[0].mxu0
        %4603 = vmatprep.mubr.bf16.mxu0 %v3535
        %4604 = vmatmul.mubr.bf16.gmra.mrb[0].mxu0 %v3534
        %v4605 = vpop.f32.mrb[0].mxu0
        %v4606 = vadd.f32 %v4445, %v4605
        %v4607 = vpop.f32.mrb[0].mxu0
        %v4608 = vpop.f32.mrb[0].mxu0
        %v4609 = vadd.f32 %v4448, %v4608
        %v4610 = vpop.f32.mrb[0].mxu0
        %4611 = vmatprep.mubr.bf16.mxu0 %v3544
        %4612 = vmatmul.mubr.bf16.gmra.mrb[0].mxu0 %v3543
        %v4613 = vpop.f32.mrb[0].mxu0
        %v4614 = vadd.f32 %v4453, %v4613
        %v4615 = vpop.f32.mrb[0].mxu0
        %v4616 = vpop.f32.mrb[0].mxu0
        %v4617 = vadd.f32 %v4456, %v4616
        %v4618 = vpop.f32.mrb[0].mxu0
        %4619 = vmatprep.mubr.bf16.mxu0 %v3553
        %4620 = vmatmul.mubr.bf16.gmra.mrb[0].mxu0 %v3552
        %v4621 = vpop.f32.mrb[0].mxu0
        %v4622 = vadd.f32 %v4461, %v4621
        %v4623 = vpop.f32.mrb[0].mxu0
        %v4624 = vpop.f32.mrb[0].mxu0
        %v4625 = vadd.f32 %v4464, %v4624
        %v4626 = vpop.f32.mrb[0].mxu0
        %4627 = vmatprep.mubr.bf16.mxu0 %v3562
        %4628 = vmatmul.mubr.bf16.gmra.mrb[0].mxu0 %v3561
        %v4629 = vpop.f32.mrb[0].mxu0
        %v4630 = vadd.f32 %v4469, %v4629
        %v4631 = vpop.f32.mrb[0].mxu0
        %v4632 = vpop.f32.mrb[0].mxu0
        %v4633 = vadd.f32 %v4472, %v4632
        %v4634 = vpop.f32.mrb[0].mxu0
        %4635 = vmatprep.mubr.bf16.mxu0 %v3571
        %4636 = vmatmul.mubr.bf16.gmra.mrb[0].mxu0 %v3570
        %v4637 = vpop.f32.mrb[0].mxu0
        %v4638 = vadd.f32 %v4477, %v4637
        %v4639 = vpop.f32.mrb[0].mxu0
        %v4640 = vpop.f32.mrb[0].mxu0
        %v4641 = vadd.f32 %v4480, %v4640
        %v4642 = vpop.f32.mrb[0].mxu0
        %4643 = vmatprep.mubr.bf16.mxu0 %v3580
        %4644 = vmatmul.mubr.bf16.gmra.mrb[0].mxu0 %v3579
        %v4645 = vpop.f32.mrb[0].mxu0
        %v4646 = vadd.f32 %v4485, %v4645
        %v4647 = vpop.f32.mrb[0].mxu0
        %v4648 = vpop.f32.mrb[0].mxu0
        %v4649 = vadd.f32 %v4488, %v4648
        %v4650 = vpop.f32.mrb[0].mxu0
        %4651 = vmatprep.mubr.bf16.mxu0 %v3589
        %4652 = vmatmul.mubr.bf16.gmra.mrb[0].mxu0 %v3588
        %v4653 = vpop.f32.mrb[0].mxu0
        %v4654 = vadd.f32 %v4493, %v4653
        %v4655 = vpop.f32.mrb[0].mxu0
        %v4656 = vpop.f32.mrb[0].mxu0
        %v4657 = vadd.f32 %v4496, %v4656
        %v4658 = vpop.f32.mrb[0].mxu0
        %4659 = vmatprep.mubr.bf16.mxu0 %v3598
        %4660 = vmatmul.mubr.bf16.gmra.mrb[0].mxu0 %v3597
        %v4661 = vpop.f32.mrb[0].mxu0
        %v4662 = vadd.f32 %v4501, %v4661
        %v4663 = vpop.f32.mrb[0].mxu0
        %v4664 = vpop.f32.mrb[0].mxu0
        %v4665 = vadd.f32 %v4504, %v4664
        %v4666 = vpop.f32.mrb[0].mxu0
        %4667 = vdwg.mxu0
        %4668 = vmatprep.subr.bf16.mxu0 0
        %4669 = vmatpush1.bf16.msra.mxu0 %v4089
        %4670 = vmatprep.subr.bf16.mxu0 0
        %4671 = vmatpush1.bf16.msra.mxu0 %v4090
        %4672 = vmatprep.subr.bf16.mxu0 0
        %4673 = vmatpush1.bf16.msra.mxu0 %v4091
        %4674 = vmatprep.subr.bf16.mxu0 0
        %4675 = vmatpush1.bf16.msra.mxu0 %v4092
        %4676 = vmatprep.subr.bf16.mxu0 0
        %4677 = vmatpush1.bf16.msra.mxu0 %v4093
        %4678 = vmatprep.subr.bf16.mxu0 0
        %4679 = vmatpush1.bf16.msra.mxu0 %v4094
        %4680 = vmatprep.subr.bf16.mxu0 0
        %4681 = vmatpush1.bf16.msra.mxu0 %v4095
        %4682 = vmatprep.subr.bf16.mxu0 0
        %4683 = vmatpush1.bf16.msra.mxu0 %v4096
        %4684 = vmatprep.subr.bf16.mxu0 0
        %4685 = vmatpush1.bf16.msra.mxu0 %v4097
        %4686 = vmatprep.subr.bf16.mxu0 0
        %4687 = vmatpush1.bf16.msra.mxu0 %v4098
        %4688 = vmatprep.subr.bf16.mxu0 0
        %4689 = vmatpush1.bf16.msra.mxu0 %v4099
        %4690 = vmatprep.subr.bf16.mxu0 0
        %4691 = vmatpush1.bf16.msra.mxu0 %v4100
        %4692 = vmatprep.subr.bf16.mxu0 0
        %4693 = vmatpush1.bf16.msra.mxu0 %v4101
        %4694 = vmatprep.subr.bf16.mxu0 0
        %4695 = vmatpush1.bf16.msra.mxu0 %v4102
        %4696 = vmatprep.subr.bf16.mxu0 0
        %4697 = vmatpush1.bf16.msra.mxu0 %v4103
        %4698 = vmatprep.subr.bf16.mxu0 0
        %4699 = vmatpush1.bf16.msra.mxu0 %v4104
        %4700 = vmatprep.mubr.bf16.mxu0 %v3465
        %4701 = vmatmul.mubr.bf16.gmra.mrb[0].mxu0 %v3464
        %v4702 = vpop.f32.mrb[0].mxu0
        %v4703 = vadd.f32 %v4542, %v4702
        %v4704 = vpop.f32.mrb[0].mxu0
        %v4705 = vpop.f32.mrb[0].mxu0
        %v4706 = vadd.f32 %v4545, %v4705
        %v4707 = vpop.f32.mrb[0].mxu0
        %4708 = vmatprep.mubr.bf16.mxu0 %v3474
        %4709 = vmatmul.mubr.bf16.gmra.mrb[0].mxu0 %v3473
        %v4710 = vpop.f32.mrb[0].mxu0
        %v4711 = vadd.f32 %v4550, %v4710
        %v4712 = vpop.f32.mrb[0].mxu0
        %v4713 = vpop.f32.mrb[0].mxu0
        %v4714 = vadd.f32 %v4553, %v4713
        %v4715 = vpop.f32.mrb[0].mxu0
        %4716 = vmatprep.mubr.bf16.mxu0 %v3483
        %4717 = vmatmul.mubr.bf16.gmra.mrb[0].mxu0 %v3482
        %v4718 = vpop.f32.mrb[0].mxu0
        %v4719 = vadd.f32 %v4558, %v4718
        %v4720 = vpop.f32.mrb[0].mxu0
        %v4721 = vpop.f32.mrb[0].mxu0
        %v4722 = vadd.f32 %v4561, %v4721
        %v4723 = vpop.f32.mrb[0].mxu0
        %4724 = vmatprep.mubr.bf16.mxu0 %v3492
        %4725 = vmatmul.mubr.bf16.gmra.mrb[0].mxu0 %v3491
        %v4726 = vpop.f32.mrb[0].mxu0
        %v4727 = vadd.f32 %v4566, %v4726
        %v4728 = vpop.f32.mrb[0].mxu0
        %v4729 = vpop.f32.mrb[0].mxu0
        %v4730 = vadd.f32 %v4569, %v4729
        %v4731 = vpop.f32.mrb[0].mxu0
        %4732 = vmatprep.mubr.bf16.mxu0 %v3501
        %4733 = vmatmul.mubr.bf16.gmra.mrb[0].mxu0 %v3500
        %v4734 = vpop.f32.mrb[0].mxu0
        %v4735 = vadd.f32 %v4574, %v4734
        %v4736 = vpop.f32.mrb[0].mxu0
        %v4737 = vpop.f32.mrb[0].mxu0
        %v4738 = vadd.f32 %v4577, %v4737
        %v4739 = vpop.f32.mrb[0].mxu0
        %4740 = vmatprep.mubr.bf16.mxu0 %v3510
        %4741 = vmatmul.mubr.bf16.gmra.mrb[0].mxu0 %v3509
        %v4742 = vpop.f32.mrb[0].mxu0
        %v4743 = vadd.f32 %v4582, %v4742
        %v4744 = vpop.f32.mrb[0].mxu0
        %v4745 = vpop.f32.mrb[0].mxu0
        %v4746 = vadd.f32 %v4585, %v4745
        %v4747 = vpop.f32.mrb[0].mxu0
        %4748 = vmatprep.mubr.bf16.mxu0 %v3519
        %4749 = vmatmul.mubr.bf16.gmra.mrb[0].mxu0 %v3518
        %v4750 = vpop.f32.mrb[0].mxu0
        %v4751 = vadd.f32 %v4590, %v4750
        %v4752 = vpop.f32.mrb[0].mxu0
        %v4753 = vpop.f32.mrb[0].mxu0
        %v4754 = vadd.f32 %v4593, %v4753
        %v4755 = vpop.f32.mrb[0].mxu0
        %4756 = vmatprep.mubr.bf16.mxu0 %v3528
        %4757 = vmatmul.mubr.bf16.gmra.mrb[0].mxu0 %v3527
        %v4758 = vpop.f32.mrb[0].mxu0
        %v4759 = vadd.f32 %v4598, %v4758
        %v4760 = vpop.f32.mrb[0].mxu0
        %v4761 = vpop.f32.mrb[0].mxu0
        %v4762 = vadd.f32 %v4601, %v4761
        %v4763 = vpop.f32.mrb[0].mxu0
        %4764 = vmatprep.mubr.bf16.mxu0 %v3537
        %4765 = vmatmul.mubr.bf16.gmra.mrb[0].mxu0 %v3536
        %v4766 = vpop.f32.mrb[0].mxu0
        %v4767 = vadd.f32 %v4606, %v4766
        %v4768 = vpop.f32.mrb[0].mxu0
        %v4769 = vpop.f32.mrb[0].mxu0
        %v4770 = vadd.f32 %v4609, %v4769
        %v4771 = vpop.f32.mrb[0].mxu0
        %4772 = vmatprep.mubr.bf16.mxu0 %v3546
        %4773 = vmatmul.mubr.bf16.gmra.mrb[0].mxu0 %v3545
        %v4774 = vpop.f32.mrb[0].mxu0
        %v4775 = vadd.f32 %v4614, %v4774
        %v4776 = vpop.f32.mrb[0].mxu0
        %v4777 = vpop.f32.mrb[0].mxu0
        %v4778 = vadd.f32 %v4617, %v4777
        %v4779 = vpop.f32.mrb[0].mxu0
        %4780 = vmatprep.mubr.bf16.mxu0 %v3555
        %4781 = vmatmul.mubr.bf16.gmra.mrb[0].mxu0 %v3554
        %v4782 = vpop.f32.mrb[0].mxu0
        %v4783 = vadd.f32 %v4622, %v4782
        %v4784 = vpop.f32.mrb[0].mxu0
        %v4785 = vpop.f32.mrb[0].mxu0
        %v4786 = vadd.f32 %v4625, %v4785
        %v4787 = vpop.f32.mrb[0].mxu0
        %4788 = vmatprep.mubr.bf16.mxu0 %v3564
        %4789 = vmatmul.mubr.bf16.gmra.mrb[0].mxu0 %v3563
        %v4790 = vpop.f32.mrb[0].mxu0
        %v4791 = vadd.f32 %v4630, %v4790
        %v4792 = vpop.f32.mrb[0].mxu0
        %v4793 = vpop.f32.mrb[0].mxu0
        %v4794 = vadd.f32 %v4633, %v4793
        %v4795 = vpop.f32.mrb[0].mxu0
        %4796 = vmatprep.mubr.bf16.mxu0 %v3573
        %4797 = vmatmul.mubr.bf16.gmra.mrb[0].mxu0 %v3572
        %v4798 = vpop.f32.mrb[0].mxu0
        %v4799 = vadd.f32 %v4638, %v4798
        %v4800 = vpop.f32.mrb[0].mxu0
        %v4801 = vpop.f32.mrb[0].mxu0
        %v4802 = vadd.f32 %v4641, %v4801
        %v4803 = vpop.f32.mrb[0].mxu0
        %4804 = vmatprep.mubr.bf16.mxu0 %v3582
        %4805 = vmatmul.mubr.bf16.gmra.mrb[0].mxu0 %v3581
        %v4806 = vpop.f32.mrb[0].mxu0
        %v4807 = vadd.f32 %v4646, %v4806
        %v4808 = vpop.f32.mrb[0].mxu0
        %v4809 = vpop.f32.mrb[0].mxu0
        %v4810 = vadd.f32 %v4649, %v4809
        %v4811 = vpop.f32.mrb[0].mxu0
        %4812 = vmatprep.mubr.bf16.mxu0 %v3591
        %4813 = vmatmul.mubr.bf16.gmra.mrb[0].mxu0 %v3590
        %v4814 = vpop.f32.mrb[0].mxu0
        %v4815 = vadd.f32 %v4654, %v4814
        %v4816 = vpop.f32.mrb[0].mxu0
        %v4817 = vpop.f32.mrb[0].mxu0
        %v4818 = vadd.f32 %v4657, %v4817
        %v4819 = vpop.f32.mrb[0].mxu0
        %4820 = vmatprep.mubr.bf16.mxu0 %v3600
        %4821 = vmatmul.mubr.bf16.gmra.mrb[0].mxu0 %v3599
        %v4822 = vpop.f32.mrb[0].mxu0
        %v4823 = vadd.f32 %v4662, %v4822
        %v4824 = vpop.f32.mrb[0].mxu0
        %v4825 = vpop.f32.mrb[0].mxu0
        %v4826 = vadd.f32 %v4665, %v4825
        %v4827 = vpop.f32.mrb[0].mxu0
        %4828 = vdwg.mxu0
        %4829 = vmatprep.subr.bf16.mxu0 0
        %4830 = vmatpush1.bf16.msra.mxu0 %v4105
        %4831 = vmatprep.subr.bf16.mxu0 0
        %4832 = vmatpush1.bf16.msra.mxu0 %v4106
        %4833 = vmatprep.subr.bf16.mxu0 0
        %4834 = vmatpush1.bf16.msra.mxu0 %v4107
        %4835 = vmatprep.subr.bf16.mxu0 0
        %4836 = vmatpush1.bf16.msra.mxu0 %v4108
        %4837 = vmatprep.subr.bf16.mxu0 0
        %4838 = vmatpush1.bf16.msra.mxu0 %v4109
        %4839 = vmatprep.subr.bf16.mxu0 0
        %4840 = vmatpush1.bf16.msra.mxu0 %v4110
        %4841 = vmatprep.subr.bf16.mxu0 0
        %4842 = vmatpush1.bf16.msra.mxu0 %v4111
        %4843 = vmatprep.subr.bf16.mxu0 0
        %4844 = vmatpush1.bf16.msra.mxu0 %v4112
        %4845 = vmatprep.subr.bf16.mxu0 0
        %4846 = vmatpush1.bf16.msra.mxu0 0
        %4847 = vmatprep.subr.bf16.mxu0 0
        %4848 = vmatpush1.bf16.msra.mxu0 0
        %4849 = vmatprep.subr.bf16.mxu0 0
        %4850 = vmatpush1.bf16.msra.mxu0 0
        %4851 = vmatprep.subr.bf16.mxu0 0
        %4852 = vmatpush1.bf16.msra.mxu0 0
        %4853 = vmatprep.subr.bf16.mxu0 0
        %4854 = vmatpush1.bf16.msra.mxu0 0
        %4855 = vmatprep.subr.bf16.mxu0 0
        %4856 = vmatpush1.bf16.msra.mxu0 0
        %4857 = vmatprep.subr.bf16.mxu0 0
        %4858 = vmatpush1.bf16.msra.mxu0 0
        %4859 = vmatprep.subr.bf16.mxu0 0
        %4860 = vmatpush1.bf16.msra.mxu0 0
        %4861 = vmatprep.mubr.bf16.mxu0 0
        %4862 = vmatmul.mubr.bf16.gmra.mrb[0].mxu0 %v3466
        %v4863 = vpop.f32.mrb[0].mxu0
        %v4864 = vadd.f32 %v4703, %v4863
        %v4865 = vpop.f32.mrb[0].mxu0
        %v4866 = vpop.f32.mrb[0].mxu0
        %v4867 = vadd.f32 %v4706, %v4866
        %v4868 = vpop.f32.mrb[0].mxu0
        %4869 = vmatprep.mubr.bf16.mxu0 0
        %4870 = vmatmul.mubr.bf16.gmra.mrb[0].mxu0 %v3475
        %v4871 = vpop.f32.mrb[0].mxu0
        %v4872 = vadd.f32 %v4711, %v4871
        %v4873 = vpop.f32.mrb[0].mxu0
        %v4874 = vpop.f32.mrb[0].mxu0
        %v4875 = vadd.f32 %v4714, %v4874
        %v4876 = vpop.f32.mrb[0].mxu0
        %4877 = vmatprep.mubr.bf16.mxu0 0
        %4878 = vmatmul.mubr.bf16.gmra.mrb[0].mxu0 %v3484
        %v4879 = vpop.f32.mrb[0].mxu0
        %v4880 = vadd.f32 %v4719, %v4879
        %v4881 = vpop.f32.mrb[0].mxu0
        %v4882 = vpop.f32.mrb[0].mxu0
        %v4883 = vadd.f32 %v4722, %v4882
        %v4884 = vpop.f32.mrb[0].mxu0
        %4885 = vmatprep.mubr.bf16.mxu0 0
        %4886 = vmatmul.mubr.bf16.gmra.mrb[0].mxu0 %v3493
        %v4887 = vpop.f32.mrb[0].mxu0
        %v4888 = vadd.f32 %v4727, %v4887
        %v4889 = vpop.f32.mrb[0].mxu0
        %v4890 = vpop.f32.mrb[0].mxu0
        %v4891 = vadd.f32 %v4730, %v4890
        %v4892 = vpop.f32.mrb[0].mxu0
        %4893 = vmatprep.mubr.bf16.mxu0 0
        %4894 = vmatmul.mubr.bf16.gmra.mrb[0].mxu0 %v3502
        %v4895 = vpop.f32.mrb[0].mxu0
        %v4896 = vadd.f32 %v4735, %v4895
        %v4897 = vpop.f32.mrb[0].mxu0
        %v4898 = vpop.f32.mrb[0].mxu0
        %v4899 = vadd.f32 %v4738, %v4898
        %v4900 = vpop.f32.mrb[0].mxu0
        %4901 = vmatprep.mubr.bf16.mxu0 0
        %4902 = vmatmul.mubr.bf16.gmra.mrb[0].mxu0 %v3511
        %v4903 = vpop.f32.mrb[0].mxu0
        %v4904 = vadd.f32 %v4743, %v4903
        %v4905 = vpop.f32.mrb[0].mxu0
        %v4906 = vpop.f32.mrb[0].mxu0
        %v4907 = vadd.f32 %v4746, %v4906
        %v4908 = vpop.f32.mrb[0].mxu0
        %4909 = vmatprep.mubr.bf16.mxu0 0
        %4910 = vmatmul.mubr.bf16.gmra.mrb[0].mxu0 %v3520
        %v4911 = vpop.f32.mrb[0].mxu0
        %v4912 = vadd.f32 %v4751, %v4911
        %v4913 = vpop.f32.mrb[0].mxu0
        %v4914 = vpop.f32.mrb[0].mxu0
        %v4915 = vadd.f32 %v4754, %v4914
        %v4916 = vpop.f32.mrb[0].mxu0
        %4917 = vmatprep.mubr.bf16.mxu0 0
        %4918 = vmatmul.mubr.bf16.gmra.mrb[0].mxu0 %v3529
        %v4919 = vpop.f32.mrb[0].mxu0
        %v4920 = vadd.f32 %v4759, %v4919
        %v4921 = vpop.f32.mrb[0].mxu0
        %v4922 = vpop.f32.mrb[0].mxu0
        %v4923 = vadd.f32 %v4762, %v4922
        %v4924 = vpop.f32.mrb[0].mxu0
        %4925 = vmatprep.mubr.bf16.mxu0 0
        %4926 = vmatmul.mubr.bf16.gmra.mrb[0].mxu0 %v3538
        %v4927 = vpop.f32.mrb[0].mxu0
        %v4928 = vadd.f32 %v4767, %v4927
        %v4929 = vpop.f32.mrb[0].mxu0
        %v4930 = vpop.f32.mrb[0].mxu0
        %v4931 = vadd.f32 %v4770, %v4930
        %v4932 = vpop.f32.mrb[0].mxu0
        %4933 = vmatprep.mubr.bf16.mxu0 0
        %4934 = vmatmul.mubr.bf16.gmra.mrb[0].mxu0 %v3547
        %v4935 = vpop.f32.mrb[0].mxu0
        %v4936 = vadd.f32 %v4775, %v4935
        %v4937 = vpop.f32.mrb[0].mxu0
        %v4938 = vpop.f32.mrb[0].mxu0
        %v4939 = vadd.f32 %v4778, %v4938
        %v4940 = vpop.f32.mrb[0].mxu0
        %4941 = vmatprep.mubr.bf16.mxu0 0
        %4942 = vmatmul.mubr.bf16.gmra.mrb[0].mxu0 %v3556
        %v4943 = vpop.f32.mrb[0].mxu0
        %v4944 = vadd.f32 %v4783, %v4943
        %v4945 = vpop.f32.mrb[0].mxu0
        %v4946 = vpop.f32.mrb[0].mxu0
        %v4947 = vadd.f32 %v4786, %v4946
        %v4948 = vpop.f32.mrb[0].mxu0
        %4949 = vmatprep.mubr.bf16.mxu0 0
        %4950 = vmatmul.mubr.bf16.gmra.mrb[0].mxu0 %v3565
        %v4951 = vpop.f32.mrb[0].mxu0
        %v4952 = vadd.f32 %v4791, %v4951
        %v4953 = vpop.f32.mrb[0].mxu0
        %v4954 = vpop.f32.mrb[0].mxu0
        %v4955 = vadd.f32 %v4794, %v4954
        %v4956 = vpop.f32.mrb[0].mxu0
        %4957 = vmatprep.mubr.bf16.mxu0 0
        %4958 = vmatmul.mubr.bf16.gmra.mrb[0].mxu0 %v3574
        %v4959 = vpop.f32.mrb[0].mxu0
        %v4960 = vadd.f32 %v4799, %v4959
        %v4961 = vpop.f32.mrb[0].mxu0
        %v4962 = vpop.f32.mrb[0].mxu0
        %v4963 = vadd.f32 %v4802, %v4962
        %v4964 = vpop.f32.mrb[0].mxu0
        %4965 = vmatprep.mubr.bf16.mxu0 0
        %4966 = vmatmul.mubr.bf16.gmra.mrb[0].mxu0 %v3583
        %v4967 = vpop.f32.mrb[0].mxu0
        %v4968 = vadd.f32 %v4807, %v4967
        %v4969 = vpop.f32.mrb[0].mxu0
        %v4970 = vpop.f32.mrb[0].mxu0
        %v4971 = vadd.f32 %v4810, %v4970
        %v4972 = vpop.f32.mrb[0].mxu0
        %4973 = vmatprep.mubr.bf16.mxu0 0
        %4974 = vmatmul.mubr.bf16.gmra.mrb[0].mxu0 %v3592
        %v4975 = vpop.f32.mrb[0].mxu0
        %v4976 = vadd.f32 %v4815, %v4975
        %v4977 = vpop.f32.mrb[0].mxu0
        %v4978 = vpop.f32.mrb[0].mxu0
        %v4979 = vadd.f32 %v4818, %v4978
        %v4980 = vpop.f32.mrb[0].mxu0
        %4981 = vmatprep.mubr.bf16.mxu0 0
        %4982 = vmatmul.mubr.bf16.gmra.mrb[0].mxu0 %v3601
        %v4983 = vpop.f32.mrb[0].mxu0
        %v4984 = vadd.f32 %v4823, %v4983
        %v4985 = vpop.f32.mrb[0].mxu0
        %v4986 = vpop.f32.mrb[0].mxu0
        %v4987 = vadd.f32 %v4826, %v4986
        %v4988 = vpop.f32.mrb[0].mxu0
        %4989 = vdwg.mxu0
        %v4990 = vmax.f32 %v4864, 0.0
        %v4991 = vmax.f32 %v4867, 0.0
        %v4992 = vmax.f32 %v4872, 0.0
        %v4993 = vmax.f32 %v4875, 0.0
        %v4994 = vmax.f32 %v4880, 0.0
        %v4995 = vmax.f32 %v4883, 0.0
        %v4996 = vmax.f32 %v4888, 0.0
        %v4997 = vmax.f32 %v4891, 0.0
        %v4998 = vmax.f32 %v4896, 0.0
        %v4999 = vmax.f32 %v4899, 0.0
        %v5000 = vmax.f32 %v4904, 0.0
        %v5001 = vmax.f32 %v4907, 0.0
        %v5002 = vmax.f32 %v4912, 0.0
        %v5003 = vmax.f32 %v4915, 0.0
        %v5004 = vmax.f32 %v4920, 0.0
        %v5005 = vmax.f32 %v4923, 0.0
        %v5006 = vmax.f32 %v4928, 0.0
        %v5007 = vmax.f32 %v4931, 0.0
        %v5008 = vmax.f32 %v4936, 0.0
        %v5009 = vmax.f32 %v4939, 0.0
        %v5010 = vmax.f32 %v4944, 0.0
        %v5011 = vmax.f32 %v4947, 0.0
        %v5012 = vmax.f32 %v4952, 0.0
        %v5013 = vmax.f32 %v4955, 0.0
        %v5014 = vmax.f32 %v4960, 0.0
        %v5015 = vmax.f32 %v4963, 0.0
        %v5016 = vmax.f32 %v4968, 0.0
        %v5017 = vmax.f32 %v4971, 0.0
        %v5018 = vmax.f32 %v4976, 0.0
        %v5019 = vmax.f32 %v4979, 0.0
        %v5020 = vmax.f32 %v4984, 0.0
        %v5021 = vmax.f32 %v4987, 0.0
        %v5022 = vpack.c.bf16 %v4991, %v4990
        %v5023 = vpack.c.bf16 %v4993, %v4992
        %v5024 = vpack.c.bf16 %v4995, %v4994
        %v5025 = vpack.c.bf16 %v4997, %v4996
        %v5026 = vpack.c.bf16 %v4999, %v4998
        %v5027 = vpack.c.bf16 %v5001, %v5000
        %v5028 = vpack.c.bf16 %v5003, %v5002
        %v5029 = vpack.c.bf16 %v5005, %v5004
        %v5030 = vpack.c.bf16 %v5007, %v5006
        %v5031 = vpack.c.bf16 %v5009, %v5008
        %v5032 = vpack.c.bf16 %v5011, %v5010
        %v5033 = vpack.c.bf16 %v5013, %v5012
        %v5034 = vpack.c.bf16 %v5015, %v5014
        %v5035 = vpack.c.bf16 %v5017, %v5016
        %v5036 = vpack.c.bf16 %v5019, %v5018
        %v5037 = vpack.c.bf16 %v5021, %v5020
        %v5054 = vrot.slane %v5022, 4
        %v5055 = vrot.slane %v5023, 4
        %v5056 = vsel %vm632, %v5054, %v5055
        %v5057 = vrot.slane %v5024, 4
        %v5058 = vsel %vm632, %v5055, %v5057
        %v5059 = vrot.slane %v5025, 4
        %v5060 = vsel %vm632, %v5057, %v5059
        %v5061 = vrot.slane %v5026, 4
        %v5062 = vsel %vm632, %v5059, %v5061
        %v5063 = vrot.slane %v5027, 4
        %v5064 = vsel %vm632, %v5061, %v5063
        %v5065 = vrot.slane %v5028, 4
        %v5066 = vsel %vm632, %v5063, %v5065
        %v5067 = vrot.slane %v5029, 4
        %v5068 = vsel %vm632, %v5065, %v5067
        %v5069 = vrot.slane %v5030, 4
        %v5070 = vsel %vm632, %v5067, %v5069
        %v5071 = vrot.slane %v5031, 4
        %v5072 = vsel %vm632, %v5069, %v5071
        %v5073 = vrot.slane %v5032, 4
        %v5074 = vsel %vm632, %v5071, %v5073
        %v5075 = vrot.slane %v5033, 4
        %v5076 = vsel %vm632, %v5073, %v5075
        %v5077 = vrot.slane %v5034, 4
        %v5078 = vsel %vm632, %v5075, %v5077
        %v5079 = vrot.slane %v5035, 4
        %v5080 = vsel %vm632, %v5077, %v5079
        %v5081 = vrot.slane %v5036, 4
        %v5082 = vsel %vm632, %v5079, %v5081
        %v5083 = vrot.slane %v5037, 4
        %v5084 = vsel %vm632, %v5081, %v5083
        %5102 = vst [vmem:[#allocation4 + $0x8] sm:$0xf0] %v5054
        %5103 = vst [vmem:[#allocation4 + $0x10] sm:$0xff] %v5056
        %5104 = vst [vmem:[#allocation4 + $0x18] sm:$0xff] %v5058
        %5105 = vst [vmem:[#allocation4 + $0x20] sm:$0xff] %v5060
        %5106 = vst [vmem:[#allocation4 + $0x28] sm:$0xff] %v5062
        %5107 = vst [vmem:[#allocation4 + $0x30] sm:$0xff] %v5064
        %5108 = vst [vmem:[#allocation4 + $0x38] sm:$0xff] %v5066
        %5109 = vst [vmem:[#allocation4 + $0x40] sm:$0xff] %v5068
        %5110 = vst [vmem:[#allocation4 + $0x48] sm:$0xff] %v5070
        %5111 = vst [vmem:[#allocation4 + $0x50] sm:$0xff] %v5072
        %5112 = vst [vmem:[#allocation4 + $0x58] sm:$0xff] %v5074
        %5113 = vst [vmem:[#allocation4 + $0x60] sm:$0xff] %v5076
        %5114 = vst [vmem:[#allocation4 + $0x68] sm:$0xff] %v5078
        %5115 = vst [vmem:[#allocation4 + $0x70] sm:$0xff] %v5080
        %5116 = vst [vmem:[#allocation4 + $0x78] sm:$0xff] %v5082
        %5117 = vst [vmem:[#allocation4 + $0x80] sm:$0xff] %v5084
        %5118 = vst [vmem:[#allocation4 + $0x88] sm:$0xf] %v5083
        %v5119 = vld [vmem:[#allocation4] sm:$0xf8]
        %v5120 = vld [vmem:[#allocation4 + $0x8] sm:$0xff]
        %v5121 = vld [vmem:[#allocation4 + $0x10] sm:$0xff]
        %v5122 = vld [vmem:[#allocation4 + $0x18] sm:$0xff]
        %v5123 = vld [vmem:[#allocation4 + $0x20] sm:$0xff]
        %v5124 = vld [vmem:[#allocation4 + $0x28] sm:$0xff]
        %v5125 = vld [vmem:[#allocation4 + $0x30] sm:$0xff]
        %v5126 = vld [vmem:[#allocation4 + $0x38] sm:$0xff]
        %v5127 = vld [vmem:[#allocation4 + $0x40] sm:$0xff]
        %v5128 = vld [vmem:[#allocation4 + $0x48] sm:$0xff]
        %v5129 = vld [vmem:[#allocation4 + $0x50] sm:$0xff]
        %v5130 = vld [vmem:[#allocation4 + $0x58] sm:$0xff]
        %v5131 = vld [vmem:[#allocation4 + $0x60] sm:$0xff]
        %v5132 = vld [vmem:[#allocation4 + $0x68] sm:$0xff]
        %v5133 = vld [vmem:[#allocation4 + $0x70] sm:$0xff]
        %v5134 = vld [vmem:[#allocation4 + $0x78] sm:$0xff]
        %v5135 = vld [vmem:[#allocation4 + $0x80] sm:$0xf]
        %v5136 = vsel %vm1516, %v5119, 0
        %v5137 = vsel %vm1517, %v5120, 0
        %v5138 = vsel %vm1518, %v5121, 0
        %v5139 = vsel %vm1519, %v5122, 0
        %v5140 = vsel %vm1520, %v5123, 0
        %v5141 = vsel %vm1521, %v5124, 0
        %v5142 = vsel %vm1522, %v5125, 0
        %v5143 = vsel %vm1523, %v5126, 0
        %v5144 = vsel %vm1524, %v5127, 0
        %v5145 = vsel %vm1525, %v5128, 0
        %v5146 = vsel %vm1526, %v5129, 0
        %v5147 = vsel %vm1527, %v5130, 0
        %v5148 = vsel %vm1528, %v5131, 0
        %v5149 = vsel %vm1529, %v5132, 0
        %v5150 = vsel %vm1530, %v5133, 0
        %v5151 = vsel %vm1531, %v5134, 0
        %v5152 = vsel %vm1532, %v5135, 0
        %v5154 = vshrl.u32 %v5136, 16
        %v5156 = vrot.slane %v5154, 3
        %v5157 = vshll.u32 %v5136, 16
        %v5159 = vrot.slane %v5157, 4
        %v5160 = vor.u32 %v5156, %v5159
        %v5162 = vshrl.u32 %v5137, 16
        %v5164 = vrot.slane %v5162, 3
        %v5165 = vshll.u32 %v5137, 16
        %v5167 = vrot.slane %v5165, 4
        %v5168 = vor.u32 %v5164, %v5167
        %v5169 = vsel %vm1550, %v5160, %v5168
        %v5171 = vshrl.u32 %v5138, 16
        %v5173 = vrot.slane %v5171, 3
        %v5174 = vshll.u32 %v5138, 16
        %v5176 = vrot.slane %v5174, 4
        %v5177 = vor.u32 %v5173, %v5176
        %v5178 = vsel %vm1550, %v5168, %v5177
        %v5180 = vshrl.u32 %v5139, 16
        %v5182 = vrot.slane %v5180, 3
        %v5183 = vshll.u32 %v5139, 16
        %v5185 = vrot.slane %v5183, 4
        %v5186 = vor.u32 %v5182, %v5185
        %v5187 = vsel %vm1550, %v5177, %v5186
        %v5189 = vshrl.u32 %v5140, 16
        %v5191 = vrot.slane %v5189, 3
        %v5192 = vshll.u32 %v5140, 16
        %v5194 = vrot.slane %v5192, 4
        %v5195 = vor.u32 %v5191, %v5194
        %v5196 = vsel %vm1550, %v5186, %v5195
        %v5198 = vshrl.u32 %v5141, 16
        %v5200 = vrot.slane %v5198, 3
        %v5201 = vshll.u32 %v5141, 16
        %v5203 = vrot.slane %v5201, 4
        %v5204 = vor.u32 %v5200, %v5203
        %v5205 = vsel %vm1550, %v5195, %v5204
        %v5207 = vshrl.u32 %v5142, 16
        %v5209 = vrot.slane %v5207, 3
        %v5210 = vshll.u32 %v5142, 16
        %v5212 = vrot.slane %v5210, 4
        %v5213 = vor.u32 %v5209, %v5212
        %v5214 = vsel %vm1550, %v5204, %v5213
        %v5216 = vshrl.u32 %v5143, 16
        %v5218 = vrot.slane %v5216, 3
        %v5219 = vshll.u32 %v5143, 16
        %v5221 = vrot.slane %v5219, 4
        %v5222 = vor.u32 %v5218, %v5221
        %v5223 = vsel %vm1550, %v5213, %v5222
        %v5225 = vshrl.u32 %v5144, 16
        %v5227 = vrot.slane %v5225, 3
        %v5228 = vshll.u32 %v5144, 16
        %v5230 = vrot.slane %v5228, 4
        %v5231 = vor.u32 %v5227, %v5230
        %v5232 = vsel %vm1550, %v5222, %v5231
        %v5234 = vshrl.u32 %v5145, 16
        %v5236 = vrot.slane %v5234, 3
        %v5237 = vshll.u32 %v5145, 16
        %v5239 = vrot.slane %v5237, 4
        %v5240 = vor.u32 %v5236, %v5239
        %v5241 = vsel %vm1550, %v5231, %v5240
        %v5243 = vshrl.u32 %v5146, 16
        %v5245 = vrot.slane %v5243, 3
        %v5246 = vshll.u32 %v5146, 16
        %v5248 = vrot.slane %v5246, 4
        %v5249 = vor.u32 %v5245, %v5248
        %v5250 = vsel %vm1550, %v5240, %v5249
        %v5252 = vshrl.u32 %v5147, 16
        %v5254 = vrot.slane %v5252, 3
        %v5255 = vshll.u32 %v5147, 16
        %v5257 = vrot.slane %v5255, 4
        %v5258 = vor.u32 %v5254, %v5257
        %v5259 = vsel %vm1550, %v5249, %v5258
        %v5261 = vshrl.u32 %v5148, 16
        %v5263 = vrot.slane %v5261, 3
        %v5264 = vshll.u32 %v5148, 16
        %v5266 = vrot.slane %v5264, 4
        %v5267 = vor.u32 %v5263, %v5266
        %v5268 = vsel %vm1550, %v5258, %v5267
        %v5270 = vshrl.u32 %v5149, 16
        %v5272 = vrot.slane %v5270, 3
        %v5273 = vshll.u32 %v5149, 16
        %v5275 = vrot.slane %v5273, 4
        %v5276 = vor.u32 %v5272, %v5275
        %v5277 = vsel %vm1550, %v5267, %v5276
        %v5279 = vshrl.u32 %v5150, 16
        %v5281 = vrot.slane %v5279, 3
        %v5282 = vshll.u32 %v5150, 16
        %v5284 = vrot.slane %v5282, 4
        %v5285 = vor.u32 %v5281, %v5284
        %v5286 = vsel %vm1550, %v5276, %v5285
        %v5288 = vshrl.u32 %v5151, 16
        %v5290 = vrot.slane %v5288, 3
        %v5291 = vshll.u32 %v5151, 16
        %v5293 = vrot.slane %v5291, 4
        %v5294 = vor.u32 %v5290, %v5293
        %v5295 = vsel %vm1550, %v5285, %v5294
        %v5297 = vshrl.u32 %v5152, 16
        %v5299 = vrot.slane %v5297, 3
        %v5300 = vshll.u32 %v5152, 16
        %v5302 = vrot.slane %v5300, 4
        %v5303 = vor.u32 %v5299, %v5302
        %v5304 = vsel %vm1550, %v5294, %v5303
        %5321 = vst [vmem:[#allocation5] sm:$0xff] %v5169
        %5322 = vst [vmem:[#allocation5 + $0x48] sm:$0xff] %v5178
        %5323 = vst [vmem:[#allocation5 + $0x90] sm:$0xff] %v5187
        %5324 = vst [vmem:[#allocation5 + $0xd8] sm:$0xff] %v5196
        %5325 = vst [vmem:[#allocation5 + $0x120] sm:$0xff] %v5205
        %5326 = vst [vmem:[#allocation5 + $0x168] sm:$0xff] %v5214
        %5327 = vst [vmem:[#allocation5 + $0x1b0] sm:$0xff] %v5223
        %5328 = vst [vmem:[#allocation5 + $0x1f8] sm:$0xff] %v5232
        %5329 = vst [vmem:[#allocation5 + $0x240] sm:$0xff] %v5241
        %5330 = vst [vmem:[#allocation5 + $0x288] sm:$0xff] %v5250
        %5331 = vst [vmem:[#allocation5 + $0x2d0] sm:$0xff] %v5259
        %5332 = vst [vmem:[#allocation5 + $0x318] sm:$0xff] %v5268
        %5333 = vst [vmem:[#allocation5 + $0x360] sm:$0xff] %v5277
        %5334 = vst [vmem:[#allocation5 + $0x3a8] sm:$0xff] %v5286
        %5335 = vst [vmem:[#allocation5 + $0x3f0] sm:$0xff] %v5295
        %5336 = vst [vmem:[#allocation5 + $0x438] sm:$0xff] %v5304
        %v5337 = vld [vmem:[#allocation4] sm:$0xf0]
        %v5338 = vld [vmem:[#allocation4 + $0x8] sm:$0xff]
        %v5339 = vld [vmem:[#allocation4 + $0x10] sm:$0xff]
        %v5340 = vld [vmem:[#allocation4 + $0x18] sm:$0xff]
        %v5341 = vld [vmem:[#allocation4 + $0x20] sm:$0xff]
        %v5342 = vld [vmem:[#allocation4 + $0x28] sm:$0xff]
        %v5343 = vld [vmem:[#allocation4 + $0x30] sm:$0xff]
        %v5344 = vld [vmem:[#allocation4 + $0x38] sm:$0xff]
        %v5345 = vld [vmem:[#allocation4 + $0x40] sm:$0xff]
        %v5346 = vld [vmem:[#allocation4 + $0x48] sm:$0xff]
        %v5347 = vld [vmem:[#allocation4 + $0x50] sm:$0xff]
        %v5348 = vld [vmem:[#allocation4 + $0x58] sm:$0xff]
        %v5349 = vld [vmem:[#allocation4 + $0x60] sm:$0xff]
        %v5350 = vld [vmem:[#allocation4 + $0x68] sm:$0xff]
        %v5351 = vld [vmem:[#allocation4 + $0x70] sm:$0xff]
        %v5352 = vld [vmem:[#allocation4 + $0x78] sm:$0xff]
        %v5353 = vld [vmem:[#allocation4 + $0x80] sm:$0xf]
        %v5371 = vrot.slane %v5337, 4
        %v5372 = vrot.slane %v5338, 4
        %v5373 = vsel %vm632, %v5371, %v5372
        %v5374 = vrot.slane %v5339, 4
        %v5375 = vsel %vm632, %v5372, %v5374
        %v5376 = vrot.slane %v5340, 4
        %v5377 = vsel %vm632, %v5374, %v5376
        %v5378 = vrot.slane %v5341, 4
        %v5379 = vsel %vm632, %v5376, %v5378
        %v5380 = vrot.slane %v5342, 4
        %v5381 = vsel %vm632, %v5378, %v5380
        %v5382 = vrot.slane %v5343, 4
        %v5383 = vsel %vm632, %v5380, %v5382
        %v5384 = vrot.slane %v5344, 4
        %v5385 = vsel %vm632, %v5382, %v5384
        %v5386 = vrot.slane %v5345, 4
        %v5387 = vsel %vm632, %v5384, %v5386
        %v5388 = vrot.slane %v5346, 4
        %v5389 = vsel %vm632, %v5386, %v5388
        %v5390 = vrot.slane %v5347, 4
        %v5391 = vsel %vm632, %v5388, %v5390
        %v5392 = vrot.slane %v5348, 4
        %v5393 = vsel %vm632, %v5390, %v5392
        %v5394 = vrot.slane %v5349, 4
        %v5395 = vsel %vm632, %v5392, %v5394
        %v5396 = vrot.slane %v5350, 4
        %v5397 = vsel %vm632, %v5394, %v5396
        %v5398 = vrot.slane %v5351, 4
        %v5399 = vsel %vm632, %v5396, %v5398
        %v5400 = vrot.slane %v5352, 4
        %v5401 = vsel %vm632, %v5398, %v5400
        %v5402 = vrot.slane %v5353, 4
        %v5403 = vsel %vm632, %v5400, %v5402
        %5420 = vst [vmem:[#allocation5 + $0x8] sm:$0xff] %v5373
        %5421 = vst [vmem:[#allocation5 + $0x50] sm:$0xff] %v5375
        %5422 = vst [vmem:[#allocation5 + $0x98] sm:$0xff] %v5377
        %5423 = vst [vmem:[#allocation5 + $0xe0] sm:$0xff] %v5379
        %5424 = vst [vmem:[#allocation5 + $0x128] sm:$0xff] %v5381
        %5425 = vst [vmem:[#allocation5 + $0x170] sm:$0xff] %v5383
        %5426 = vst [vmem:[#allocation5 + $0x1b8] sm:$0xff] %v5385
        %5427 = vst [vmem:[#allocation5 + $0x200] sm:$0xff] %v5387
        %5428 = vst [vmem:[#allocation5 + $0x248] sm:$0xff] %v5389
        %5429 = vst [vmem:[#allocation5 + $0x290] sm:$0xff] %v5391
        %5430 = vst [vmem:[#allocation5 + $0x2d8] sm:$0xff] %v5393
        %5431 = vst [vmem:[#allocation5 + $0x320] sm:$0xff] %v5395
        %5432 = vst [vmem:[#allocation5 + $0x368] sm:$0xff] %v5397
        %5433 = vst [vmem:[#allocation5 + $0x3b0] sm:$0xff] %v5399
        %5434 = vst [vmem:[#allocation5 + $0x3f8] sm:$0xff] %v5401
        %5435 = vst [vmem:[#allocation5 + $0x440] sm:$0xff] %v5403
        %v5436 = vld [vmem:[#allocation4] sm:$0xf0]
        %v5437 = vld [vmem:[#allocation4 + $0x8] sm:$0xff]
        %v5438 = vld [vmem:[#allocation4 + $0x10] sm:$0xff]
        %v5439 = vld [vmem:[#allocation4 + $0x18] sm:$0xff]
        %v5440 = vld [vmem:[#allocation4 + $0x20] sm:$0xff]
        %v5441 = vld [vmem:[#allocation4 + $0x28] sm:$0xff]
        %v5442 = vld [vmem:[#allocation4 + $0x30] sm:$0xff]
        %v5443 = vld [vmem:[#allocation4 + $0x38] sm:$0xff]
        %v5444 = vld [vmem:[#allocation4 + $0x40] sm:$0xff]
        %v5445 = vld [vmem:[#allocation4 + $0x48] sm:$0xff]
        %v5446 = vld [vmem:[#allocation4 + $0x50] sm:$0xff]
        %v5447 = vld [vmem:[#allocation4 + $0x58] sm:$0xff]
        %v5448 = vld [vmem:[#allocation4 + $0x60] sm:$0xff]
        %v5449 = vld [vmem:[#allocation4 + $0x68] sm:$0xff]
        %v5450 = vld [vmem:[#allocation4 + $0x70] sm:$0xff]
        %v5451 = vld [vmem:[#allocation4 + $0x78] sm:$0xff]
        %v5452 = vld [vmem:[#allocation4 + $0x80] sm:$0x1f]
        %v5453 = vsel %vm2170, %v5436, 0
        %v5454 = vsel %vm2171, %v5437, 0
        %v5455 = vsel %vm2172, %v5438, 0
        %v5456 = vsel %vm2173, %v5439, 0
        %v5457 = vsel %vm2174, %v5440, 0
        %v5458 = vsel %vm2175, %v5441, 0
        %v5459 = vsel %vm2176, %v5442, 0
        %v5460 = vsel %vm2177, %v5443, 0
        %v5461 = vsel %vm2178, %v5444, 0
        %v5462 = vsel %vm2179, %v5445, 0
        %v5463 = vsel %vm2180, %v5446, 0
        %v5464 = vsel %vm2181, %v5447, 0
        %v5465 = vsel %vm2182, %v5448, 0
        %v5466 = vsel %vm2183, %v5449, 0
        %v5467 = vsel %vm2184, %v5450, 0
        %v5468 = vsel %vm2185, %v5451, 0
        %v5469 = vsel %vm2186, %v5452, 0
        %v5471 = vshrl.u32 %v5453, 16
        %v5473 = vrot.slane %v5471, 4
        %v5474 = vshll.u32 %v5453, 16
        %v5476 = vrot.slane %v5474, 5
        %v5477 = vor.u32 %v5473, %v5476
        %v5479 = vshrl.u32 %v5454, 16
        %v5481 = vrot.slane %v5479, 4
        %v5482 = vshll.u32 %v5454, 16
        %v5484 = vrot.slane %v5482, 5
        %v5485 = vor.u32 %v5481, %v5484
        %v5486 = vsel %vm1372, %v5477, %v5485
        %v5488 = vshrl.u32 %v5455, 16
        %v5490 = vrot.slane %v5488, 4
        %v5491 = vshll.u32 %v5455, 16
        %v5493 = vrot.slane %v5491, 5
        %v5494 = vor.u32 %v5490, %v5493
        %v5495 = vsel %vm1372, %v5485, %v5494
        %v5497 = vshrl.u32 %v5456, 16
        %v5499 = vrot.slane %v5497, 4
        %v5500 = vshll.u32 %v5456, 16
        %v5502 = vrot.slane %v5500, 5
        %v5503 = vor.u32 %v5499, %v5502
        %v5504 = vsel %vm1372, %v5494, %v5503
        %v5506 = vshrl.u32 %v5457, 16
        %v5508 = vrot.slane %v5506, 4
        %v5509 = vshll.u32 %v5457, 16
        %v5511 = vrot.slane %v5509, 5
        %v5512 = vor.u32 %v5508, %v5511
        %v5513 = vsel %vm1372, %v5503, %v5512
        %v5515 = vshrl.u32 %v5458, 16
        %v5517 = vrot.slane %v5515, 4
        %v5518 = vshll.u32 %v5458, 16
        %v5520 = vrot.slane %v5518, 5
        %v5521 = vor.u32 %v5517, %v5520
        %v5522 = vsel %vm1372, %v5512, %v5521
        %v5524 = vshrl.u32 %v5459, 16
        %v5526 = vrot.slane %v5524, 4
        %v5527 = vshll.u32 %v5459, 16
        %v5529 = vrot.slane %v5527, 5
        %v5530 = vor.u32 %v5526, %v5529
        %v5531 = vsel %vm1372, %v5521, %v5530
        %v5533 = vshrl.u32 %v5460, 16
        %v5535 = vrot.slane %v5533, 4
        %v5536 = vshll.u32 %v5460, 16
        %v5538 = vrot.slane %v5536, 5
        %v5539 = vor.u32 %v5535, %v5538
        %v5540 = vsel %vm1372, %v5530, %v5539
        %v5542 = vshrl.u32 %v5461, 16
        %v5544 = vrot.slane %v5542, 4
        %v5545 = vshll.u32 %v5461, 16
        %v5547 = vrot.slane %v5545, 5
        %v5548 = vor.u32 %v5544, %v5547
        %v5549 = vsel %vm1372, %v5539, %v5548
        %v5551 = vshrl.u32 %v5462, 16
        %v5553 = vrot.slane %v5551, 4
        %v5554 = vshll.u32 %v5462, 16
        %v5556 = vrot.slane %v5554, 5
        %v5557 = vor.u32 %v5553, %v5556
        %v5558 = vsel %vm1372, %v5548, %v5557
        %v5560 = vshrl.u32 %v5463, 16
        %v5562 = vrot.slane %v5560, 4
        %v5563 = vshll.u32 %v5463, 16
        %v5565 = vrot.slane %v5563, 5
        %v5566 = vor.u32 %v5562, %v5565
        %v5567 = vsel %vm1372, %v5557, %v5566
        %v5569 = vshrl.u32 %v5464, 16
        %v5571 = vrot.slane %v5569, 4
        %v5572 = vshll.u32 %v5464, 16
        %v5574 = vrot.slane %v5572, 5
        %v5575 = vor.u32 %v5571, %v5574
        %v5576 = vsel %vm1372, %v5566, %v5575
        %v5578 = vshrl.u32 %v5465, 16
        %v5580 = vrot.slane %v5578, 4
        %v5581 = vshll.u32 %v5465, 16
        %v5583 = vrot.slane %v5581, 5
        %v5584 = vor.u32 %v5580, %v5583
        %v5585 = vsel %vm1372, %v5575, %v5584
        %v5587 = vshrl.u32 %v5466, 16
        %v5589 = vrot.slane %v5587, 4
        %v5590 = vshll.u32 %v5466, 16
        %v5592 = vrot.slane %v5590, 5
        %v5593 = vor.u32 %v5589, %v5592
        %v5594 = vsel %vm1372, %v5584, %v5593
        %v5596 = vshrl.u32 %v5467, 16
        %v5598 = vrot.slane %v5596, 4
        %v5599 = vshll.u32 %v5467, 16
        %v5601 = vrot.slane %v5599, 5
        %v5602 = vor.u32 %v5598, %v5601
        %v5603 = vsel %vm1372, %v5593, %v5602
        %v5605 = vshrl.u32 %v5468, 16
        %v5607 = vrot.slane %v5605, 4
        %v5608 = vshll.u32 %v5468, 16
        %v5610 = vrot.slane %v5608, 5
        %v5611 = vor.u32 %v5607, %v5610
        %v5612 = vsel %vm1372, %v5602, %v5611
        %v5614 = vshrl.u32 %v5469, 16
        %v5616 = vrot.slane %v5614, 4
        %v5617 = vshll.u32 %v5469, 16
        %v5619 = vrot.slane %v5617, 5
        %v5620 = vor.u32 %v5616, %v5619
        %v5621 = vsel %vm1372, %v5611, %v5620
        %5638 = vst [vmem:[#allocation5 + $0x10] sm:$0xff] %v5486
        %5639 = vst [vmem:[#allocation5 + $0x58] sm:$0xff] %v5495
        %5640 = vst [vmem:[#allocation5 + $0xa0] sm:$0xff] %v5504
        %5641 = vst [vmem:[#allocation5 + $0xe8] sm:$0xff] %v5513
        %5642 = vst [vmem:[#allocation5 + $0x130] sm:$0xff] %v5522
        %5643 = vst [vmem:[#allocation5 + $0x178] sm:$0xff] %v5531
        %5644 = vst [vmem:[#allocation5 + $0x1c0] sm:$0xff] %v5540
        %5645 = vst [vmem:[#allocation5 + $0x208] sm:$0xff] %v5549
        %5646 = vst [vmem:[#allocation5 + $0x250] sm:$0xff] %v5558
        %5647 = vst [vmem:[#allocation5 + $0x298] sm:$0xff] %v5567
        %5648 = vst [vmem:[#allocation5 + $0x2e0] sm:$0xff] %v5576
        %5649 = vst [vmem:[#allocation5 + $0x328] sm:$0xff] %v5585
        %5650 = vst [vmem:[#allocation5 + $0x370] sm:$0xff] %v5594
        %5651 = vst [vmem:[#allocation5 + $0x3b8] sm:$0xff] %v5603
        %5652 = vst [vmem:[#allocation5 + $0x400] sm:$0xff] %v5612
        %5653 = vst [vmem:[#allocation5 + $0x448] sm:$0xff] %v5621
        %v5654 = vld [vmem:[#allocation4 + $0x8] sm:$0xf8]
        %v5655 = vld [vmem:[#allocation4 + $0x10] sm:$0xff]
        %v5656 = vld [vmem:[#allocation4 + $0x18] sm:$0xff]
        %v5657 = vld [vmem:[#allocation4 + $0x20] sm:$0xff]
        %v5658 = vld [vmem:[#allocation4 + $0x28] sm:$0xff]
        %v5659 = vld [vmem:[#allocation4 + $0x30] sm:$0xff]
        %v5660 = vld [vmem:[#allocation4 + $0x38] sm:$0xff]
        %v5661 = vld [vmem:[#allocation4 + $0x40] sm:$0xff]
        %v5662 = vld [vmem:[#allocation4 + $0x48] sm:$0xff]
        %v5663 = vld [vmem:[#allocation4 + $0x50] sm:$0xff]
        %v5664 = vld [vmem:[#allocation4 + $0x58] sm:$0xff]
        %v5665 = vld [vmem:[#allocation4 + $0x60] sm:$0xff]
        %v5666 = vld [vmem:[#allocation4 + $0x68] sm:$0xff]
        %v5667 = vld [vmem:[#allocation4 + $0x70] sm:$0xff]
        %v5668 = vld [vmem:[#allocation4 + $0x78] sm:$0xff]
        %v5669 = vld [vmem:[#allocation4 + $0x80] sm:$0xff]
        %v5670 = vld [vmem:[#allocation4 + $0x88] sm:$0xf]
        %v5671 = vsel %vm1516, %v5654, 0
        %v5672 = vsel %vm1517, %v5655, 0
        %v5673 = vsel %vm1518, %v5656, 0
        %v5674 = vsel %vm1519, %v5657, 0
        %v5675 = vsel %vm1520, %v5658, 0
        %v5676 = vsel %vm1521, %v5659, 0
        %v5677 = vsel %vm1522, %v5660, 0
        %v5678 = vsel %vm1523, %v5661, 0
        %v5679 = vsel %vm1524, %v5662, 0
        %v5680 = vsel %vm1525, %v5663, 0
        %v5681 = vsel %vm1526, %v5664, 0
        %v5682 = vsel %vm1527, %v5665, 0
        %v5683 = vsel %vm1528, %v5666, 0
        %v5684 = vsel %vm1529, %v5667, 0
        %v5685 = vsel %vm1530, %v5668, 0
        %v5686 = vsel %vm1531, %v5669, 0
        %v5687 = vsel %vm1532, %v5670, 0
        %v5689 = vshrl.u32 %v5671, 16
        %v5691 = vrot.slane %v5689, 3
        %v5692 = vshll.u32 %v5671, 16
        %v5694 = vrot.slane %v5692, 4
        %v5695 = vor.u32 %v5691, %v5694
        %v5697 = vshrl.u32 %v5672, 16
        %v5699 = vrot.slane %v5697, 3
        %v5700 = vshll.u32 %v5672, 16
        %v5702 = vrot.slane %v5700, 4
        %v5703 = vor.u32 %v5699, %v5702
        %v5704 = vsel %vm1550, %v5695, %v5703
        %v5706 = vshrl.u32 %v5673, 16
        %v5708 = vrot.slane %v5706, 3
        %v5709 = vshll.u32 %v5673, 16
        %v5711 = vrot.slane %v5709, 4
        %v5712 = vor.u32 %v5708, %v5711
        %v5713 = vsel %vm1550, %v5703, %v5712
        %v5715 = vshrl.u32 %v5674, 16
        %v5717 = vrot.slane %v5715, 3
        %v5718 = vshll.u32 %v5674, 16
        %v5720 = vrot.slane %v5718, 4
        %v5721 = vor.u32 %v5717, %v5720
        %v5722 = vsel %vm1550, %v5712, %v5721
        %v5724 = vshrl.u32 %v5675, 16
        %v5726 = vrot.slane %v5724, 3
        %v5727 = vshll.u32 %v5675, 16
        %v5729 = vrot.slane %v5727, 4
        %v5730 = vor.u32 %v5726, %v5729
        %v5731 = vsel %vm1550, %v5721, %v5730
        %v5733 = vshrl.u32 %v5676, 16
        %v5735 = vrot.slane %v5733, 3
        %v5736 = vshll.u32 %v5676, 16
        %v5738 = vrot.slane %v5736, 4
        %v5739 = vor.u32 %v5735, %v5738
        %v5740 = vsel %vm1550, %v5730, %v5739
        %v5742 = vshrl.u32 %v5677, 16
        %v5744 = vrot.slane %v5742, 3
        %v5745 = vshll.u32 %v5677, 16
        %v5747 = vrot.slane %v5745, 4
        %v5748 = vor.u32 %v5744, %v5747
        %v5749 = vsel %vm1550, %v5739, %v5748
        %v5751 = vshrl.u32 %v5678, 16
        %v5753 = vrot.slane %v5751, 3
        %v5754 = vshll.u32 %v5678, 16
        %v5756 = vrot.slane %v5754, 4
        %v5757 = vor.u32 %v5753, %v5756
        %v5758 = vsel %vm1550, %v5748, %v5757
        %v5760 = vshrl.u32 %v5679, 16
        %v5762 = vrot.slane %v5760, 3
        %v5763 = vshll.u32 %v5679, 16
        %v5765 = vrot.slane %v5763, 4
        %v5766 = vor.u32 %v5762, %v5765
        %v5767 = vsel %vm1550, %v5757, %v5766
        %v5769 = vshrl.u32 %v5680, 16
        %v5771 = vrot.slane %v5769, 3
        %v5772 = vshll.u32 %v5680, 16
        %v5774 = vrot.slane %v5772, 4
        %v5775 = vor.u32 %v5771, %v5774
        %v5776 = vsel %vm1550, %v5766, %v5775
        %v5778 = vshrl.u32 %v5681, 16
        %v5780 = vrot.slane %v5778, 3
        %v5781 = vshll.u32 %v5681, 16
        %v5783 = vrot.slane %v5781, 4
        %v5784 = vor.u32 %v5780, %v5783
        %v5785 = vsel %vm1550, %v5775, %v5784
        %v5787 = vshrl.u32 %v5682, 16
        %v5789 = vrot.slane %v5787, 3
        %v5790 = vshll.u32 %v5682, 16
        %v5792 = vrot.slane %v5790, 4
        %v5793 = vor.u32 %v5789, %v5792
        %v5794 = vsel %vm1550, %v5784, %v5793
        %v5796 = vshrl.u32 %v5683, 16
        %v5798 = vrot.slane %v5796, 3
        %v5799 = vshll.u32 %v5683, 16
        %v5801 = vrot.slane %v5799, 4
        %v5802 = vor.u32 %v5798, %v5801
        %v5803 = vsel %vm1550, %v5793, %v5802
        %v5805 = vshrl.u32 %v5684, 16
        %v5807 = vrot.slane %v5805, 3
        %v5808 = vshll.u32 %v5684, 16
        %v5810 = vrot.slane %v5808, 4
        %v5811 = vor.u32 %v5807, %v5810
        %v5812 = vsel %vm1550, %v5802, %v5811
        %v5814 = vshrl.u32 %v5685, 16
        %v5816 = vrot.slane %v5814, 3
        %v5817 = vshll.u32 %v5685, 16
        %v5819 = vrot.slane %v5817, 4
        %v5820 = vor.u32 %v5816, %v5819
        %v5821 = vsel %vm1550, %v5811, %v5820
        %v5823 = vshrl.u32 %v5686, 16
        %v5825 = vrot.slane %v5823, 3
        %v5826 = vshll.u32 %v5686, 16
        %v5828 = vrot.slane %v5826, 4
        %v5829 = vor.u32 %v5825, %v5828
        %v5830 = vsel %vm1550, %v5820, %v5829
        %v5832 = vshrl.u32 %v5687, 16
        %v5834 = vrot.slane %v5832, 3
        %v5835 = vshll.u32 %v5687, 16
        %v5837 = vrot.slane %v5835, 4
        %v5838 = vor.u32 %v5834, %v5837
        %v5839 = vsel %vm1550, %v5829, %v5838
        %5856 = vst [vmem:[#allocation5 + $0x18] sm:$0xff] %v5704
        %5857 = vst [vmem:[#allocation5 + $0x60] sm:$0xff] %v5713
        %5858 = vst [vmem:[#allocation5 + $0xa8] sm:$0xff] %v5722
        %5859 = vst [vmem:[#allocation5 + $0xf0] sm:$0xff] %v5731
        %5860 = vst [vmem:[#allocation5 + $0x138] sm:$0xff] %v5740
        %5861 = vst [vmem:[#allocation5 + $0x180] sm:$0xff] %v5749
        %5862 = vst [vmem:[#allocation5 + $0x1c8] sm:$0xff] %v5758
        %5863 = vst [vmem:[#allocation5 + $0x210] sm:$0xff] %v5767
        %5864 = vst [vmem:[#allocation5 + $0x258] sm:$0xff] %v5776
        %5865 = vst [vmem:[#allocation5 + $0x2a0] sm:$0xff] %v5785
        %5866 = vst [vmem:[#allocation5 + $0x2e8] sm:$0xff] %v5794
        %5867 = vst [vmem:[#allocation5 + $0x330] sm:$0xff] %v5803
        %5868 = vst [vmem:[#allocation5 + $0x378] sm:$0xff] %v5812
        %5869 = vst [vmem:[#allocation5 + $0x3c0] sm:$0xff] %v5821
        %5870 = vst [vmem:[#allocation5 + $0x408] sm:$0xff] %v5830
        %5871 = vst [vmem:[#allocation5 + $0x450] sm:$0xff] %v5839
        %v5872 = vld [vmem:[#allocation4 + $0x8] sm:$0xf0]
        %v5873 = vld [vmem:[#allocation4 + $0x10] sm:$0xff]
        %v5874 = vld [vmem:[#allocation4 + $0x18] sm:$0xff]
        %v5875 = vld [vmem:[#allocation4 + $0x20] sm:$0xff]
        %v5876 = vld [vmem:[#allocation4 + $0x28] sm:$0xff]
        %v5877 = vld [vmem:[#allocation4 + $0x30] sm:$0xff]
        %v5878 = vld [vmem:[#allocation4 + $0x38] sm:$0xff]
        %v5879 = vld [vmem:[#allocation4 + $0x40] sm:$0xff]
        %v5880 = vld [vmem:[#allocation4 + $0x48] sm:$0xff]
        %v5881 = vld [vmem:[#allocation4 + $0x50] sm:$0xff]
        %v5882 = vld [vmem:[#allocation4 + $0x58] sm:$0xff]
        %v5883 = vld [vmem:[#allocation4 + $0x60] sm:$0xff]
        %v5884 = vld [vmem:[#allocation4 + $0x68] sm:$0xff]
        %v5885 = vld [vmem:[#allocation4 + $0x70] sm:$0xff]
        %v5886 = vld [vmem:[#allocation4 + $0x78] sm:$0xff]
        %v5887 = vld [vmem:[#allocation4 + $0x80] sm:$0xff]
        %v5888 = vld [vmem:[#allocation4 + $0x88] sm:$0xf]
        %v5906 = vrot.slane %v5872, 4
        %v5907 = vrot.slane %v5873, 4
        %v5908 = vsel %vm632, %v5906, %v5907
        %v5909 = vrot.slane %v5874, 4
        %v5910 = vsel %vm632, %v5907, %v5909
        %v5911 = vrot.slane %v5875, 4
        %v5912 = vsel %vm632, %v5909, %v5911
        %v5913 = vrot.slane %v5876, 4
        %v5914 = vsel %vm632, %v5911, %v5913
        %v5915 = vrot.slane %v5877, 4
        %v5916 = vsel %vm632, %v5913, %v5915
        %v5917 = vrot.slane %v5878, 4
        %v5918 = vsel %vm632, %v5915, %v5917
        %v5919 = vrot.slane %v5879, 4
        %v5920 = vsel %vm632, %v5917, %v5919
        %v5921 = vrot.slane %v5880, 4
        %v5922 = vsel %vm632, %v5919, %v5921
        %v5923 = vrot.slane %v5881, 4
        %v5924 = vsel %vm632, %v5921, %v5923
        %v5925 = vrot.slane %v5882, 4
        %v5926 = vsel %vm632, %v5923, %v5925
        %v5927 = vrot.slane %v5883, 4
        %v5928 = vsel %vm632, %v5925, %v5927
        %v5929 = vrot.slane %v5884, 4
        %v5930 = vsel %vm632, %v5927, %v5929
        %v5931 = vrot.slane %v5885, 4
        %v5932 = vsel %vm632, %v5929, %v5931
        %v5933 = vrot.slane %v5886, 4
        %v5934 = vsel %vm632, %v5931, %v5933
        %v5935 = vrot.slane %v5887, 4
        %v5936 = vsel %vm632, %v5933, %v5935
        %v5937 = vrot.slane %v5888, 4
        %v5938 = vsel %vm632, %v5935, %v5937
        %5955 = vst [vmem:[#allocation5 + $0x20] sm:$0xff] %v5908
        %5956 = vst [vmem:[#allocation5 + $0x68] sm:$0xff] %v5910
        %5957 = vst [vmem:[#allocation5 + $0xb0] sm:$0xff] %v5912
        %5958 = vst [vmem:[#allocation5 + $0xf8] sm:$0xff] %v5914
        %5959 = vst [vmem:[#allocation5 + $0x140] sm:$0xff] %v5916
        %5960 = vst [vmem:[#allocation5 + $0x188] sm:$0xff] %v5918
        %5961 = vst [vmem:[#allocation5 + $0x1d0] sm:$0xff] %v5920
        %5962 = vst [vmem:[#allocation5 + $0x218] sm:$0xff] %v5922
        %5963 = vst [vmem:[#allocation5 + $0x260] sm:$0xff] %v5924
        %5964 = vst [vmem:[#allocation5 + $0x2a8] sm:$0xff] %v5926
        %5965 = vst [vmem:[#allocation5 + $0x2f0] sm:$0xff] %v5928
        %5966 = vst [vmem:[#allocation5 + $0x338] sm:$0xff] %v5930
        %5967 = vst [vmem:[#allocation5 + $0x380] sm:$0xff] %v5932
        %5968 = vst [vmem:[#allocation5 + $0x3c8] sm:$0xff] %v5934
        %5969 = vst [vmem:[#allocation5 + $0x410] sm:$0xff] %v5936
        %5970 = vst [vmem:[#allocation5 + $0x458] sm:$0xff] %v5938
        %v5971 = vld [vmem:[#allocation4 + $0x8] sm:$0xf0]
        %v5972 = vld [vmem:[#allocation4 + $0x10] sm:$0xff]
        %v5973 = vld [vmem:[#allocation4 + $0x18] sm:$0xff]
        %v5974 = vld [vmem:[#allocation4 + $0x20] sm:$0xff]
        %v5975 = vld [vmem:[#allocation4 + $0x28] sm:$0xff]
        %v5976 = vld [vmem:[#allocation4 + $0x30] sm:$0xff]
        %v5977 = vld [vmem:[#allocation4 + $0x38] sm:$0xff]
        %v5978 = vld [vmem:[#allocation4 + $0x40] sm:$0xff]
        %v5979 = vld [vmem:[#allocation4 + $0x48] sm:$0xff]
        %v5980 = vld [vmem:[#allocation4 + $0x50] sm:$0xff]
        %v5981 = vld [vmem:[#allocation4 + $0x58] sm:$0xff]
        %v5982 = vld [vmem:[#allocation4 + $0x60] sm:$0xff]
        %v5983 = vld [vmem:[#allocation4 + $0x68] sm:$0xff]
        %v5984 = vld [vmem:[#allocation4 + $0x70] sm:$0xff]
        %v5985 = vld [vmem:[#allocation4 + $0x78] sm:$0xff]
        %v5986 = vld [vmem:[#allocation4 + $0x80] sm:$0xff]
        %v5987 = vld [vmem:[#allocation4 + $0x88] sm:$0x1f]
        %v5988 = vsel %vm2170, %v5971, 0
        %v5989 = vsel %vm2171, %v5972, 0
        %v5990 = vsel %vm2172, %v5973, 0
        %v5991 = vsel %vm2173, %v5974, 0
        %v5992 = vsel %vm2174, %v5975, 0
        %v5993 = vsel %vm2175, %v5976, 0
        %v5994 = vsel %vm2176, %v5977, 0
        %v5995 = vsel %vm2177, %v5978, 0
        %v5996 = vsel %vm2178, %v5979, 0
        %v5997 = vsel %vm2179, %v5980, 0
        %v5998 = vsel %vm2180, %v5981, 0
        %v5999 = vsel %vm2181, %v5982, 0
        %v6000 = vsel %vm2182, %v5983, 0
        %v6001 = vsel %vm2183, %v5984, 0
        %v6002 = vsel %vm2184, %v5985, 0
        %v6003 = vsel %vm2185, %v5986, 0
        %v6004 = vsel %vm2186, %v5987, 0
        %v6006 = vshrl.u32 %v5988, 16
        %v6008 = vrot.slane %v6006, 4
        %v6009 = vshll.u32 %v5988, 16
        %v6011 = vrot.slane %v6009, 5
        %v6012 = vor.u32 %v6008, %v6011
        %v6014 = vshrl.u32 %v5989, 16
        %v6016 = vrot.slane %v6014, 4
        %v6017 = vshll.u32 %v5989, 16
        %v6019 = vrot.slane %v6017, 5
        %v6020 = vor.u32 %v6016, %v6019
        %v6021 = vsel %vm1372, %v6012, %v6020
        %v6023 = vshrl.u32 %v5990, 16
        %v6025 = vrot.slane %v6023, 4
        %v6026 = vshll.u32 %v5990, 16
        %v6028 = vrot.slane %v6026, 5
        %v6029 = vor.u32 %v6025, %v6028
        %v6030 = vsel %vm1372, %v6020, %v6029
        %v6032 = vshrl.u32 %v5991, 16
        %v6034 = vrot.slane %v6032, 4
        %v6035 = vshll.u32 %v5991, 16
        %v6037 = vrot.slane %v6035, 5
        %v6038 = vor.u32 %v6034, %v6037
        %v6039 = vsel %vm1372, %v6029, %v6038
        %v6041 = vshrl.u32 %v5992, 16
        %v6043 = vrot.slane %v6041, 4
        %v6044 = vshll.u32 %v5992, 16
        %v6046 = vrot.slane %v6044, 5
        %v6047 = vor.u32 %v6043, %v6046
        %v6048 = vsel %vm1372, %v6038, %v6047
        %v6050 = vshrl.u32 %v5993, 16
        %v6052 = vrot.slane %v6050, 4
        %v6053 = vshll.u32 %v5993, 16
        %v6055 = vrot.slane %v6053, 5
        %v6056 = vor.u32 %v6052, %v6055
        %v6057 = vsel %vm1372, %v6047, %v6056
        %v6059 = vshrl.u32 %v5994, 16
        %v6061 = vrot.slane %v6059, 4
        %v6062 = vshll.u32 %v5994, 16
        %v6064 = vrot.slane %v6062, 5
        %v6065 = vor.u32 %v6061, %v6064
        %v6066 = vsel %vm1372, %v6056, %v6065
        %v6068 = vshrl.u32 %v5995, 16
        %v6070 = vrot.slane %v6068, 4
        %v6071 = vshll.u32 %v5995, 16
        %v6073 = vrot.slane %v6071, 5
        %v6074 = vor.u32 %v6070, %v6073
        %v6075 = vsel %vm1372, %v6065, %v6074
        %v6077 = vshrl.u32 %v5996, 16
        %v6079 = vrot.slane %v6077, 4
        %v6080 = vshll.u32 %v5996, 16
        %v6082 = vrot.slane %v6080, 5
        %v6083 = vor.u32 %v6079, %v6082
        %v6084 = vsel %vm1372, %v6074, %v6083
        %v6086 = vshrl.u32 %v5997, 16
        %v6088 = vrot.slane %v6086, 4
        %v6089 = vshll.u32 %v5997, 16
        %v6091 = vrot.slane %v6089, 5
        %v6092 = vor.u32 %v6088, %v6091
        %v6093 = vsel %vm1372, %v6083, %v6092
        %v6095 = vshrl.u32 %v5998, 16
        %v6097 = vrot.slane %v6095, 4
        %v6098 = vshll.u32 %v5998, 16
        %v6100 = vrot.slane %v6098, 5
        %v6101 = vor.u32 %v6097, %v6100
        %v6102 = vsel %vm1372, %v6092, %v6101
        %v6104 = vshrl.u32 %v5999, 16
        %v6106 = vrot.slane %v6104, 4
        %v6107 = vshll.u32 %v5999, 16
        %v6109 = vrot.slane %v6107, 5
        %v6110 = vor.u32 %v6106, %v6109
        %v6111 = vsel %vm1372, %v6101, %v6110
        %v6113 = vshrl.u32 %v6000, 16
        %v6115 = vrot.slane %v6113, 4
        %v6116 = vshll.u32 %v6000, 16
        %v6118 = vrot.slane %v6116, 5
        %v6119 = vor.u32 %v6115, %v6118
        %v6120 = vsel %vm1372, %v6110, %v6119
        %v6122 = vshrl.u32 %v6001, 16
        %v6124 = vrot.slane %v6122, 4
        %v6125 = vshll.u32 %v6001, 16
        %v6127 = vrot.slane %v6125, 5
        %v6128 = vor.u32 %v6124, %v6127
        %v6129 = vsel %vm1372, %v6119, %v6128
        %v6131 = vshrl.u32 %v6002, 16
        %v6133 = vrot.slane %v6131, 4
        %v6134 = vshll.u32 %v6002, 16
        %v6136 = vrot.slane %v6134, 5
        %v6137 = vor.u32 %v6133, %v6136
        %v6138 = vsel %vm1372, %v6128, %v6137
        %v6140 = vshrl.u32 %v6003, 16
        %v6142 = vrot.slane %v6140, 4
        %v6143 = vshll.u32 %v6003, 16
        %v6145 = vrot.slane %v6143, 5
        %v6146 = vor.u32 %v6142, %v6145
        %v6147 = vsel %vm1372, %v6137, %v6146
        %v6149 = vshrl.u32 %v6004, 16
        %v6151 = vrot.slane %v6149, 4
        %v6152 = vshll.u32 %v6004, 16
        %v6154 = vrot.slane %v6152, 5
        %v6155 = vor.u32 %v6151, %v6154
        %v6156 = vsel %vm1372, %v6146, %v6155
        %6173 = vst [vmem:[#allocation5 + $0x28] sm:$0xff] %v6021
        %6174 = vst [vmem:[#allocation5 + $0x70] sm:$0xff] %v6030
        %6175 = vst [vmem:[#allocation5 + $0xb8] sm:$0xff] %v6039
        %6176 = vst [vmem:[#allocation5 + $0x100] sm:$0xff] %v6048
        %6177 = vst [vmem:[#allocation5 + $0x148] sm:$0xff] %v6057
        %6178 = vst [vmem:[#allocation5 + $0x190] sm:$0xff] %v6066
        %6179 = vst [vmem:[#allocation5 + $0x1d8] sm:$0xff] %v6075
        %6180 = vst [vmem:[#allocation5 + $0x220] sm:$0xff] %v6084
        %6181 = vst [vmem:[#allocation5 + $0x268] sm:$0xff] %v6093
        %6182 = vst [vmem:[#allocation5 + $0x2b0] sm:$0xff] %v6102
        %6183 = vst [vmem:[#allocation5 + $0x2f8] sm:$0xff] %v6111
        %6184 = vst [vmem:[#allocation5 + $0x340] sm:$0xff] %v6120
        %6185 = vst [vmem:[#allocation5 + $0x388] sm:$0xff] %v6129
        %6186 = vst [vmem:[#allocation5 + $0x3d0] sm:$0xff] %v6138
        %6187 = vst [vmem:[#allocation5 + $0x418] sm:$0xff] %v6147
        %6188 = vst [vmem:[#allocation5 + $0x460] sm:$0xff] %v6156
        %v6189 = vld [vmem:[#allocation4 + $0x10] sm:$0xf8]
        %v6190 = vld [vmem:[#allocation4 + $0x18] sm:$0xff]
        %v6191 = vld [vmem:[#allocation4 + $0x20] sm:$0xff]
        %v6192 = vld [vmem:[#allocation4 + $0x28] sm:$0xff]
        %v6193 = vld [vmem:[#allocation4 + $0x30] sm:$0xff]
        %v6194 = vld [vmem:[#allocation4 + $0x38] sm:$0xff]
        %v6195 = vld [vmem:[#allocation4 + $0x40] sm:$0xff]
        %v6196 = vld [vmem:[#allocation4 + $0x48] sm:$0xff]
        %v6197 = vld [vmem:[#allocation4 + $0x50] sm:$0xff]
        %v6198 = vld [vmem:[#allocation4 + $0x58] sm:$0xff]
        %v6199 = vld [vmem:[#allocation4 + $0x60] sm:$0xff]
        %v6200 = vld [vmem:[#allocation4 + $0x68] sm:$0xff]
        %v6201 = vld [vmem:[#allocation4 + $0x70] sm:$0xff]
        %v6202 = vld [vmem:[#allocation4 + $0x78] sm:$0xff]
        %v6203 = vld [vmem:[#allocation4 + $0x80] sm:$0xff]
        %v6204 = vld [vmem:[#allocation4 + $0x88] sm:$0xff]
        %v6205 = vld [vmem:[#allocation4 + $0x90] sm:$0xf]
        %v6206 = vsel %vm1516, %v6189, 0
        %v6207 = vsel %vm1517, %v6190, 0
        %v6208 = vsel %vm1518, %v6191, 0
        %v6209 = vsel %vm1519, %v6192, 0
        %v6210 = vsel %vm1520, %v6193, 0
        %v6211 = vsel %vm1521, %v6194, 0
        %v6212 = vsel %vm1522, %v6195, 0
        %v6213 = vsel %vm1523, %v6196, 0
        %v6214 = vsel %vm1524, %v6197, 0
        %v6215 = vsel %vm1525, %v6198, 0
        %v6216 = vsel %vm1526, %v6199, 0
        %v6217 = vsel %vm1527, %v6200, 0
        %v6218 = vsel %vm1528, %v6201, 0
        %v6219 = vsel %vm1529, %v6202, 0
        %v6220 = vsel %vm1530, %v6203, 0
        %v6221 = vsel %vm1531, %v6204, 0
        %v6222 = vsel %vm1532, %v6205, 0
        %v6224 = vshrl.u32 %v6206, 16
        %v6226 = vrot.slane %v6224, 3
        %v6227 = vshll.u32 %v6206, 16
        %v6229 = vrot.slane %v6227, 4
        %v6230 = vor.u32 %v6226, %v6229
        %v6232 = vshrl.u32 %v6207, 16
        %v6234 = vrot.slane %v6232, 3
        %v6235 = vshll.u32 %v6207, 16
        %v6237 = vrot.slane %v6235, 4
        %v6238 = vor.u32 %v6234, %v6237
        %v6239 = vsel %vm1550, %v6230, %v6238
        %v6241 = vshrl.u32 %v6208, 16
        %v6243 = vrot.slane %v6241, 3
        %v6244 = vshll.u32 %v6208, 16
        %v6246 = vrot.slane %v6244, 4
        %v6247 = vor.u32 %v6243, %v6246
        %v6248 = vsel %vm1550, %v6238, %v6247
        %v6250 = vshrl.u32 %v6209, 16
        %v6252 = vrot.slane %v6250, 3
        %v6253 = vshll.u32 %v6209, 16
        %v6255 = vrot.slane %v6253, 4
        %v6256 = vor.u32 %v6252, %v6255
        %v6257 = vsel %vm1550, %v6247, %v6256
        %v6259 = vshrl.u32 %v6210, 16
        %v6261 = vrot.slane %v6259, 3
        %v6262 = vshll.u32 %v6210, 16
        %v6264 = vrot.slane %v6262, 4
        %v6265 = vor.u32 %v6261, %v6264
        %v6266 = vsel %vm1550, %v6256, %v6265
        %v6268 = vshrl.u32 %v6211, 16
        %v6270 = vrot.slane %v6268, 3
        %v6271 = vshll.u32 %v6211, 16
        %v6273 = vrot.slane %v6271, 4
        %v6274 = vor.u32 %v6270, %v6273
        %v6275 = vsel %vm1550, %v6265, %v6274
        %v6277 = vshrl.u32 %v6212, 16
        %v6279 = vrot.slane %v6277, 3
        %v6280 = vshll.u32 %v6212, 16
        %v6282 = vrot.slane %v6280, 4
        %v6283 = vor.u32 %v6279, %v6282
        %v6284 = vsel %vm1550, %v6274, %v6283
        %v6286 = vshrl.u32 %v6213, 16
        %v6288 = vrot.slane %v6286, 3
        %v6289 = vshll.u32 %v6213, 16
        %v6291 = vrot.slane %v6289, 4
        %v6292 = vor.u32 %v6288, %v6291
        %v6293 = vsel %vm1550, %v6283, %v6292
        %v6295 = vshrl.u32 %v6214, 16
        %v6297 = vrot.slane %v6295, 3
        %v6298 = vshll.u32 %v6214, 16
        %v6300 = vrot.slane %v6298, 4
        %v6301 = vor.u32 %v6297, %v6300
        %v6302 = vsel %vm1550, %v6292, %v6301
        %v6304 = vshrl.u32 %v6215, 16
        %v6306 = vrot.slane %v6304, 3
        %v6307 = vshll.u32 %v6215, 16
        %v6309 = vrot.slane %v6307, 4
        %v6310 = vor.u32 %v6306, %v6309
        %v6311 = vsel %vm1550, %v6301, %v6310
        %v6313 = vshrl.u32 %v6216, 16
        %v6315 = vrot.slane %v6313, 3
        %v6316 = vshll.u32 %v6216, 16
        %v6318 = vrot.slane %v6316, 4
        %v6319 = vor.u32 %v6315, %v6318
        %v6320 = vsel %vm1550, %v6310, %v6319
        %v6322 = vshrl.u32 %v6217, 16
        %v6324 = vrot.slane %v6322, 3
        %v6325 = vshll.u32 %v6217, 16
        %v6327 = vrot.slane %v6325, 4
        %v6328 = vor.u32 %v6324, %v6327
        %v6329 = vsel %vm1550, %v6319, %v6328
        %v6331 = vshrl.u32 %v6218, 16
        %v6333 = vrot.slane %v6331, 3
        %v6334 = vshll.u32 %v6218, 16
        %v6336 = vrot.slane %v6334, 4
        %v6337 = vor.u32 %v6333, %v6336
        %v6338 = vsel %vm1550, %v6328, %v6337
        %v6340 = vshrl.u32 %v6219, 16
        %v6342 = vrot.slane %v6340, 3
        %v6343 = vshll.u32 %v6219, 16
        %v6345 = vrot.slane %v6343, 4
        %v6346 = vor.u32 %v6342, %v6345
        %v6347 = vsel %vm1550, %v6337, %v6346
        %v6349 = vshrl.u32 %v6220, 16
        %v6351 = vrot.slane %v6349, 3
        %v6352 = vshll.u32 %v6220, 16
        %v6354 = vrot.slane %v6352, 4
        %v6355 = vor.u32 %v6351, %v6354
        %v6356 = vsel %vm1550, %v6346, %v6355
        %v6358 = vshrl.u32 %v6221, 16
        %v6360 = vrot.slane %v6358, 3
        %v6361 = vshll.u32 %v6221, 16
        %v6363 = vrot.slane %v6361, 4
        %v6364 = vor.u32 %v6360, %v6363
        %v6365 = vsel %vm1550, %v6355, %v6364
        %v6367 = vshrl.u32 %v6222, 16
        %v6369 = vrot.slane %v6367, 3
        %v6370 = vshll.u32 %v6222, 16
        %v6372 = vrot.slane %v6370, 4
        %v6373 = vor.u32 %v6369, %v6372
        %v6374 = vsel %vm1550, %v6364, %v6373
        %6391 = vst [vmem:[#allocation5 + $0x30] sm:$0xff] %v6239
        %6392 = vst [vmem:[#allocation5 + $0x78] sm:$0xff] %v6248
        %6393 = vst [vmem:[#allocation5 + $0xc0] sm:$0xff] %v6257
        %6394 = vst [vmem:[#allocation5 + $0x108] sm:$0xff] %v6266
        %6395 = vst [vmem:[#allocation5 + $0x150] sm:$0xff] %v6275
        %6396 = vst [vmem:[#allocation5 + $0x198] sm:$0xff] %v6284
        %6397 = vst [vmem:[#allocation5 + $0x1e0] sm:$0xff] %v6293
        %6398 = vst [vmem:[#allocation5 + $0x228] sm:$0xff] %v6302
        %6399 = vst [vmem:[#allocation5 + $0x270] sm:$0xff] %v6311
        %6400 = vst [vmem:[#allocation5 + $0x2b8] sm:$0xff] %v6320
        %6401 = vst [vmem:[#allocation5 + $0x300] sm:$0xff] %v6329
        %6402 = vst [vmem:[#allocation5 + $0x348] sm:$0xff] %v6338
        %6403 = vst [vmem:[#allocation5 + $0x390] sm:$0xff] %v6347
        %6404 = vst [vmem:[#allocation5 + $0x3d8] sm:$0xff] %v6356
        %6405 = vst [vmem:[#allocation5 + $0x420] sm:$0xff] %v6365
        %6406 = vst [vmem:[#allocation5 + $0x468] sm:$0xff] %v6374
        %v6407 = vld [vmem:[#allocation4 + $0x10] sm:$0xf0]
        %v6408 = vld [vmem:[#allocation4 + $0x18] sm:$0xff]
        %v6409 = vld [vmem:[#allocation4 + $0x20] sm:$0xff]
        %v6410 = vld [vmem:[#allocation4 + $0x28] sm:$0xff]
        %v6411 = vld [vmem:[#allocation4 + $0x30] sm:$0xff]
        %v6412 = vld [vmem:[#allocation4 + $0x38] sm:$0xff]
        %v6413 = vld [vmem:[#allocation4 + $0x40] sm:$0xff]
        %v6414 = vld [vmem:[#allocation4 + $0x48] sm:$0xff]
        %v6415 = vld [vmem:[#allocation4 + $0x50] sm:$0xff]
        %v6416 = vld [vmem:[#allocation4 + $0x58] sm:$0xff]
        %v6417 = vld [vmem:[#allocation4 + $0x60] sm:$0xff]
        %v6418 = vld [vmem:[#allocation4 + $0x68] sm:$0xff]
        %v6419 = vld [vmem:[#allocation4 + $0x70] sm:$0xff]
        %v6420 = vld [vmem:[#allocation4 + $0x78] sm:$0xff]
        %v6421 = vld [vmem:[#allocation4 + $0x80] sm:$0xff]
        %v6422 = vld [vmem:[#allocation4 + $0x88] sm:$0xff]
        %v6423 = vld [vmem:[#allocation4 + $0x90] sm:$0xf]
        %v6441 = vrot.slane %v6407, 4
        %v6442 = vrot.slane %v6408, 4
        %v6443 = vsel %vm632, %v6441, %v6442
        %v6444 = vrot.slane %v6409, 4
        %v6445 = vsel %vm632, %v6442, %v6444
        %v6446 = vrot.slane %v6410, 4
        %v6447 = vsel %vm632, %v6444, %v6446
        %v6448 = vrot.slane %v6411, 4
        %v6449 = vsel %vm632, %v6446, %v6448
        %v6450 = vrot.slane %v6412, 4
        %v6451 = vsel %vm632, %v6448, %v6450
        %v6452 = vrot.slane %v6413, 4
        %v6453 = vsel %vm632, %v6450, %v6452
        %v6454 = vrot.slane %v6414, 4
        %v6455 = vsel %vm632, %v6452, %v6454
        %v6456 = vrot.slane %v6415, 4
        %v6457 = vsel %vm632, %v6454, %v6456
        %v6458 = vrot.slane %v6416, 4
        %v6459 = vsel %vm632, %v6456, %v6458
        %v6460 = vrot.slane %v6417, 4
        %v6461 = vsel %vm632, %v6458, %v6460
        %v6462 = vrot.slane %v6418, 4
        %v6463 = vsel %vm632, %v6460, %v6462
        %v6464 = vrot.slane %v6419, 4
        %v6465 = vsel %vm632, %v6462, %v6464
        %v6466 = vrot.slane %v6420, 4
        %v6467 = vsel %vm632, %v6464, %v6466
        %v6468 = vrot.slane %v6421, 4
        %v6469 = vsel %vm632, %v6466, %v6468
        %v6470 = vrot.slane %v6422, 4
        %v6471 = vsel %vm632, %v6468, %v6470
        %v6472 = vrot.slane %v6423, 4
        %v6473 = vsel %vm632, %v6470, %v6472
        %6490 = vst [vmem:[#allocation5 + $0x38] sm:$0xff] %v6443
        %6491 = vst [vmem:[#allocation5 + $0x80] sm:$0xff] %v6445
        %6492 = vst [vmem:[#allocation5 + $0xc8] sm:$0xff] %v6447
        %6493 = vst [vmem:[#allocation5 + $0x110] sm:$0xff] %v6449
        %6494 = vst [vmem:[#allocation5 + $0x158] sm:$0xff] %v6451
        %6495 = vst [vmem:[#allocation5 + $0x1a0] sm:$0xff] %v6453
        %6496 = vst [vmem:[#allocation5 + $0x1e8] sm:$0xff] %v6455
        %6497 = vst [vmem:[#allocation5 + $0x230] sm:$0xff] %v6457
        %6498 = vst [vmem:[#allocation5 + $0x278] sm:$0xff] %v6459
        %6499 = vst [vmem:[#allocation5 + $0x2c0] sm:$0xff] %v6461
        %6500 = vst [vmem:[#allocation5 + $0x308] sm:$0xff] %v6463
        %6501 = vst [vmem:[#allocation5 + $0x350] sm:$0xff] %v6465
        %6502 = vst [vmem:[#allocation5 + $0x398] sm:$0xff] %v6467
        %6503 = vst [vmem:[#allocation5 + $0x3e0] sm:$0xff] %v6469
        %6504 = vst [vmem:[#allocation5 + $0x428] sm:$0xff] %v6471
        %6505 = vst [vmem:[#allocation5 + $0x470] sm:$0xff] %v6473
        %v6506 = vld [vmem:[#allocation4 + $0x10] sm:$0xf0]
        %v6507 = vld [vmem:[#allocation4 + $0x18] sm:$0xff]
        %v6508 = vld [vmem:[#allocation4 + $0x20] sm:$0xff]
        %v6509 = vld [vmem:[#allocation4 + $0x28] sm:$0xff]
        %v6510 = vld [vmem:[#allocation4 + $0x30] sm:$0xff]
        %v6511 = vld [vmem:[#allocation4 + $0x38] sm:$0xff]
        %v6512 = vld [vmem:[#allocation4 + $0x40] sm:$0xff]
        %v6513 = vld [vmem:[#allocation4 + $0x48] sm:$0xff]
        %v6514 = vld [vmem:[#allocation4 + $0x50] sm:$0xff]
        %v6515 = vld [vmem:[#allocation4 + $0x58] sm:$0xff]
        %v6516 = vld [vmem:[#allocation4 + $0x60] sm:$0xff]
        %v6517 = vld [vmem:[#allocation4 + $0x68] sm:$0xff]
        %v6518 = vld [vmem:[#allocation4 + $0x70] sm:$0xff]
        %v6519 = vld [vmem:[#allocation4 + $0x78] sm:$0xff]
        %v6520 = vld [vmem:[#allocation4 + $0x80] sm:$0xff]
        %v6521 = vld [vmem:[#allocation4 + $0x88] sm:$0xff]
        %v6522 = vld [vmem:[#allocation4 + $0x90] sm:$0x1f]
        %v6523 = vsel %vm2170, %v6506, 0
        %v6524 = vsel %vm2171, %v6507, 0
        %v6525 = vsel %vm2172, %v6508, 0
        %v6526 = vsel %vm2173, %v6509, 0
        %v6527 = vsel %vm2174, %v6510, 0
        %v6528 = vsel %vm2175, %v6511, 0
        %v6529 = vsel %vm2176, %v6512, 0
        %v6530 = vsel %vm2177, %v6513, 0
        %v6531 = vsel %vm2178, %v6514, 0
        %v6532 = vsel %vm2179, %v6515, 0
        %v6533 = vsel %vm2180, %v6516, 0
        %v6534 = vsel %vm2181, %v6517, 0
        %v6535 = vsel %vm2182, %v6518, 0
        %v6536 = vsel %vm2183, %v6519, 0
        %v6537 = vsel %vm2184, %v6520, 0
        %v6538 = vsel %vm2185, %v6521, 0
        %v6539 = vsel %vm2186, %v6522, 0
        %v6541 = vshrl.u32 %v6523, 16
        %v6543 = vrot.slane %v6541, 4
        %v6544 = vshll.u32 %v6523, 16
        %v6546 = vrot.slane %v6544, 5
        %v6547 = vor.u32 %v6543, %v6546
        %v6549 = vshrl.u32 %v6524, 16
        %v6551 = vrot.slane %v6549, 4
        %v6552 = vshll.u32 %v6524, 16
        %v6554 = vrot.slane %v6552, 5
        %v6555 = vor.u32 %v6551, %v6554
        %v6556 = vsel %vm1372, %v6547, %v6555
        %v6558 = vshrl.u32 %v6525, 16
        %v6560 = vrot.slane %v6558, 4
        %v6561 = vshll.u32 %v6525, 16
        %v6563 = vrot.slane %v6561, 5
        %v6564 = vor.u32 %v6560, %v6563
        %v6565 = vsel %vm1372, %v6555, %v6564
        %v6567 = vshrl.u32 %v6526, 16
        %v6569 = vrot.slane %v6567, 4
        %v6570 = vshll.u32 %v6526, 16
        %v6572 = vrot.slane %v6570, 5
        %v6573 = vor.u32 %v6569, %v6572
        %v6574 = vsel %vm1372, %v6564, %v6573
        %v6576 = vshrl.u32 %v6527, 16
        %v6578 = vrot.slane %v6576, 4
        %v6579 = vshll.u32 %v6527, 16
        %v6581 = vrot.slane %v6579, 5
        %v6582 = vor.u32 %v6578, %v6581
        %v6583 = vsel %vm1372, %v6573, %v6582
        %v6585 = vshrl.u32 %v6528, 16
        %v6587 = vrot.slane %v6585, 4
        %v6588 = vshll.u32 %v6528, 16
        %v6590 = vrot.slane %v6588, 5
        %v6591 = vor.u32 %v6587, %v6590
        %v6592 = vsel %vm1372, %v6582, %v6591
        %v6594 = vshrl.u32 %v6529, 16
        %v6596 = vrot.slane %v6594, 4
        %v6597 = vshll.u32 %v6529, 16
        %v6599 = vrot.slane %v6597, 5
        %v6600 = vor.u32 %v6596, %v6599
        %v6601 = vsel %vm1372, %v6591, %v6600
        %v6603 = vshrl.u32 %v6530, 16
        %v6605 = vrot.slane %v6603, 4
        %v6606 = vshll.u32 %v6530, 16
        %v6608 = vrot.slane %v6606, 5
        %v6609 = vor.u32 %v6605, %v6608
        %v6610 = vsel %vm1372, %v6600, %v6609
        %v6612 = vshrl.u32 %v6531, 16
        %v6614 = vrot.slane %v6612, 4
        %v6615 = vshll.u32 %v6531, 16
        %v6617 = vrot.slane %v6615, 5
        %v6618 = vor.u32 %v6614, %v6617
        %v6619 = vsel %vm1372, %v6609, %v6618
        %v6621 = vshrl.u32 %v6532, 16
        %v6623 = vrot.slane %v6621, 4
        %v6624 = vshll.u32 %v6532, 16
        %v6626 = vrot.slane %v6624, 5
        %v6627 = vor.u32 %v6623, %v6626
        %v6628 = vsel %vm1372, %v6618, %v6627
        %v6630 = vshrl.u32 %v6533, 16
        %v6632 = vrot.slane %v6630, 4
        %v6633 = vshll.u32 %v6533, 16
        %v6635 = vrot.slane %v6633, 5
        %v6636 = vor.u32 %v6632, %v6635
        %v6637 = vsel %vm1372, %v6627, %v6636
        %v6639 = vshrl.u32 %v6534, 16
        %v6641 = vrot.slane %v6639, 4
        %v6642 = vshll.u32 %v6534, 16
        %v6644 = vrot.slane %v6642, 5
        %v6645 = vor.u32 %v6641, %v6644
        %v6646 = vsel %vm1372, %v6636, %v6645
        %v6648 = vshrl.u32 %v6535, 16
        %v6650 = vrot.slane %v6648, 4
        %v6651 = vshll.u32 %v6535, 16
        %v6653 = vrot.slane %v6651, 5
        %v6654 = vor.u32 %v6650, %v6653
        %v6655 = vsel %vm1372, %v6645, %v6654
        %v6657 = vshrl.u32 %v6536, 16
        %v6659 = vrot.slane %v6657, 4
        %v6660 = vshll.u32 %v6536, 16
        %v6662 = vrot.slane %v6660, 5
        %v6663 = vor.u32 %v6659, %v6662
        %v6664 = vsel %vm1372, %v6654, %v6663
        %v6666 = vshrl.u32 %v6537, 16
        %v6668 = vrot.slane %v6666, 4
        %v6669 = vshll.u32 %v6537, 16
        %v6671 = vrot.slane %v6669, 5
        %v6672 = vor.u32 %v6668, %v6671
        %v6673 = vsel %vm1372, %v6663, %v6672
        %v6675 = vshrl.u32 %v6538, 16
        %v6677 = vrot.slane %v6675, 4
        %v6678 = vshll.u32 %v6538, 16
        %v6680 = vrot.slane %v6678, 5
        %v6681 = vor.u32 %v6677, %v6680
        %v6682 = vsel %vm1372, %v6672, %v6681
        %v6684 = vshrl.u32 %v6539, 16
        %v6686 = vrot.slane %v6684, 4
        %v6687 = vshll.u32 %v6539, 16
        %v6689 = vrot.slane %v6687, 5
        %v6690 = vor.u32 %v6686, %v6689
        %v6691 = vsel %vm1372, %v6681, %v6690
        %6708 = vst [vmem:[#allocation5 + $0x40] sm:$0xff] %v6556
        %6709 = vst [vmem:[#allocation5 + $0x88] sm:$0xff] %v6565
        %6710 = vst [vmem:[#allocation5 + $0xd0] sm:$0xff] %v6574
        %6711 = vst [vmem:[#allocation5 + $0x118] sm:$0xff] %v6583
        %6712 = vst [vmem:[#allocation5 + $0x160] sm:$0xff] %v6592
        %6713 = vst [vmem:[#allocation5 + $0x1a8] sm:$0xff] %v6601
        %6714 = vst [vmem:[#allocation5 + $0x1f0] sm:$0xff] %v6610
        %6715 = vst [vmem:[#allocation5 + $0x238] sm:$0xff] %v6619
        %6716 = vst [vmem:[#allocation5 + $0x280] sm:$0xff] %v6628
        %6717 = vst [vmem:[#allocation5 + $0x2c8] sm:$0xff] %v6637
        %6718 = vst [vmem:[#allocation5 + $0x310] sm:$0xff] %v6646
        %6719 = vst [vmem:[#allocation5 + $0x358] sm:$0xff] %v6655
        %6720 = vst [vmem:[#allocation5 + $0x3a0] sm:$0xff] %v6664
        %6721 = vst [vmem:[#allocation5 + $0x3e8] sm:$0xff] %v6673
        %6722 = vst [vmem:[#allocation5 + $0x430] sm:$0xff] %v6682
        %6723 = vst [vmem:[#allocation5 + $0x478] sm:$0xff] %v6691
        %v6724 = vld [vmem:[#allocation5] sm:$0xff]
        %v6725 = vld [vmem:[#allocation5 + $0x8] sm:$0xff]
        %v6726 = vld [vmem:[#allocation5 + $0x10] sm:$0xff]
        %v6727 = vld [vmem:[#allocation5 + $0x18] sm:$0xff]
        %v6728 = vld [vmem:[#allocation5 + $0x20] sm:$0xff]
        %v6729 = vld [vmem:[#allocation5 + $0x28] sm:$0xff]
        %v6730 = vld [vmem:[#allocation5 + $0x30] sm:$0xff]
        %v6731 = vld [vmem:[#allocation5 + $0x38] sm:$0xff]
        %v6732 = vld [vmem:[#allocation5 + $0x40] sm:$0xff]
        %v6733 = vld [vmem:[#allocation5 + $0x48] sm:$0xff]
        %v6734 = vld [vmem:[#allocation5 + $0x50] sm:$0xff]
        %v6735 = vld [vmem:[#allocation5 + $0x58] sm:$0xff]
        %v6736 = vld [vmem:[#allocation5 + $0x60] sm:$0xff]
        %v6737 = vld [vmem:[#allocation5 + $0x68] sm:$0xff]
        %v6738 = vld [vmem:[#allocation5 + $0x70] sm:$0xff]
        %v6739 = vld [vmem:[#allocation5 + $0x78] sm:$0xff]
        %v6740 = vld [vmem:[#allocation5 + $0x80] sm:$0xff]
        %v6741 = vld [vmem:[#allocation5 + $0x88] sm:$0xff]
        %v6742 = vld [vmem:[#allocation5 + $0x90] sm:$0xff]
        %v6743 = vld [vmem:[#allocation5 + $0x98] sm:$0xff]
        %v6744 = vld [vmem:[#allocation5 + $0xa0] sm:$0xff]
        %v6745 = vld [vmem:[#allocation5 + $0xa8] sm:$0xff]
        %v6746 = vld [vmem:[#allocation5 + $0xb0] sm:$0xff]
        %v6747 = vld [vmem:[#allocation5 + $0xb8] sm:$0xff]
        %v6748 = vld [vmem:[#allocation5 + $0xc0] sm:$0xff]
        %v6749 = vld [vmem:[#allocation5 + $0xc8] sm:$0xff]
        %v6750 = vld [vmem:[#allocation5 + $0xd0] sm:$0xff]
        %v6751 = vld [vmem:[#allocation5 + $0xd8] sm:$0xff]
        %v6752 = vld [vmem:[#allocation5 + $0xe0] sm:$0xff]
        %v6753 = vld [vmem:[#allocation5 + $0xe8] sm:$0xff]
        %v6754 = vld [vmem:[#allocation5 + $0xf0] sm:$0xff]
        %v6755 = vld [vmem:[#allocation5 + $0xf8] sm:$0xff]
        %v6756 = vld [vmem:[#allocation5 + $0x100] sm:$0xff]
        %v6757 = vld [vmem:[#allocation5 + $0x108] sm:$0xff]
        %v6758 = vld [vmem:[#allocation5 + $0x110] sm:$0xff]
        %v6759 = vld [vmem:[#allocation5 + $0x118] sm:$0xff]
        %v6760 = vld [vmem:[#allocation5 + $0x120] sm:$0xff]
        %v6761 = vld [vmem:[#allocation5 + $0x128] sm:$0xff]
        %v6762 = vld [vmem:[#allocation5 + $0x130] sm:$0xff]
        %v6763 = vld [vmem:[#allocation5 + $0x138] sm:$0xff]
        %v6764 = vld [vmem:[#allocation5 + $0x140] sm:$0xff]
        %v6765 = vld [vmem:[#allocation5 + $0x148] sm:$0xff]
        %v6766 = vld [vmem:[#allocation5 + $0x150] sm:$0xff]
        %v6767 = vld [vmem:[#allocation5 + $0x158] sm:$0xff]
        %v6768 = vld [vmem:[#allocation5 + $0x160] sm:$0xff]
        %v6769 = vld [vmem:[#allocation5 + $0x168] sm:$0xff]
        %v6770 = vld [vmem:[#allocation5 + $0x170] sm:$0xff]
        %v6771 = vld [vmem:[#allocation5 + $0x178] sm:$0xff]
        %v6772 = vld [vmem:[#allocation5 + $0x180] sm:$0xff]
        %v6773 = vld [vmem:[#allocation5 + $0x188] sm:$0xff]
        %v6774 = vld [vmem:[#allocation5 + $0x190] sm:$0xff]
        %v6775 = vld [vmem:[#allocation5 + $0x198] sm:$0xff]
        %v6776 = vld [vmem:[#allocation5 + $0x1a0] sm:$0xff]
        %v6777 = vld [vmem:[#allocation5 + $0x1a8] sm:$0xff]
        %v6778 = vld [vmem:[#allocation5 + $0x1b0] sm:$0xff]
        %v6779 = vld [vmem:[#allocation5 + $0x1b8] sm:$0xff]
        %v6780 = vld [vmem:[#allocation5 + $0x1c0] sm:$0xff]
        %v6781 = vld [vmem:[#allocation5 + $0x1c8] sm:$0xff]
        %v6782 = vld [vmem:[#allocation5 + $0x1d0] sm:$0xff]
        %v6783 = vld [vmem:[#allocation5 + $0x1d8] sm:$0xff]
        %v6784 = vld [vmem:[#allocation5 + $0x1e0] sm:$0xff]
        %v6785 = vld [vmem:[#allocation5 + $0x1e8] sm:$0xff]
        %v6786 = vld [vmem:[#allocation5 + $0x1f0] sm:$0xff]
        %v6787 = vld [vmem:[#allocation5 + $0x1f8] sm:$0xff]
        %v6788 = vld [vmem:[#allocation5 + $0x200] sm:$0xff]
        %v6789 = vld [vmem:[#allocation5 + $0x208] sm:$0xff]
        %v6790 = vld [vmem:[#allocation5 + $0x210] sm:$0xff]
        %v6791 = vld [vmem:[#allocation5 + $0x218] sm:$0xff]
        %v6792 = vld [vmem:[#allocation5 + $0x220] sm:$0xff]
        %v6793 = vld [vmem:[#allocation5 + $0x228] sm:$0xff]
        %v6794 = vld [vmem:[#allocation5 + $0x230] sm:$0xff]
        %v6795 = vld [vmem:[#allocation5 + $0x238] sm:$0xff]
        %v6796 = vld [vmem:[#allocation5 + $0x240] sm:$0xff]
        %v6797 = vld [vmem:[#allocation5 + $0x248] sm:$0xff]
        %v6798 = vld [vmem:[#allocation5 + $0x250] sm:$0xff]
        %v6799 = vld [vmem:[#allocation5 + $0x258] sm:$0xff]
        %v6800 = vld [vmem:[#allocation5 + $0x260] sm:$0xff]
        %v6801 = vld [vmem:[#allocation5 + $0x268] sm:$0xff]
        %v6802 = vld [vmem:[#allocation5 + $0x270] sm:$0xff]
        %v6803 = vld [vmem:[#allocation5 + $0x278] sm:$0xff]
        %v6804 = vld [vmem:[#allocation5 + $0x280] sm:$0xff]
        %v6805 = vld [vmem:[#allocation5 + $0x288] sm:$0xff]
        %v6806 = vld [vmem:[#allocation5 + $0x290] sm:$0xff]
        %v6807 = vld [vmem:[#allocation5 + $0x298] sm:$0xff]
        %v6808 = vld [vmem:[#allocation5 + $0x2a0] sm:$0xff]
        %v6809 = vld [vmem:[#allocation5 + $0x2a8] sm:$0xff]
        %v6810 = vld [vmem:[#allocation5 + $0x2b0] sm:$0xff]
        %v6811 = vld [vmem:[#allocation5 + $0x2b8] sm:$0xff]
        %v6812 = vld [vmem:[#allocation5 + $0x2c0] sm:$0xff]
        %v6813 = vld [vmem:[#allocation5 + $0x2c8] sm:$0xff]
        %v6814 = vld [vmem:[#allocation5 + $0x2d0] sm:$0xff]
        %v6815 = vld [vmem:[#allocation5 + $0x2d8] sm:$0xff]
        %v6816 = vld [vmem:[#allocation5 + $0x2e0] sm:$0xff]
        %v6817 = vld [vmem:[#allocation5 + $0x2e8] sm:$0xff]
        %v6818 = vld [vmem:[#allocation5 + $0x2f0] sm:$0xff]
        %v6819 = vld [vmem:[#allocation5 + $0x2f8] sm:$0xff]
        %v6820 = vld [vmem:[#allocation5 + $0x300] sm:$0xff]
        %v6821 = vld [vmem:[#allocation5 + $0x308] sm:$0xff]
        %v6822 = vld [vmem:[#allocation5 + $0x310] sm:$0xff]
        %v6823 = vld [vmem:[#allocation5 + $0x318] sm:$0xff]
        %v6824 = vld [vmem:[#allocation5 + $0x320] sm:$0xff]
        %v6825 = vld [vmem:[#allocation5 + $0x328] sm:$0xff]
        %v6826 = vld [vmem:[#allocation5 + $0x330] sm:$0xff]
        %v6827 = vld [vmem:[#allocation5 + $0x338] sm:$0xff]
        %v6828 = vld [vmem:[#allocation5 + $0x340] sm:$0xff]
        %v6829 = vld [vmem:[#allocation5 + $0x348] sm:$0xff]
        %v6830 = vld [vmem:[#allocation5 + $0x350] sm:$0xff]
        %v6831 = vld [vmem:[#allocation5 + $0x358] sm:$0xff]
        %v6832 = vld [vmem:[#allocation5 + $0x360] sm:$0xff]
        %v6833 = vld [vmem:[#allocation5 + $0x368] sm:$0xff]
        %v6834 = vld [vmem:[#allocation5 + $0x370] sm:$0xff]
        %v6835 = vld [vmem:[#allocation5 + $0x378] sm:$0xff]
        %v6836 = vld [vmem:[#allocation5 + $0x380] sm:$0xff]
        %v6837 = vld [vmem:[#allocation5 + $0x388] sm:$0xff]
        %v6838 = vld [vmem:[#allocation5 + $0x390] sm:$0xff]
        %v6839 = vld [vmem:[#allocation5 + $0x398] sm:$0xff]
        %v6840 = vld [vmem:[#allocation5 + $0x3a0] sm:$0xff]
        %v6841 = vld [vmem:[#allocation5 + $0x3a8] sm:$0xff]
        %v6842 = vld [vmem:[#allocation5 + $0x3b0] sm:$0xff]
        %v6843 = vld [vmem:[#allocation5 + $0x3b8] sm:$0xff]
        %v6844 = vld [vmem:[#allocation5 + $0x3c0] sm:$0xff]
        %v6845 = vld [vmem:[#allocation5 + $0x3c8] sm:$0xff]
        %v6846 = vld [vmem:[#allocation5 + $0x3d0] sm:$0xff]
        %v6847 = vld [vmem:[#allocation5 + $0x3d8] sm:$0xff]
        %v6848 = vld [vmem:[#allocation5 + $0x3e0] sm:$0xff]
        %v6849 = vld [vmem:[#allocation5 + $0x3e8] sm:$0xff]
        %v6850 = vld [vmem:[#allocation5 + $0x3f0] sm:$0xff]
        %v6851 = vld [vmem:[#allocation5 + $0x3f8] sm:$0xff]
        %v6852 = vld [vmem:[#allocation5 + $0x400] sm:$0xff]
        %v6853 = vld [vmem:[#allocation5 + $0x408] sm:$0xff]
        %v6854 = vld [vmem:[#allocation5 + $0x410] sm:$0xff]
        %v6855 = vld [vmem:[#allocation5 + $0x418] sm:$0xff]
        %v6856 = vld [vmem:[#allocation5 + $0x420] sm:$0xff]
        %v6857 = vld [vmem:[#allocation5 + $0x428] sm:$0xff]
        %v6858 = vld [vmem:[#allocation5 + $0x430] sm:$0xff]
        %v6859 = vld [vmem:[#allocation5 + $0x438] sm:$0xff]
        %v6860 = vld [vmem:[#allocation5 + $0x440] sm:$0xff]
        %v6861 = vld [vmem:[#allocation5 + $0x448] sm:$0xff]
        %v6862 = vld [vmem:[#allocation5 + $0x450] sm:$0xff]
        %v6863 = vld [vmem:[#allocation5 + $0x458] sm:$0xff]
        %v6864 = vld [vmem:[#allocation5 + $0x460] sm:$0xff]
        %v6865 = vld [vmem:[#allocation5 + $0x468] sm:$0xff]
        %v6866 = vld [vmem:[#allocation5 + $0x470] sm:$0xff]
        %v6867 = vld [vmem:[#allocation5 + $0x478] sm:$0xff]
        %v6868 = vld [vmem:[%s4] sm:$0xf]
        %v6869 = vld [vmem:[%s4 + $0x4] sm:$0xf]
        %v6870 = vld [vmem:[%s4 + $0x8] sm:$0xf]
        %v6871 = vld [vmem:[%s4 + $0xc] sm:$0xf]
        %v6872 = vld [vmem:[%s4 + $0x10] sm:$0xf]
        %v6873 = vld [vmem:[%s4 + $0x14] sm:$0xf]
        %v6874 = vld [vmem:[%s4 + $0x18] sm:$0xf]
        %v6875 = vld [vmem:[%s4 + $0x1c] sm:$0xf]
        %v6876 = vld [vmem:[%s4 + $0x20] sm:$0xf]
        %v6877 = vld [vmem:[%s4 + $0x24] sm:$0xf]
        %v6878 = vld [vmem:[%s4 + $0x28] sm:$0xf]
        %v6879 = vld [vmem:[%s4 + $0x2c] sm:$0xf]
        %v6880 = vld [vmem:[%s4 + $0x30] sm:$0xf]
        %v6881 = vld [vmem:[%s4 + $0x34] sm:$0xf]
        %v6882 = vld [vmem:[%s4 + $0x38] sm:$0xf]
        %v6883 = vld [vmem:[%s4 + $0x3c] sm:$0xf]
        %v6884 = vld [vmem:[%s4 + $0x40] sm:$0xf]
        %v6885 = vld [vmem:[%s4 + $0x44] sm:$0xf]
        %v6886 = vld [vmem:[%s4 + $0x48] sm:$0xf]
        %v6887 = vld [vmem:[%s4 + $0x4c] sm:$0xf]
        %v6888 = vld [vmem:[%s4 + $0x50] sm:$0xf]
        %v6889 = vld [vmem:[%s4 + $0x54] sm:$0xf]
        %v6890 = vld [vmem:[%s4 + $0x58] sm:$0xf]
        %v6891 = vld [vmem:[%s4 + $0x5c] sm:$0xf]
        %v6892 = vld [vmem:[%s4 + $0x60] sm:$0xf]
        %v6893 = vld [vmem:[%s4 + $0x64] sm:$0xf]
        %v6894 = vld [vmem:[%s4 + $0x68] sm:$0xf]
        %v6895 = vld [vmem:[%s4 + $0x6c] sm:$0xf]
        %v6896 = vld [vmem:[%s4 + $0x70] sm:$0xf]
        %v6897 = vld [vmem:[%s4 + $0x74] sm:$0xf]
        %v6898 = vld [vmem:[%s4 + $0x78] sm:$0xf]
        %v6899 = vld [vmem:[%s4 + $0x7c] sm:$0xf]
        %v6900 = vld [vmem:[%s4 + $0x80] sm:$0xf]
        %v6901 = vld [vmem:[%s4 + $0x84] sm:$0xf]
        %v6902 = vld [vmem:[%s4 + $0x88] sm:$0xf]
        %v6903 = vld [vmem:[%s4 + $0x8c] sm:$0xf]
        %v6904 = vld [vmem:[%s4 + $0x90] sm:$0xf]
        %v6905 = vld [vmem:[%s4 + $0x94] sm:$0xf]
        %v6906 = vld [vmem:[%s4 + $0x98] sm:$0xf]
        %v6907 = vld [vmem:[%s4 + $0x9c] sm:$0xf]
        %v6908 = vld [vmem:[%s4 + $0xa0] sm:$0xf]
        %v6909 = vld [vmem:[%s4 + $0xa4] sm:$0xf]
        %v6910 = vld [vmem:[%s4 + $0xa8] sm:$0xf]
        %v6911 = vld [vmem:[%s4 + $0xac] sm:$0xf]
        %v6912 = vld [vmem:[%s4 + $0xb0] sm:$0xf]
        %v6913 = vld [vmem:[%s4 + $0xb4] sm:$0xf]
        %v6914 = vld [vmem:[%s4 + $0xb8] sm:$0xf]
        %v6915 = vld [vmem:[%s4 + $0xbc] sm:$0xf]
        %v6916 = vld [vmem:[%s4 + $0xc0] sm:$0xf]
        %v6917 = vld [vmem:[%s4 + $0xc4] sm:$0xf]
        %v6918 = vld [vmem:[%s4 + $0xc8] sm:$0xf]
        %v6919 = vld [vmem:[%s4 + $0xcc] sm:$0xf]
        %v6920 = vld [vmem:[%s4 + $0xd0] sm:$0xf]
        %v6921 = vld [vmem:[%s4 + $0xd4] sm:$0xf]
        %v6922 = vld [vmem:[%s4 + $0xd8] sm:$0xf]
        %v6923 = vld [vmem:[%s4 + $0xdc] sm:$0xf]
        %v6924 = vld [vmem:[%s4 + $0xe0] sm:$0xf]
        %v6925 = vld [vmem:[%s4 + $0xe4] sm:$0xf]
        %v6926 = vld [vmem:[%s4 + $0xe8] sm:$0xf]
        %v6927 = vld [vmem:[%s4 + $0xec] sm:$0xf]
        %v6928 = vld [vmem:[%s4 + $0xf0] sm:$0xf]
        %v6929 = vld [vmem:[%s4 + $0xf4] sm:$0xf]
        %v6930 = vld [vmem:[%s4 + $0xf8] sm:$0xf]
        %v6931 = vld [vmem:[%s4 + $0xfc] sm:$0xf]
        %v6932 = vld [vmem:[%s4 + $0x100] sm:$0xf]
        %v6933 = vld [vmem:[%s4 + $0x104] sm:$0xf]
        %v6934 = vld [vmem:[%s4 + $0x108] sm:$0xf]
        %v6935 = vld [vmem:[%s4 + $0x10c] sm:$0xf]
        %v6936 = vld [vmem:[%s4 + $0x110] sm:$0xf]
        %v6937 = vld [vmem:[%s4 + $0x114] sm:$0xf]
        %v6938 = vld [vmem:[%s4 + $0x118] sm:$0xf]
        %v6939 = vld [vmem:[%s4 + $0x11c] sm:$0xf]
        %v6940 = vld [vmem:[%s4 + $0x120] sm:$0xf]
        %v6941 = vld [vmem:[%s4 + $0x124] sm:$0xf]
        %v6942 = vld [vmem:[%s4 + $0x128] sm:$0xf]
        %v6943 = vld [vmem:[%s4 + $0x12c] sm:$0xf]
        %v6944 = vld [vmem:[%s4 + $0x130] sm:$0xf]
        %v6945 = vld [vmem:[%s4 + $0x134] sm:$0xf]
        %v6946 = vld [vmem:[%s4 + $0x138] sm:$0xf]
        %v6947 = vld [vmem:[%s4 + $0x13c] sm:$0xf]
        %v6948 = vld [vmem:[%s4 + $0x140] sm:$0xf]
        %v6949 = vld [vmem:[%s4 + $0x144] sm:$0xf]
        %v6950 = vld [vmem:[%s4 + $0x148] sm:$0xf]
        %v6951 = vld [vmem:[%s4 + $0x14c] sm:$0xf]
        %v6952 = vld [vmem:[%s4 + $0x150] sm:$0xf]
        %v6953 = vld [vmem:[%s4 + $0x154] sm:$0xf]
        %v6954 = vld [vmem:[%s4 + $0x158] sm:$0xf]
        %v6955 = vld [vmem:[%s4 + $0x15c] sm:$0xf]
        %v6956 = vld [vmem:[%s4 + $0x160] sm:$0xf]
        %v6957 = vld [vmem:[%s4 + $0x164] sm:$0xf]
        %v6958 = vld [vmem:[%s4 + $0x168] sm:$0xf]
        %v6959 = vld [vmem:[%s4 + $0x16c] sm:$0xf]
        %v6960 = vld [vmem:[%s4 + $0x170] sm:$0xf]
        %v6961 = vld [vmem:[%s4 + $0x174] sm:$0xf]
        %v6962 = vld [vmem:[%s4 + $0x178] sm:$0xf]
        %v6963 = vld [vmem:[%s4 + $0x17c] sm:$0xf]
        %v6964 = vld [vmem:[%s4 + $0x180] sm:$0xf]
        %v6965 = vld [vmem:[%s4 + $0x184] sm:$0xf]
        %v6966 = vld [vmem:[%s4 + $0x188] sm:$0xf]
        %v6967 = vld [vmem:[%s4 + $0x18c] sm:$0xf]
        %v6968 = vld [vmem:[%s4 + $0x190] sm:$0xf]
        %v6969 = vld [vmem:[%s4 + $0x194] sm:$0xf]
        %v6970 = vld [vmem:[%s4 + $0x198] sm:$0xf]
        %v6971 = vld [vmem:[%s4 + $0x19c] sm:$0xf]
        %v6972 = vld [vmem:[%s4 + $0x1a0] sm:$0xf]
        %v6973 = vld [vmem:[%s4 + $0x1a4] sm:$0xf]
        %v6974 = vld [vmem:[%s4 + $0x1a8] sm:$0xf]
        %v6975 = vld [vmem:[%s4 + $0x1ac] sm:$0xf]
        %v6976 = vld [vmem:[%s4 + $0x1b0] sm:$0xf]
        %v6977 = vld [vmem:[%s4 + $0x1b4] sm:$0xf]
        %v6978 = vld [vmem:[%s4 + $0x1b8] sm:$0xf]
        %v6979 = vld [vmem:[%s4 + $0x1bc] sm:$0xf]
        %v6980 = vld [vmem:[%s4 + $0x1c0] sm:$0xf]
        %v6981 = vld [vmem:[%s4 + $0x1c4] sm:$0xf]
        %v6982 = vld [vmem:[%s4 + $0x1c8] sm:$0xf]
        %v6983 = vld [vmem:[%s4 + $0x1cc] sm:$0xf]
        %v6984 = vld [vmem:[%s4 + $0x1d0] sm:$0xf]
        %v6985 = vld [vmem:[%s4 + $0x1d4] sm:$0xf]
        %v6986 = vld [vmem:[%s4 + $0x1d8] sm:$0xf]
        %v6987 = vld [vmem:[%s4 + $0x1dc] sm:$0xf]
        %v6988 = vld [vmem:[%s4 + $0x1e0] sm:$0xf]
        %v6989 = vld [vmem:[%s4 + $0x1e4] sm:$0xf]
        %v6990 = vld [vmem:[%s4 + $0x1e8] sm:$0xf]
        %v6991 = vld [vmem:[%s4 + $0x1ec] sm:$0xf]
        %v6992 = vld [vmem:[%s4 + $0x1f0] sm:$0xf]
        %v6993 = vld [vmem:[%s4 + $0x1f4] sm:$0xf]
        %v6994 = vld [vmem:[%s4 + $0x1f8] sm:$0xf]
        %v6995 = vld [vmem:[%s4 + $0x1fc] sm:$0xf]
        %v6996 = vld [vmem:[%s4 + $0x200] sm:$0xf]
        %v6997 = vld [vmem:[%s4 + $0x204] sm:$0xf]
        %v6998 = vld [vmem:[%s4 + $0x208] sm:$0xf]
        %v6999 = vld [vmem:[%s4 + $0x20c] sm:$0xf]
        %v7000 = vld [vmem:[%s4 + $0x210] sm:$0xf]
        %v7001 = vld [vmem:[%s4 + $0x214] sm:$0xf]
        %v7002 = vld [vmem:[%s4 + $0x218] sm:$0xf]
        %v7003 = vld [vmem:[%s4 + $0x21c] sm:$0xf]
        %v7004 = vld [vmem:[%s4 + $0x220] sm:$0xf]
        %v7005 = vld [vmem:[%s4 + $0x224] sm:$0xf]
        %v7006 = vld [vmem:[%s4 + $0x228] sm:$0xf]
        %v7007 = vld [vmem:[%s4 + $0x22c] sm:$0xf]
        %v7008 = vld [vmem:[%s4 + $0x230] sm:$0xf]
        %v7009 = vld [vmem:[%s4 + $0x234] sm:$0xf]
        %v7010 = vld [vmem:[%s4 + $0x238] sm:$0xf]
        %v7011 = vld [vmem:[%s4 + $0x23c] sm:$0xf]
        %v7012 = vld [vmem:[%s5] sm:$0x1]
        %v7014 = vlaneseq
        %v7015 = vshrl.u32 %v7014, 7
        %v7016 = vsub.s32 0, %v7015
        %v7017 = vrot.slane %v7012, %v7016
        %v7163 = vunpack.c.l.b16 %v6868
        %v7164 = vunpack.c.l.b16 %v6869
        %v7165 = vunpack.c.l.b16 %v6870
        %v7166 = vunpack.c.l.b16 %v6871
        %v7167 = vunpack.c.l.b16 %v6872
        %v7168 = vunpack.c.l.b16 %v6873
        %v7169 = vunpack.c.l.b16 %v6874
        %v7170 = vunpack.c.l.b16 %v6875
        %v7171 = vunpack.c.l.b16 %v6876
        %v7172 = vunpack.c.l.b16 %v6877
        %v7173 = vunpack.c.l.b16 %v6878
        %v7174 = vunpack.c.l.b16 %v6879
        %v7175 = vunpack.c.l.b16 %v6880
        %v7176 = vunpack.c.l.b16 %v6881
        %v7177 = vunpack.c.l.b16 %v6882
        %v7178 = vunpack.c.l.b16 %v6883
        %v7179 = vunpack.c.l.b16 %v6884
        %v7180 = vunpack.c.l.b16 %v6885
        %v7181 = vunpack.c.l.b16 %v6886
        %v7182 = vunpack.c.l.b16 %v6887
        %v7183 = vunpack.c.l.b16 %v6888
        %v7184 = vunpack.c.l.b16 %v6889
        %v7185 = vunpack.c.l.b16 %v6890
        %v7186 = vunpack.c.l.b16 %v6891
        %v7187 = vunpack.c.l.b16 %v6892
        %v7188 = vunpack.c.l.b16 %v6893
        %v7189 = vunpack.c.l.b16 %v6894
        %v7190 = vunpack.c.l.b16 %v6895
        %v7191 = vunpack.c.l.b16 %v6896
        %v7192 = vunpack.c.l.b16 %v6897
        %v7193 = vunpack.c.l.b16 %v6898
        %v7194 = vunpack.c.l.b16 %v6899
        %v7195 = vunpack.c.l.b16 %v6900
        %v7196 = vunpack.c.l.b16 %v6901
        %v7197 = vunpack.c.l.b16 %v6902
        %v7198 = vunpack.c.l.b16 %v6903
        %v7199 = vunpack.c.l.b16 %v6904
        %v7200 = vunpack.c.l.b16 %v6905
        %v7201 = vunpack.c.l.b16 %v6906
        %v7202 = vunpack.c.l.b16 %v6907
        %v7203 = vunpack.c.l.b16 %v6908
        %v7204 = vunpack.c.l.b16 %v6909
        %v7205 = vunpack.c.l.b16 %v6910
        %v7206 = vunpack.c.l.b16 %v6911
        %v7207 = vunpack.c.l.b16 %v6912
        %v7208 = vunpack.c.l.b16 %v6913
        %v7209 = vunpack.c.l.b16 %v6914
        %v7210 = vunpack.c.l.b16 %v6915
        %v7211 = vunpack.c.l.b16 %v6916
        %v7212 = vunpack.c.l.b16 %v6917
        %v7213 = vunpack.c.l.b16 %v6918
        %v7214 = vunpack.c.l.b16 %v6919
        %v7215 = vunpack.c.l.b16 %v6920
        %v7216 = vunpack.c.l.b16 %v6921
        %v7217 = vunpack.c.l.b16 %v6922
        %v7218 = vunpack.c.l.b16 %v6923
        %v7219 = vunpack.c.l.b16 %v6924
        %v7220 = vunpack.c.l.b16 %v6925
        %v7221 = vunpack.c.l.b16 %v6926
        %v7222 = vunpack.c.l.b16 %v6927
        %v7223 = vunpack.c.l.b16 %v6928
        %v7224 = vunpack.c.l.b16 %v6929
        %v7225 = vunpack.c.l.b16 %v6930
        %v7226 = vunpack.c.l.b16 %v6931
        %v7227 = vunpack.c.l.b16 %v6932
        %v7228 = vunpack.c.l.b16 %v6933
        %v7229 = vunpack.c.l.b16 %v6934
        %v7230 = vunpack.c.l.b16 %v6935
        %v7231 = vunpack.c.l.b16 %v6936
        %v7232 = vunpack.c.l.b16 %v6937
        %v7233 = vunpack.c.l.b16 %v6938
        %v7234 = vunpack.c.l.b16 %v6939
        %v7235 = vunpack.c.l.b16 %v6940
        %v7236 = vunpack.c.l.b16 %v6941
        %v7237 = vunpack.c.l.b16 %v6942
        %v7238 = vunpack.c.l.b16 %v6943
        %v7239 = vunpack.c.l.b16 %v6944
        %v7240 = vunpack.c.l.b16 %v6945
        %v7241 = vunpack.c.l.b16 %v6946
        %v7242 = vunpack.c.l.b16 %v6947
        %v7243 = vunpack.c.l.b16 %v6948
        %v7244 = vunpack.c.l.b16 %v6949
        %v7245 = vunpack.c.l.b16 %v6950
        %v7246 = vunpack.c.l.b16 %v6951
        %v7247 = vunpack.c.l.b16 %v6952
        %v7248 = vunpack.c.l.b16 %v6953
        %v7249 = vunpack.c.l.b16 %v6954
        %v7250 = vunpack.c.l.b16 %v6955
        %v7251 = vunpack.c.l.b16 %v6956
        %v7252 = vunpack.c.l.b16 %v6957
        %v7253 = vunpack.c.l.b16 %v6958
        %v7254 = vunpack.c.l.b16 %v6959
        %v7255 = vunpack.c.l.b16 %v6960
        %v7256 = vunpack.c.l.b16 %v6961
        %v7257 = vunpack.c.l.b16 %v6962
        %v7258 = vunpack.c.l.b16 %v6963
        %v7259 = vunpack.c.l.b16 %v6964
        %v7260 = vunpack.c.l.b16 %v6965
        %v7261 = vunpack.c.l.b16 %v6966
        %v7262 = vunpack.c.l.b16 %v6967
        %v7263 = vunpack.c.l.b16 %v6968
        %v7264 = vunpack.c.l.b16 %v6969
        %v7265 = vunpack.c.l.b16 %v6970
        %v7266 = vunpack.c.l.b16 %v6971
        %v7267 = vunpack.c.l.b16 %v6972
        %v7268 = vunpack.c.l.b16 %v6973
        %v7269 = vunpack.c.l.b16 %v6974
        %v7270 = vunpack.c.l.b16 %v6975
        %v7271 = vunpack.c.l.b16 %v6976
        %v7272 = vunpack.c.l.b16 %v6977
        %v7273 = vunpack.c.l.b16 %v6978
        %v7274 = vunpack.c.l.b16 %v6979
        %v7275 = vunpack.c.l.b16 %v6980
        %v7276 = vunpack.c.l.b16 %v6981
        %v7277 = vunpack.c.l.b16 %v6982
        %v7278 = vunpack.c.l.b16 %v6983
        %v7279 = vunpack.c.l.b16 %v6984
        %v7280 = vunpack.c.l.b16 %v6985
        %v7281 = vunpack.c.l.b16 %v6986
        %v7282 = vunpack.c.l.b16 %v6987
        %v7283 = vunpack.c.l.b16 %v6988
        %v7284 = vunpack.c.l.b16 %v6989
        %v7285 = vunpack.c.l.b16 %v6990
        %v7286 = vunpack.c.l.b16 %v6991
        %v7287 = vunpack.c.l.b16 %v6992
        %v7288 = vunpack.c.l.b16 %v6993
        %v7289 = vunpack.c.l.b16 %v6994
        %v7290 = vunpack.c.l.b16 %v6995
        %v7291 = vunpack.c.l.b16 %v6996
        %v7292 = vunpack.c.l.b16 %v6997
        %v7293 = vunpack.c.l.b16 %v6998
        %v7294 = vunpack.c.l.b16 %v6999
        %v7295 = vunpack.c.l.b16 %v7000
        %v7296 = vunpack.c.l.b16 %v7001
        %v7297 = vunpack.c.l.b16 %v7002
        %v7298 = vunpack.c.l.b16 %v7003
        %v7299 = vunpack.c.l.b16 %v7004
        %v7300 = vunpack.c.l.b16 %v7005
        %v7301 = vunpack.c.l.b16 %v7006
        %v7302 = vunpack.c.l.b16 %v7007
        %v7303 = vunpack.c.l.b16 %v7008
        %v7304 = vunpack.c.l.b16 %v7009
        %v7305 = vunpack.c.l.b16 %v7010
        %v7306 = vunpack.c.l.b16 %v7011
        %v7307 = vpack.c.b16 %v7164, %v7163
        %v7308 = vpack.c.b16 %v7166, %v7165
        %v7309 = vpack.c.b16 %v7168, %v7167
        %v7310 = vpack.c.b16 %v7170, %v7169
        %v7311 = vpack.c.b16 %v7172, %v7171
        %v7312 = vpack.c.b16 %v7174, %v7173
        %v7313 = vpack.c.b16 %v7176, %v7175
        %v7314 = vpack.c.b16 %v7178, %v7177
        %v7315 = vpack.c.b16 %v7180, %v7179
        %v7316 = vpack.c.b16 %v7182, %v7181
        %v7317 = vpack.c.b16 %v7184, %v7183
        %v7318 = vpack.c.b16 %v7186, %v7185
        %v7319 = vpack.c.b16 %v7188, %v7187
        %v7320 = vpack.c.b16 %v7190, %v7189
        %v7321 = vpack.c.b16 %v7192, %v7191
        %v7322 = vpack.c.b16 %v7194, %v7193
        %v7323 = vpack.c.b16 %v7196, %v7195
        %v7324 = vpack.c.b16 %v7198, %v7197
        %v7325 = vpack.c.b16 %v7200, %v7199
        %v7326 = vpack.c.b16 %v7202, %v7201
        %v7327 = vpack.c.b16 %v7204, %v7203
        %v7328 = vpack.c.b16 %v7206, %v7205
        %v7329 = vpack.c.b16 %v7208, %v7207
        %v7330 = vpack.c.b16 %v7210, %v7209
        %v7331 = vpack.c.b16 %v7212, %v7211
        %v7332 = vpack.c.b16 %v7214, %v7213
        %v7333 = vpack.c.b16 %v7216, %v7215
        %v7334 = vpack.c.b16 %v7218, %v7217
        %v7335 = vpack.c.b16 %v7220, %v7219
        %v7336 = vpack.c.b16 %v7222, %v7221
        %v7337 = vpack.c.b16 %v7224, %v7223
        %v7338 = vpack.c.b16 %v7226, %v7225
        %v7339 = vpack.c.b16 %v7228, %v7227
        %v7340 = vpack.c.b16 %v7230, %v7229
        %v7341 = vpack.c.b16 %v7232, %v7231
        %v7342 = vpack.c.b16 %v7234, %v7233
        %v7343 = vpack.c.b16 %v7236, %v7235
        %v7344 = vpack.c.b16 %v7238, %v7237
        %v7345 = vpack.c.b16 %v7240, %v7239
        %v7346 = vpack.c.b16 %v7242, %v7241
        %v7347 = vpack.c.b16 %v7244, %v7243
        %v7348 = vpack.c.b16 %v7246, %v7245
        %v7349 = vpack.c.b16 %v7248, %v7247
        %v7350 = vpack.c.b16 %v7250, %v7249
        %v7351 = vpack.c.b16 %v7252, %v7251
        %v7352 = vpack.c.b16 %v7254, %v7253
        %v7353 = vpack.c.b16 %v7256, %v7255
        %v7354 = vpack.c.b16 %v7258, %v7257
        %v7355 = vpack.c.b16 %v7260, %v7259
        %v7356 = vpack.c.b16 %v7262, %v7261
        %v7357 = vpack.c.b16 %v7264, %v7263
        %v7358 = vpack.c.b16 %v7266, %v7265
        %v7359 = vpack.c.b16 %v7268, %v7267
        %v7360 = vpack.c.b16 %v7270, %v7269
        %v7361 = vpack.c.b16 %v7272, %v7271
        %v7362 = vpack.c.b16 %v7274, %v7273
        %v7363 = vpack.c.b16 %v7276, %v7275
        %v7364 = vpack.c.b16 %v7278, %v7277
        %v7365 = vpack.c.b16 %v7280, %v7279
        %v7366 = vpack.c.b16 %v7282, %v7281
        %v7367 = vpack.c.b16 %v7284, %v7283
        %v7368 = vpack.c.b16 %v7286, %v7285
        %v7369 = vpack.c.b16 %v7288, %v7287
        %v7370 = vpack.c.b16 %v7290, %v7289
        %v7371 = vpack.c.b16 %v7292, %v7291
        %v7372 = vpack.c.b16 %v7294, %v7293
        %v7373 = vpack.c.b16 %v7296, %v7295
        %v7374 = vpack.c.b16 %v7298, %v7297
        %v7375 = vpack.c.b16 %v7300, %v7299
        %v7376 = vpack.c.b16 %v7302, %v7301
        %v7377 = vpack.c.b16 %v7304, %v7303
        %v7378 = vpack.c.b16 %v7306, %v7305
        %7451 = vmatprep.subr.bf16.mxu0 0
        %7452 = vmatpush1.bf16.msra.mxu0 %v7307
        %7453 = vmatprep.subr.bf16.mxu0 0
        %7454 = vmatpush1.bf16.msra.mxu0 %v7308
        %7455 = vmatprep.subr.bf16.mxu0 0
        %7456 = vmatpush1.bf16.msra.mxu0 %v7309
        %7457 = vmatprep.subr.bf16.mxu0 0
        %7458 = vmatpush1.bf16.msra.mxu0 %v7310
        %7459 = vmatprep.subr.bf16.mxu0 0
        %7460 = vmatpush1.bf16.msra.mxu0 %v7311
        %7461 = vmatprep.subr.bf16.mxu0 0
        %7462 = vmatpush1.bf16.msra.mxu0 %v7312
        %7463 = vmatprep.subr.bf16.mxu0 0
        %7464 = vmatpush1.bf16.msra.mxu0 %v7313
        %7465 = vmatprep.subr.bf16.mxu0 0
        %7466 = vmatpush1.bf16.msra.mxu0 %v7314
        %7467 = vmatprep.subr.bf16.mxu0 0
        %7468 = vmatpush1.bf16.msra.mxu0 %v7315
        %7469 = vmatprep.subr.bf16.mxu0 0
        %7470 = vmatpush1.bf16.msra.mxu0 %v7316
        %7471 = vmatprep.subr.bf16.mxu0 0
        %7472 = vmatpush1.bf16.msra.mxu0 %v7317
        %7473 = vmatprep.subr.bf16.mxu0 0
        %7474 = vmatpush1.bf16.msra.mxu0 %v7318
        %7475 = vmatprep.subr.bf16.mxu0 0
        %7476 = vmatpush1.bf16.msra.mxu0 %v7319
        %7477 = vmatprep.subr.bf16.mxu0 0
        %7478 = vmatpush1.bf16.msra.mxu0 %v7320
        %7479 = vmatprep.subr.bf16.mxu0 0
        %7480 = vmatpush1.bf16.msra.mxu0 %v7321
        %7481 = vmatprep.subr.bf16.mxu0 0
        %7482 = vmatpush1.bf16.msra.mxu0 %v7322
        %7483 = vmatprep.mubr.bf16.mxu0 %v6725
        %7484 = vmatmul.mubr.bf16.gmra.mrb[0].mxu0 %v6724
        %v7485 = vpop.f32.mrb[0].mxu0
        %v7486 = vadd.f32 %v7017, %v7485
        %v7487 = vpop.f32.mrb[0].mxu0
        %v7488 = vpop.f32.mrb[0].mxu0
        %v7489 = vadd.f32 %v7017, %v7488
        %v7490 = vpop.f32.mrb[0].mxu0
        %7491 = vmatprep.mubr.bf16.mxu0 %v6734
        %7492 = vmatmul.mubr.bf16.gmra.mrb[0].mxu0 %v6733
        %v7493 = vpop.f32.mrb[0].mxu0
        %v7494 = vadd.f32 %v7017, %v7493
        %v7495 = vpop.f32.mrb[0].mxu0
        %v7496 = vpop.f32.mrb[0].mxu0
        %v7497 = vadd.f32 %v7017, %v7496
        %v7498 = vpop.f32.mrb[0].mxu0
        %7499 = vmatprep.mubr.bf16.mxu0 %v6743
        %7500 = vmatmul.mubr.bf16.gmra.mrb[0].mxu0 %v6742
        %v7501 = vpop.f32.mrb[0].mxu0
        %v7502 = vadd.f32 %v7017, %v7501
        %v7503 = vpop.f32.mrb[0].mxu0
        %v7504 = vpop.f32.mrb[0].mxu0
        %v7505 = vadd.f32 %v7017, %v7504
        %v7506 = vpop.f32.mrb[0].mxu0
        %7507 = vmatprep.mubr.bf16.mxu0 %v6752
        %7508 = vmatmul.mubr.bf16.gmra.mrb[0].mxu0 %v6751
        %v7509 = vpop.f32.mrb[0].mxu0
        %v7510 = vadd.f32 %v7017, %v7509
        %v7511 = vpop.f32.mrb[0].mxu0
        %v7512 = vpop.f32.mrb[0].mxu0
        %v7513 = vadd.f32 %v7017, %v7512
        %v7514 = vpop.f32.mrb[0].mxu0
        %7515 = vmatprep.mubr.bf16.mxu0 %v6761
        %7516 = vmatmul.mubr.bf16.gmra.mrb[0].mxu0 %v6760
        %v7517 = vpop.f32.mrb[0].mxu0
        %v7518 = vadd.f32 %v7017, %v7517
        %v7519 = vpop.f32.mrb[0].mxu0
        %v7520 = vpop.f32.mrb[0].mxu0
        %v7521 = vadd.f32 %v7017, %v7520
        %v7522 = vpop.f32.mrb[0].mxu0
        %7523 = vmatprep.mubr.bf16.mxu0 %v6770
        %7524 = vmatmul.mubr.bf16.gmra.mrb[0].mxu0 %v6769
        %v7525 = vpop.f32.mrb[0].mxu0
        %v7526 = vadd.f32 %v7017, %v7525
        %v7527 = vpop.f32.mrb[0].mxu0
        %v7528 = vpop.f32.mrb[0].mxu0
        %v7529 = vadd.f32 %v7017, %v7528
        %v7530 = vpop.f32.mrb[0].mxu0
        %7531 = vmatprep.mubr.bf16.mxu0 %v6779
        %7532 = vmatmul.mubr.bf16.gmra.mrb[0].mxu0 %v6778
        %v7533 = vpop.f32.mrb[0].mxu0
        %v7534 = vadd.f32 %v7017, %v7533
        %v7535 = vpop.f32.mrb[0].mxu0
        %v7536 = vpop.f32.mrb[0].mxu0
        %v7537 = vadd.f32 %v7017, %v7536
        %v7538 = vpop.f32.mrb[0].mxu0
        %7539 = vmatprep.mubr.bf16.mxu0 %v6788
        %7540 = vmatmul.mubr.bf16.gmra.mrb[0].mxu0 %v6787
        %v7541 = vpop.f32.mrb[0].mxu0
        %v7542 = vadd.f32 %v7017, %v7541
        %v7543 = vpop.f32.mrb[0].mxu0
        %v7544 = vpop.f32.mrb[0].mxu0
        %v7545 = vadd.f32 %v7017, %v7544
        %v7546 = vpop.f32.mrb[0].mxu0
        %7547 = vmatprep.mubr.bf16.mxu0 %v6797
        %7548 = vmatmul.mubr.bf16.gmra.mrb[0].mxu0 %v6796
        %v7549 = vpop.f32.mrb[0].mxu0
        %v7550 = vadd.f32 %v7017, %v7549
        %v7551 = vpop.f32.mrb[0].mxu0
        %v7552 = vpop.f32.mrb[0].mxu0
        %v7553 = vadd.f32 %v7017, %v7552
        %v7554 = vpop.f32.mrb[0].mxu0
        %7555 = vmatprep.mubr.bf16.mxu0 %v6806
        %7556 = vmatmul.mubr.bf16.gmra.mrb[0].mxu0 %v6805
        %v7557 = vpop.f32.mrb[0].mxu0
        %v7558 = vadd.f32 %v7017, %v7557
        %v7559 = vpop.f32.mrb[0].mxu0
        %v7560 = vpop.f32.mrb[0].mxu0
        %v7561 = vadd.f32 %v7017, %v7560
        %v7562 = vpop.f32.mrb[0].mxu0
        %7563 = vmatprep.mubr.bf16.mxu0 %v6815
        %7564 = vmatmul.mubr.bf16.gmra.mrb[0].mxu0 %v6814
        %v7565 = vpop.f32.mrb[0].mxu0
        %v7566 = vadd.f32 %v7017, %v7565
        %v7567 = vpop.f32.mrb[0].mxu0
        %v7568 = vpop.f32.mrb[0].mxu0
        %v7569 = vadd.f32 %v7017, %v7568
        %v7570 = vpop.f32.mrb[0].mxu0
        %7571 = vmatprep.mubr.bf16.mxu0 %v6824
        %7572 = vmatmul.mubr.bf16.gmra.mrb[0].mxu0 %v6823
        %v7573 = vpop.f32.mrb[0].mxu0
        %v7574 = vadd.f32 %v7017, %v7573
        %v7575 = vpop.f32.mrb[0].mxu0
        %v7576 = vpop.f32.mrb[0].mxu0
        %v7577 = vadd.f32 %v7017, %v7576
        %v7578 = vpop.f32.mrb[0].mxu0
        %7579 = vmatprep.mubr.bf16.mxu0 %v6833
        %7580 = vmatmul.mubr.bf16.gmra.mrb[0].mxu0 %v6832
        %v7581 = vpop.f32.mrb[0].mxu0
        %v7582 = vadd.f32 %v7017, %v7581
        %v7583 = vpop.f32.mrb[0].mxu0
        %v7584 = vpop.f32.mrb[0].mxu0
        %v7585 = vadd.f32 %v7017, %v7584
        %v7586 = vpop.f32.mrb[0].mxu0
        %7587 = vmatprep.mubr.bf16.mxu0 %v6842
        %7588 = vmatmul.mubr.bf16.gmra.mrb[0].mxu0 %v6841
        %v7589 = vpop.f32.mrb[0].mxu0
        %v7590 = vadd.f32 %v7017, %v7589
        %v7591 = vpop.f32.mrb[0].mxu0
        %v7592 = vpop.f32.mrb[0].mxu0
        %v7593 = vadd.f32 %v7017, %v7592
        %v7594 = vpop.f32.mrb[0].mxu0
        %7595 = vmatprep.mubr.bf16.mxu0 %v6851
        %7596 = vmatmul.mubr.bf16.gmra.mrb[0].mxu0 %v6850
        %v7597 = vpop.f32.mrb[0].mxu0
        %v7598 = vadd.f32 %v7017, %v7597
        %v7599 = vpop.f32.mrb[0].mxu0
        %v7600 = vpop.f32.mrb[0].mxu0
        %v7601 = vadd.f32 %v7017, %v7600
        %v7602 = vpop.f32.mrb[0].mxu0
        %7603 = vmatprep.mubr.bf16.mxu0 %v6860
        %7604 = vmatmul.mubr.bf16.gmra.mrb[0].mxu0 %v6859
        %v7605 = vpop.f32.mrb[0].mxu0
        %v7606 = vadd.f32 %v7017, %v7605
        %v7607 = vpop.f32.mrb[0].mxu0
        %v7608 = vpop.f32.mrb[0].mxu0
        %v7609 = vadd.f32 %v7017, %v7608
        %v7610 = vpop.f32.mrb[0].mxu0
        %7611 = vdwg.mxu0
        %7612 = vmatprep.subr.bf16.mxu0 0
        %7613 = vmatpush1.bf16.msra.mxu0 %v7323
        %7614 = vmatprep.subr.bf16.mxu0 0
        %7615 = vmatpush1.bf16.msra.mxu0 %v7324
        %7616 = vmatprep.subr.bf16.mxu0 0
        %7617 = vmatpush1.bf16.msra.mxu0 %v7325
        %7618 = vmatprep.subr.bf16.mxu0 0
        %7619 = vmatpush1.bf16.msra.mxu0 %v7326
        %7620 = vmatprep.subr.bf16.mxu0 0
        %7621 = vmatpush1.bf16.msra.mxu0 %v7327
        %7622 = vmatprep.subr.bf16.mxu0 0
        %7623 = vmatpush1.bf16.msra.mxu0 %v7328
        %7624 = vmatprep.subr.bf16.mxu0 0
        %7625 = vmatpush1.bf16.msra.mxu0 %v7329
        %7626 = vmatprep.subr.bf16.mxu0 0
        %7627 = vmatpush1.bf16.msra.mxu0 %v7330
        %7628 = vmatprep.subr.bf16.mxu0 0
        %7629 = vmatpush1.bf16.msra.mxu0 %v7331
        %7630 = vmatprep.subr.bf16.mxu0 0
        %7631 = vmatpush1.bf16.msra.mxu0 %v7332
        %7632 = vmatprep.subr.bf16.mxu0 0
        %7633 = vmatpush1.bf16.msra.mxu0 %v7333
        %7634 = vmatprep.subr.bf16.mxu0 0
        %7635 = vmatpush1.bf16.msra.mxu0 %v7334
        %7636 = vmatprep.subr.bf16.mxu0 0
        %7637 = vmatpush1.bf16.msra.mxu0 %v7335
        %7638 = vmatprep.subr.bf16.mxu0 0
        %7639 = vmatpush1.bf16.msra.mxu0 %v7336
        %7640 = vmatprep.subr.bf16.mxu0 0
        %7641 = vmatpush1.bf16.msra.mxu0 %v7337
        %7642 = vmatprep.subr.bf16.mxu0 0
        %7643 = vmatpush1.bf16.msra.mxu0 %v7338
        %7644 = vmatprep.mubr.bf16.mxu0 %v6727
        %7645 = vmatmul.mubr.bf16.gmra.mrb[0].mxu0 %v6726
        %v7646 = vpop.f32.mrb[0].mxu0
        %v7647 = vadd.f32 %v7486, %v7646
        %v7648 = vpop.f32.mrb[0].mxu0
        %v7649 = vpop.f32.mrb[0].mxu0
        %v7650 = vadd.f32 %v7489, %v7649
        %v7651 = vpop.f32.mrb[0].mxu0
        %7652 = vmatprep.mubr.bf16.mxu0 %v6736
        %7653 = vmatmul.mubr.bf16.gmra.mrb[0].mxu0 %v6735
        %v7654 = vpop.f32.mrb[0].mxu0
        %v7655 = vadd.f32 %v7494, %v7654
        %v7656 = vpop.f32.mrb[0].mxu0
        %v7657 = vpop.f32.mrb[0].mxu0
        %v7658 = vadd.f32 %v7497, %v7657
        %v7659 = vpop.f32.mrb[0].mxu0
        %7660 = vmatprep.mubr.bf16.mxu0 %v6745
        %7661 = vmatmul.mubr.bf16.gmra.mrb[0].mxu0 %v6744
        %v7662 = vpop.f32.mrb[0].mxu0
        %v7663 = vadd.f32 %v7502, %v7662
        %v7664 = vpop.f32.mrb[0].mxu0
        %v7665 = vpop.f32.mrb[0].mxu0
        %v7666 = vadd.f32 %v7505, %v7665
        %v7667 = vpop.f32.mrb[0].mxu0
        %7668 = vmatprep.mubr.bf16.mxu0 %v6754
        %7669 = vmatmul.mubr.bf16.gmra.mrb[0].mxu0 %v6753
        %v7670 = vpop.f32.mrb[0].mxu0
        %v7671 = vadd.f32 %v7510, %v7670
        %v7672 = vpop.f32.mrb[0].mxu0
        %v7673 = vpop.f32.mrb[0].mxu0
        %v7674 = vadd.f32 %v7513, %v7673
        %v7675 = vpop.f32.mrb[0].mxu0
        %7676 = vmatprep.mubr.bf16.mxu0 %v6763
        %7677 = vmatmul.mubr.bf16.gmra.mrb[0].mxu0 %v6762
        %v7678 = vpop.f32.mrb[0].mxu0
        %v7679 = vadd.f32 %v7518, %v7678
        %v7680 = vpop.f32.mrb[0].mxu0
        %v7681 = vpop.f32.mrb[0].mxu0
        %v7682 = vadd.f32 %v7521, %v7681
        %v7683 = vpop.f32.mrb[0].mxu0
        %7684 = vmatprep.mubr.bf16.mxu0 %v6772
        %7685 = vmatmul.mubr.bf16.gmra.mrb[0].mxu0 %v6771
        %v7686 = vpop.f32.mrb[0].mxu0
        %v7687 = vadd.f32 %v7526, %v7686
        %v7688 = vpop.f32.mrb[0].mxu0
        %v7689 = vpop.f32.mrb[0].mxu0
        %v7690 = vadd.f32 %v7529, %v7689
        %v7691 = vpop.f32.mrb[0].mxu0
        %7692 = vmatprep.mubr.bf16.mxu0 %v6781
        %7693 = vmatmul.mubr.bf16.gmra.mrb[0].mxu0 %v6780
        %v7694 = vpop.f32.mrb[0].mxu0
        %v7695 = vadd.f32 %v7534, %v7694
        %v7696 = vpop.f32.mrb[0].mxu0
        %v7697 = vpop.f32.mrb[0].mxu0
        %v7698 = vadd.f32 %v7537, %v7697
        %v7699 = vpop.f32.mrb[0].mxu0
        %7700 = vmatprep.mubr.bf16.mxu0 %v6790
        %7701 = vmatmul.mubr.bf16.gmra.mrb[0].mxu0 %v6789
        %v7702 = vpop.f32.mrb[0].mxu0
        %v7703 = vadd.f32 %v7542, %v7702
        %v7704 = vpop.f32.mrb[0].mxu0
        %v7705 = vpop.f32.mrb[0].mxu0
        %v7706 = vadd.f32 %v7545, %v7705
        %v7707 = vpop.f32.mrb[0].mxu0
        %7708 = vmatprep.mubr.bf16.mxu0 %v6799
        %7709 = vmatmul.mubr.bf16.gmra.mrb[0].mxu0 %v6798
        %v7710 = vpop.f32.mrb[0].mxu0
        %v7711 = vadd.f32 %v7550, %v7710
        %v7712 = vpop.f32.mrb[0].mxu0
        %v7713 = vpop.f32.mrb[0].mxu0
        %v7714 = vadd.f32 %v7553, %v7713
        %v7715 = vpop.f32.mrb[0].mxu0
        %7716 = vmatprep.mubr.bf16.mxu0 %v6808
        %7717 = vmatmul.mubr.bf16.gmra.mrb[0].mxu0 %v6807
        %v7718 = vpop.f32.mrb[0].mxu0
        %v7719 = vadd.f32 %v7558, %v7718
        %v7720 = vpop.f32.mrb[0].mxu0
        %v7721 = vpop.f32.mrb[0].mxu0
        %v7722 = vadd.f32 %v7561, %v7721
        %v7723 = vpop.f32.mrb[0].mxu0
        %7724 = vmatprep.mubr.bf16.mxu0 %v6817
        %7725 = vmatmul.mubr.bf16.gmra.mrb[0].mxu0 %v6816
        %v7726 = vpop.f32.mrb[0].mxu0
        %v7727 = vadd.f32 %v7566, %v7726
        %v7728 = vpop.f32.mrb[0].mxu0
        %v7729 = vpop.f32.mrb[0].mxu0
        %v7730 = vadd.f32 %v7569, %v7729
        %v7731 = vpop.f32.mrb[0].mxu0
        %7732 = vmatprep.mubr.bf16.mxu0 %v6826
        %7733 = vmatmul.mubr.bf16.gmra.mrb[0].mxu0 %v6825
        %v7734 = vpop.f32.mrb[0].mxu0
        %v7735 = vadd.f32 %v7574, %v7734
        %v7736 = vpop.f32.mrb[0].mxu0
        %v7737 = vpop.f32.mrb[0].mxu0
        %v7738 = vadd.f32 %v7577, %v7737
        %v7739 = vpop.f32.mrb[0].mxu0
        %7740 = vmatprep.mubr.bf16.mxu0 %v6835
        %7741 = vmatmul.mubr.bf16.gmra.mrb[0].mxu0 %v6834
        %v7742 = vpop.f32.mrb[0].mxu0
        %v7743 = vadd.f32 %v7582, %v7742
        %v7744 = vpop.f32.mrb[0].mxu0
        %v7745 = vpop.f32.mrb[0].mxu0
        %v7746 = vadd.f32 %v7585, %v7745
        %v7747 = vpop.f32.mrb[0].mxu0
        %7748 = vmatprep.mubr.bf16.mxu0 %v6844
        %7749 = vmatmul.mubr.bf16.gmra.mrb[0].mxu0 %v6843
        %v7750 = vpop.f32.mrb[0].mxu0
        %v7751 = vadd.f32 %v7590, %v7750
        %v7752 = vpop.f32.mrb[0].mxu0
        %v7753 = vpop.f32.mrb[0].mxu0
        %v7754 = vadd.f32 %v7593, %v7753
        %v7755 = vpop.f32.mrb[0].mxu0
        %7756 = vmatprep.mubr.bf16.mxu0 %v6853
        %7757 = vmatmul.mubr.bf16.gmra.mrb[0].mxu0 %v6852
        %v7758 = vpop.f32.mrb[0].mxu0
        %v7759 = vadd.f32 %v7598, %v7758
        %v7760 = vpop.f32.mrb[0].mxu0
        %v7761 = vpop.f32.mrb[0].mxu0
        %v7762 = vadd.f32 %v7601, %v7761
        %v7763 = vpop.f32.mrb[0].mxu0
        %7764 = vmatprep.mubr.bf16.mxu0 %v6862
        %7765 = vmatmul.mubr.bf16.gmra.mrb[0].mxu0 %v6861
        %v7766 = vpop.f32.mrb[0].mxu0
        %v7767 = vadd.f32 %v7606, %v7766
        %v7768 = vpop.f32.mrb[0].mxu0
        %v7769 = vpop.f32.mrb[0].mxu0
        %v7770 = vadd.f32 %v7609, %v7769
        %v7771 = vpop.f32.mrb[0].mxu0
        %7772 = vdwg.mxu0
        %7773 = vmatprep.subr.bf16.mxu0 0
        %7774 = vmatpush1.bf16.msra.mxu0 %v7339
        %7775 = vmatprep.subr.bf16.mxu0 0
        %7776 = vmatpush1.bf16.msra.mxu0 %v7340
        %7777 = vmatprep.subr.bf16.mxu0 0
        %7778 = vmatpush1.bf16.msra.mxu0 %v7341
        %7779 = vmatprep.subr.bf16.mxu0 0
        %7780 = vmatpush1.bf16.msra.mxu0 %v7342
        %7781 = vmatprep.subr.bf16.mxu0 0
        %7782 = vmatpush1.bf16.msra.mxu0 %v7343
        %7783 = vmatprep.subr.bf16.mxu0 0
        %7784 = vmatpush1.bf16.msra.mxu0 %v7344
        %7785 = vmatprep.subr.bf16.mxu0 0
        %7786 = vmatpush1.bf16.msra.mxu0 %v7345
        %7787 = vmatprep.subr.bf16.mxu0 0
        %7788 = vmatpush1.bf16.msra.mxu0 %v7346
        %7789 = vmatprep.subr.bf16.mxu0 0
        %7790 = vmatpush1.bf16.msra.mxu0 %v7347
        %7791 = vmatprep.subr.bf16.mxu0 0
        %7792 = vmatpush1.bf16.msra.mxu0 %v7348
        %7793 = vmatprep.subr.bf16.mxu0 0
        %7794 = vmatpush1.bf16.msra.mxu0 %v7349
        %7795 = vmatprep.subr.bf16.mxu0 0
        %7796 = vmatpush1.bf16.msra.mxu0 %v7350
        %7797 = vmatprep.subr.bf16.mxu0 0
        %7798 = vmatpush1.bf16.msra.mxu0 %v7351
        %7799 = vmatprep.subr.bf16.mxu0 0
        %7800 = vmatpush1.bf16.msra.mxu0 %v7352
        %7801 = vmatprep.subr.bf16.mxu0 0
        %7802 = vmatpush1.bf16.msra.mxu0 %v7353
        %7803 = vmatprep.subr.bf16.mxu0 0
        %7804 = vmatpush1.bf16.msra.mxu0 %v7354
        %7805 = vmatprep.mubr.bf16.mxu0 %v6729
        %7806 = vmatmul.mubr.bf16.gmra.mrb[0].mxu0 %v6728
        %v7807 = vpop.f32.mrb[0].mxu0
        %v7808 = vadd.f32 %v7647, %v7807
        %v7809 = vpop.f32.mrb[0].mxu0
        %v7810 = vpop.f32.mrb[0].mxu0
        %v7811 = vadd.f32 %v7650, %v7810
        %v7812 = vpop.f32.mrb[0].mxu0
        %7813 = vmatprep.mubr.bf16.mxu0 %v6738
        %7814 = vmatmul.mubr.bf16.gmra.mrb[0].mxu0 %v6737
        %v7815 = vpop.f32.mrb[0].mxu0
        %v7816 = vadd.f32 %v7655, %v7815
        %v7817 = vpop.f32.mrb[0].mxu0
        %v7818 = vpop.f32.mrb[0].mxu0
        %v7819 = vadd.f32 %v7658, %v7818
        %v7820 = vpop.f32.mrb[0].mxu0
        %7821 = vmatprep.mubr.bf16.mxu0 %v6747
        %7822 = vmatmul.mubr.bf16.gmra.mrb[0].mxu0 %v6746
        %v7823 = vpop.f32.mrb[0].mxu0
        %v7824 = vadd.f32 %v7663, %v7823
        %v7825 = vpop.f32.mrb[0].mxu0
        %v7826 = vpop.f32.mrb[0].mxu0
        %v7827 = vadd.f32 %v7666, %v7826
        %v7828 = vpop.f32.mrb[0].mxu0
        %7829 = vmatprep.mubr.bf16.mxu0 %v6756
        %7830 = vmatmul.mubr.bf16.gmra.mrb[0].mxu0 %v6755
        %v7831 = vpop.f32.mrb[0].mxu0
        %v7832 = vadd.f32 %v7671, %v7831
        %v7833 = vpop.f32.mrb[0].mxu0
        %v7834 = vpop.f32.mrb[0].mxu0
        %v7835 = vadd.f32 %v7674, %v7834
        %v7836 = vpop.f32.mrb[0].mxu0
        %7837 = vmatprep.mubr.bf16.mxu0 %v6765
        %7838 = vmatmul.mubr.bf16.gmra.mrb[0].mxu0 %v6764
        %v7839 = vpop.f32.mrb[0].mxu0
        %v7840 = vadd.f32 %v7679, %v7839
        %v7841 = vpop.f32.mrb[0].mxu0
        %v7842 = vpop.f32.mrb[0].mxu0
        %v7843 = vadd.f32 %v7682, %v7842
        %v7844 = vpop.f32.mrb[0].mxu0
        %7845 = vmatprep.mubr.bf16.mxu0 %v6774
        %7846 = vmatmul.mubr.bf16.gmra.mrb[0].mxu0 %v6773
        %v7847 = vpop.f32.mrb[0].mxu0
        %v7848 = vadd.f32 %v7687, %v7847
        %v7849 = vpop.f32.mrb[0].mxu0
        %v7850 = vpop.f32.mrb[0].mxu0
        %v7851 = vadd.f32 %v7690, %v7850
        %v7852 = vpop.f32.mrb[0].mxu0
        %7853 = vmatprep.mubr.bf16.mxu0 %v6783
        %7854 = vmatmul.mubr.bf16.gmra.mrb[0].mxu0 %v6782
        %v7855 = vpop.f32.mrb[0].mxu0
        %v7856 = vadd.f32 %v7695, %v7855
        %v7857 = vpop.f32.mrb[0].mxu0
        %v7858 = vpop.f32.mrb[0].mxu0
        %v7859 = vadd.f32 %v7698, %v7858
        %v7860 = vpop.f32.mrb[0].mxu0
        %7861 = vmatprep.mubr.bf16.mxu0 %v6792
        %7862 = vmatmul.mubr.bf16.gmra.mrb[0].mxu0 %v6791
        %v7863 = vpop.f32.mrb[0].mxu0
        %v7864 = vadd.f32 %v7703, %v7863
        %v7865 = vpop.f32.mrb[0].mxu0
        %v7866 = vpop.f32.mrb[0].mxu0
        %v7867 = vadd.f32 %v7706, %v7866
        %v7868 = vpop.f32.mrb[0].mxu0
        %7869 = vmatprep.mubr.bf16.mxu0 %v6801
        %7870 = vmatmul.mubr.bf16.gmra.mrb[0].mxu0 %v6800
        %v7871 = vpop.f32.mrb[0].mxu0
        %v7872 = vadd.f32 %v7711, %v7871
        %v7873 = vpop.f32.mrb[0].mxu0
        %v7874 = vpop.f32.mrb[0].mxu0
        %v7875 = vadd.f32 %v7714, %v7874
        %v7876 = vpop.f32.mrb[0].mxu0
        %7877 = vmatprep.mubr.bf16.mxu0 %v6810
        %7878 = vmatmul.mubr.bf16.gmra.mrb[0].mxu0 %v6809
        %v7879 = vpop.f32.mrb[0].mxu0
        %v7880 = vadd.f32 %v7719, %v7879
        %v7881 = vpop.f32.mrb[0].mxu0
        %v7882 = vpop.f32.mrb[0].mxu0
        %v7883 = vadd.f32 %v7722, %v7882
        %v7884 = vpop.f32.mrb[0].mxu0
        %7885 = vmatprep.mubr.bf16.mxu0 %v6819
        %7886 = vmatmul.mubr.bf16.gmra.mrb[0].mxu0 %v6818
        %v7887 = vpop.f32.mrb[0].mxu0
        %v7888 = vadd.f32 %v7727, %v7887
        %v7889 = vpop.f32.mrb[0].mxu0
        %v7890 = vpop.f32.mrb[0].mxu0
        %v7891 = vadd.f32 %v7730, %v7890
        %v7892 = vpop.f32.mrb[0].mxu0
        %7893 = vmatprep.mubr.bf16.mxu0 %v6828
        %7894 = vmatmul.mubr.bf16.gmra.mrb[0].mxu0 %v6827
        %v7895 = vpop.f32.mrb[0].mxu0
        %v7896 = vadd.f32 %v7735, %v7895
        %v7897 = vpop.f32.mrb[0].mxu0
        %v7898 = vpop.f32.mrb[0].mxu0
        %v7899 = vadd.f32 %v7738, %v7898
        %v7900 = vpop.f32.mrb[0].mxu0
        %7901 = vmatprep.mubr.bf16.mxu0 %v6837
        %7902 = vmatmul.mubr.bf16.gmra.mrb[0].mxu0 %v6836
        %v7903 = vpop.f32.mrb[0].mxu0
        %v7904 = vadd.f32 %v7743, %v7903
        %v7905 = vpop.f32.mrb[0].mxu0
        %v7906 = vpop.f32.mrb[0].mxu0
        %v7907 = vadd.f32 %v7746, %v7906
        %v7908 = vpop.f32.mrb[0].mxu0
        %7909 = vmatprep.mubr.bf16.mxu0 %v6846
        %7910 = vmatmul.mubr.bf16.gmra.mrb[0].mxu0 %v6845
        %v7911 = vpop.f32.mrb[0].mxu0
        %v7912 = vadd.f32 %v7751, %v7911
        %v7913 = vpop.f32.mrb[0].mxu0
        %v7914 = vpop.f32.mrb[0].mxu0
        %v7915 = vadd.f32 %v7754, %v7914
        %v7916 = vpop.f32.mrb[0].mxu0
        %7917 = vmatprep.mubr.bf16.mxu0 %v6855
        %7918 = vmatmul.mubr.bf16.gmra.mrb[0].mxu0 %v6854
        %v7919 = vpop.f32.mrb[0].mxu0
        %v7920 = vadd.f32 %v7759, %v7919
        %v7921 = vpop.f32.mrb[0].mxu0
        %v7922 = vpop.f32.mrb[0].mxu0
        %v7923 = vadd.f32 %v7762, %v7922
        %v7924 = vpop.f32.mrb[0].mxu0
        %7925 = vmatprep.mubr.bf16.mxu0 %v6864
        %7926 = vmatmul.mubr.bf16.gmra.mrb[0].mxu0 %v6863
        %v7927 = vpop.f32.mrb[0].mxu0
        %v7928 = vadd.f32 %v7767, %v7927
        %v7929 = vpop.f32.mrb[0].mxu0
        %v7930 = vpop.f32.mrb[0].mxu0
        %v7931 = vadd.f32 %v7770, %v7930
        %v7932 = vpop.f32.mrb[0].mxu0
        %7933 = vdwg.mxu0
        %7934 = vmatprep.subr.bf16.mxu0 0
        %7935 = vmatpush1.bf16.msra.mxu0 %v7355
        %7936 = vmatprep.subr.bf16.mxu0 0
        %7937 = vmatpush1.bf16.msra.mxu0 %v7356
        %7938 = vmatprep.subr.bf16.mxu0 0
        %7939 = vmatpush1.bf16.msra.mxu0 %v7357
        %7940 = vmatprep.subr.bf16.mxu0 0
        %7941 = vmatpush1.bf16.msra.mxu0 %v7358
        %7942 = vmatprep.subr.bf16.mxu0 0
        %7943 = vmatpush1.bf16.msra.mxu0 %v7359
        %7944 = vmatprep.subr.bf16.mxu0 0
        %7945 = vmatpush1.bf16.msra.mxu0 %v7360
        %7946 = vmatprep.subr.bf16.mxu0 0
        %7947 = vmatpush1.bf16.msra.mxu0 %v7361
        %7948 = vmatprep.subr.bf16.mxu0 0
        %7949 = vmatpush1.bf16.msra.mxu0 %v7362
        %7950 = vmatprep.subr.bf16.mxu0 0
        %7951 = vmatpush1.bf16.msra.mxu0 %v7363
        %7952 = vmatprep.subr.bf16.mxu0 0
        %7953 = vmatpush1.bf16.msra.mxu0 %v7364
        %7954 = vmatprep.subr.bf16.mxu0 0
        %7955 = vmatpush1.bf16.msra.mxu0 %v7365
        %7956 = vmatprep.subr.bf16.mxu0 0
        %7957 = vmatpush1.bf16.msra.mxu0 %v7366
        %7958 = vmatprep.subr.bf16.mxu0 0
        %7959 = vmatpush1.bf16.msra.mxu0 %v7367
        %7960 = vmatprep.subr.bf16.mxu0 0
        %7961 = vmatpush1.bf16.msra.mxu0 %v7368
        %7962 = vmatprep.subr.bf16.mxu0 0
        %7963 = vmatpush1.bf16.msra.mxu0 %v7369
        %7964 = vmatprep.subr.bf16.mxu0 0
        %7965 = vmatpush1.bf16.msra.mxu0 %v7370
        %7966 = vmatprep.mubr.bf16.mxu0 %v6731
        %7967 = vmatmul.mubr.bf16.gmra.mrb[0].mxu0 %v6730
        %v7968 = vpop.f32.mrb[0].mxu0
        %v7969 = vadd.f32 %v7808, %v7968
        %v7970 = vpop.f32.mrb[0].mxu0
        %v7971 = vpop.f32.mrb[0].mxu0
        %v7972 = vadd.f32 %v7811, %v7971
        %v7973 = vpop.f32.mrb[0].mxu0
        %7974 = vmatprep.mubr.bf16.mxu0 %v6740
        %7975 = vmatmul.mubr.bf16.gmra.mrb[0].mxu0 %v6739
        %v7976 = vpop.f32.mrb[0].mxu0
        %v7977 = vadd.f32 %v7816, %v7976
        %v7978 = vpop.f32.mrb[0].mxu0
        %v7979 = vpop.f32.mrb[0].mxu0
        %v7980 = vadd.f32 %v7819, %v7979
        %v7981 = vpop.f32.mrb[0].mxu0
        %7982 = vmatprep.mubr.bf16.mxu0 %v6749
        %7983 = vmatmul.mubr.bf16.gmra.mrb[0].mxu0 %v6748
        %v7984 = vpop.f32.mrb[0].mxu0
        %v7985 = vadd.f32 %v7824, %v7984
        %v7986 = vpop.f32.mrb[0].mxu0
        %v7987 = vpop.f32.mrb[0].mxu0
        %v7988 = vadd.f32 %v7827, %v7987
        %v7989 = vpop.f32.mrb[0].mxu0
        %7990 = vmatprep.mubr.bf16.mxu0 %v6758
        %7991 = vmatmul.mubr.bf16.gmra.mrb[0].mxu0 %v6757
        %v7992 = vpop.f32.mrb[0].mxu0
        %v7993 = vadd.f32 %v7832, %v7992
        %v7994 = vpop.f32.mrb[0].mxu0
        %v7995 = vpop.f32.mrb[0].mxu0
        %v7996 = vadd.f32 %v7835, %v7995
        %v7997 = vpop.f32.mrb[0].mxu0
        %7998 = vmatprep.mubr.bf16.mxu0 %v6767
        %7999 = vmatmul.mubr.bf16.gmra.mrb[0].mxu0 %v6766
        %v8000 = vpop.f32.mrb[0].mxu0
        %v8001 = vadd.f32 %v7840, %v8000
        %v8002 = vpop.f32.mrb[0].mxu0
        %v8003 = vpop.f32.mrb[0].mxu0
        %v8004 = vadd.f32 %v7843, %v8003
        %v8005 = vpop.f32.mrb[0].mxu0
        %8006 = vmatprep.mubr.bf16.mxu0 %v6776
        %8007 = vmatmul.mubr.bf16.gmra.mrb[0].mxu0 %v6775
        %v8008 = vpop.f32.mrb[0].mxu0
        %v8009 = vadd.f32 %v7848, %v8008
        %v8010 = vpop.f32.mrb[0].mxu0
        %v8011 = vpop.f32.mrb[0].mxu0
        %v8012 = vadd.f32 %v7851, %v8011
        %v8013 = vpop.f32.mrb[0].mxu0
        %8014 = vmatprep.mubr.bf16.mxu0 %v6785
        %8015 = vmatmul.mubr.bf16.gmra.mrb[0].mxu0 %v6784
        %v8016 = vpop.f32.mrb[0].mxu0
        %v8017 = vadd.f32 %v7856, %v8016
        %v8018 = vpop.f32.mrb[0].mxu0
        %v8019 = vpop.f32.mrb[0].mxu0
        %v8020 = vadd.f32 %v7859, %v8019
        %v8021 = vpop.f32.mrb[0].mxu0
        %8022 = vmatprep.mubr.bf16.mxu0 %v6794
        %8023 = vmatmul.mubr.bf16.gmra.mrb[0].mxu0 %v6793
        %v8024 = vpop.f32.mrb[0].mxu0
        %v8025 = vadd.f32 %v7864, %v8024
        %v8026 = vpop.f32.mrb[0].mxu0
        %v8027 = vpop.f32.mrb[0].mxu0
        %v8028 = vadd.f32 %v7867, %v8027
        %v8029 = vpop.f32.mrb[0].mxu0
        %8030 = vmatprep.mubr.bf16.mxu0 %v6803
        %8031 = vmatmul.mubr.bf16.gmra.mrb[0].mxu0 %v6802
        %v8032 = vpop.f32.mrb[0].mxu0
        %v8033 = vadd.f32 %v7872, %v8032
        %v8034 = vpop.f32.mrb[0].mxu0
        %v8035 = vpop.f32.mrb[0].mxu0
        %v8036 = vadd.f32 %v7875, %v8035
        %v8037 = vpop.f32.mrb[0].mxu0
        %8038 = vmatprep.mubr.bf16.mxu0 %v6812
        %8039 = vmatmul.mubr.bf16.gmra.mrb[0].mxu0 %v6811
        %v8040 = vpop.f32.mrb[0].mxu0
        %v8041 = vadd.f32 %v7880, %v8040
        %v8042 = vpop.f32.mrb[0].mxu0
        %v8043 = vpop.f32.mrb[0].mxu0
        %v8044 = vadd.f32 %v7883, %v8043
        %v8045 = vpop.f32.mrb[0].mxu0
        %8046 = vmatprep.mubr.bf16.mxu0 %v6821
        %8047 = vmatmul.mubr.bf16.gmra.mrb[0].mxu0 %v6820
        %v8048 = vpop.f32.mrb[0].mxu0
        %v8049 = vadd.f32 %v7888, %v8048
        %v8050 = vpop.f32.mrb[0].mxu0
        %v8051 = vpop.f32.mrb[0].mxu0
        %v8052 = vadd.f32 %v7891, %v8051
        %v8053 = vpop.f32.mrb[0].mxu0
        %8054 = vmatprep.mubr.bf16.mxu0 %v6830
        %8055 = vmatmul.mubr.bf16.gmra.mrb[0].mxu0 %v6829
        %v8056 = vpop.f32.mrb[0].mxu0
        %v8057 = vadd.f32 %v7896, %v8056
        %v8058 = vpop.f32.mrb[0].mxu0
        %v8059 = vpop.f32.mrb[0].mxu0
        %v8060 = vadd.f32 %v7899, %v8059
        %v8061 = vpop.f32.mrb[0].mxu0
        %8062 = vmatprep.mubr.bf16.mxu0 %v6839
        %8063 = vmatmul.mubr.bf16.gmra.mrb[0].mxu0 %v6838
        %v8064 = vpop.f32.mrb[0].mxu0
        %v8065 = vadd.f32 %v7904, %v8064
        %v8066 = vpop.f32.mrb[0].mxu0
        %v8067 = vpop.f32.mrb[0].mxu0
        %v8068 = vadd.f32 %v7907, %v8067
        %v8069 = vpop.f32.mrb[0].mxu0
        %8070 = vmatprep.mubr.bf16.mxu0 %v6848
        %8071 = vmatmul.mubr.bf16.gmra.mrb[0].mxu0 %v6847
        %v8072 = vpop.f32.mrb[0].mxu0
        %v8073 = vadd.f32 %v7912, %v8072
        %v8074 = vpop.f32.mrb[0].mxu0
        %v8075 = vpop.f32.mrb[0].mxu0
        %v8076 = vadd.f32 %v7915, %v8075
        %v8077 = vpop.f32.mrb[0].mxu0
        %8078 = vmatprep.mubr.bf16.mxu0 %v6857
        %8079 = vmatmul.mubr.bf16.gmra.mrb[0].mxu0 %v6856
        %v8080 = vpop.f32.mrb[0].mxu0
        %v8081 = vadd.f32 %v7920, %v8080
        %v8082 = vpop.f32.mrb[0].mxu0
        %v8083 = vpop.f32.mrb[0].mxu0
        %v8084 = vadd.f32 %v7923, %v8083
        %v8085 = vpop.f32.mrb[0].mxu0
        %8086 = vmatprep.mubr.bf16.mxu0 %v6866
        %8087 = vmatmul.mubr.bf16.gmra.mrb[0].mxu0 %v6865
        %v8088 = vpop.f32.mrb[0].mxu0
        %v8089 = vadd.f32 %v7928, %v8088
        %v8090 = vpop.f32.mrb[0].mxu0
        %v8091 = vpop.f32.mrb[0].mxu0
        %v8092 = vadd.f32 %v7931, %v8091
        %v8093 = vpop.f32.mrb[0].mxu0
        %8094 = vdwg.mxu0
        %8095 = vmatprep.subr.bf16.mxu0 0
        %8096 = vmatpush1.bf16.msra.mxu0 %v7371
        %8097 = vmatprep.subr.bf16.mxu0 0
        %8098 = vmatpush1.bf16.msra.mxu0 %v7372
        %8099 = vmatprep.subr.bf16.mxu0 0
        %8100 = vmatpush1.bf16.msra.mxu0 %v7373
        %8101 = vmatprep.subr.bf16.mxu0 0
        %8102 = vmatpush1.bf16.msra.mxu0 %v7374
        %8103 = vmatprep.subr.bf16.mxu0 0
        %8104 = vmatpush1.bf16.msra.mxu0 %v7375
        %8105 = vmatprep.subr.bf16.mxu0 0
        %8106 = vmatpush1.bf16.msra.mxu0 %v7376
        %8107 = vmatprep.subr.bf16.mxu0 0
        %8108 = vmatpush1.bf16.msra.mxu0 %v7377
        %8109 = vmatprep.subr.bf16.mxu0 0
        %8110 = vmatpush1.bf16.msra.mxu0 %v7378
        %8111 = vmatprep.subr.bf16.mxu0 0
        %8112 = vmatpush1.bf16.msra.mxu0 0
        %8113 = vmatprep.subr.bf16.mxu0 0
        %8114 = vmatpush1.bf16.msra.mxu0 0
        %8115 = vmatprep.subr.bf16.mxu0 0
        %8116 = vmatpush1.bf16.msra.mxu0 0
        %8117 = vmatprep.subr.bf16.mxu0 0
        %8118 = vmatpush1.bf16.msra.mxu0 0
        %8119 = vmatprep.subr.bf16.mxu0 0
        %8120 = vmatpush1.bf16.msra.mxu0 0
        %8121 = vmatprep.subr.bf16.mxu0 0
        %8122 = vmatpush1.bf16.msra.mxu0 0
        %8123 = vmatprep.subr.bf16.mxu0 0
        %8124 = vmatpush1.bf16.msra.mxu0 0
        %8125 = vmatprep.subr.bf16.mxu0 0
        %8126 = vmatpush1.bf16.msra.mxu0 0
        %8127 = vmatprep.mubr.bf16.mxu0 0
        %8128 = vmatmul.mubr.bf16.gmra.mrb[0].mxu0 %v6732
        %v8129 = vpop.f32.mrb[0].mxu0
        %v8130 = vadd.f32 %v7969, %v8129
        %v8131 = vpop.f32.mrb[0].mxu0
        %v8132 = vpop.f32.mrb[0].mxu0
        %v8133 = vadd.f32 %v7972, %v8132
        %v8134 = vpop.f32.mrb[0].mxu0
        %8135 = vmatprep.mubr.bf16.mxu0 0
        %8136 = vmatmul.mubr.bf16.gmra.mrb[0].mxu0 %v6741
        %v8137 = vpop.f32.mrb[0].mxu0
        %v8138 = vadd.f32 %v7977, %v8137
        %v8139 = vpop.f32.mrb[0].mxu0
        %v8140 = vpop.f32.mrb[0].mxu0
        %v8141 = vadd.f32 %v7980, %v8140
        %v8142 = vpop.f32.mrb[0].mxu0
        %8143 = vmatprep.mubr.bf16.mxu0 0
        %8144 = vmatmul.mubr.bf16.gmra.mrb[0].mxu0 %v6750
        %v8145 = vpop.f32.mrb[0].mxu0
        %v8146 = vadd.f32 %v7985, %v8145
        %v8147 = vpop.f32.mrb[0].mxu0
        %v8148 = vpop.f32.mrb[0].mxu0
        %v8149 = vadd.f32 %v7988, %v8148
        %v8150 = vpop.f32.mrb[0].mxu0
        %8151 = vmatprep.mubr.bf16.mxu0 0
        %8152 = vmatmul.mubr.bf16.gmra.mrb[0].mxu0 %v6759
        %v8153 = vpop.f32.mrb[0].mxu0
        %v8154 = vadd.f32 %v7993, %v8153
        %v8155 = vpop.f32.mrb[0].mxu0
        %v8156 = vpop.f32.mrb[0].mxu0
        %v8157 = vadd.f32 %v7996, %v8156
        %v8158 = vpop.f32.mrb[0].mxu0
        %8159 = vmatprep.mubr.bf16.mxu0 0
        %8160 = vmatmul.mubr.bf16.gmra.mrb[0].mxu0 %v6768
        %v8161 = vpop.f32.mrb[0].mxu0
        %v8162 = vadd.f32 %v8001, %v8161
        %v8163 = vpop.f32.mrb[0].mxu0
        %v8164 = vpop.f32.mrb[0].mxu0
        %v8165 = vadd.f32 %v8004, %v8164
        %v8166 = vpop.f32.mrb[0].mxu0
        %8167 = vmatprep.mubr.bf16.mxu0 0
        %8168 = vmatmul.mubr.bf16.gmra.mrb[0].mxu0 %v6777
        %v8169 = vpop.f32.mrb[0].mxu0
        %v8170 = vadd.f32 %v8009, %v8169
        %v8171 = vpop.f32.mrb[0].mxu0
        %v8172 = vpop.f32.mrb[0].mxu0
        %v8173 = vadd.f32 %v8012, %v8172
        %v8174 = vpop.f32.mrb[0].mxu0
        %8175 = vmatprep.mubr.bf16.mxu0 0
        %8176 = vmatmul.mubr.bf16.gmra.mrb[0].mxu0 %v6786
        %v8177 = vpop.f32.mrb[0].mxu0
        %v8178 = vadd.f32 %v8017, %v8177
        %v8179 = vpop.f32.mrb[0].mxu0
        %v8180 = vpop.f32.mrb[0].mxu0
        %v8181 = vadd.f32 %v8020, %v8180
        %v8182 = vpop.f32.mrb[0].mxu0
        %8183 = vmatprep.mubr.bf16.mxu0 0
        %8184 = vmatmul.mubr.bf16.gmra.mrb[0].mxu0 %v6795
        %v8185 = vpop.f32.mrb[0].mxu0
        %v8186 = vadd.f32 %v8025, %v8185
        %v8187 = vpop.f32.mrb[0].mxu0
        %v8188 = vpop.f32.mrb[0].mxu0
        %v8189 = vadd.f32 %v8028, %v8188
        %v8190 = vpop.f32.mrb[0].mxu0
        %8191 = vmatprep.mubr.bf16.mxu0 0
        %8192 = vmatmul.mubr.bf16.gmra.mrb[0].mxu0 %v6804
        %v8193 = vpop.f32.mrb[0].mxu0
        %v8194 = vadd.f32 %v8033, %v8193
        %v8195 = vpop.f32.mrb[0].mxu0
        %v8196 = vpop.f32.mrb[0].mxu0
        %v8197 = vadd.f32 %v8036, %v8196
        %v8198 = vpop.f32.mrb[0].mxu0
        %8199 = vmatprep.mubr.bf16.mxu0 0
        %8200 = vmatmul.mubr.bf16.gmra.mrb[0].mxu0 %v6813
        %v8201 = vpop.f32.mrb[0].mxu0
        %v8202 = vadd.f32 %v8041, %v8201
        %v8203 = vpop.f32.mrb[0].mxu0
        %v8204 = vpop.f32.mrb[0].mxu0
        %v8205 = vadd.f32 %v8044, %v8204
        %v8206 = vpop.f32.mrb[0].mxu0
        %8207 = vmatprep.mubr.bf16.mxu0 0
        %8208 = vmatmul.mubr.bf16.gmra.mrb[0].mxu0 %v6822
        %v8209 = vpop.f32.mrb[0].mxu0
        %v8210 = vadd.f32 %v8049, %v8209
        %v8211 = vpop.f32.mrb[0].mxu0
        %v8212 = vpop.f32.mrb[0].mxu0
        %v8213 = vadd.f32 %v8052, %v8212
        %v8214 = vpop.f32.mrb[0].mxu0
        %8215 = vmatprep.mubr.bf16.mxu0 0
        %8216 = vmatmul.mubr.bf16.gmra.mrb[0].mxu0 %v6831
        %v8217 = vpop.f32.mrb[0].mxu0
        %v8218 = vadd.f32 %v8057, %v8217
        %v8219 = vpop.f32.mrb[0].mxu0
        %v8220 = vpop.f32.mrb[0].mxu0
        %v8221 = vadd.f32 %v8060, %v8220
        %v8222 = vpop.f32.mrb[0].mxu0
        %8223 = vmatprep.mubr.bf16.mxu0 0
        %8224 = vmatmul.mubr.bf16.gmra.mrb[0].mxu0 %v6840
        %v8225 = vpop.f32.mrb[0].mxu0
        %v8226 = vadd.f32 %v8065, %v8225
        %v8227 = vpop.f32.mrb[0].mxu0
        %v8228 = vpop.f32.mrb[0].mxu0
        %v8229 = vadd.f32 %v8068, %v8228
        %v8230 = vpop.f32.mrb[0].mxu0
        %8231 = vmatprep.mubr.bf16.mxu0 0
        %8232 = vmatmul.mubr.bf16.gmra.mrb[0].mxu0 %v6849
        %v8233 = vpop.f32.mrb[0].mxu0
        %v8234 = vadd.f32 %v8073, %v8233
        %v8235 = vpop.f32.mrb[0].mxu0
        %v8236 = vpop.f32.mrb[0].mxu0
        %v8237 = vadd.f32 %v8076, %v8236
        %v8238 = vpop.f32.mrb[0].mxu0
        %8239 = vmatprep.mubr.bf16.mxu0 0
        %8240 = vmatmul.mubr.bf16.gmra.mrb[0].mxu0 %v6858
        %v8241 = vpop.f32.mrb[0].mxu0
        %v8242 = vadd.f32 %v8081, %v8241
        %v8243 = vpop.f32.mrb[0].mxu0
        %v8244 = vpop.f32.mrb[0].mxu0
        %v8245 = vadd.f32 %v8084, %v8244
        %v8246 = vpop.f32.mrb[0].mxu0
        %8247 = vmatprep.mubr.bf16.mxu0 0
        %8248 = vmatmul.mubr.bf16.gmra.mrb[0].mxu0 %v6867
        %v8249 = vpop.f32.mrb[0].mxu0
        %v8250 = vadd.f32 %v8089, %v8249
        %v8251 = vpop.f32.mrb[0].mxu0
        %v8252 = vpop.f32.mrb[0].mxu0
        %v8253 = vadd.f32 %v8092, %v8252
        %v8254 = vpop.f32.mrb[0].mxu0
        %8255 = vdwg.mxu0
        %v8256 = vmax.f32 %v8130, 0.0
        %v8257 = vmax.f32 %v8133, 0.0
        %v8258 = vmax.f32 %v8138, 0.0
        %v8259 = vmax.f32 %v8141, 0.0
        %v8260 = vmax.f32 %v8146, 0.0
        %v8261 = vmax.f32 %v8149, 0.0
        %v8262 = vmax.f32 %v8154, 0.0
        %v8263 = vmax.f32 %v8157, 0.0
        %v8264 = vmax.f32 %v8162, 0.0
        %v8265 = vmax.f32 %v8165, 0.0
        %v8266 = vmax.f32 %v8170, 0.0
        %v8267 = vmax.f32 %v8173, 0.0
        %v8268 = vmax.f32 %v8178, 0.0
        %v8269 = vmax.f32 %v8181, 0.0
        %v8270 = vmax.f32 %v8186, 0.0
        %v8271 = vmax.f32 %v8189, 0.0
        %v8272 = vmax.f32 %v8194, 0.0
        %v8273 = vmax.f32 %v8197, 0.0
        %v8274 = vmax.f32 %v8202, 0.0
        %v8275 = vmax.f32 %v8205, 0.0
        %v8276 = vmax.f32 %v8210, 0.0
        %v8277 = vmax.f32 %v8213, 0.0
        %v8278 = vmax.f32 %v8218, 0.0
        %v8279 = vmax.f32 %v8221, 0.0
        %v8280 = vmax.f32 %v8226, 0.0
        %v8281 = vmax.f32 %v8229, 0.0
        %v8282 = vmax.f32 %v8234, 0.0
        %v8283 = vmax.f32 %v8237, 0.0
        %v8284 = vmax.f32 %v8242, 0.0
        %v8285 = vmax.f32 %v8245, 0.0
        %v8286 = vmax.f32 %v8250, 0.0
        %v8287 = vmax.f32 %v8253, 0.0
        %8288 = vst [vmem:[%s259] sm:$0xff] %v8256
        %8289 = vst [vmem:[%s259 + $0x8] sm:$0xff] %v8257
        %8290 = vst [vmem:[%s259 + $0x10] sm:$0xff] %v8258
        %8291 = vst [vmem:[%s259 + $0x18] sm:$0xff] %v8259
        %8292 = vst [vmem:[%s259 + $0x20] sm:$0xff] %v8260
        %8293 = vst [vmem:[%s259 + $0x28] sm:$0xff] %v8261
        %8294 = vst [vmem:[%s259 + $0x30] sm:$0xff] %v8262
        %8295 = vst [vmem:[%s259 + $0x38] sm:$0xff] %v8263
        %8296 = vst [vmem:[%s259 + $0x40] sm:$0xff] %v8264
        %8297 = vst [vmem:[%s259 + $0x48] sm:$0xff] %v8265
        %8298 = vst [vmem:[%s259 + $0x50] sm:$0xff] %v8266
        %8299 = vst [vmem:[%s259 + $0x58] sm:$0xff] %v8267
        %8300 = vst [vmem:[%s259 + $0x60] sm:$0xff] %v8268
        %8301 = vst [vmem:[%s259 + $0x68] sm:$0xff] %v8269
        %8302 = vst [vmem:[%s259 + $0x70] sm:$0xff] %v8270
        %8303 = vst [vmem:[%s259 + $0x78] sm:$0xff] %v8271
        %8304 = vst [vmem:[%s259 + $0x80] sm:$0xff] %v8272
        %8305 = vst [vmem:[%s259 + $0x88] sm:$0xff] %v8273
        %8306 = vst [vmem:[%s259 + $0x90] sm:$0xff] %v8274
        %8307 = vst [vmem:[%s259 + $0x98] sm:$0xff] %v8275
        %8308 = vst [vmem:[%s259 + $0xa0] sm:$0xff] %v8276
        %8309 = vst [vmem:[%s259 + $0xa8] sm:$0xff] %v8277
        %8310 = vst [vmem:[%s259 + $0xb0] sm:$0xff] %v8278
        %8311 = vst [vmem:[%s259 + $0xb8] sm:$0xff] %v8279
        %8312 = vst [vmem:[%s259 + $0xc0] sm:$0xff] %v8280
        %8313 = vst [vmem:[%s259 + $0xc8] sm:$0xff] %v8281
        %8314 = vst [vmem:[%s259 + $0xd0] sm:$0xff] %v8282
        %8315 = vst [vmem:[%s259 + $0xd8] sm:$0xff] %v8283
        %8316 = vst [vmem:[%s259 + $0xe0] sm:$0xff] %v8284
        %8317 = vst [vmem:[%s259 + $0xe8] sm:$0xff] %v8285
        %8318 = vst [vmem:[%s259 + $0xf0] sm:$0xff] %v8286
        %8319 = vst [vmem:[%s259 + $0xf8] sm:$0xff] %v8287
        %s8320 = sand.u32 %s164, 1
        %s8321 = scalar_lea.sflag [#allocation7], %s8320
        %s8322 = sand.u32 %s164, 1
        %s8323 = smul.addr %s8322, 256
        %s8324 = scalar_lea.vmem [#allocation6], %s8323
        // Predicated region
        $region45: #{up_forward.1} parent=43 // pred_check
          %p8325 = pneg %p174
        $region46: #{up_forward.1} parent=43 // pred_check_branch
          %8327 = sbr.rel (%p8325) target = $region48
        $region47: #{up_forward.1} parent=43 // pred_region
          %s8329 = ssub.s32 4096, 4096
          %8330 = vsyncadd %s8321, %s8329
          %s8331 = smul.addr %s20, 32
          %s8332 = smul.addr %s8331, 128
          %s8333 = scalar_lea.hbm %s6, %s8332
          %s8334 = sshll.u32 %s8324, 4
          %s8335 = int_to_ptr.vmem [resolvable:$true] %s8334
          %8340 = dma.vmem_to_hbm [thread:$0]  %s8335, 4096, %s8333, %s8321, 128, 128, 8
        $region48: #{up_forward.1} parent=43 // pred_fallthru
          _
      $region44: #{up_forward.1} parent=5 // pred_fallthru
        _
      %p8341 = scmp.le.s32.totalorder 2, %s15
      // Predicated region
      $region49: #{up_forward.1} parent=5 // pred_check
        %p8342 = pneg %p8341
      $region50: #{up_forward.1} parent=5 // pred_check_branch
        %8344 = sbr.rel (%p8342) target = $region52
      $region51: #{up_forward.1} parent=5 // pred_region
        %s8345 = ssub.s32 %s15, 2
        // Predicated region
        $region53: #{up_forward.1} parent=51 // pred_check
          %p8346 = pneg %p180
        $region54: #{up_forward.1} parent=51 // pred_check_branch
          %8348 = sbr.rel (%p8346) target = $region56
        $region55: #{up_forward.1} parent=51 // pred_region
          %s8349 = sand.u32 %s165, 1
          %s8350 = scalar_lea.sflag [#allocation7], %s8349
          %s8351 = sand.u32 %s165, 1
          %s8352 = smul.addr %s8351, 256
          %s8353 = scalar_lea.vmem [#allocation6], %s8352
          %8354 = dma.done %s8350, 4096
        $region56: #{up_forward.1} parent=51 // pred_fallthru
          _
      $region52: #{up_forward.1} parent=5 // pred_fallthru
        _
    $region6: #{up_forward.1} parent=1 // loop_footer
      %s19 = sadd.s32 1, %s15
    $region7: #{up_forward.1} parent=1 // loop_footer_branch
      %14 = sbr.rel target = $region3
    $region8: #{up_forward.1} parent=1 // loop_exit
      _
    %8355 = vsyncpa [#allocation7], 1
    %s8356 = scalar_lea.sflag [#allocation7], 1
    %8357 = vsyncpa %s8356, 1

</llo_original>
